<compile_context>
chip_gen: v7x
topology: tpu7x:2x2x1
jax: 0.10.0
libtpu: 0.0.40
codegen_flags: <defaults>
</compile_context>

<pallas_src>
import functools
import math

import jax
import jax.numpy as jnp
from jax import lax
from jax.experimental import pallas as pl
from jax.experimental.pallas import tpu as pltpu

BN_EPS = 1e-5


def _round_up8(n):
    return ((n + 7) // 8) * 8


def _pool_select_matrix(H, W):
    """(H*W, Ho*Wo) 0/1 matrix selecting flat index (2*ho)*W + 2*wo for output (ho, wo)."""
    Ho, Wo = H // 2, W // 2
    q = jnp.arange(Ho * Wo, dtype=jnp.int32)
    src = (2 * (q // Wo)) * W + 2 * (q % Wo)
    p = jnp.arange(H * W, dtype=jnp.int32)
    return (p[:, None] == src[None, :]).astype(jnp.float32)


def _const_spec(arr):
    """Full-array block with a constant index map (DMA'd once for the whole grid)."""
    nd = arr.ndim
    return pl.BlockSpec(arr.shape, lambda n, _nd=nd: (0,) * _nd)


# ----------------------------------------------------------------------------
# Single fused kernel: [3x3 conv + folded BN + ReLU + 2x2 pools] * stages + FC head
# ----------------------------------------------------------------------------
def _fused_convnet_kernel(*refs, conv_meta, c_last, relu_flags):
    x_ref, o_ref = refs[0], refs[-1]
    r = 1
    y = x_ref[0]                                          # (Cin_pad, H*W), lane-dense

    # -------- conv stages (all activations stay in VMEM/vregs) --------
    for (H, W, n_pools) in conv_meta:
        w_ref, b_ref = refs[r], refs[r + 1]               # w: (9, Cout_pad, Cin_pad)
        sel_refs = refs[r + 2:r + 2 + n_pools]
        r += 2 + n_pools

        HW = H * W
        pidx = lax.broadcasted_iota(jnp.int32, (1, HW), 1)
        col = jnp.bitwise_and(pidx, W - 1)                # W is a power of two

        # im2col via lane rolls + border masks, one small MXU matmul per tap
        acc = None
        t = 0
        for dy in (-1, 0, 1):
            for dx in (-1, 0, 1):
                shift = (-(dy * W + dx)) % HW
                xt = pltpu.roll(y, shift=shift, axis=1) if shift else y
                conds = []
                if dy == -1:
                    conds.append(pidx >= W)
                elif dy == 1:
                    conds.append(pidx < (H - 1) * W)
                if dx == -1:
                    conds.append(col >= 1)
                elif dx == 1:
                    conds.append(col <= W - 2)
                if conds:
                    m = conds[0]
                    for cnd in conds[1:]:
                        m = jnp.logical_and(m, cnd)
                    xt = jnp.where(m, xt, 0.0)
                part = jnp.dot(w_ref[t], xt, preferred_element_type=jnp.float32)
                acc = part if acc is None else acc + part
                t += 1
        y = jnp.maximum(acc + b_ref[...], 0.0)            # folded eval-BN bias + ReLU

        # fused 2x2 / stride-2 max pools: two lane-roll maxes + selection matmul
        cur_w, cur_hw = W, HW
        for i in range(n_pools):
            zh = jnp.maximum(y, pltpu.roll(y, shift=cur_hw - 1, axis=1))
            zv = jnp.maximum(zh, pltpu.roll(zh, shift=cur_hw - cur_w, axis=1))
            y = jnp.dot(zv, sel_refs[i][...], preferred_element_type=jnp.float32)
            cur_w //= 2
            cur_hw //= 4

    # -------- FC head (in the same kernel) --------
    # First FC: contract (channel, spatial) directly against the (C_pad, HW_last)
    # activation; weights were pre-reshaped to (C_pad, HW_last, F) so the feature
    # order equals PyTorch's NCHW view(N, -1) without any in-kernel flatten.
    w_ref, b_ref = refs[r], refs[r + 1]
    r += 2
    h = b_ref[...]                                        # (1, F1)
    for c in range(c_last):                               # padded channels are all-zero
        h = h + jnp.dot(y[c:c + 1, :], w_ref[c], preferred_element_type=jnp.float32)
    if relu_flags[0]:
        h = jnp.maximum(h, 0.0)

    for i in range(1, len(relu_flags)):
        w_ref, b_ref = refs[r], refs[r + 1]
        r += 2
        h = jnp.dot(h, w_ref[...], preferred_element_type=jnp.float32) + b_ref[...]
        if relu_flags[i]:
            h = jnp.maximum(h, 0.0)

    o_ref[0] = h.astype(o_ref.dtype)


# ----------------------------------------------------------------------------
# Parameter construction mirroring ConvNetMaker.__init__ (deterministic init),
# with ALL per-forward preprocessing hoisted here.
# ----------------------------------------------------------------------------
def build_convnet_params(layers, key):
    h, w, d = 32, 32, 3
    prev_c = 3
    prev_size = h * w * d
    conv_stages = []
    fc_stack = []
    num_fc_remaining = sum(1 for l in layers if l.startswith("FC"))

    for layer in layers:
        if layer.startswith("Conv"):
            if fc_stack:
                raise NotImplementedError("Conv after FC layers is not supported")
            c = int(layer[4:])
            c_pad = _round_up8(c)
            cin, cin_pad = prev_c, _round_up8(prev_c)
            key, k1, k2, k3, k4, k5, k6 = jax.random.split(key, 7)
            bound = 1.0 / math.sqrt(cin * 9)
            w_conv = jax.random.uniform(k1, (c, cin, 3, 3), jnp.float32, -bound, bound)
            b_conv = jax.random.uniform(k2, (c,), jnp.float32, -bound, bound)
            gamma = jax.random.uniform(k3, (c,), jnp.float32, 0.5, 1.5)
            beta = jax.random.uniform(k4, (c,), jnp.float32, -0.5, 0.5)
            mean = jax.random.uniform(k5, (c,), jnp.float32, -0.5, 0.5)
            var = jax.random.uniform(k6, (c,), jnp.float32, 0.5, 1.5)
            # TODO(synk): training-mode BatchNorm (batch statistics) not implemented.
            scale = gamma / jnp.sqrt(var + BN_EPS)        # eval-mode BN fold
            bias = beta + (b_conv - mean) * scale
            # Per-tap (9, Cout, Cin) weights with BN scale folded into rows, padded
            # so channel counts are sublane(8)-aligned — all hoisted to build time.
            w_taps = jnp.transpose(w_conv, (2, 3, 0, 1)).reshape(9, c, cin)
            w_taps = w_taps * scale[None, :, None]
            w_taps = jnp.pad(w_taps, ((0, 0), (0, c_pad - c), (0, cin_pad - cin)))
            bias_p = jnp.pad(bias, (0, c_pad - c)).reshape(c_pad, 1)
            conv_stages.append(dict(w=w_taps, bias=bias_p, H=h, W=w, cout=c, sels=[]))
            prev_c = c
            d = c
            prev_size = h * w * d
        elif layer.startswith("MaxPool"):
            if not conv_stages:
                # TODO(synk): standalone MaxPool before any Conv is not supported.
                raise NotImplementedError("MaxPool before the first Conv layer")
            if fc_stack:
                raise NotImplementedError("MaxPool after FC layers is not supported")
            conv_stages[-1]["sels"].append(_pool_select_matrix(h, w))
            h, w = h // 2, w // 2
            prev_size = h * w * d
        elif layer.startswith("FC"):
            num_fc_remaining -= 1
            cur = int(layer[2:])
            key, k1, k2 = jax.random.split(key, 3)
            bound = 1.0 / math.sqrt(prev_size)
            w_fc = jax.random.uniform(k1, (cur, prev_size), jnp.float32, -bound, bound)
            b_fc = jax.random.uniform(k2, (cur,), jnp.float32, -bound, bound)
            if not fc_stack:
                if not conv_stages:
                    # TODO(synk): FC-only networks are not supported by the fused kernel.
                    raise NotImplementedError("FC-only network")
                c_last = conv_stages[-1]["cout"]
                c_last_pad = _round_up8(c_last)
                hw_last = h * w
                assert prev_size == c_last * hw_last
                # Hoisted: (F, C*HW) -> (C_pad, HW, F) so the kernel consumes the
                # (C_pad, HW) conv activation directly (PyTorch NCHW flatten order).
                w_k = w_fc.reshape(cur, c_last, hw_last).transpose(1, 2, 0)
                w_k = jnp.pad(w_k, ((0, c_last_pad - c_last), (0, 0), (0, 0)))
            else:
                w_k = w_fc.T                              # hoisted x @ W.T layout
            fc_stack.append(dict(w=w_k, b=b_fc.reshape(1, cur),
                                 relu=(num_fc_remaining != 0)))
            prev_size = cur
        else:
            raise ValueError(f"unknown layer spec: {layer}")

    if not conv_stages or not fc_stack:
        # TODO(synk): fused kernel expects the canonical Conv...FC structure.
        raise NotImplementedError("fused kernel expects Conv stages followed by FC layers")
    return conv_stages, fc_stack


# ----------------------------------------------------------------------------
# Wrapper: one pallas_call for the whole forward pass
# ----------------------------------------------------------------------------
def convnet_forward(x_nchw, conv_stages, fc_stack):
    N, C, H0, W0 = x_nchw.shape
    x = x_nchw.reshape(N, C, H0 * W0)        # channels on sublanes, flat spatial on lanes
    cin_pad = conv_stages[0]["w"].shape[2]
    if cin_pad > C:                          # one-time tiny channel pad for sublane alignment
        x = jnp.pad(x, ((0, 0), (0, cin_pad - C), (0, 0)))
    hw0 = conv_stages[0]["H"] * conv_stages[0]["W"]
    assert x.shape[2] == hw0, "input spatial size must match the module's (32, 32)"

    args = [x]
    in_specs = [pl.BlockSpec((1, cin_pad, hw0), lambda n: (n, 0, 0))]
    conv_meta = []
    for st in conv_stages:
        assert st["W"] > 0 and (st["W"] & (st["W"] - 1)) == 0, "width must be a power of two"
        args += [st["w"], st["bias"]]
        in_specs += [_const_spec(st["w"]), _const_spec(st["bias"])]
        for sel in st["sels"]:
            args.append(sel)
            in_specs.append(_const_spec(sel))
        conv_meta.append((st["H"], st["W"], len(st["sels"])))

    relu_flags = []
    for p in fc_stack:
        args += [p["w"], p["b"]]
        in_specs += [_const_spec(p["w"]), _const_spec(p["b"])]
        relu_flags.append(p["relu"])

    F_out = fc_stack[-1]["w"].shape[-1]
    c_last = conv_stages[-1]["cout"]

    out = pl.pallas_call(
        functools.partial(_fused_convnet_kernel,
                          conv_meta=tuple(conv_meta),
                          c_last=c_last,
                          relu_flags=tuple(relu_flags)),
        out_shape=jax.ShapeDtypeStruct((N, 1, F_out), x.dtype),
        grid=(N,),
        in_specs=in_specs,
        out_specs=pl.BlockSpec((1, 1, F_out), lambda n: (n, 0, 0)),
        compiler_params=pltpu.CompilerParams(
            dimension_semantics=("parallel",),
            vmem_limit_bytes=32 * 1024 * 1024),
    )(*args)
    return out.reshape(N, F_out)


if __name__ == "__main__":
    # Input spatial size must be 32x32x3 per the module's hard-coded (h, w, d).
    layers = ["Conv8", "MaxPool", "Conv16", "MaxPool", "FC32", "FC10"]
    key = jax.random.PRNGKey(0)
    kparams, kx = jax.random.split(key)
    conv_stages, fc_stack = build_convnet_params(layers, kparams)

    x = jax.random.normal(kx, (2, 3, 32, 32), jnp.float32)   # NCHW, batch=2

    fwd = jax.jit(lambda inp: convnet_forward(inp, conv_stages, fc_stack))
    out = fwd(x)
    jax.block_until_ready(out)
    assert out.shape == (2, 10), out.shape
    assert jnp.all(jnp.isfinite(out))
    print("KERNEL_OK")
</pallas_src>

<mosaic_0001>
module attributes {stable_mosaic.version = 11 : i64} {
  func.func @_fused_convnet_kernel(%arg0: i32, %arg1: memref<1x8x1024xf32, #tpu.memory_space<vmem>>, %arg2: memref<9x8x8xf32, #tpu.memory_space<vmem>>, %arg3: memref<8x1xf32, #tpu.memory_space<vmem>>, %arg4: memref<1024x256xf32, #tpu.memory_space<vmem>>, %arg5: memref<9x16x8xf32, #tpu.memory_space<vmem>>, %arg6: memref<16x1xf32, #tpu.memory_space<vmem>>, %arg7: memref<256x64xf32, #tpu.memory_space<vmem>>, %arg8: memref<16x64x32xf32, #tpu.memory_space<vmem>>, %arg9: memref<1x32xf32, #tpu.memory_space<vmem>>, %arg10: memref<32x10xf32, #tpu.memory_space<vmem>>, %arg11: memref<1x10xf32, #tpu.memory_space<vmem>>, %arg12: memref<1x1x10xf32, #tpu.memory_space<vmem>>) attributes {dimension_semantics = [#tpu.dimension_semantics<parallel>], iteration_bounds = array<i64: 2>, scalar_prefetch = 0 : i64, scratch_operands = 0 : i64, tpu.core_type = #tpu.core_type<tc>, window_params = [{transform_indices = @transform_0, window_bounds = array<i64: 1, 8, 1024>}, {pipeline_mode = #tpu.pipeline_mode<synchronous>, transform_indices = @transform_1, window_bounds = array<i64: 9, 8, 8>}, {pipeline_mode = #tpu.pipeline_mode<synchronous>, transform_indices = @transform_2, window_bounds = array<i64: 8, 1>}, {pipeline_mode = #tpu.pipeline_mode<synchronous>, transform_indices = @transform_3, window_bounds = array<i64: 1024, 256>}, {pipeline_mode = #tpu.pipeline_mode<synchronous>, transform_indices = @transform_4, window_bounds = array<i64: 9, 16, 8>}, {pipeline_mode = #tpu.pipeline_mode<synchronous>, transform_indices = @transform_5, window_bounds = array<i64: 16, 1>}, {pipeline_mode = #tpu.pipeline_mode<synchronous>, transform_indices = @transform_6, window_bounds = array<i64: 256, 64>}, {pipeline_mode = #tpu.pipeline_mode<synchronous>, transform_indices = @transform_7, window_bounds = array<i64: 16, 64, 32>}, {pipeline_mode = #tpu.pipeline_mode<synchronous>, transform_indices = @transform_8, window_bounds = array<i64: 1, 32>}, {pipeline_mode = #tpu.pipeline_mode<synchronous>, transform_indices = @transform_9, window_bounds = array<i64: 32, 10>}, {pipeline_mode = #tpu.pipeline_mode<synchronous>, transform_indices = @transform_10, window_bounds = array<i64: 1, 10>}, {transform_indices = @transform_11, window_bounds = array<i64: 1, 1, 10>}]} {
    %c0 = arith.constant 0 : index
    %c0_0 = arith.constant 0 : index
    %c0_1 = arith.constant 0 : index
    %0 = vector.load %arg1[%c0, %c0_0, %c0_1] : memref<1x8x1024xf32, #tpu.memory_space<vmem>>, vector<1x8x1024xf32>
    %1 = vector.shape_cast %0 : vector<1x8x1024xf32> to vector<8x1024xf32>
    %2 = tpu.iota {dimensions = array<i32: 1>} : vector<1x1024xi32>
    %c31_i32 = arith.constant 31 : i32
    %3 = vector.broadcast %c31_i32 : i32 to vector<1x1024xi32>
    %4 = arith.andi %2, %3 : vector<1x1024xi32>
    %c33_i32 = arith.constant 33 : i32
    %5 = tpu.dynamic_rotate %1 by %c33_i32 dim 1 : vector<8x1024xf32>, i32 -> vector<8x1024xf32>
    %c32_i32 = arith.constant 32 : i32
    %6 = vector.broadcast %c32_i32 : i32 to vector<1x1024xi32>
    %7 = arith.cmpi sge, %2, %6 : vector<1x1024xi32>
    %c1_i32 = arith.constant 1 : i32
    %8 = vector.broadcast %c1_i32 : i32 to vector<1x1024xi32>
    %9 = arith.cmpi sge, %4, %8 : vector<1x1024xi32>
    %10 = arith.andi %7, %9 : vector<1x1024xi1>
    %cst = arith.constant 0.000000e+00 : f32
    %11 = vector.shape_cast %10 : vector<1x1024xi1> to vector<1x1024xi1>
    %12 = vector.broadcast %11 : vector<1x1024xi1> to vector<8x1024xi1>
    %13 = vector.broadcast %cst : f32 to vector<8x1024xf32>
    %14 = arith.select %12, %5, %13 : vector<8x1024xi1>, vector<8x1024xf32>
    %c0_2 = arith.constant 0 : index
    %c0_3 = arith.constant 0 : index
    %c0_4 = arith.constant 0 : index
    %15 = vector.load %arg2[%c0_2, %c0_3, %c0_4] : memref<9x8x8xf32, #tpu.memory_space<vmem>>, vector<1x8x8xf32>
    %16 = vector.shape_cast %15 : vector<1x8x8xf32> to vector<8x8xf32>
    %cst_5 = arith.constant dense<0.000000e+00> : vector<8x1024xf32>
    %17 = tpu.matmul %16, %14, %cst_5 {dimension_numbers = #tpu.dot_dimension_numbers<[1], [0], [0], [1], [0, 0, 1, 1], [], []>} : vector<8x8xf32>, vector<8x1024xf32>, vector<8x1024xf32> -> vector<8x1024xf32>
    %c32_i32_6 = arith.constant 32 : i32
    %18 = tpu.dynamic_rotate %1 by %c32_i32_6 dim 1 : vector<8x1024xf32>, i32 -> vector<8x1024xf32>
    %c32_i32_7 = arith.constant 32 : i32
    %19 = vector.broadcast %c32_i32_7 : i32 to vector<1x1024xi32>
    %20 = arith.cmpi sge, %2, %19 : vector<1x1024xi32>
    %cst_8 = arith.constant 0.000000e+00 : f32
    %21 = vector.shape_cast %20 : vector<1x1024xi1> to vector<1x1024xi1>
    %22 = vector.broadcast %21 : vector<1x1024xi1> to vector<8x1024xi1>
    %23 = vector.broadcast %cst_8 : f32 to vector<8x1024xf32>
    %24 = arith.select %22, %18, %23 : vector<8x1024xi1>, vector<8x1024xf32>
    %c1 = arith.constant 1 : index
    %c0_9 = arith.constant 0 : index
    %c0_10 = arith.constant 0 : index
    %25 = vector.load %arg2[%c1, %c0_9, %c0_10] : memref<9x8x8xf32, #tpu.memory_space<vmem>>, vector<1x8x8xf32>
    %26 = vector.shape_cast %25 : vector<1x8x8xf32> to vector<8x8xf32>
    %cst_11 = arith.constant dense<0.000000e+00> : vector<8x1024xf32>
    %27 = tpu.matmul %26, %24, %cst_11 {dimension_numbers = #tpu.dot_dimension_numbers<[1], [0], [0], [1], [0, 0, 1, 1], [], []>} : vector<8x8xf32>, vector<8x1024xf32>, vector<8x1024xf32> -> vector<8x1024xf32>
    %28 = arith.addf %17, %27 : vector<8x1024xf32>
    %c31_i32_12 = arith.constant 31 : i32
    %29 = tpu.dynamic_rotate %1 by %c31_i32_12 dim 1 : vector<8x1024xf32>, i32 -> vector<8x1024xf32>
    %c32_i32_13 = arith.constant 32 : i32
    %30 = vector.broadcast %c32_i32_13 : i32 to vector<1x1024xi32>
    %31 = arith.cmpi sge, %2, %30 : vector<1x1024xi32>
    %c30_i32 = arith.constant 30 : i32
    %32 = vector.broadcast %c30_i32 : i32 to vector<1x1024xi32>
    %33 = arith.cmpi sle, %4, %32 : vector<1x1024xi32>
    %34 = arith.andi %31, %33 : vector<1x1024xi1>
    %cst_14 = arith.constant 0.000000e+00 : f32
    %35 = vector.shape_cast %34 : vector<1x1024xi1> to vector<1x1024xi1>
    %36 = vector.broadcast %35 : vector<1x1024xi1> to vector<8x1024xi1>
    %37 = vector.broadcast %cst_14 : f32 to vector<8x1024xf32>
    %38 = arith.select %36, %29, %37 : vector<8x1024xi1>, vector<8x1024xf32>
    %c2 = arith.constant 2 : index
    %c0_15 = arith.constant 0 : index
    %c0_16 = arith.constant 0 : index
    %39 = vector.load %arg2[%c2, %c0_15, %c0_16] : memref<9x8x8xf32, #tpu.memory_space<vmem>>, vector<1x8x8xf32>
    %40 = vector.shape_cast %39 : vector<1x8x8xf32> to vector<8x8xf32>
    %cst_17 = arith.constant dense<0.000000e+00> : vector<8x1024xf32>
    %41 = tpu.matmul %40, %38, %cst_17 {dimension_numbers = #tpu.dot_dimension_numbers<[1], [0], [0], [1], [0, 0, 1, 1], [], []>} : vector<8x8xf32>, vector<8x1024xf32>, vector<8x1024xf32> -> vector<8x1024xf32>
    %42 = arith.addf %28, %41 : vector<8x1024xf32>
    %c1_i32_18 = arith.constant 1 : i32
    %43 = tpu.dynamic_rotate %1 by %c1_i32_18 dim 1 : vector<8x1024xf32>, i32 -> vector<8x1024xf32>
    %c1_i32_19 = arith.constant 1 : i32
    %44 = vector.broadcast %c1_i32_19 : i32 to vector<1x1024xi32>
    %45 = arith.cmpi sge, %4, %44 : vector<1x1024xi32>
    %cst_20 = arith.constant 0.000000e+00 : f32
    %46 = vector.shape_cast %45 : vector<1x1024xi1> to vector<1x1024xi1>
    %47 = vector.broadcast %46 : vector<1x1024xi1> to vector<8x1024xi1>
    %48 = vector.broadcast %cst_20 : f32 to vector<8x1024xf32>
    %49 = arith.select %47, %43, %48 : vector<8x1024xi1>, vector<8x1024xf32>
    %c3 = arith.constant 3 : index
    %c0_21 = arith.constant 0 : index
    %c0_22 = arith.constant 0 : index
    %50 = vector.load %arg2[%c3, %c0_21, %c0_22] : memref<9x8x8xf32, #tpu.memory_space<vmem>>, vector<1x8x8xf32>
    %51 = vector.shape_cast %50 : vector<1x8x8xf32> to vector<8x8xf32>
    %cst_23 = arith.constant dense<0.000000e+00> : vector<8x1024xf32>
    %52 = tpu.matmul %51, %49, %cst_23 {dimension_numbers = #tpu.dot_dimension_numbers<[1], [0], [0], [1], [0, 0, 1, 1], [], []>} : vector<8x8xf32>, vector<8x1024xf32>, vector<8x1024xf32> -> vector<8x1024xf32>
    %53 = arith.addf %42, %52 : vector<8x1024xf32>
    %c4 = arith.constant 4 : index
    %c0_24 = arith.constant 0 : index
    %c0_25 = arith.constant 0 : index
    %54 = vector.load %arg2[%c4, %c0_24, %c0_25] : memref<9x8x8xf32, #tpu.memory_space<vmem>>, vector<1x8x8xf32>
    %55 = vector.shape_cast %54 : vector<1x8x8xf32> to vector<8x8xf32>
    %cst_26 = arith.constant dense<0.000000e+00> : vector<8x1024xf32>
    %56 = tpu.matmul %55, %1, %cst_26 {dimension_numbers = #tpu.dot_dimension_numbers<[1], [0], [0], [1], [0, 0, 1, 1], [], []>} : vector<8x8xf32>, vector<8x1024xf32>, vector<8x1024xf32> -> vector<8x1024xf32>
    %57 = arith.addf %53, %56 : vector<8x1024xf32>
    %c1023_i32 = arith.constant 1023 : i32
    %58 = tpu.dynamic_rotate %1 by %c1023_i32 dim 1 : vector<8x1024xf32>, i32 -> vector<8x1024xf32>
    %c30_i32_27 = arith.constant 30 : i32
    %59 = vector.broadcast %c30_i32_27 : i32 to vector<1x1024xi32>
    %60 = arith.cmpi sle, %4, %59 : vector<1x1024xi32>
    %cst_28 = arith.constant 0.000000e+00 : f32
    %61 = vector.shape_cast %60 : vector<1x1024xi1> to vector<1x1024xi1>
    %62 = vector.broadcast %61 : vector<1x1024xi1> to vector<8x1024xi1>
    %63 = vector.broadcast %cst_28 : f32 to vector<8x1024xf32>
    %64 = arith.select %62, %58, %63 : vector<8x1024xi1>, vector<8x1024xf32>
    %c5 = arith.constant 5 : index
    %c0_29 = arith.constant 0 : index
    %c0_30 = arith.constant 0 : index
    %65 = vector.load %arg2[%c5, %c0_29, %c0_30] : memref<9x8x8xf32, #tpu.memory_space<vmem>>, vector<1x8x8xf32>
    %66 = vector.shape_cast %65 : vector<1x8x8xf32> to vector<8x8xf32>
    %cst_31 = arith.constant dense<0.000000e+00> : vector<8x1024xf32>
    %67 = tpu.matmul %66, %64, %cst_31 {dimension_numbers = #tpu.dot_dimension_numbers<[1], [0], [0], [1], [0, 0, 1, 1], [], []>} : vector<8x8xf32>, vector<8x1024xf32>, vector<8x1024xf32> -> vector<8x1024xf32>
    %68 = arith.addf %57, %67 : vector<8x1024xf32>
    %c993_i32 = arith.constant 993 : i32
    %69 = tpu.dynamic_rotate %1 by %c993_i32 dim 1 : vector<8x1024xf32>, i32 -> vector<8x1024xf32>
    %c992_i32 = arith.constant 992 : i32
    %70 = vector.broadcast %c992_i32 : i32 to vector<1x1024xi32>
    %71 = arith.cmpi slt, %2, %70 : vector<1x1024xi32>
    %c1_i32_32 = arith.constant 1 : i32
    %72 = vector.broadcast %c1_i32_32 : i32 to vector<1x1024xi32>
    %73 = arith.cmpi sge, %4, %72 : vector<1x1024xi32>
    %74 = arith.andi %71, %73 : vector<1x1024xi1>
    %cst_33 = arith.constant 0.000000e+00 : f32
    %75 = vector.shape_cast %74 : vector<1x1024xi1> to vector<1x1024xi1>
    %76 = vector.broadcast %75 : vector<1x1024xi1> to vector<8x1024xi1>
    %77 = vector.broadcast %cst_33 : f32 to vector<8x1024xf32>
    %78 = arith.select %76, %69, %77 : vector<8x1024xi1>, vector<8x1024xf32>
    %c6 = arith.constant 6 : index
    %c0_34 = arith.constant 0 : index
    %c0_35 = arith.constant 0 : index
    %79 = vector.load %arg2[%c6, %c0_34, %c0_35] : memref<9x8x8xf32, #tpu.memory_space<vmem>>, vector<1x8x8xf32>
    %80 = vector.shape_cast %79 : vector<1x8x8xf32> to vector<8x8xf32>
    %cst_36 = arith.constant dense<0.000000e+00> : vector<8x1024xf32>
    %81 = tpu.matmul %80, %78, %cst_36 {dimension_numbers = #tpu.dot_dimension_numbers<[1], [0], [0], [1], [0, 0, 1, 1], [], []>} : vector<8x8xf32>, vector<8x1024xf32>, vector<8x1024xf32> -> vector<8x1024xf32>
    %82 = arith.addf %68, %81 : vector<8x1024xf32>
    %c992_i32_37 = arith.constant 992 : i32
    %83 = tpu.dynamic_rotate %1 by %c992_i32_37 dim 1 : vector<8x1024xf32>, i32 -> vector<8x1024xf32>
    %c992_i32_38 = arith.constant 992 : i32
    %84 = vector.broadcast %c992_i32_38 : i32 to vector<1x1024xi32>
    %85 = arith.cmpi slt, %2, %84 : vector<1x1024xi32>
    %cst_39 = arith.constant 0.000000e+00 : f32
    %86 = vector.shape_cast %85 : vector<1x1024xi1> to vector<1x1024xi1>
    %87 = vector.broadcast %86 : vector<1x1024xi1> to vector<8x1024xi1>
    %88 = vector.broadcast %cst_39 : f32 to vector<8x1024xf32>
    %89 = arith.select %87, %83, %88 : vector<8x1024xi1>, vector<8x1024xf32>
    %c7 = arith.constant 7 : index
    %c0_40 = arith.constant 0 : index
    %c0_41 = arith.constant 0 : index
    %90 = vector.load %arg2[%c7, %c0_40, %c0_41] : memref<9x8x8xf32, #tpu.memory_space<vmem>>, vector<1x8x8xf32>
    %91 = vector.shape_cast %90 : vector<1x8x8xf32> to vector<8x8xf32>
    %cst_42 = arith.constant dense<0.000000e+00> : vector<8x1024xf32>
    %92 = tpu.matmul %91, %89, %cst_42 {dimension_numbers = #tpu.dot_dimension_numbers<[1], [0], [0], [1], [0, 0, 1, 1], [], []>} : vector<8x8xf32>, vector<8x1024xf32>, vector<8x1024xf32> -> vector<8x1024xf32>
    %93 = arith.addf %82, %92 : vector<8x1024xf32>
    %c991_i32 = arith.constant 991 : i32
    %94 = tpu.dynamic_rotate %1 by %c991_i32 dim 1 : vector<8x1024xf32>, i32 -> vector<8x1024xf32>
    %c992_i32_43 = arith.constant 992 : i32
    %95 = vector.broadcast %c992_i32_43 : i32 to vector<1x1024xi32>
    %96 = arith.cmpi slt, %2, %95 : vector<1x1024xi32>
    %c30_i32_44 = arith.constant 30 : i32
    %97 = vector.broadcast %c30_i32_44 : i32 to vector<1x1024xi32>
    %98 = arith.cmpi sle, %4, %97 : vector<1x1024xi32>
    %99 = arith.andi %96, %98 : vector<1x1024xi1>
    %cst_45 = arith.constant 0.000000e+00 : f32
    %100 = vector.shape_cast %99 : vector<1x1024xi1> to vector<1x1024xi1>
    %101 = vector.broadcast %100 : vector<1x1024xi1> to vector<8x1024xi1>
    %102 = vector.broadcast %cst_45 : f32 to vector<8x1024xf32>
    %103 = arith.select %101, %94, %102 : vector<8x1024xi1>, vector<8x1024xf32>
    %c8 = arith.constant 8 : index
    %c0_46 = arith.constant 0 : index
    %c0_47 = arith.constant 0 : index
    %104 = vector.load %arg2[%c8, %c0_46, %c0_47] : memref<9x8x8xf32, #tpu.memory_space<vmem>>, vector<1x8x8xf32>
    %105 = vector.shape_cast %104 : vector<1x8x8xf32> to vector<8x8xf32>
    %cst_48 = arith.constant dense<0.000000e+00> : vector<8x1024xf32>
    %106 = tpu.matmul %105, %103, %cst_48 {dimension_numbers = #tpu.dot_dimension_numbers<[1], [0], [0], [1], [0, 0, 1, 1], [], []>} : vector<8x8xf32>, vector<8x1024xf32>, vector<8x1024xf32> -> vector<8x1024xf32>
    %107 = arith.addf %93, %106 : vector<8x1024xf32>
    %c0_49 = arith.constant 0 : index
    %c0_50 = arith.constant 0 : index
    %108 = vector.load %arg3[%c0_49, %c0_50] : memref<8x1xf32, #tpu.memory_space<vmem>>, vector<8x1xf32>
    %109 = vector.broadcast %108 : vector<8x1xf32> to vector<8x1024xf32>
    %110 = arith.addf %107, %109 : vector<8x1024xf32>
    %cst_51 = arith.constant 0.000000e+00 : f32
    %111 = vector.broadcast %cst_51 : f32 to vector<8x1024xf32>
    %112 = arith.maximumf %110, %111 : vector<8x1024xf32>
    %c1023_i32_52 = arith.constant 1023 : i32
    %113 = tpu.dynamic_rotate %112 by %c1023_i32_52 dim 1 : vector<8x1024xf32>, i32 -> vector<8x1024xf32>
    %114 = arith.maximumf %112, %113 : vector<8x1024xf32>
    %c992_i32_53 = arith.constant 992 : i32
    %115 = tpu.dynamic_rotate %114 by %c992_i32_53 dim 1 : vector<8x1024xf32>, i32 -> vector<8x1024xf32>
    %116 = arith.maximumf %114, %115 : vector<8x1024xf32>
    %c0_54 = arith.constant 0 : index
    %c0_55 = arith.constant 0 : index
    %117 = vector.load %arg4[%c0_54, %c0_55] : memref<1024x256xf32, #tpu.memory_space<vmem>>, vector<1024x256xf32>
    %cst_56 = arith.constant dense<0.000000e+00> : vector<8x256xf32>
    %118 = tpu.matmul %116, %117, %cst_56 {dimension_numbers = #tpu.dot_dimension_numbers<[1], [0], [0], [1], [0, 0, 1, 1], [], []>} : vector<8x1024xf32>, vector<1024x256xf32>, vector<8x256xf32> -> vector<8x256xf32>
    %119 = tpu.iota {dimensions = array<i32: 1>} : vector<1x256xi32>
    %c15_i32 = arith.constant 15 : i32
    %120 = vector.broadcast %c15_i32 : i32 to vector<1x256xi32>
    %121 = arith.andi %119, %120 : vector<1x256xi32>
    %c17_i32 = arith.constant 17 : i32
    %122 = tpu.dynamic_rotate %118 by %c17_i32 dim 1 : vector<8x256xf32>, i32 -> vector<8x256xf32>
    %c16_i32 = arith.constant 16 : i32
    %123 = vector.broadcast %c16_i32 : i32 to vector<1x256xi32>
    %124 = arith.cmpi sge, %119, %123 : vector<1x256xi32>
    %c1_i32_57 = arith.constant 1 : i32
    %125 = vector.broadcast %c1_i32_57 : i32 to vector<1x256xi32>
    %126 = arith.cmpi sge, %121, %125 : vector<1x256xi32>
    %127 = arith.andi %124, %126 : vector<1x256xi1>
    %cst_58 = arith.constant 0.000000e+00 : f32
    %128 = vector.shape_cast %127 : vector<1x256xi1> to vector<1x256xi1>
    %129 = vector.broadcast %128 : vector<1x256xi1> to vector<8x256xi1>
    %130 = vector.broadcast %cst_58 : f32 to vector<8x256xf32>
    %131 = arith.select %129, %122, %130 : vector<8x256xi1>, vector<8x256xf32>
    %c0_59 = arith.constant 0 : index
    %c0_60 = arith.constant 0 : index
    %c0_61 = arith.constant 0 : index
    %132 = vector.load %arg5[%c0_59, %c0_60, %c0_61] : memref<9x16x8xf32, #tpu.memory_space<vmem>>, vector<1x16x8xf32>
    %133 = vector.shape_cast %132 : vector<1x16x8xf32> to vector<16x8xf32>
    %cst_62 = arith.constant dense<0.000000e+00> : vector<16x256xf32>
    %134 = tpu.matmul %133, %131, %cst_62 {dimension_numbers = #tpu.dot_dimension_numbers<[1], [0], [0], [1], [0, 0, 1, 1], [], []>} : vector<16x8xf32>, vector<8x256xf32>, vector<16x256xf32> -> vector<16x256xf32>
    %c16_i32_63 = arith.constant 16 : i32
    %135 = tpu.dynamic_rotate %118 by %c16_i32_63 dim 1 : vector<8x256xf32>, i32 -> vector<8x256xf32>
    %c16_i32_64 = arith.constant 16 : i32
    %136 = vector.broadcast %c16_i32_64 : i32 to vector<1x256xi32>
    %137 = arith.cmpi sge, %119, %136 : vector<1x256xi32>
    %cst_65 = arith.constant 0.000000e+00 : f32
    %138 = vector.shape_cast %137 : vector<1x256xi1> to vector<1x256xi1>
    %139 = vector.broadcast %138 : vector<1x256xi1> to vector<8x256xi1>
    %140 = vector.broadcast %cst_65 : f32 to vector<8x256xf32>
    %141 = arith.select %139, %135, %140 : vector<8x256xi1>, vector<8x256xf32>
    %c1_66 = arith.constant 1 : index
    %c0_67 = arith.constant 0 : index
    %c0_68 = arith.constant 0 : index
    %142 = vector.load %arg5[%c1_66, %c0_67, %c0_68] : memref<9x16x8xf32, #tpu.memory_space<vmem>>, vector<1x16x8xf32>
    %143 = vector.shape_cast %142 : vector<1x16x8xf32> to vector<16x8xf32>
    %cst_69 = arith.constant dense<0.000000e+00> : vector<16x256xf32>
    %144 = tpu.matmul %143, %141, %cst_69 {dimension_numbers = #tpu.dot_dimension_numbers<[1], [0], [0], [1], [0, 0, 1, 1], [], []>} : vector<16x8xf32>, vector<8x256xf32>, vector<16x256xf32> -> vector<16x256xf32>
    %145 = arith.addf %134, %144 : vector<16x256xf32>
    %c15_i32_70 = arith.constant 15 : i32
    %146 = tpu.dynamic_rotate %118 by %c15_i32_70 dim 1 : vector<8x256xf32>, i32 -> vector<8x256xf32>
    %c16_i32_71 = arith.constant 16 : i32
    %147 = vector.broadcast %c16_i32_71 : i32 to vector<1x256xi32>
    %148 = arith.cmpi sge, %119, %147 : vector<1x256xi32>
    %c14_i32 = arith.constant 14 : i32
    %149 = vector.broadcast %c14_i32 : i32 to vector<1x256xi32>
    %150 = arith.cmpi sle, %121, %149 : vector<1x256xi32>
    %151 = arith.andi %148, %150 : vector<1x256xi1>
    %cst_72 = arith.constant 0.000000e+00 : f32
    %152 = vector.shape_cast %151 : vector<1x256xi1> to vector<1x256xi1>
    %153 = vector.broadcast %152 : vector<1x256xi1> to vector<8x256xi1>
    %154 = vector.broadcast %cst_72 : f32 to vector<8x256xf32>
    %155 = arith.select %153, %146, %154 : vector<8x256xi1>, vector<8x256xf32>
    %c2_73 = arith.constant 2 : index
    %c0_74 = arith.constant 0 : index
    %c0_75 = arith.constant 0 : index
    %156 = vector.load %arg5[%c2_73, %c0_74, %c0_75] : memref<9x16x8xf32, #tpu.memory_space<vmem>>, vector<1x16x8xf32>
    %157 = vector.shape_cast %156 : vector<1x16x8xf32> to vector<16x8xf32>
    %cst_76 = arith.constant dense<0.000000e+00> : vector<16x256xf32>
    %158 = tpu.matmul %157, %155, %cst_76 {dimension_numbers = #tpu.dot_dimension_numbers<[1], [0], [0], [1], [0, 0, 1, 1], [], []>} : vector<16x8xf32>, vector<8x256xf32>, vector<16x256xf32> -> vector<16x256xf32>
    %159 = arith.addf %145, %158 : vector<16x256xf32>
    %c1_i32_77 = arith.constant 1 : i32
    %160 = tpu.dynamic_rotate %118 by %c1_i32_77 dim 1 : vector<8x256xf32>, i32 -> vector<8x256xf32>
    %c1_i32_78 = arith.constant 1 : i32
    %161 = vector.broadcast %c1_i32_78 : i32 to vector<1x256xi32>
    %162 = arith.cmpi sge, %121, %161 : vector<1x256xi32>
    %cst_79 = arith.constant 0.000000e+00 : f32
    %163 = vector.shape_cast %162 : vector<1x256xi1> to vector<1x256xi1>
    %164 = vector.broadcast %163 : vector<1x256xi1> to vector<8x256xi1>
    %165 = vector.broadcast %cst_79 : f32 to vector<8x256xf32>
    %166 = arith.select %164, %160, %165 : vector<8x256xi1>, vector<8x256xf32>
    %c3_80 = arith.constant 3 : index
    %c0_81 = arith.constant 0 : index
    %c0_82 = arith.constant 0 : index
    %167 = vector.load %arg5[%c3_80, %c0_81, %c0_82] : memref<9x16x8xf32, #tpu.memory_space<vmem>>, vector<1x16x8xf32>
    %168 = vector.shape_cast %167 : vector<1x16x8xf32> to vector<16x8xf32>
    %cst_83 = arith.constant dense<0.000000e+00> : vector<16x256xf32>
    %169 = tpu.matmul %168, %166, %cst_83 {dimension_numbers = #tpu.dot_dimension_numbers<[1], [0], [0], [1], [0, 0, 1, 1], [], []>} : vector<16x8xf32>, vector<8x256xf32>, vector<16x256xf32> -> vector<16x256xf32>
    %170 = arith.addf %159, %169 : vector<16x256xf32>
    %c4_84 = arith.constant 4 : index
    %c0_85 = arith.constant 0 : index
    %c0_86 = arith.constant 0 : index
    %171 = vector.load %arg5[%c4_84, %c0_85, %c0_86] : memref<9x16x8xf32, #tpu.memory_space<vmem>>, vector<1x16x8xf32>
    %172 = vector.shape_cast %171 : vector<1x16x8xf32> to vector<16x8xf32>
    %cst_87 = arith.constant dense<0.000000e+00> : vector<16x256xf32>
    %173 = tpu.matmul %172, %118, %cst_87 {dimension_numbers = #tpu.dot_dimension_numbers<[1], [0], [0], [1], [0, 0, 1, 1], [], []>} : vector<16x8xf32>, vector<8x256xf32>, vector<16x256xf32> -> vector<16x256xf32>
    %174 = arith.addf %170, %173 : vector<16x256xf32>
    %c255_i32 = arith.constant 255 : i32
    %175 = tpu.dynamic_rotate %118 by %c255_i32 dim 1 : vector<8x256xf32>, i32 -> vector<8x256xf32>
    %c14_i32_88 = arith.constant 14 : i32
    %176 = vector.broadcast %c14_i32_88 : i32 to vector<1x256xi32>
    %177 = arith.cmpi sle, %121, %176 : vector<1x256xi32>
    %cst_89 = arith.constant 0.000000e+00 : f32
    %178 = vector.shape_cast %177 : vector<1x256xi1> to vector<1x256xi1>
    %179 = vector.broadcast %178 : vector<1x256xi1> to vector<8x256xi1>
    %180 = vector.broadcast %cst_89 : f32 to vector<8x256xf32>
    %181 = arith.select %179, %175, %180 : vector<8x256xi1>, vector<8x256xf32>
    %c5_90 = arith.constant 5 : index
    %c0_91 = arith.constant 0 : index
    %c0_92 = arith.constant 0 : index
    %182 = vector.load %arg5[%c5_90, %c0_91, %c0_92] : memref<9x16x8xf32, #tpu.memory_space<vmem>>, vector<1x16x8xf32>
    %183 = vector.shape_cast %182 : vector<1x16x8xf32> to vector<16x8xf32>
    %cst_93 = arith.constant dense<0.000000e+00> : vector<16x256xf32>
    %184 = tpu.matmul %183, %181, %cst_93 {dimension_numbers = #tpu.dot_dimension_numbers<[1], [0], [0], [1], [0, 0, 1, 1], [], []>} : vector<16x8xf32>, vector<8x256xf32>, vector<16x256xf32> -> vector<16x256xf32>
    %185 = arith.addf %174, %184 : vector<16x256xf32>
    %c241_i32 = arith.constant 241 : i32
    %186 = tpu.dynamic_rotate %118 by %c241_i32 dim 1 : vector<8x256xf32>, i32 -> vector<8x256xf32>
    %c240_i32 = arith.constant 240 : i32
    %187 = vector.broadcast %c240_i32 : i32 to vector<1x256xi32>
    %188 = arith.cmpi slt, %119, %187 : vector<1x256xi32>
    %c1_i32_94 = arith.constant 1 : i32
    %189 = vector.broadcast %c1_i32_94 : i32 to vector<1x256xi32>
    %190 = arith.cmpi sge, %121, %189 : vector<1x256xi32>
    %191 = arith.andi %188, %190 : vector<1x256xi1>
    %cst_95 = arith.constant 0.000000e+00 : f32
    %192 = vector.shape_cast %191 : vector<1x256xi1> to vector<1x256xi1>
    %193 = vector.broadcast %192 : vector<1x256xi1> to vector<8x256xi1>
    %194 = vector.broadcast %cst_95 : f32 to vector<8x256xf32>
    %195 = arith.select %193, %186, %194 : vector<8x256xi1>, vector<8x256xf32>
    %c6_96 = arith.constant 6 : index
    %c0_97 = arith.constant 0 : index
    %c0_98 = arith.constant 0 : index
    %196 = vector.load %arg5[%c6_96, %c0_97, %c0_98] : memref<9x16x8xf32, #tpu.memory_space<vmem>>, vector<1x16x8xf32>
    %197 = vector.shape_cast %196 : vector<1x16x8xf32> to vector<16x8xf32>
    %cst_99 = arith.constant dense<0.000000e+00> : vector<16x256xf32>
    %198 = tpu.matmul %197, %195, %cst_99 {dimension_numbers = #tpu.dot_dimension_numbers<[1], [0], [0], [1], [0, 0, 1, 1], [], []>} : vector<16x8xf32>, vector<8x256xf32>, vector<16x256xf32> -> vector<16x256xf32>
    %199 = arith.addf %185, %198 : vector<16x256xf32>
    %c240_i32_100 = arith.constant 240 : i32
    %200 = tpu.dynamic_rotate %118 by %c240_i32_100 dim 1 : vector<8x256xf32>, i32 -> vector<8x256xf32>
    %c240_i32_101 = arith.constant 240 : i32
    %201 = vector.broadcast %c240_i32_101 : i32 to vector<1x256xi32>
    %202 = arith.cmpi slt, %119, %201 : vector<1x256xi32>
    %cst_102 = arith.constant 0.000000e+00 : f32
    %203 = vector.shape_cast %202 : vector<1x256xi1> to vector<1x256xi1>
    %204 = vector.broadcast %203 : vector<1x256xi1> to vector<8x256xi1>
    %205 = vector.broadcast %cst_102 : f32 to vector<8x256xf32>
    %206 = arith.select %204, %200, %205 : vector<8x256xi1>, vector<8x256xf32>
    %c7_103 = arith.constant 7 : index
    %c0_104 = arith.constant 0 : index
    %c0_105 = arith.constant 0 : index
    %207 = vector.load %arg5[%c7_103, %c0_104, %c0_105] : memref<9x16x8xf32, #tpu.memory_space<vmem>>, vector<1x16x8xf32>
    %208 = vector.shape_cast %207 : vector<1x16x8xf32> to vector<16x8xf32>
    %cst_106 = arith.constant dense<0.000000e+00> : vector<16x256xf32>
    %209 = tpu.matmul %208, %206, %cst_106 {dimension_numbers = #tpu.dot_dimension_numbers<[1], [0], [0], [1], [0, 0, 1, 1], [], []>} : vector<16x8xf32>, vector<8x256xf32>, vector<16x256xf32> -> vector<16x256xf32>
    %210 = arith.addf %199, %209 : vector<16x256xf32>
    %c239_i32 = arith.constant 239 : i32
    %211 = tpu.dynamic_rotate %118 by %c239_i32 dim 1 : vector<8x256xf32>, i32 -> vector<8x256xf32>
    %c240_i32_107 = arith.constant 240 : i32
    %212 = vector.broadcast %c240_i32_107 : i32 to vector<1x256xi32>
    %213 = arith.cmpi slt, %119, %212 : vector<1x256xi32>
    %c14_i32_108 = arith.constant 14 : i32
    %214 = vector.broadcast %c14_i32_108 : i32 to vector<1x256xi32>
    %215 = arith.cmpi sle, %121, %214 : vector<1x256xi32>
    %216 = arith.andi %213, %215 : vector<1x256xi1>
    %cst_109 = arith.constant 0.000000e+00 : f32
    %217 = vector.shape_cast %216 : vector<1x256xi1> to vector<1x256xi1>
    %218 = vector.broadcast %217 : vector<1x256xi1> to vector<8x256xi1>
    %219 = vector.broadcast %cst_109 : f32 to vector<8x256xf32>
    %220 = arith.select %218, %211, %219 : vector<8x256xi1>, vector<8x256xf32>
    %c8_110 = arith.constant 8 : index
    %c0_111 = arith.constant 0 : index
    %c0_112 = arith.constant 0 : index
    %221 = vector.load %arg5[%c8_110, %c0_111, %c0_112] : memref<9x16x8xf32, #tpu.memory_space<vmem>>, vector<1x16x8xf32>
    %222 = vector.shape_cast %221 : vector<1x16x8xf32> to vector<16x8xf32>
    %cst_113 = arith.constant dense<0.000000e+00> : vector<16x256xf32>
    %223 = tpu.matmul %222, %220, %cst_113 {dimension_numbers = #tpu.dot_dimension_numbers<[1], [0], [0], [1], [0, 0, 1, 1], [], []>} : vector<16x8xf32>, vector<8x256xf32>, vector<16x256xf32> -> vector<16x256xf32>
    %224 = arith.addf %210, %223 : vector<16x256xf32>
    %c0_114 = arith.constant 0 : index
    %c0_115 = arith.constant 0 : index
    %225 = vector.load %arg6[%c0_114, %c0_115] : memref<16x1xf32, #tpu.memory_space<vmem>>, vector<16x1xf32>
    %226 = vector.broadcast %225 : vector<16x1xf32> to vector<16x256xf32>
    %227 = arith.addf %224, %226 : vector<16x256xf32>
    %cst_116 = arith.constant 0.000000e+00 : f32
    %228 = vector.broadcast %cst_116 : f32 to vector<16x256xf32>
    %229 = arith.maximumf %227, %228 : vector<16x256xf32>
    %c255_i32_117 = arith.constant 255 : i32
    %230 = tpu.dynamic_rotate %229 by %c255_i32_117 dim 1 : vector<16x256xf32>, i32 -> vector<16x256xf32>
    %231 = arith.maximumf %229, %230 : vector<16x256xf32>
    %c240_i32_118 = arith.constant 240 : i32
    %232 = tpu.dynamic_rotate %231 by %c240_i32_118 dim 1 : vector<16x256xf32>, i32 -> vector<16x256xf32>
    %233 = arith.maximumf %231, %232 : vector<16x256xf32>
    %c0_119 = arith.constant 0 : index
    %c0_120 = arith.constant 0 : index
    %234 = vector.load %arg7[%c0_119, %c0_120] : memref<256x64xf32, #tpu.memory_space<vmem>>, vector<256x64xf32>
    %cst_121 = arith.constant dense<0.000000e+00> : vector<16x64xf32>
    %235 = tpu.matmul %233, %234, %cst_121 {dimension_numbers = #tpu.dot_dimension_numbers<[1], [0], [0], [1], [0, 0, 1, 1], [], []>} : vector<16x256xf32>, vector<256x64xf32>, vector<16x64xf32> -> vector<16x64xf32>
    %c0_122 = arith.constant 0 : index
    %c0_123 = arith.constant 0 : index
    %236 = vector.load %arg9[%c0_122, %c0_123] : memref<1x32xf32, #tpu.memory_space<vmem>>, vector<1x32xf32>
    %237 = vector.extract_strided_slice %235 {offsets = [0, 0], sizes = [1, 64], strides = [1, 1]} : vector<16x64xf32> to vector<1x64xf32>
    %c0_124 = arith.constant 0 : index
    %c0_125 = arith.constant 0 : index
    %c0_126 = arith.constant 0 : index
    %238 = vector.load %arg8[%c0_124, %c0_125, %c0_126] : memref<16x64x32xf32, #tpu.memory_space<vmem>>, vector<1x64x32xf32>
    %239 = vector.shape_cast %238 : vector<1x64x32xf32> to vector<64x32xf32>
    %cst_127 = arith.constant dense<0.000000e+00> : vector<1x32xf32>
    %240 = tpu.matmul %237, %239, %cst_127 {dimension_numbers = #tpu.dot_dimension_numbers<[1], [0], [0], [1], [0, 0, 1, 1], [], []>} : vector<1x64xf32>, vector<64x32xf32>, vector<1x32xf32> -> vector<1x32xf32>
    %241 = arith.addf %236, %240 : vector<1x32xf32>
    %242 = vector.extract_strided_slice %235 {offsets = [1, 0], sizes = [1, 64], strides = [1, 1]} : vector<16x64xf32> to vector<1x64xf32>
    %c1_128 = arith.constant 1 : index
    %c0_129 = arith.constant 0 : index
    %c0_130 = arith.constant 0 : index
    %243 = vector.load %arg8[%c1_128, %c0_129, %c0_130] : memref<16x64x32xf32, #tpu.memory_space<vmem>>, vector<1x64x32xf32>
    %244 = vector.shape_cast %243 : vector<1x64x32xf32> to vector<64x32xf32>
    %cst_131 = arith.constant dense<0.000000e+00> : vector<1x32xf32>
    %245 = tpu.matmul %242, %244, %cst_131 {dimension_numbers = #tpu.dot_dimension_numbers<[1], [0], [0], [1], [0, 0, 1, 1], [], []>} : vector<1x64xf32>, vector<64x32xf32>, vector<1x32xf32> -> vector<1x32xf32>
    %246 = arith.addf %241, %245 : vector<1x32xf32>
    %247 = vector.extract_strided_slice %235 {offsets = [2, 0], sizes = [1, 64], strides = [1, 1]} : vector<16x64xf32> to vector<1x64xf32>
    %c2_132 = arith.constant 2 : index
    %c0_133 = arith.constant 0 : index
    %c0_134 = arith.constant 0 : index
    %248 = vector.load %arg8[%c2_132, %c0_133, %c0_134] : memref<16x64x32xf32, #tpu.memory_space<vmem>>, vector<1x64x32xf32>
    %249 = vector.shape_cast %248 : vector<1x64x32xf32> to vector<64x32xf32>
    %cst_135 = arith.constant dense<0.000000e+00> : vector<1x32xf32>
    %250 = tpu.matmul %247, %249, %cst_135 {dimension_numbers = #tpu.dot_dimension_numbers<[1], [0], [0], [1], [0, 0, 1, 1], [], []>} : vector<1x64xf32>, vector<64x32xf32>, vector<1x32xf32> -> vector<1x32xf32>
    %251 = arith.addf %246, %250 : vector<1x32xf32>
    %252 = vector.extract_strided_slice %235 {offsets = [3, 0], sizes = [1, 64], strides = [1, 1]} : vector<16x64xf32> to vector<1x64xf32>
    %c3_136 = arith.constant 3 : index
    %c0_137 = arith.constant 0 : index
    %c0_138 = arith.constant 0 : index
    %253 = vector.load %arg8[%c3_136, %c0_137, %c0_138] : memref<16x64x32xf32, #tpu.memory_space<vmem>>, vector<1x64x32xf32>
    %254 = vector.shape_cast %253 : vector<1x64x32xf32> to vector<64x32xf32>
    %cst_139 = arith.constant dense<0.000000e+00> : vector<1x32xf32>
    %255 = tpu.matmul %252, %254, %cst_139 {dimension_numbers = #tpu.dot_dimension_numbers<[1], [0], [0], [1], [0, 0, 1, 1], [], []>} : vector<1x64xf32>, vector<64x32xf32>, vector<1x32xf32> -> vector<1x32xf32>
    %256 = arith.addf %251, %255 : vector<1x32xf32>
    %257 = vector.extract_strided_slice %235 {offsets = [4, 0], sizes = [1, 64], strides = [1, 1]} : vector<16x64xf32> to vector<1x64xf32>
    %c4_140 = arith.constant 4 : index
    %c0_141 = arith.constant 0 : index
    %c0_142 = arith.constant 0 : index
    %258 = vector.load %arg8[%c4_140, %c0_141, %c0_142] : memref<16x64x32xf32, #tpu.memory_space<vmem>>, vector<1x64x32xf32>
    %259 = vector.shape_cast %258 : vector<1x64x32xf32> to vector<64x32xf32>
    %cst_143 = arith.constant dense<0.000000e+00> : vector<1x32xf32>
    %260 = tpu.matmul %257, %259, %cst_143 {dimension_numbers = #tpu.dot_dimension_numbers<[1], [0], [0], [1], [0, 0, 1, 1], [], []>} : vector<1x64xf32>, vector<64x32xf32>, vector<1x32xf32> -> vector<1x32xf32>
    %261 = arith.addf %256, %260 : vector<1x32xf32>
    %262 = vector.extract_strided_slice %235 {offsets = [5, 0], sizes = [1, 64], strides = [1, 1]} : vector<16x64xf32> to vector<1x64xf32>
    %c5_144 = arith.constant 5 : index
    %c0_145 = arith.constant 0 : index
    %c0_146 = arith.constant 0 : index
    %263 = vector.load %arg8[%c5_144, %c0_145, %c0_146] : memref<16x64x32xf32, #tpu.memory_space<vmem>>, vector<1x64x32xf32>
    %264 = vector.shape_cast %263 : vector<1x64x32xf32> to vector<64x32xf32>
    %cst_147 = arith.constant dense<0.000000e+00> : vector<1x32xf32>
    %265 = tpu.matmul %262, %264, %cst_147 {dimension_numbers = #tpu.dot_dimension_numbers<[1], [0], [0], [1], [0, 0, 1, 1], [], []>} : vector<1x64xf32>, vector<64x32xf32>, vector<1x32xf32> -> vector<1x32xf32>
    %266 = arith.addf %261, %265 : vector<1x32xf32>
    %267 = vector.extract_strided_slice %235 {offsets = [6, 0], sizes = [1, 64], strides = [1, 1]} : vector<16x64xf32> to vector<1x64xf32>
    %c6_148 = arith.constant 6 : index
    %c0_149 = arith.constant 0 : index
    %c0_150 = arith.constant 0 : index
    %268 = vector.load %arg8[%c6_148, %c0_149, %c0_150] : memref<16x64x32xf32, #tpu.memory_space<vmem>>, vector<1x64x32xf32>
    %269 = vector.shape_cast %268 : vector<1x64x32xf32> to vector<64x32xf32>
    %cst_151 = arith.constant dense<0.000000e+00> : vector<1x32xf32>
    %270 = tpu.matmul %267, %269, %cst_151 {dimension_numbers = #tpu.dot_dimension_numbers<[1], [0], [0], [1], [0, 0, 1, 1], [], []>} : vector<1x64xf32>, vector<64x32xf32>, vector<1x32xf32> -> vector<1x32xf32>
    %271 = arith.addf %266, %270 : vector<1x32xf32>
    %272 = vector.extract_strided_slice %235 {offsets = [7, 0], sizes = [1, 64], strides = [1, 1]} : vector<16x64xf32> to vector<1x64xf32>
    %c7_152 = arith.constant 7 : index
    %c0_153 = arith.constant 0 : index
    %c0_154 = arith.constant 0 : index
    %273 = vector.load %arg8[%c7_152, %c0_153, %c0_154] : memref<16x64x32xf32, #tpu.memory_space<vmem>>, vector<1x64x32xf32>
    %274 = vector.shape_cast %273 : vector<1x64x32xf32> to vector<64x32xf32>
    %cst_155 = arith.constant dense<0.000000e+00> : vector<1x32xf32>
    %275 = tpu.matmul %272, %274, %cst_155 {dimension_numbers = #tpu.dot_dimension_numbers<[1], [0], [0], [1], [0, 0, 1, 1], [], []>} : vector<1x64xf32>, vector<64x32xf32>, vector<1x32xf32> -> vector<1x32xf32>
    %276 = arith.addf %271, %275 : vector<1x32xf32>
    %277 = vector.extract_strided_slice %235 {offsets = [8, 0], sizes = [1, 64], strides = [1, 1]} : vector<16x64xf32> to vector<1x64xf32>
    %c8_156 = arith.constant 8 : index
    %c0_157 = arith.constant 0 : index
    %c0_158 = arith.constant 0 : index
    %278 = vector.load %arg8[%c8_156, %c0_157, %c0_158] : memref<16x64x32xf32, #tpu.memory_space<vmem>>, vector<1x64x32xf32>
    %279 = vector.shape_cast %278 : vector<1x64x32xf32> to vector<64x32xf32>
    %cst_159 = arith.constant dense<0.000000e+00> : vector<1x32xf32>
    %280 = tpu.matmul %277, %279, %cst_159 {dimension_numbers = #tpu.dot_dimension_numbers<[1], [0], [0], [1], [0, 0, 1, 1], [], []>} : vector<1x64xf32>, vector<64x32xf32>, vector<1x32xf32> -> vector<1x32xf32>
    %281 = arith.addf %276, %280 : vector<1x32xf32>
    %282 = vector.extract_strided_slice %235 {offsets = [9, 0], sizes = [1, 64], strides = [1, 1]} : vector<16x64xf32> to vector<1x64xf32>
    %c9 = arith.constant 9 : index
    %c0_160 = arith.constant 0 : index
    %c0_161 = arith.constant 0 : index
    %283 = vector.load %arg8[%c9, %c0_160, %c0_161] : memref<16x64x32xf32, #tpu.memory_space<vmem>>, vector<1x64x32xf32>
    %284 = vector.shape_cast %283 : vector<1x64x32xf32> to vector<64x32xf32>
    %cst_162 = arith.constant dense<0.000000e+00> : vector<1x32xf32>
    %285 = tpu.matmul %282, %284, %cst_162 {dimension_numbers = #tpu.dot_dimension_numbers<[1], [0], [0], [1], [0, 0, 1, 1], [], []>} : vector<1x64xf32>, vector<64x32xf32>, vector<1x32xf32> -> vector<1x32xf32>
    %286 = arith.addf %281, %285 : vector<1x32xf32>
    %287 = vector.extract_strided_slice %235 {offsets = [10, 0], sizes = [1, 64], strides = [1, 1]} : vector<16x64xf32> to vector<1x64xf32>
    %c10 = arith.constant 10 : index
    %c0_163 = arith.constant 0 : index
    %c0_164 = arith.constant 0 : index
    %288 = vector.load %arg8[%c10, %c0_163, %c0_164] : memref<16x64x32xf32, #tpu.memory_space<vmem>>, vector<1x64x32xf32>
    %289 = vector.shape_cast %288 : vector<1x64x32xf32> to vector<64x32xf32>
    %cst_165 = arith.constant dense<0.000000e+00> : vector<1x32xf32>
    %290 = tpu.matmul %287, %289, %cst_165 {dimension_numbers = #tpu.dot_dimension_numbers<[1], [0], [0], [1], [0, 0, 1, 1], [], []>} : vector<1x64xf32>, vector<64x32xf32>, vector<1x32xf32> -> vector<1x32xf32>
    %291 = arith.addf %286, %290 : vector<1x32xf32>
    %292 = vector.extract_strided_slice %235 {offsets = [11, 0], sizes = [1, 64], strides = [1, 1]} : vector<16x64xf32> to vector<1x64xf32>
    %c11 = arith.constant 11 : index
    %c0_166 = arith.constant 0 : index
    %c0_167 = arith.constant 0 : index
    %293 = vector.load %arg8[%c11, %c0_166, %c0_167] : memref<16x64x32xf32, #tpu.memory_space<vmem>>, vector<1x64x32xf32>
    %294 = vector.shape_cast %293 : vector<1x64x32xf32> to vector<64x32xf32>
    %cst_168 = arith.constant dense<0.000000e+00> : vector<1x32xf32>
    %295 = tpu.matmul %292, %294, %cst_168 {dimension_numbers = #tpu.dot_dimension_numbers<[1], [0], [0], [1], [0, 0, 1, 1], [], []>} : vector<1x64xf32>, vector<64x32xf32>, vector<1x32xf32> -> vector<1x32xf32>
    %296 = arith.addf %291, %295 : vector<1x32xf32>
    %297 = vector.extract_strided_slice %235 {offsets = [12, 0], sizes = [1, 64], strides = [1, 1]} : vector<16x64xf32> to vector<1x64xf32>
    %c12 = arith.constant 12 : index
    %c0_169 = arith.constant 0 : index
    %c0_170 = arith.constant 0 : index
    %298 = vector.load %arg8[%c12, %c0_169, %c0_170] : memref<16x64x32xf32, #tpu.memory_space<vmem>>, vector<1x64x32xf32>
    %299 = vector.shape_cast %298 : vector<1x64x32xf32> to vector<64x32xf32>
    %cst_171 = arith.constant dense<0.000000e+00> : vector<1x32xf32>
    %300 = tpu.matmul %297, %299, %cst_171 {dimension_numbers = #tpu.dot_dimension_numbers<[1], [0], [0], [1], [0, 0, 1, 1], [], []>} : vector<1x64xf32>, vector<64x32xf32>, vector<1x32xf32> -> vector<1x32xf32>
    %301 = arith.addf %296, %300 : vector<1x32xf32>
    %302 = vector.extract_strided_slice %235 {offsets = [13, 0], sizes = [1, 64], strides = [1, 1]} : vector<16x64xf32> to vector<1x64xf32>
    %c13 = arith.constant 13 : index
    %c0_172 = arith.constant 0 : index
    %c0_173 = arith.constant 0 : index
    %303 = vector.load %arg8[%c13, %c0_172, %c0_173] : memref<16x64x32xf32, #tpu.memory_space<vmem>>, vector<1x64x32xf32>
    %304 = vector.shape_cast %303 : vector<1x64x32xf32> to vector<64x32xf32>
    %cst_174 = arith.constant dense<0.000000e+00> : vector<1x32xf32>
    %305 = tpu.matmul %302, %304, %cst_174 {dimension_numbers = #tpu.dot_dimension_numbers<[1], [0], [0], [1], [0, 0, 1, 1], [], []>} : vector<1x64xf32>, vector<64x32xf32>, vector<1x32xf32> -> vector<1x32xf32>
    %306 = arith.addf %301, %305 : vector<1x32xf32>
    %307 = vector.extract_strided_slice %235 {offsets = [14, 0], sizes = [1, 64], strides = [1, 1]} : vector<16x64xf32> to vector<1x64xf32>
    %c14 = arith.constant 14 : index
    %c0_175 = arith.constant 0 : index
    %c0_176 = arith.constant 0 : index
    %308 = vector.load %arg8[%c14, %c0_175, %c0_176] : memref<16x64x32xf32, #tpu.memory_space<vmem>>, vector<1x64x32xf32>
    %309 = vector.shape_cast %308 : vector<1x64x32xf32> to vector<64x32xf32>
    %cst_177 = arith.constant dense<0.000000e+00> : vector<1x32xf32>
    %310 = tpu.matmul %307, %309, %cst_177 {dimension_numbers = #tpu.dot_dimension_numbers<[1], [0], [0], [1], [0, 0, 1, 1], [], []>} : vector<1x64xf32>, vector<64x32xf32>, vector<1x32xf32> -> vector<1x32xf32>
    %311 = arith.addf %306, %310 : vector<1x32xf32>
    %312 = vector.extract_strided_slice %235 {offsets = [15, 0], sizes = [1, 64], strides = [1, 1]} : vector<16x64xf32> to vector<1x64xf32>
    %c15 = arith.constant 15 : index
    %c0_178 = arith.constant 0 : index
    %c0_179 = arith.constant 0 : index
    %313 = vector.load %arg8[%c15, %c0_178, %c0_179] : memref<16x64x32xf32, #tpu.memory_space<vmem>>, vector<1x64x32xf32>
    %314 = vector.shape_cast %313 : vector<1x64x32xf32> to vector<64x32xf32>
    %cst_180 = arith.constant dense<0.000000e+00> : vector<1x32xf32>
    %315 = tpu.matmul %312, %314, %cst_180 {dimension_numbers = #tpu.dot_dimension_numbers<[1], [0], [0], [1], [0, 0, 1, 1], [], []>} : vector<1x64xf32>, vector<64x32xf32>, vector<1x32xf32> -> vector<1x32xf32>
    %316 = arith.addf %311, %315 : vector<1x32xf32>
    %cst_181 = arith.constant 0.000000e+00 : f32
    %317 = vector.broadcast %cst_181 : f32 to vector<1x32xf32>
    %318 = arith.maximumf %316, %317 : vector<1x32xf32>
    %c0_182 = arith.constant 0 : index
    %c0_183 = arith.constant 0 : index
    %319 = vector.load %arg10[%c0_182, %c0_183] : memref<32x10xf32, #tpu.memory_space<vmem>>, vector<32x10xf32>
    %cst_184 = arith.constant dense<0.000000e+00> : vector<1x10xf32>
    %320 = tpu.matmul %318, %319, %cst_184 {dimension_numbers = #tpu.dot_dimension_numbers<[1], [0], [0], [1], [0, 0, 1, 1], [], []>} : vector<1x32xf32>, vector<32x10xf32>, vector<1x10xf32> -> vector<1x10xf32>
    %c0_185 = arith.constant 0 : index
    %c0_186 = arith.constant 0 : index
    %321 = vector.load %arg11[%c0_185, %c0_186] : memref<1x10xf32, #tpu.memory_space<vmem>>, vector<1x10xf32>
    %322 = arith.addf %320, %321 : vector<1x10xf32>
    %c0_187 = arith.constant 0 : index
    %c0_188 = arith.constant 0 : index
    %c0_189 = arith.constant 0 : index
    %323 = vector.load %arg12[%c0_187, %c0_188, %c0_189] : memref<1x1x10xf32, #tpu.memory_space<vmem>>, vector<1x1x10xf32>
    %324 = vector.shape_cast %323 : vector<1x1x10xf32> to vector<1x10xf32>
    %325 = vector.shape_cast %322 : vector<1x10xf32> to vector<1x1x10xf32>
    tpu.vector_store %arg12[%c0_187, %c0_188, %c0_189], %325 {strides = array<i32>} : memref<1x1x10xf32, #tpu.memory_space<vmem>>, vector<1x1x10xf32>,
    return
  }
  func.func @transform_0(%arg0: i32) -> (i32, i32, i32) {
    %c0_i32 = arith.constant 0 : i32
    %c0_i32_0 = arith.constant 0 : i32
    %c0_i32_1 = arith.constant 0 : i32
    return %arg0, %c0_i32, %c0_i32_0 : i32, i32, i32
  }
  func.func @transform_1(%arg0: i32) -> (i32, i32, i32) {
    %c0_i32 = arith.constant 0 : i32
    %c0_i32_0 = arith.constant 0 : i32
    %c0_i32_1 = arith.constant 0 : i32
    %c0_i32_2 = arith.constant 0 : i32
    return %c0_i32, %c0_i32_0, %c0_i32_1 : i32, i32, i32
  }
  func.func @transform_2(%arg0: i32) -> (i32, i32) {
    %c0_i32 = arith.constant 0 : i32
    %c0_i32_0 = arith.constant 0 : i32
    %c0_i32_1 = arith.constant 0 : i32
    return %c0_i32, %c0_i32_0 : i32, i32
  }
  func.func @transform_3(%arg0: i32) -> (i32, i32) {
    %c0_i32 = arith.constant 0 : i32
    %c0_i32_0 = arith.constant 0 : i32
    %c0_i32_1 = arith.constant 0 : i32
    return %c0_i32, %c0_i32_0 : i32, i32
  }
  func.func @transform_4(%arg0: i32) -> (i32, i32, i32) {
    %c0_i32 = arith.constant 0 : i32
    %c0_i32_0 = arith.constant 0 : i32
    %c0_i32_1 = arith.constant 0 : i32
    %c0_i32_2 = arith.constant 0 : i32
    return %c0_i32, %c0_i32_0, %c0_i32_1 : i32, i32, i32
  }
  func.func @transform_5(%arg0: i32) -> (i32, i32) {
    %c0_i32 = arith.constant 0 : i32
    %c0_i32_0 = arith.constant 0 : i32
    %c0_i32_1 = arith.constant 0 : i32
    return %c0_i32, %c0_i32_0 : i32, i32
  }
  func.func @transform_6(%arg0: i32) -> (i32, i32) {
    %c0_i32 = arith.constant 0 : i32
    %c0_i32_0 = arith.constant 0 : i32
    %c0_i32_1 = arith.constant 0 : i32
    return %c0_i32, %c0_i32_0 : i32, i32
  }
  func.func @transform_7(%arg0: i32) -> (i32, i32, i32) {
    %c0_i32 = arith.constant 0 : i32
    %c0_i32_0 = arith.constant 0 : i32
    %c0_i32_1 = arith.constant 0 : i32
    %c0_i32_2 = arith.constant 0 : i32
    return %c0_i32, %c0_i32_0, %c0_i32_1 : i32, i32, i32
  }
  func.func @transform_8(%arg0: i32) -> (i32, i32) {
    %c0_i32 = arith.constant 0 : i32
    %c0_i32_0 = arith.constant 0 : i32
    %c0_i32_1 = arith.constant 0 : i32
    return %c0_i32, %c0_i32_0 : i32, i32
  }
  func.func @transform_9(%arg0: i32) -> (i32, i32) {
    %c0_i32 = arith.constant 0 : i32
    %c0_i32_0 = arith.constant 0 : i32
    %c0_i32_1 = arith.constant 0 : i32
    return %c0_i32, %c0_i32_0 : i32, i32
  }
  func.func @transform_10(%arg0: i32) -> (i32, i32) {
    %c0_i32 = arith.constant 0 : i32
    %c0_i32_0 = arith.constant 0 : i32
    %c0_i32_1 = arith.constant 0 : i32
    return %c0_i32, %c0_i32_0 : i32, i32
  }
  func.func @transform_11(%arg0: i32) -> (i32, i32, i32) {
    %c0_i32 = arith.constant 0 : i32
    %c0_i32_0 = arith.constant 0 : i32
    %c0_i32_1 = arith.constant 0 : i32
    return %arg0, %c0_i32, %c0_i32_0 : i32, i32, i32
  }
}

</mosaic_0001>

<llo_original>
// kernel: _lambda_.1
$region0: #{_lambda_.1}
  #allocation0 [shape = 'u32[]', space=smem, size = 0x4, offset = 0x4, fixed_abs, tag = 'smem constant byte address 0x4 - core index']
  #allocation1 [shape = 'u32[144,128]{1,0:T(1,128)}', space=vmem, size = 0x12000, scoped, tag = 'internal scratch']
  %s0 = inlined_call_operand.vmem [shape: f32[2,8,1024], index: 0, kind: input, shape index: {}]
  %s1 = inlined_call_operand.hbm [shape: f32[9,8,8], index: 1, kind: input, shape index: {}]
  %s2 = inlined_call_operand.vmem [shape: f32[8,1], index: 2, kind: input, shape index: {}]
  %s3 = inlined_call_operand.hbm [shape: f32[1024,256], index: 3, kind: input, shape index: {}]
  %s4 = inlined_call_operand.vmem [shape: f32[9,16,8], index: 4, kind: input, shape index: {}]
  %s5 = inlined_call_operand.vmem [shape: f32[16,1], index: 5, kind: input, shape index: {}]
  %s6 = inlined_call_operand.vmem [shape: f32[256,64], index: 6, kind: input, shape index: {}]
  %s7 = inlined_call_operand.hbm [shape: f32[16,64,32], index: 7, kind: input, shape index: {}]
  %s8 = inlined_call_operand.vmem [shape: f32[1,32], index: 8, kind: input, shape index: {}]
  %s9 = inlined_call_operand.vmem [shape: f32[32,10], index: 9, kind: input, shape index: {}]
  %s10 = inlined_call_operand.vmem [shape: f32[1,10], index: 10, kind: input, shape index: {}]
  %s11 = inlined_call_operand.hbm [shape: f32[2,1,10], index: 11, kind: output, shape index: {}]
  %s12 = sld [smem:[#allocation0]]
  $region89: #{_lambda_.1} parent=0
    _
  %s14 = ssub.s32 1, %s12
  %s15 = scalar_select 0, %s14, %s12
  $region1: #{_lambda_.1} parent=0
    #allocation2 [shape = 'u8[36864]{0}', space=vmem, size = 0x9000, scoped, tag = 'input window, operand 1, single buffered']
    #allocation3 [shape = 's32[2]{0}', space=sflag, size = 0x8, scoped, tag = 'scoped memory for _lambda_.1']
    #allocation4 [shape = 's32[2]{0}', space=sflag, size = 0x8, scoped, tag = 'scoped memory for _lambda_.1']
    #allocation5 [shape = 'u8[1048576]{0}', space=vmem, size = 0x100000, scoped, tag = 'input window, operand 3, single buffered']
    #allocation6 [shape = 's32[1]{0}', space=sflag, size = 0x4, scoped, tag = 'scoped memory for _lambda_.1']
    #allocation7 [shape = 'u8[524288]{0}', space=vmem, size = 0x80000, scoped, tag = 'input window, operand 7, single buffered']
    #allocation8 [shape = 'u8[1024]{0}', space=vmem, size = 0x400, scoped, tag = 'output window, operand 0']
    %16 = vsyncpa [#allocation3], 0
    %17 = vsyncpa [#allocation6], 0
    %18 = vsyncpa [#allocation4], 0
    %s19 = scalar_lea.sflag [#allocation4], 1
    %20 = vsyncpa %s19, 0
    loop: start=0, step=1, limit=4
    $region2: #{_lambda_.1} parent=1 // loop_pre_header
      _
    $region3: #{_lambda_.1} parent=1 // loop_header
      %s22 = sphi 0, %s26
      %p23 = scmp.ge.s32.totalorder %s22, 4
      %s32 = sphi 0, %s34
      %s35 = sphi 0, %s32
      %s36 = sphi 0, %s35
      %s52 = sphi 0, %s36
      %s56 = sphi 0, %s56
      %s58 = sphi 0, %s56
      %s59 = sphi 0, %s58
      %s73 = sphi 0, %s59
      %s77 = sphi 0, %s77
      %s79 = sphi 0, %s77
      %s80 = sphi 0, %s79
      %s94 = sphi 0, %s80
      %s98 = sphi 0, %s98
      %s100 = sphi 0, %s98
      %s101 = sphi 0, %s100
      %s115 = sphi 0, %s101
      %s119 = sphi 0, %s119
      %s121 = sphi 0, %s119
      %s122 = sphi 0, %s121
      %s136 = sphi 0, %s122
      %s140 = sphi 0, %s140
      %s142 = sphi 0, %s140
      %s143 = sphi 0, %s142
      %s157 = sphi 0, %s143
      %s161 = sphi 0, %s161
      %s163 = sphi 0, %s161
      %s164 = sphi 0, %s163
      %s178 = sphi 0, %s164
      %s182 = sphi 0, %s182
      %s184 = sphi 0, %s182
      %s185 = sphi 0, %s184
      %s199 = sphi 0, %s185
      %s203 = sphi 0, %s203
      %s205 = sphi 0, %s203
      %s206 = sphi 0, %s205
      %s220 = sphi 0, %s206
      %s224 = sphi 0, %s224
      %s226 = sphi 0, %s224
      %s227 = sphi 0, %s226
      %s241 = sphi 0, %s227
      %s245 = sphi 0, %s245
      %s247 = sphi 0, %s245
      %s248 = sphi 0, %s247
      %s262 = sphi 0, %s248
      %s268 = sphi 0, %s270
      %s271 = sphi 0, %s268
      %s272 = sphi 0, %s271
      %s288 = sphi 0, %s272
    $region4: #{_lambda_.1} parent=1 // loop_header_branch
      %25 = sbr.rel (%p23) target = $region8
    $region5: #{_lambda_.1} parent=1 // loop_body
      %s27 = ssub.s32 %s22, 1
      %s28 = ssub.s32 %s22, 2
      %s29 = sadd.s32 %s22, 1
      %s30 = ssub.s32 %s22, %s29
      %p31 = scmp.eq.s32.totalorder %s30, 0
      %s33 = sadd.s32 %s32, 1
      %s34 = scalar_select %p31, %s32, %s33
      %p37 = pneg %p31
      %p38 = scmp.eq.s32.totalorder %s22, 1
      %p39 = por %p37, %p38
      %p40 = scmp.ne.s32.totalorder %s32, %s35
      %p41 = scmp.eq.s32.totalorder %s22, 0
      %p42 = por %p40, %p41
      %p43 = scmp.ne.s32.totalorder %s32, %s35
      %p44 = scmp.eq.s32.totalorder %s27, 1
      %p45 = por %p43, %p44
      %p46 = scmp.ne.s32.totalorder %s35, %s36
      %p47 = scmp.eq.s32.totalorder %s27, 0
      %p48 = por %p46, %p47
      %p49 = scmp.ne.s32.totalorder %s35, %s36
      %p50 = scmp.eq.s32.totalorder %s28, 1
      %p51 = por %p49, %p50
      %p53 = scmp.ne.s32.totalorder %s36, %s52
      %p54 = scmp.eq.s32.totalorder %s28, 0
      %p55 = por %p53, %p54
      %s57 = sadd.s32 %s56, 1
      %p60 = scmp.eq.s32.totalorder %s22, 1
      %p61 = scmp.ne.s32.totalorder %s56, %s58
      %p62 = scmp.eq.s32.totalorder %s22, 0
      %p63 = por %p61, %p62
      %p64 = scmp.ne.s32.totalorder %s56, %s58
      %p65 = scmp.eq.s32.totalorder %s27, 1
      %p66 = por %p64, %p65
      %p67 = scmp.ne.s32.totalorder %s58, %s59
      %p68 = scmp.eq.s32.totalorder %s27, 0
      %p69 = por %p67, %p68
      %p70 = scmp.ne.s32.totalorder %s58, %s59
      %p71 = scmp.eq.s32.totalorder %s28, 1
      %p72 = por %p70, %p71
      %p74 = scmp.ne.s32.totalorder %s59, %s73
      %p75 = scmp.eq.s32.totalorder %s28, 0
      %p76 = por %p74, %p75
      %s78 = sadd.s32 %s77, 1
      %p81 = scmp.eq.s32.totalorder %s22, 1
      %p82 = scmp.ne.s32.totalorder %s77, %s79
      %p83 = scmp.eq.s32.totalorder %s22, 0
      %p84 = por %p82, %p83
      %p85 = scmp.ne.s32.totalorder %s77, %s79
      %p86 = scmp.eq.s32.totalorder %s27, 1
      %p87 = por %p85, %p86
      %p88 = scmp.ne.s32.totalorder %s79, %s80
      %p89 = scmp.eq.s32.totalorder %s27, 0
      %p90 = por %p88, %p89
      %p91 = scmp.ne.s32.totalorder %s79, %s80
      %p92 = scmp.eq.s32.totalorder %s28, 1
      %p93 = por %p91, %p92
      %p95 = scmp.ne.s32.totalorder %s80, %s94
      %p96 = scmp.eq.s32.totalorder %s28, 0
      %p97 = por %p95, %p96
      %s99 = sadd.s32 %s98, 1
      %p102 = scmp.eq.s32.totalorder %s22, 1
      %p103 = scmp.ne.s32.totalorder %s98, %s100
      %p104 = scmp.eq.s32.totalorder %s22, 0
      %p105 = por %p103, %p104
      %p106 = scmp.ne.s32.totalorder %s98, %s100
      %p107 = scmp.eq.s32.totalorder %s27, 1
      %p108 = por %p106, %p107
      %p109 = scmp.ne.s32.totalorder %s100, %s101
      %p110 = scmp.eq.s32.totalorder %s27, 0
      %p111 = por %p109, %p110
      %p112 = scmp.ne.s32.totalorder %s100, %s101
      %p113 = scmp.eq.s32.totalorder %s28, 1
      %p114 = por %p112, %p113
      %p116 = scmp.ne.s32.totalorder %s101, %s115
      %p117 = scmp.eq.s32.totalorder %s28, 0
      %p118 = por %p116, %p117
      %s120 = sadd.s32 %s119, 1
      %p123 = scmp.eq.s32.totalorder %s22, 1
      %p124 = scmp.ne.s32.totalorder %s119, %s121
      %p125 = scmp.eq.s32.totalorder %s22, 0
      %p126 = por %p124, %p125
      %p127 = scmp.ne.s32.totalorder %s119, %s121
      %p128 = scmp.eq.s32.totalorder %s27, 1
      %p129 = por %p127, %p128
      %p130 = scmp.ne.s32.totalorder %s121, %s122
      %p131 = scmp.eq.s32.totalorder %s27, 0
      %p132 = por %p130, %p131
      %p133 = scmp.ne.s32.totalorder %s121, %s122
      %p134 = scmp.eq.s32.totalorder %s28, 1
      %p135 = por %p133, %p134
      %p137 = scmp.ne.s32.totalorder %s122, %s136
      %p138 = scmp.eq.s32.totalorder %s28, 0
      %p139 = por %p137, %p138
      %s141 = sadd.s32 %s140, 1
      %p144 = scmp.eq.s32.totalorder %s22, 1
      %p145 = scmp.ne.s32.totalorder %s140, %s142
      %p146 = scmp.eq.s32.totalorder %s22, 0
      %p147 = por %p145, %p146
      %p148 = scmp.ne.s32.totalorder %s140, %s142
      %p149 = scmp.eq.s32.totalorder %s27, 1
      %p150 = por %p148, %p149
      %p151 = scmp.ne.s32.totalorder %s142, %s143
      %p152 = scmp.eq.s32.totalorder %s27, 0
      %p153 = por %p151, %p152
      %p154 = scmp.ne.s32.totalorder %s142, %s143
      %p155 = scmp.eq.s32.totalorder %s28, 1
      %p156 = por %p154, %p155
      %p158 = scmp.ne.s32.totalorder %s143, %s157
      %p159 = scmp.eq.s32.totalorder %s28, 0
      %p160 = por %p158, %p159
      %s162 = sadd.s32 %s161, 1
      %p165 = scmp.eq.s32.totalorder %s22, 1
      %p166 = scmp.ne.s32.totalorder %s161, %s163
      %p167 = scmp.eq.s32.totalorder %s22, 0
      %p168 = por %p166, %p167
      %p169 = scmp.ne.s32.totalorder %s161, %s163
      %p170 = scmp.eq.s32.totalorder %s27, 1
      %p171 = por %p169, %p170
      %p172 = scmp.ne.s32.totalorder %s163, %s164
      %p173 = scmp.eq.s32.totalorder %s27, 0
      %p174 = por %p172, %p173
      %p175 = scmp.ne.s32.totalorder %s163, %s164
      %p176 = scmp.eq.s32.totalorder %s28, 1
      %p177 = por %p175, %p176
      %p179 = scmp.ne.s32.totalorder %s164, %s178
      %p180 = scmp.eq.s32.totalorder %s28, 0
      %p181 = por %p179, %p180
      %s183 = sadd.s32 %s182, 1
      %p186 = scmp.eq.s32.totalorder %s22, 1
      %p187 = scmp.ne.s32.totalorder %s182, %s184
      %p188 = scmp.eq.s32.totalorder %s22, 0
      %p189 = por %p187, %p188
      %p190 = scmp.ne.s32.totalorder %s182, %s184
      %p191 = scmp.eq.s32.totalorder %s27, 1
      %p192 = por %p190, %p191
      %p193 = scmp.ne.s32.totalorder %s184, %s185
      %p194 = scmp.eq.s32.totalorder %s27, 0
      %p195 = por %p193, %p194
      %p196 = scmp.ne.s32.totalorder %s184, %s185
      %p197 = scmp.eq.s32.totalorder %s28, 1
      %p198 = por %p196, %p197
      %p200 = scmp.ne.s32.totalorder %s185, %s199
      %p201 = scmp.eq.s32.totalorder %s28, 0
      %p202 = por %p200, %p201
      %s204 = sadd.s32 %s203, 1
      %p207 = scmp.eq.s32.totalorder %s22, 1
      %p208 = scmp.ne.s32.totalorder %s203, %s205
      %p209 = scmp.eq.s32.totalorder %s22, 0
      %p210 = por %p208, %p209
      %p211 = scmp.ne.s32.totalorder %s203, %s205
      %p212 = scmp.eq.s32.totalorder %s27, 1
      %p213 = por %p211, %p212
      %p214 = scmp.ne.s32.totalorder %s205, %s206
      %p215 = scmp.eq.s32.totalorder %s27, 0
      %p216 = por %p214, %p215
      %p217 = scmp.ne.s32.totalorder %s205, %s206
      %p218 = scmp.eq.s32.totalorder %s28, 1
      %p219 = por %p217, %p218
      %p221 = scmp.ne.s32.totalorder %s206, %s220
      %p222 = scmp.eq.s32.totalorder %s28, 0
      %p223 = por %p221, %p222
      %s225 = sadd.s32 %s224, 1
      %p228 = scmp.eq.s32.totalorder %s22, 1
      %p229 = scmp.ne.s32.totalorder %s224, %s226
      %p230 = scmp.eq.s32.totalorder %s22, 0
      %p231 = por %p229, %p230
      %p232 = scmp.ne.s32.totalorder %s224, %s226
      %p233 = scmp.eq.s32.totalorder %s27, 1
      %p234 = por %p232, %p233
      %p235 = scmp.ne.s32.totalorder %s226, %s227
      %p236 = scmp.eq.s32.totalorder %s27, 0
      %p237 = por %p235, %p236
      %p238 = scmp.ne.s32.totalorder %s226, %s227
      %p239 = scmp.eq.s32.totalorder %s28, 1
      %p240 = por %p238, %p239
      %p242 = scmp.ne.s32.totalorder %s227, %s241
      %p243 = scmp.eq.s32.totalorder %s28, 0
      %p244 = por %p242, %p243
      %s246 = sadd.s32 %s245, 1
      %p249 = scmp.eq.s32.totalorder %s22, 1
      %p250 = scmp.ne.s32.totalorder %s245, %s247
      %p251 = scmp.eq.s32.totalorder %s22, 0
      %p252 = por %p250, %p251
      %p253 = scmp.ne.s32.totalorder %s245, %s247
      %p254 = scmp.eq.s32.totalorder %s27, 1
      %p255 = por %p253, %p254
      %p256 = scmp.ne.s32.totalorder %s247, %s248
      %p257 = scmp.eq.s32.totalorder %s27, 0
      %p258 = por %p256, %p257
      %p259 = scmp.ne.s32.totalorder %s247, %s248
      %p260 = scmp.eq.s32.totalorder %s28, 1
      %p261 = por %p259, %p260
      %p263 = scmp.ne.s32.totalorder %s248, %s262
      %p264 = scmp.eq.s32.totalorder %s28, 0
      %p265 = por %p263, %p264
      %s266 = ssub.s32 %s22, %s29
      %p267 = scmp.eq.s32.totalorder %s266, 0
      %s269 = sadd.s32 %s268, 1
      %s270 = scalar_select %p267, %s268, %s269
      %p273 = pneg %p267
      %p274 = scmp.eq.s32.totalorder %s22, 1
      %p275 = por %p273, %p274
      %p276 = scmp.ne.s32.totalorder %s268, %s271
      %p277 = scmp.eq.s32.totalorder %s22, 0
      %p278 = por %p276, %p277
      %p279 = scmp.ne.s32.totalorder %s268, %s271
      %p280 = scmp.eq.s32.totalorder %s27, 1
      %p281 = por %p279, %p280
      %p282 = scmp.ne.s32.totalorder %s271, %s272
      %p283 = scmp.eq.s32.totalorder %s27, 0
      %p284 = por %p282, %p283
      %p285 = scmp.ne.s32.totalorder %s271, %s272
      %p286 = scmp.eq.s32.totalorder %s28, 1
      %p287 = por %p285, %p286
      %p289 = scmp.ne.s32.totalorder %s272, %s288
      %p290 = scmp.eq.s32.totalorder %s28, 0
      %p291 = por %p289, %p290
      %p292 = scmp.le.s32.totalorder 1, %s22
      %p293 = scmp.lt.s32.totalorder %s22, 3
      %p294 = pnand %p292, %p293
      %p295 = pneg %p294
      // Predicated region
      $region9: #{_lambda_.1} parent=5 // pred_check
        _
      $region10: #{_lambda_.1} parent=5 // pred_check_branch
        %297 = sbr.rel (%p294) target = $region12
      $region11: #{_lambda_.1} parent=5 // pred_region
        %s298 = ssub.s32 %s22, 1
        // Predicated region
        $region13: #{_lambda_.1} parent=11 // pred_check
          %p299 = pneg %p69
        $region14: #{_lambda_.1} parent=11 // pred_check_branch
          %301 = sbr.rel (%p299) target = $region16
        $region15: #{_lambda_.1} parent=11 // pred_region
          %s303 = ssub.s32 1152, 1152
          %304 = vsyncadd [#allocation3], %s303
          %s305 = sshll.u32 [#allocation2], 4
          %s306 = int_to_ptr.vmem [resolvable:$true] %s305
          %311 = dma.hbm_to_vmem [thread:$0]  %s1, 1152, %s306, [#allocation3], 128, 128, 8
        $region16: #{_lambda_.1} parent=11 // pred_fallthru
          _
        // Predicated region
        $region17: #{_lambda_.1} parent=11 // pred_check
          %p312 = pneg %p90
        $region18: #{_lambda_.1} parent=11 // pred_check_branch
          %314 = sbr.rel (%p312) target = $region20
        $region19: #{_lambda_.1} parent=11 // pred_region
          _
        $region20: #{_lambda_.1} parent=11 // pred_fallthru
          _
        // Predicated region
        $region21: #{_lambda_.1} parent=11 // pred_check
          %p315 = pneg %p111
        $region22: #{_lambda_.1} parent=11 // pred_check_branch
          %317 = sbr.rel (%p315) target = $region24
        $region23: #{_lambda_.1} parent=11 // pred_region
          %s319 = ssub.s32 32768, 32768
          %320 = vsyncadd [#allocation6], %s319
          %s321 = sshll.u32 [#allocation5], 4
          %s322 = int_to_ptr.vmem [resolvable:$true] %s321
          %327 = dma.hbm_to_vmem [thread:$0]  %s3, 32768, %s322, [#allocation6], 256, 256, 16
        $region24: #{_lambda_.1} parent=11 // pred_fallthru
          _
        // Predicated region
        $region25: #{_lambda_.1} parent=11 // pred_check
          %p328 = pneg %p132
        $region26: #{_lambda_.1} parent=11 // pred_check_branch
          %330 = sbr.rel (%p328) target = $region28
        $region27: #{_lambda_.1} parent=11 // pred_region
          _
        $region28: #{_lambda_.1} parent=11 // pred_fallthru
          _
        // Predicated region
        $region29: #{_lambda_.1} parent=11 // pred_check
          %p331 = pneg %p153
        $region30: #{_lambda_.1} parent=11 // pred_check_branch
          %333 = sbr.rel (%p331) target = $region32
        $region31: #{_lambda_.1} parent=11 // pred_region
          _
        $region32: #{_lambda_.1} parent=11 // pred_fallthru
          _
        // Predicated region
        $region33: #{_lambda_.1} parent=11 // pred_check
          %p334 = pneg %p174
        $region34: #{_lambda_.1} parent=11 // pred_check_branch
          %336 = sbr.rel (%p334) target = $region36
        $region35: #{_lambda_.1} parent=11 // pred_region
          _
        $region36: #{_lambda_.1} parent=11 // pred_fallthru
          _
        // Predicated region
        $region37: #{_lambda_.1} parent=11 // pred_check
          %p337 = pneg %p195
        $region38: #{_lambda_.1} parent=11 // pred_check_branch
          %339 = sbr.rel (%p337) target = $region40
        $region39: #{_lambda_.1} parent=11 // pred_region
          %s341 = ssub.s32 16384, 16384
          %342 = vsyncadd [#allocation6], %s341
          %s343 = sshll.u32 [#allocation7], 4
          %s344 = int_to_ptr.vmem [resolvable:$true] %s343
          %349 = dma.hbm_to_vmem [thread:$0]  %s7, 16384, %s344, [#allocation6], 128, 128, 8
        $region40: #{_lambda_.1} parent=11 // pred_fallthru
          _
        // Predicated region
        $region41: #{_lambda_.1} parent=11 // pred_check
          %p350 = pneg %p216
        $region42: #{_lambda_.1} parent=11 // pred_check_branch
          %352 = sbr.rel (%p350) target = $region44
        $region43: #{_lambda_.1} parent=11 // pred_region
          _
        $region44: #{_lambda_.1} parent=11 // pred_fallthru
          _
        // Predicated region
        $region45: #{_lambda_.1} parent=11 // pred_check
          %p353 = pneg %p237
        $region46: #{_lambda_.1} parent=11 // pred_check_branch
          %355 = sbr.rel (%p353) target = $region48
        $region47: #{_lambda_.1} parent=11 // pred_region
          _
        $region48: #{_lambda_.1} parent=11 // pred_fallthru
          _
        // Predicated region
        $region49: #{_lambda_.1} parent=11 // pred_check
          %p356 = pneg %p258
        $region50: #{_lambda_.1} parent=11 // pred_check_branch
          %358 = sbr.rel (%p356) target = $region52
        $region51: #{_lambda_.1} parent=11 // pred_region
          _
        $region52: #{_lambda_.1} parent=11 // pred_fallthru
          _
      $region12: #{_lambda_.1} parent=5 // pred_fallthru
        _
      %p359 = scmp.lt.s32.totalorder %s22, 2
      // Predicated region
      $region53: #{_lambda_.1} parent=5 // pred_check
        %p360 = pneg %p359
      $region54: #{_lambda_.1} parent=5 // pred_check_branch
        %362 = sbr.rel (%p360) target = $region56
      $region55: #{_lambda_.1} parent=5 // pred_region
        // Predicated region
        $region57: #{_lambda_.1} parent=55 // pred_check
          %p363 = pneg %p42
        $region58: #{_lambda_.1} parent=55 // pred_check_branch
          %365 = sbr.rel (%p363) target = $region60
        $region59: #{_lambda_.1} parent=55 // pred_region
          %p366 = scmp.lt.s32.totalorder %s22, 1
          %s367 = scalar_select %p366, %s22, 1
          %s368 = smul.addr %s367, 8
          %s369 = smul.addr %s368, 8
          %s370 = scalar_lea.vmem %s0, %s369
        $region60: #{_lambda_.1} parent=55 // pred_fallthru
          _
      $region56: #{_lambda_.1} parent=5 // pred_fallthru
        _
      %p371 = scmp.le.s32.totalorder 1, %s22
      %p372 = scmp.lt.s32.totalorder %s22, 3
      %p373 = pnand %p371, %p372
      %p374 = pneg %p373
      // Predicated region
      $region61: #{_lambda_.1} parent=5 // pred_check
        _
      $region62: #{_lambda_.1} parent=5 // pred_check_branch
        %376 = sbr.rel (%p373) target = $region64
      $region63: #{_lambda_.1} parent=5 // pred_region
        %s377 = ssub.s32 %s22, 1
        // Predicated region
        $region65: #{_lambda_.1} parent=63 // pred_check
          %p378 = pneg %p69
        $region66: #{_lambda_.1} parent=63 // pred_check_branch
          %380 = sbr.rel (%p378) target = $region68
        $region67: #{_lambda_.1} parent=63 // pred_region
          %381 = dma.done [#allocation3], 1152
        $region68: #{_lambda_.1} parent=63 // pred_fallthru
          _
        // Predicated region
        $region69: #{_lambda_.1} parent=63 // pred_check
          %p382 = pneg %p111
        $region70: #{_lambda_.1} parent=63 // pred_check_branch
          %384 = sbr.rel (%p382) target = $region72
        $region71: #{_lambda_.1} parent=63 // pred_region
          %385 = dma.done [#allocation6], 32768
        $region72: #{_lambda_.1} parent=63 // pred_fallthru
          _
        // Predicated region
        $region73: #{_lambda_.1} parent=63 // pred_check
          %p386 = pneg %p195
        $region74: #{_lambda_.1} parent=63 // pred_check_branch
          %388 = sbr.rel (%p386) target = $region76
        $region75: #{_lambda_.1} parent=63 // pred_region
          %389 = dma.done [#allocation6], 16384
        $region76: #{_lambda_.1} parent=63 // pred_fallthru
          _
        %p390 = scmp.lt.s32.totalorder %s27, 1
        %s391 = scalar_select %p390, %s27, 1
        %s392 = smul.addr %s391, 8
        %s393 = smul.addr %s392, 8
        %s394 = scalar_lea.vmem %s0, %s393
        %p395 = pneg %p48
        %p396 = pneg %p45
        %p397 = pneg %p69
        %p398 = pneg %p66
        %p399 = pneg %p90
        %p400 = pneg %p87
        %p401 = pneg %p111
        %p402 = pneg %p108
        %p403 = pneg %p132
        %p404 = pneg %p129
        %p405 = pneg %p153
        %p406 = pneg %p150
        %p407 = pneg %p174
        %p408 = pneg %p171
        %p409 = pneg %p195
        %p410 = pneg %p192
        %p411 = pneg %p216
        %p412 = pneg %p213
        %p413 = pneg %p237
        %p414 = pneg %p234
        %p415 = pneg %p258
        %p416 = pneg %p255
        %p417 = pneg %p284
        %p418 = pneg %p281
        %s419 = sand.u32 %s271, 1
        %s420 = scalar_lea.sflag [#allocation4], %s419
        %s421 = sand.u32 %s271, 1
        %s422 = scalar_lea.vmem [#allocation8], %s421
        %p423 = scmp.lt.s32.totalorder %s27, 1
        %s424 = scalar_select %p423, %s27, 1
        %s425 = smul.addr %s424, 8
        %s426 = smul.addr %s425, 8
        %s427 = scalar_lea.vmem %s0, %s426
        %v428 = vld [vmem:[%s427] sm:$0xff]
        %v429 = vld [vmem:[%s427 + $0x8] sm:$0xff]
        %v430 = vld [vmem:[%s427 + $0x10] sm:$0xff]
        %v431 = vld [vmem:[%s427 + $0x18] sm:$0xff]
        %v432 = vld [vmem:[%s427 + $0x20] sm:$0xff]
        %v433 = vld [vmem:[%s427 + $0x28] sm:$0xff]
        %v434 = vld [vmem:[%s427 + $0x30] sm:$0xff]
        %v435 = vld [vmem:[%s427 + $0x38] sm:$0xff]
        %v436 = vlaneseq
        %v437 = vand.u32 %v436, 127
        %v438 = vadd.s32 %v437, 128
        %v439 = vadd.s32 %v437, 256
        %v440 = vadd.s32 %v437, 384
        %v441 = vadd.s32 %v437, 512
        %v442 = vadd.s32 %v437, 640
        %v443 = vadd.s32 %v437, 768
        %v444 = vadd.s32 %v437, 896
        %v445 = vand.u32 %v437, 31
        %v446 = vand.u32 %v438, 31
        %v447 = vand.u32 %v439, 31
        %v448 = vand.u32 %v440, 31
        %v449 = vand.u32 %v441, 31
        %v450 = vand.u32 %v442, 31
        %v451 = vand.u32 %v443, 31
        %v452 = vand.u32 %v444, 31
        %453 = vrot.lane.b32.xlu0 %v428, 33
        %v454 = vpop.permute.xlu0 %453
        %455 = vrot.lane.b32.xlu0 %v429, 33
        %v456 = vpop.permute.xlu0 %455
        %457 = vrot.lane.b32.xlu0 %v430, 33
        %v458 = vpop.permute.xlu0 %457
        %459 = vrot.lane.b32.xlu0 %v431, 33
        %v460 = vpop.permute.xlu0 %459
        %461 = vrot.lane.b32.xlu0 %v432, 33
        %v462 = vpop.permute.xlu0 %461
        %463 = vrot.lane.b32.xlu0 %v433, 33
        %v464 = vpop.permute.xlu0 %463
        %465 = vrot.lane.b32.xlu0 %v434, 33
        %v466 = vpop.permute.xlu0 %465
        %467 = vrot.lane.b32.xlu0 %v435, 33
        %v468 = vpop.permute.xlu0 %467
        %vm469 = vcmp.lt.s32.totalorder %v437, 33
        %v470 = vsel %vm469, %v466, %v468
        %v471 = vsel %vm469, %v464, %v466
        %v472 = vsel %vm469, %v462, %v464
        %v473 = vsel %vm469, %v460, %v462
        %v474 = vsel %vm469, %v458, %v460
        %v475 = vsel %vm469, %v456, %v458
        %v476 = vsel %vm469, %v454, %v456
        %v477 = vsel %vm469, %v468, %v454
        %vm478 = vcmp.ge.s32.totalorder %v437, 32
        %vm479 = vcmp.ge.s32.totalorder %v438, 32
        %vm480 = vcmp.ge.s32.totalorder %v439, 32
        %vm481 = vcmp.ge.s32.totalorder %v440, 32
        %vm482 = vcmp.ge.s32.totalorder %v441, 32
        %vm483 = vcmp.ge.s32.totalorder %v442, 32
        %vm484 = vcmp.ge.s32.totalorder %v443, 32
        %vm485 = vcmp.ge.s32.totalorder %v444, 32
        %vm486 = vcmp.ge.s32.totalorder %v445, 1
        %vm487 = vcmp.ge.s32.totalorder %v446, 1
        %vm488 = vcmp.ge.s32.totalorder %v447, 1
        %vm489 = vcmp.ge.s32.totalorder %v448, 1
        %vm490 = vcmp.ge.s32.totalorder %v449, 1
        %vm491 = vcmp.ge.s32.totalorder %v450, 1
        %vm492 = vcmp.ge.s32.totalorder %v451, 1
        %vm493 = vcmp.ge.s32.totalorder %v452, 1
        %vm494 = vmand %vm478, %vm486
        %vm495 = vmand %vm479, %vm487
        %vm496 = vmand %vm480, %vm488
        %vm497 = vmand %vm481, %vm489
        %vm498 = vmand %vm482, %vm490
        %vm499 = vmand %vm483, %vm491
        %vm500 = vmand %vm484, %vm492
        %vm501 = vmand %vm485, %vm493
        %v502 = vsel %vm494, 1, 0
        %v503 = vsel %vm495, 1, 0
        %v504 = vsel %vm496, 1, 0
        %v505 = vsel %vm497, 1, 0
        %v506 = vsel %vm498, 1, 0
        %v507 = vsel %vm499, 1, 0
        %v508 = vsel %vm500, 1, 0
        %v509 = vsel %vm501, 1, 0
        %vm510 = vcmp.eq.s32.totalorder %v502, 1
        %vm511 = vcmp.eq.s32.totalorder %v503, 1
        %vm512 = vcmp.eq.s32.totalorder %v504, 1
        %vm513 = vcmp.eq.s32.totalorder %v505, 1
        %vm514 = vcmp.eq.s32.totalorder %v506, 1
        %vm515 = vcmp.eq.s32.totalorder %v507, 1
        %vm516 = vcmp.eq.s32.totalorder %v508, 1
        %vm517 = vcmp.eq.s32.totalorder %v509, 1
        %v518 = vsel %vm510, %v477, 0.0
        %v519 = vsel %vm511, %v476, 0.0
        %v520 = vsel %vm512, %v475, 0.0
        %v521 = vsel %vm513, %v474, 0.0
        %v522 = vsel %vm514, %v473, 0.0
        %v523 = vsel %vm515, %v472, 0.0
        %v524 = vsel %vm516, %v471, 0.0
        %v525 = vsel %vm517, %v470, 0.0
        %v526 = vld [vmem:[#allocation2] sm:$0xff]
        %527 = vrot.lane.b32.xlu0 %v428, 32
        %v528 = vpop.permute.xlu0 %527
        %529 = vrot.lane.b32.xlu0 %v429, 32
        %v530 = vpop.permute.xlu0 %529
        %531 = vrot.lane.b32.xlu0 %v430, 32
        %v532 = vpop.permute.xlu0 %531
        %533 = vrot.lane.b32.xlu0 %v431, 32
        %v534 = vpop.permute.xlu0 %533
        %535 = vrot.lane.b32.xlu0 %v432, 32
        %v536 = vpop.permute.xlu0 %535
        %537 = vrot.lane.b32.xlu0 %v433, 32
        %v538 = vpop.permute.xlu0 %537
        %539 = vrot.lane.b32.xlu0 %v434, 32
        %v540 = vpop.permute.xlu0 %539
        %541 = vrot.lane.b32.xlu0 %v435, 32
        %v542 = vpop.permute.xlu0 %541
        %vm543 = vcmp.lt.s32.totalorder %v437, 32
        %v544 = vsel %vm543, %v540, %v542
        %v545 = vsel %vm543, %v538, %v540
        %v546 = vsel %vm543, %v536, %v538
        %v547 = vsel %vm543, %v534, %v536
        %v548 = vsel %vm543, %v532, %v534
        %v549 = vsel %vm543, %v530, %v532
        %v550 = vsel %vm543, %v528, %v530
        %v551 = vsel %vm543, %v542, %v528
        %v552 = vsel %vm478, 1, 0
        %v553 = vsel %vm479, 1, 0
        %v554 = vsel %vm480, 1, 0
        %v555 = vsel %vm481, 1, 0
        %v556 = vsel %vm482, 1, 0
        %v557 = vsel %vm483, 1, 0
        %v558 = vsel %vm484, 1, 0
        %v559 = vsel %vm485, 1, 0
        %vm560 = vcmp.eq.s32.totalorder %v552, 1
        %vm561 = vcmp.eq.s32.totalorder %v553, 1
        %vm562 = vcmp.eq.s32.totalorder %v554, 1
        %vm563 = vcmp.eq.s32.totalorder %v555, 1
        %vm564 = vcmp.eq.s32.totalorder %v556, 1
        %vm565 = vcmp.eq.s32.totalorder %v557, 1
        %vm566 = vcmp.eq.s32.totalorder %v558, 1
        %vm567 = vcmp.eq.s32.totalorder %v559, 1
        %v568 = vsel %vm560, %v551, 0.0
        %v569 = vsel %vm561, %v550, 0.0
        %v570 = vsel %vm562, %v549, 0.0
        %v571 = vsel %vm563, %v548, 0.0
        %v572 = vsel %vm564, %v547, 0.0
        %v573 = vsel %vm565, %v546, 0.0
        %v574 = vsel %vm566, %v545, 0.0
        %v575 = vsel %vm567, %v544, 0.0
        %s576 = scalar_lea.vmem [#allocation2], 8
        %v577 = vld [vmem:[%s576] sm:$0xff]
        %vm578 = vcmask 64512
        %v580 = vsel %vm578, %v577, 0
        %582 = vmatprep.subr.mxu0 %v569
        %583 = vmatpush1.msra.mxu0 %v568
        %584 = vmatprep.subr.mxu0 0.0
        %585 = vmatpush1.msra.mxu0 0.0
        %586 = vmatprep.subr.mxu0 0.0
        %587 = vmatpush1.msra.mxu0 0.0
        %588 = vmatprep.subr.mxu0 0.0
        %589 = vmatpush1.msra.mxu0 0.0
        %590 = vmatprep.subr.mxu0 0.0
        %591 = vmatpush1.msra.mxu0 0.0
        %592 = vmatprep.subr.mxu0 0.0
        %593 = vmatpush1.msra.mxu0 0.0
        %594 = vmatprep.subr.mxu0 0.0
        %595 = vmatpush1.msra.mxu0 0.0
        %596 = vmatprep.subr.mxu0 0.0
        %597 = vmatpush1.msra.mxu0 0.0
        %598 = vmatprep.subr.mxu0 0.0
        %599 = vmatpush1.msra.mxu0 0.0
        %600 = vmatprep.subr.mxu0 0.0
        %601 = vmatpush1.msra.mxu0 0.0
        %602 = vmatprep.subr.mxu0 0.0
        %603 = vmatpush1.msra.mxu0 0.0
        %604 = vmatprep.subr.mxu0 0.0
        %605 = vmatpush1.msra.mxu0 0.0
        %606 = vmatprep.subr.mxu0 0.0
        %607 = vmatpush1.msra.mxu0 0.0
        %608 = vmatprep.subr.mxu0 0.0
        %609 = vmatpush1.msra.mxu0 0.0
        %610 = vmatprep.subr.mxu0 0.0
        %611 = vmatpush1.msra.mxu0 0.0
        %612 = vmatprep.subr.mxu0 0.0
        %613 = vmatpush1.msra.mxu0 0.0
        %614 = vmatprep.subr.mxu0 0.0
        %615 = vmatpush1.msra.mxu0 0.0
        %616 = vmatprep.subr.mxu0 0.0
        %617 = vmatpush1.msra.mxu0 0.0
        %618 = vmatprep.subr.mxu0 0.0
        %619 = vmatpush1.msra.mxu0 0.0
        %620 = vmatprep.subr.mxu0 0.0
        %621 = vmatpush1.msra.mxu0 0.0
        %622 = vmatprep.subr.mxu0 0.0
        %623 = vmatpush1.msra.mxu0 0.0
        %624 = vmatprep.subr.mxu0 0.0
        %625 = vmatpush1.msra.mxu0 0.0
        %626 = vmatprep.subr.mxu0 0.0
        %627 = vmatpush1.msra.mxu0 0.0
        %628 = vmatprep.subr.mxu0 0.0
        %629 = vmatpush1.msra.mxu0 0.0
        %630 = vmatprep.subr.mxu0 0.0
        %631 = vmatpush1.msra.mxu0 0.0
        %632 = vmatprep.subr.mxu0 0.0
        %633 = vmatpush1.msra.mxu0 0.0
        %634 = vmatprep.subr.mxu0 0.0
        %635 = vmatpush1.msra.mxu0 0.0
        %636 = vmatprep.subr.mxu0 0.0
        %637 = vmatpush1.msra.mxu0 0.0
        %638 = vmatprep.subr.mxu0 0.0
        %639 = vmatpush1.msra.mxu0 0.0
        %640 = vmatprep.subr.mxu0 0.0
        %641 = vmatpush1.msra.mxu0 0.0
        %642 = vmatprep.subr.mxu0 0.0
        %643 = vmatpush1.msra.mxu0 0.0
        %644 = vmatprep.subr.mxu0 0.0
        %645 = vmatpush1.msra.mxu0 0.0
        %646 = vmatprep.mubr.f32.mxu0 0.0
        %647 = vmatmul.mubr.f32.gmra.mrb[0].mxu0 %v580
        %v648 = vpop.f32.mrb[0].mxu0
        %v649 = vadd.f32 0.0, %v648
        %v650 = vpop.f32.mrb[0].mxu0
        %v651 = vadd.f32 0.0, %v650
        %652 = vdwg.mxu0
        %653 = vmatprep.subr.mxu0 %v571
        %654 = vmatpush1.msra.mxu0 %v570
        %655 = vmatprep.subr.mxu0 0.0
        %656 = vmatpush1.msra.mxu0 0.0
        %657 = vmatprep.subr.mxu0 0.0
        %658 = vmatpush1.msra.mxu0 0.0
        %659 = vmatprep.subr.mxu0 0.0
        %660 = vmatpush1.msra.mxu0 0.0
        %661 = vmatprep.subr.mxu0 0.0
        %662 = vmatpush1.msra.mxu0 0.0
        %663 = vmatprep.subr.mxu0 0.0
        %664 = vmatpush1.msra.mxu0 0.0
        %665 = vmatprep.subr.mxu0 0.0
        %666 = vmatpush1.msra.mxu0 0.0
        %667 = vmatprep.subr.mxu0 0.0
        %668 = vmatpush1.msra.mxu0 0.0
        %669 = vmatprep.subr.mxu0 0.0
        %670 = vmatpush1.msra.mxu0 0.0
        %671 = vmatprep.subr.mxu0 0.0
        %672 = vmatpush1.msra.mxu0 0.0
        %673 = vmatprep.subr.mxu0 0.0
        %674 = vmatpush1.msra.mxu0 0.0
        %675 = vmatprep.subr.mxu0 0.0
        %676 = vmatpush1.msra.mxu0 0.0
        %677 = vmatprep.subr.mxu0 0.0
        %678 = vmatpush1.msra.mxu0 0.0
        %679 = vmatprep.subr.mxu0 0.0
        %680 = vmatpush1.msra.mxu0 0.0
        %681 = vmatprep.subr.mxu0 0.0
        %682 = vmatpush1.msra.mxu0 0.0
        %683 = vmatprep.subr.mxu0 0.0
        %684 = vmatpush1.msra.mxu0 0.0
        %685 = vmatprep.subr.mxu0 0.0
        %686 = vmatpush1.msra.mxu0 0.0
        %687 = vmatprep.subr.mxu0 0.0
        %688 = vmatpush1.msra.mxu0 0.0
        %689 = vmatprep.subr.mxu0 0.0
        %690 = vmatpush1.msra.mxu0 0.0
        %691 = vmatprep.subr.mxu0 0.0
        %692 = vmatpush1.msra.mxu0 0.0
        %693 = vmatprep.subr.mxu0 0.0
        %694 = vmatpush1.msra.mxu0 0.0
        %695 = vmatprep.subr.mxu0 0.0
        %696 = vmatpush1.msra.mxu0 0.0
        %697 = vmatprep.subr.mxu0 0.0
        %698 = vmatpush1.msra.mxu0 0.0
        %699 = vmatprep.subr.mxu0 0.0
        %700 = vmatpush1.msra.mxu0 0.0
        %701 = vmatprep.subr.mxu0 0.0
        %702 = vmatpush1.msra.mxu0 0.0
        %703 = vmatprep.subr.mxu0 0.0
        %704 = vmatpush1.msra.mxu0 0.0
        %705 = vmatprep.subr.mxu0 0.0
        %706 = vmatpush1.msra.mxu0 0.0
        %707 = vmatprep.subr.mxu0 0.0
        %708 = vmatpush1.msra.mxu0 0.0
        %709 = vmatprep.subr.mxu0 0.0
        %710 = vmatpush1.msra.mxu0 0.0
        %711 = vmatprep.subr.mxu0 0.0
        %712 = vmatpush1.msra.mxu0 0.0
        %713 = vmatprep.subr.mxu0 0.0
        %714 = vmatpush1.msra.mxu0 0.0
        %715 = vmatprep.subr.mxu0 0.0
        %716 = vmatpush1.msra.mxu0 0.0
        %717 = vmatprep.mubr.f32.mxu0 0.0
        %718 = vmatmul.mubr.f32.gmra.mrb[0].mxu0 %v580
        %v719 = vpop.f32.mrb[0].mxu0
        %v720 = vadd.f32 0.0, %v719
        %v721 = vpop.f32.mrb[0].mxu0
        %v722 = vadd.f32 0.0, %v721
        %723 = vdwg.mxu0
        %724 = vmatprep.subr.mxu0 %v573
        %725 = vmatpush1.msra.mxu0 %v572
        %726 = vmatprep.subr.mxu0 0.0
        %727 = vmatpush1.msra.mxu0 0.0
        %728 = vmatprep.subr.mxu0 0.0
        %729 = vmatpush1.msra.mxu0 0.0
        %730 = vmatprep.subr.mxu0 0.0
        %731 = vmatpush1.msra.mxu0 0.0
        %732 = vmatprep.subr.mxu0 0.0
        %733 = vmatpush1.msra.mxu0 0.0
        %734 = vmatprep.subr.mxu0 0.0
        %735 = vmatpush1.msra.mxu0 0.0
        %736 = vmatprep.subr.mxu0 0.0
        %737 = vmatpush1.msra.mxu0 0.0
        %738 = vmatprep.subr.mxu0 0.0
        %739 = vmatpush1.msra.mxu0 0.0
        %740 = vmatprep.subr.mxu0 0.0
        %741 = vmatpush1.msra.mxu0 0.0
        %742 = vmatprep.subr.mxu0 0.0
        %743 = vmatpush1.msra.mxu0 0.0
        %744 = vmatprep.subr.mxu0 0.0
        %745 = vmatpush1.msra.mxu0 0.0
        %746 = vmatprep.subr.mxu0 0.0
        %747 = vmatpush1.msra.mxu0 0.0
        %748 = vmatprep.subr.mxu0 0.0
        %749 = vmatpush1.msra.mxu0 0.0
        %750 = vmatprep.subr.mxu0 0.0
        %751 = vmatpush1.msra.mxu0 0.0
        %752 = vmatprep.subr.mxu0 0.0
        %753 = vmatpush1.msra.mxu0 0.0
        %754 = vmatprep.subr.mxu0 0.0
        %755 = vmatpush1.msra.mxu0 0.0
        %756 = vmatprep.subr.mxu0 0.0
        %757 = vmatpush1.msra.mxu0 0.0
        %758 = vmatprep.subr.mxu0 0.0
        %759 = vmatpush1.msra.mxu0 0.0
        %760 = vmatprep.subr.mxu0 0.0
        %761 = vmatpush1.msra.mxu0 0.0
        %762 = vmatprep.subr.mxu0 0.0
        %763 = vmatpush1.msra.mxu0 0.0
        %764 = vmatprep.subr.mxu0 0.0
        %765 = vmatpush1.msra.mxu0 0.0
        %766 = vmatprep.subr.mxu0 0.0
        %767 = vmatpush1.msra.mxu0 0.0
        %768 = vmatprep.subr.mxu0 0.0
        %769 = vmatpush1.msra.mxu0 0.0
        %770 = vmatprep.subr.mxu0 0.0
        %771 = vmatpush1.msra.mxu0 0.0
        %772 = vmatprep.subr.mxu0 0.0
        %773 = vmatpush1.msra.mxu0 0.0
        %774 = vmatprep.subr.mxu0 0.0
        %775 = vmatpush1.msra.mxu0 0.0
        %776 = vmatprep.subr.mxu0 0.0
        %777 = vmatpush1.msra.mxu0 0.0
        %778 = vmatprep.subr.mxu0 0.0
        %779 = vmatpush1.msra.mxu0 0.0
        %780 = vmatprep.subr.mxu0 0.0
        %781 = vmatpush1.msra.mxu0 0.0
        %782 = vmatprep.subr.mxu0 0.0
        %783 = vmatpush1.msra.mxu0 0.0
        %784 = vmatprep.subr.mxu0 0.0
        %785 = vmatpush1.msra.mxu0 0.0
        %786 = vmatprep.subr.mxu0 0.0
        %787 = vmatpush1.msra.mxu0 0.0
        %788 = vmatprep.mubr.f32.mxu0 0.0
        %789 = vmatmul.mubr.f32.gmra.mrb[0].mxu0 %v580
        %v790 = vpop.f32.mrb[0].mxu0
        %v791 = vadd.f32 0.0, %v790
        %v792 = vpop.f32.mrb[0].mxu0
        %v793 = vadd.f32 0.0, %v792
        %794 = vdwg.mxu0
        %795 = vmatprep.subr.mxu0 %v575
        %796 = vmatpush1.msra.mxu0 %v574
        %797 = vmatprep.subr.mxu0 0.0
        %798 = vmatpush1.msra.mxu0 0.0
        %799 = vmatprep.subr.mxu0 0.0
        %800 = vmatpush1.msra.mxu0 0.0
        %801 = vmatprep.subr.mxu0 0.0
        %802 = vmatpush1.msra.mxu0 0.0
        %803 = vmatprep.subr.mxu0 0.0
        %804 = vmatpush1.msra.mxu0 0.0
        %805 = vmatprep.subr.mxu0 0.0
        %806 = vmatpush1.msra.mxu0 0.0
        %807 = vmatprep.subr.mxu0 0.0
        %808 = vmatpush1.msra.mxu0 0.0
        %809 = vmatprep.subr.mxu0 0.0
        %810 = vmatpush1.msra.mxu0 0.0
        %811 = vmatprep.subr.mxu0 0.0
        %812 = vmatpush1.msra.mxu0 0.0
        %813 = vmatprep.subr.mxu0 0.0
        %814 = vmatpush1.msra.mxu0 0.0
        %815 = vmatprep.subr.mxu0 0.0
        %816 = vmatpush1.msra.mxu0 0.0
        %817 = vmatprep.subr.mxu0 0.0
        %818 = vmatpush1.msra.mxu0 0.0
        %819 = vmatprep.subr.mxu0 0.0
        %820 = vmatpush1.msra.mxu0 0.0
        %821 = vmatprep.subr.mxu0 0.0
        %822 = vmatpush1.msra.mxu0 0.0
        %823 = vmatprep.subr.mxu0 0.0
        %824 = vmatpush1.msra.mxu0 0.0
        %825 = vmatprep.subr.mxu0 0.0
        %826 = vmatpush1.msra.mxu0 0.0
        %827 = vmatprep.subr.mxu0 0.0
        %828 = vmatpush1.msra.mxu0 0.0
        %829 = vmatprep.subr.mxu0 0.0
        %830 = vmatpush1.msra.mxu0 0.0
        %831 = vmatprep.subr.mxu0 0.0
        %832 = vmatpush1.msra.mxu0 0.0
        %833 = vmatprep.subr.mxu0 0.0
        %834 = vmatpush1.msra.mxu0 0.0
        %835 = vmatprep.subr.mxu0 0.0
        %836 = vmatpush1.msra.mxu0 0.0
        %837 = vmatprep.subr.mxu0 0.0
        %838 = vmatpush1.msra.mxu0 0.0
        %839 = vmatprep.subr.mxu0 0.0
        %840 = vmatpush1.msra.mxu0 0.0
        %841 = vmatprep.subr.mxu0 0.0
        %842 = vmatpush1.msra.mxu0 0.0
        %843 = vmatprep.subr.mxu0 0.0
        %844 = vmatpush1.msra.mxu0 0.0
        %845 = vmatprep.subr.mxu0 0.0
        %846 = vmatpush1.msra.mxu0 0.0
        %847 = vmatprep.subr.mxu0 0.0
        %848 = vmatpush1.msra.mxu0 0.0
        %849 = vmatprep.subr.mxu0 0.0
        %850 = vmatpush1.msra.mxu0 0.0
        %851 = vmatprep.subr.mxu0 0.0
        %852 = vmatpush1.msra.mxu0 0.0
        %853 = vmatprep.subr.mxu0 0.0
        %854 = vmatpush1.msra.mxu0 0.0
        %855 = vmatprep.subr.mxu0 0.0
        %856 = vmatpush1.msra.mxu0 0.0
        %857 = vmatprep.subr.mxu0 0.0
        %858 = vmatpush1.msra.mxu0 0.0
        %859 = vmatprep.mubr.f32.mxu0 0.0
        %860 = vmatmul.mubr.f32.gmra.mrb[0].mxu0 %v580
        %v861 = vpop.f32.mrb[0].mxu0
        %v862 = vadd.f32 0.0, %v861
        %v863 = vpop.f32.mrb[0].mxu0
        %v864 = vadd.f32 0.0, %v863
        %865 = vdwg.mxu0
        %v867 = vsel %vm578, %v526, 0
        %869 = vmatprep.subr.mxu0 %v519
        %870 = vmatpush1.msra.mxu0 %v518
        %871 = vmatprep.subr.mxu0 0.0
        %872 = vmatpush1.msra.mxu0 0.0
        %873 = vmatprep.subr.mxu0 0.0
        %874 = vmatpush1.msra.mxu0 0.0
        %875 = vmatprep.subr.mxu0 0.0
        %876 = vmatpush1.msra.mxu0 0.0
        %877 = vmatprep.subr.mxu0 0.0
        %878 = vmatpush1.msra.mxu0 0.0
        %879 = vmatprep.subr.mxu0 0.0
        %880 = vmatpush1.msra.mxu0 0.0
        %881 = vmatprep.subr.mxu0 0.0
        %882 = vmatpush1.msra.mxu0 0.0
        %883 = vmatprep.subr.mxu0 0.0
        %884 = vmatpush1.msra.mxu0 0.0
        %885 = vmatprep.subr.mxu0 0.0
        %886 = vmatpush1.msra.mxu0 0.0
        %887 = vmatprep.subr.mxu0 0.0
        %888 = vmatpush1.msra.mxu0 0.0
        %889 = vmatprep.subr.mxu0 0.0
        %890 = vmatpush1.msra.mxu0 0.0
        %891 = vmatprep.subr.mxu0 0.0
        %892 = vmatpush1.msra.mxu0 0.0
        %893 = vmatprep.subr.mxu0 0.0
        %894 = vmatpush1.msra.mxu0 0.0
        %895 = vmatprep.subr.mxu0 0.0
        %896 = vmatpush1.msra.mxu0 0.0
        %897 = vmatprep.subr.mxu0 0.0
        %898 = vmatpush1.msra.mxu0 0.0
        %899 = vmatprep.subr.mxu0 0.0
        %900 = vmatpush1.msra.mxu0 0.0
        %901 = vmatprep.subr.mxu0 0.0
        %902 = vmatpush1.msra.mxu0 0.0
        %903 = vmatprep.subr.mxu0 0.0
        %904 = vmatpush1.msra.mxu0 0.0
        %905 = vmatprep.subr.mxu0 0.0
        %906 = vmatpush1.msra.mxu0 0.0
        %907 = vmatprep.subr.mxu0 0.0
        %908 = vmatpush1.msra.mxu0 0.0
        %909 = vmatprep.subr.mxu0 0.0
        %910 = vmatpush1.msra.mxu0 0.0
        %911 = vmatprep.subr.mxu0 0.0
        %912 = vmatpush1.msra.mxu0 0.0
        %913 = vmatprep.subr.mxu0 0.0
        %914 = vmatpush1.msra.mxu0 0.0
        %915 = vmatprep.subr.mxu0 0.0
        %916 = vmatpush1.msra.mxu0 0.0
        %917 = vmatprep.subr.mxu0 0.0
        %918 = vmatpush1.msra.mxu0 0.0
        %919 = vmatprep.subr.mxu0 0.0
        %920 = vmatpush1.msra.mxu0 0.0
        %921 = vmatprep.subr.mxu0 0.0
        %922 = vmatpush1.msra.mxu0 0.0
        %923 = vmatprep.subr.mxu0 0.0
        %924 = vmatpush1.msra.mxu0 0.0
        %925 = vmatprep.subr.mxu0 0.0
        %926 = vmatpush1.msra.mxu0 0.0
        %927 = vmatprep.subr.mxu0 0.0
        %928 = vmatpush1.msra.mxu0 0.0
        %929 = vmatprep.subr.mxu0 0.0
        %930 = vmatpush1.msra.mxu0 0.0
        %931 = vmatprep.subr.mxu0 0.0
        %932 = vmatpush1.msra.mxu0 0.0
        %933 = vmatprep.mubr.f32.mxu0 0.0
        %934 = vmatmul.mubr.f32.gmra.mrb[0].mxu0 %v867
        %v935 = vpop.f32.mrb[0].mxu0
        %v936 = vadd.f32 %v649, %v935
        %v937 = vpop.f32.mrb[0].mxu0
        %v938 = vadd.f32 %v651, %v937
        %939 = vdwg.mxu0
        %940 = vmatprep.subr.mxu0 %v521
        %941 = vmatpush1.msra.mxu0 %v520
        %942 = vmatprep.subr.mxu0 0.0
        %943 = vmatpush1.msra.mxu0 0.0
        %944 = vmatprep.subr.mxu0 0.0
        %945 = vmatpush1.msra.mxu0 0.0
        %946 = vmatprep.subr.mxu0 0.0
        %947 = vmatpush1.msra.mxu0 0.0
        %948 = vmatprep.subr.mxu0 0.0
        %949 = vmatpush1.msra.mxu0 0.0
        %950 = vmatprep.subr.mxu0 0.0
        %951 = vmatpush1.msra.mxu0 0.0
        %952 = vmatprep.subr.mxu0 0.0
        %953 = vmatpush1.msra.mxu0 0.0
        %954 = vmatprep.subr.mxu0 0.0
        %955 = vmatpush1.msra.mxu0 0.0
        %956 = vmatprep.subr.mxu0 0.0
        %957 = vmatpush1.msra.mxu0 0.0
        %958 = vmatprep.subr.mxu0 0.0
        %959 = vmatpush1.msra.mxu0 0.0
        %960 = vmatprep.subr.mxu0 0.0
        %961 = vmatpush1.msra.mxu0 0.0
        %962 = vmatprep.subr.mxu0 0.0
        %963 = vmatpush1.msra.mxu0 0.0
        %964 = vmatprep.subr.mxu0 0.0
        %965 = vmatpush1.msra.mxu0 0.0
        %966 = vmatprep.subr.mxu0 0.0
        %967 = vmatpush1.msra.mxu0 0.0
        %968 = vmatprep.subr.mxu0 0.0
        %969 = vmatpush1.msra.mxu0 0.0
        %970 = vmatprep.subr.mxu0 0.0
        %971 = vmatpush1.msra.mxu0 0.0
        %972 = vmatprep.subr.mxu0 0.0
        %973 = vmatpush1.msra.mxu0 0.0
        %974 = vmatprep.subr.mxu0 0.0
        %975 = vmatpush1.msra.mxu0 0.0
        %976 = vmatprep.subr.mxu0 0.0
        %977 = vmatpush1.msra.mxu0 0.0
        %978 = vmatprep.subr.mxu0 0.0
        %979 = vmatpush1.msra.mxu0 0.0
        %980 = vmatprep.subr.mxu0 0.0
        %981 = vmatpush1.msra.mxu0 0.0
        %982 = vmatprep.subr.mxu0 0.0
        %983 = vmatpush1.msra.mxu0 0.0
        %984 = vmatprep.subr.mxu0 0.0
        %985 = vmatpush1.msra.mxu0 0.0
        %986 = vmatprep.subr.mxu0 0.0
        %987 = vmatpush1.msra.mxu0 0.0
        %988 = vmatprep.subr.mxu0 0.0
        %989 = vmatpush1.msra.mxu0 0.0
        %990 = vmatprep.subr.mxu0 0.0
        %991 = vmatpush1.msra.mxu0 0.0
        %992 = vmatprep.subr.mxu0 0.0
        %993 = vmatpush1.msra.mxu0 0.0
        %994 = vmatprep.subr.mxu0 0.0
        %995 = vmatpush1.msra.mxu0 0.0
        %996 = vmatprep.subr.mxu0 0.0
        %997 = vmatpush1.msra.mxu0 0.0
        %998 = vmatprep.subr.mxu0 0.0
        %999 = vmatpush1.msra.mxu0 0.0
        %1000 = vmatprep.subr.mxu0 0.0
        %1001 = vmatpush1.msra.mxu0 0.0
        %1002 = vmatprep.subr.mxu0 0.0
        %1003 = vmatpush1.msra.mxu0 0.0
        %1004 = vmatprep.mubr.f32.mxu0 0.0
        %1005 = vmatmul.mubr.f32.gmra.mrb[0].mxu0 %v867
        %v1006 = vpop.f32.mrb[0].mxu0
        %v1007 = vadd.f32 %v720, %v1006
        %v1008 = vpop.f32.mrb[0].mxu0
        %v1009 = vadd.f32 %v722, %v1008
        %1010 = vdwg.mxu0
        %1011 = vmatprep.subr.mxu0 %v523
        %1012 = vmatpush1.msra.mxu0 %v522
        %1013 = vmatprep.subr.mxu0 0.0
        %1014 = vmatpush1.msra.mxu0 0.0
        %1015 = vmatprep.subr.mxu0 0.0
        %1016 = vmatpush1.msra.mxu0 0.0
        %1017 = vmatprep.subr.mxu0 0.0
        %1018 = vmatpush1.msra.mxu0 0.0
        %1019 = vmatprep.subr.mxu0 0.0
        %1020 = vmatpush1.msra.mxu0 0.0
        %1021 = vmatprep.subr.mxu0 0.0
        %1022 = vmatpush1.msra.mxu0 0.0
        %1023 = vmatprep.subr.mxu0 0.0
        %1024 = vmatpush1.msra.mxu0 0.0
        %1025 = vmatprep.subr.mxu0 0.0
        %1026 = vmatpush1.msra.mxu0 0.0
        %1027 = vmatprep.subr.mxu0 0.0
        %1028 = vmatpush1.msra.mxu0 0.0
        %1029 = vmatprep.subr.mxu0 0.0
        %1030 = vmatpush1.msra.mxu0 0.0
        %1031 = vmatprep.subr.mxu0 0.0
        %1032 = vmatpush1.msra.mxu0 0.0
        %1033 = vmatprep.subr.mxu0 0.0
        %1034 = vmatpush1.msra.mxu0 0.0
        %1035 = vmatprep.subr.mxu0 0.0
        %1036 = vmatpush1.msra.mxu0 0.0
        %1037 = vmatprep.subr.mxu0 0.0
        %1038 = vmatpush1.msra.mxu0 0.0
        %1039 = vmatprep.subr.mxu0 0.0
        %1040 = vmatpush1.msra.mxu0 0.0
        %1041 = vmatprep.subr.mxu0 0.0
        %1042 = vmatpush1.msra.mxu0 0.0
        %1043 = vmatprep.subr.mxu0 0.0
        %1044 = vmatpush1.msra.mxu0 0.0
        %1045 = vmatprep.subr.mxu0 0.0
        %1046 = vmatpush1.msra.mxu0 0.0
        %1047 = vmatprep.subr.mxu0 0.0
        %1048 = vmatpush1.msra.mxu0 0.0
        %1049 = vmatprep.subr.mxu0 0.0
        %1050 = vmatpush1.msra.mxu0 0.0
        %1051 = vmatprep.subr.mxu0 0.0
        %1052 = vmatpush1.msra.mxu0 0.0
        %1053 = vmatprep.subr.mxu0 0.0
        %1054 = vmatpush1.msra.mxu0 0.0
        %1055 = vmatprep.subr.mxu0 0.0
        %1056 = vmatpush1.msra.mxu0 0.0
        %1057 = vmatprep.subr.mxu0 0.0
        %1058 = vmatpush1.msra.mxu0 0.0
        %1059 = vmatprep.subr.mxu0 0.0
        %1060 = vmatpush1.msra.mxu0 0.0
        %1061 = vmatprep.subr.mxu0 0.0
        %1062 = vmatpush1.msra.mxu0 0.0
        %1063 = vmatprep.subr.mxu0 0.0
        %1064 = vmatpush1.msra.mxu0 0.0
        %1065 = vmatprep.subr.mxu0 0.0
        %1066 = vmatpush1.msra.mxu0 0.0
        %1067 = vmatprep.subr.mxu0 0.0
        %1068 = vmatpush1.msra.mxu0 0.0
        %1069 = vmatprep.subr.mxu0 0.0
        %1070 = vmatpush1.msra.mxu0 0.0
        %1071 = vmatprep.subr.mxu0 0.0
        %1072 = vmatpush1.msra.mxu0 0.0
        %1073 = vmatprep.subr.mxu0 0.0
        %1074 = vmatpush1.msra.mxu0 0.0
        %1075 = vmatprep.mubr.f32.mxu0 0.0
        %1076 = vmatmul.mubr.f32.gmra.mrb[0].mxu0 %v867
        %v1077 = vpop.f32.mrb[0].mxu0
        %v1078 = vadd.f32 %v791, %v1077
        %v1079 = vpop.f32.mrb[0].mxu0
        %v1080 = vadd.f32 %v793, %v1079
        %1081 = vdwg.mxu0
        %1082 = vmatprep.subr.mxu0 %v525
        %1083 = vmatpush1.msra.mxu0 %v524
        %1084 = vmatprep.subr.mxu0 0.0
        %1085 = vmatpush1.msra.mxu0 0.0
        %1086 = vmatprep.subr.mxu0 0.0
        %1087 = vmatpush1.msra.mxu0 0.0
        %1088 = vmatprep.subr.mxu0 0.0
        %1089 = vmatpush1.msra.mxu0 0.0
        %1090 = vmatprep.subr.mxu0 0.0
        %1091 = vmatpush1.msra.mxu0 0.0
        %1092 = vmatprep.subr.mxu0 0.0
        %1093 = vmatpush1.msra.mxu0 0.0
        %1094 = vmatprep.subr.mxu0 0.0
        %1095 = vmatpush1.msra.mxu0 0.0
        %1096 = vmatprep.subr.mxu0 0.0
        %1097 = vmatpush1.msra.mxu0 0.0
        %1098 = vmatprep.subr.mxu0 0.0
        %1099 = vmatpush1.msra.mxu0 0.0
        %1100 = vmatprep.subr.mxu0 0.0
        %1101 = vmatpush1.msra.mxu0 0.0
        %1102 = vmatprep.subr.mxu0 0.0
        %1103 = vmatpush1.msra.mxu0 0.0
        %1104 = vmatprep.subr.mxu0 0.0
        %1105 = vmatpush1.msra.mxu0 0.0
        %1106 = vmatprep.subr.mxu0 0.0
        %1107 = vmatpush1.msra.mxu0 0.0
        %1108 = vmatprep.subr.mxu0 0.0
        %1109 = vmatpush1.msra.mxu0 0.0
        %1110 = vmatprep.subr.mxu0 0.0
        %1111 = vmatpush1.msra.mxu0 0.0
        %1112 = vmatprep.subr.mxu0 0.0
        %1113 = vmatpush1.msra.mxu0 0.0
        %1114 = vmatprep.subr.mxu0 0.0
        %1115 = vmatpush1.msra.mxu0 0.0
        %1116 = vmatprep.subr.mxu0 0.0
        %1117 = vmatpush1.msra.mxu0 0.0
        %1118 = vmatprep.subr.mxu0 0.0
        %1119 = vmatpush1.msra.mxu0 0.0
        %1120 = vmatprep.subr.mxu0 0.0
        %1121 = vmatpush1.msra.mxu0 0.0
        %1122 = vmatprep.subr.mxu0 0.0
        %1123 = vmatpush1.msra.mxu0 0.0
        %1124 = vmatprep.subr.mxu0 0.0
        %1125 = vmatpush1.msra.mxu0 0.0
        %1126 = vmatprep.subr.mxu0 0.0
        %1127 = vmatpush1.msra.mxu0 0.0
        %1128 = vmatprep.subr.mxu0 0.0
        %1129 = vmatpush1.msra.mxu0 0.0
        %1130 = vmatprep.subr.mxu0 0.0
        %1131 = vmatpush1.msra.mxu0 0.0
        %1132 = vmatprep.subr.mxu0 0.0
        %1133 = vmatpush1.msra.mxu0 0.0
        %1134 = vmatprep.subr.mxu0 0.0
        %1135 = vmatpush1.msra.mxu0 0.0
        %1136 = vmatprep.subr.mxu0 0.0
        %1137 = vmatpush1.msra.mxu0 0.0
        %1138 = vmatprep.subr.mxu0 0.0
        %1139 = vmatpush1.msra.mxu0 0.0
        %1140 = vmatprep.subr.mxu0 0.0
        %1141 = vmatpush1.msra.mxu0 0.0
        %1142 = vmatprep.subr.mxu0 0.0
        %1143 = vmatpush1.msra.mxu0 0.0
        %1144 = vmatprep.subr.mxu0 0.0
        %1145 = vmatpush1.msra.mxu0 0.0
        %1146 = vmatprep.mubr.f32.mxu0 0.0
        %1147 = vmatmul.mubr.f32.gmra.mrb[0].mxu0 %v867
        %v1148 = vpop.f32.mrb[0].mxu0
        %v1149 = vadd.f32 %v862, %v1148
        %v1150 = vpop.f32.mrb[0].mxu0
        %v1151 = vadd.f32 %v864, %v1150
        %1152 = vdwg.mxu0
        %1153 = vrot.lane.b32.xlu0 %v428, 31
        %v1154 = vpop.permute.xlu0 %1153
        %1155 = vrot.lane.b32.xlu0 %v429, 31
        %v1156 = vpop.permute.xlu0 %1155
        %1157 = vrot.lane.b32.xlu0 %v430, 31
        %v1158 = vpop.permute.xlu0 %1157
        %1159 = vrot.lane.b32.xlu0 %v431, 31
        %v1160 = vpop.permute.xlu0 %1159
        %1161 = vrot.lane.b32.xlu0 %v432, 31
        %v1162 = vpop.permute.xlu0 %1161
        %1163 = vrot.lane.b32.xlu0 %v433, 31
        %v1164 = vpop.permute.xlu0 %1163
        %1165 = vrot.lane.b32.xlu0 %v434, 31
        %v1166 = vpop.permute.xlu0 %1165
        %1167 = vrot.lane.b32.xlu0 %v435, 31
        %v1168 = vpop.permute.xlu0 %1167
        %vm1169 = vcmp.lt.s32.totalorder %v437, 31
        %v1170 = vsel %vm1169, %v1166, %v1168
        %v1171 = vsel %vm1169, %v1164, %v1166
        %v1172 = vsel %vm1169, %v1162, %v1164
        %v1173 = vsel %vm1169, %v1160, %v1162
        %v1174 = vsel %vm1169, %v1158, %v1160
        %v1175 = vsel %vm1169, %v1156, %v1158
        %v1176 = vsel %vm1169, %v1154, %v1156
        %v1177 = vsel %vm1169, %v1168, %v1154
        %vm1178 = vcmp.le.s32.totalorder %v445, 30
        %vm1179 = vcmp.le.s32.totalorder %v446, 30
        %vm1180 = vcmp.le.s32.totalorder %v447, 30
        %vm1181 = vcmp.le.s32.totalorder %v448, 30
        %vm1182 = vcmp.le.s32.totalorder %v449, 30
        %vm1183 = vcmp.le.s32.totalorder %v450, 30
        %vm1184 = vcmp.le.s32.totalorder %v451, 30
        %vm1185 = vcmp.le.s32.totalorder %v452, 30
        %vm1186 = vmand %vm478, %vm1178
        %vm1187 = vmand %vm479, %vm1179
        %vm1188 = vmand %vm480, %vm1180
        %vm1189 = vmand %vm481, %vm1181
        %vm1190 = vmand %vm482, %vm1182
        %vm1191 = vmand %vm483, %vm1183
        %vm1192 = vmand %vm484, %vm1184
        %vm1193 = vmand %vm485, %vm1185
        %v1194 = vsel %vm1186, 1, 0
        %v1195 = vsel %vm1187, 1, 0
        %v1196 = vsel %vm1188, 1, 0
        %v1197 = vsel %vm1189, 1, 0
        %v1198 = vsel %vm1190, 1, 0
        %v1199 = vsel %vm1191, 1, 0
        %v1200 = vsel %vm1192, 1, 0
        %v1201 = vsel %vm1193, 1, 0
        %vm1202 = vcmp.eq.s32.totalorder %v1194, 1
        %vm1203 = vcmp.eq.s32.totalorder %v1195, 1
        %vm1204 = vcmp.eq.s32.totalorder %v1196, 1
        %vm1205 = vcmp.eq.s32.totalorder %v1197, 1
        %vm1206 = vcmp.eq.s32.totalorder %v1198, 1
        %vm1207 = vcmp.eq.s32.totalorder %v1199, 1
        %vm1208 = vcmp.eq.s32.totalorder %v1200, 1
        %vm1209 = vcmp.eq.s32.totalorder %v1201, 1
        %v1210 = vsel %vm1202, %v1177, 0.0
        %v1211 = vsel %vm1203, %v1176, 0.0
        %v1212 = vsel %vm1204, %v1175, 0.0
        %v1213 = vsel %vm1205, %v1174, 0.0
        %v1214 = vsel %vm1206, %v1173, 0.0
        %v1215 = vsel %vm1207, %v1172, 0.0
        %v1216 = vsel %vm1208, %v1171, 0.0
        %v1217 = vsel %vm1209, %v1170, 0.0
        %s1218 = scalar_lea.vmem [#allocation2], 16
        %v1219 = vld [vmem:[%s1218] sm:$0xff]
        %v1221 = vsel %vm578, %v1219, 0
        %1223 = vmatprep.subr.mxu0 %v1211
        %1224 = vmatpush1.msra.mxu0 %v1210
        %1225 = vmatprep.subr.mxu0 0.0
        %1226 = vmatpush1.msra.mxu0 0.0
        %1227 = vmatprep.subr.mxu0 0.0
        %1228 = vmatpush1.msra.mxu0 0.0
        %1229 = vmatprep.subr.mxu0 0.0
        %1230 = vmatpush1.msra.mxu0 0.0
        %1231 = vmatprep.subr.mxu0 0.0
        %1232 = vmatpush1.msra.mxu0 0.0
        %1233 = vmatprep.subr.mxu0 0.0
        %1234 = vmatpush1.msra.mxu0 0.0
        %1235 = vmatprep.subr.mxu0 0.0
        %1236 = vmatpush1.msra.mxu0 0.0
        %1237 = vmatprep.subr.mxu0 0.0
        %1238 = vmatpush1.msra.mxu0 0.0
        %1239 = vmatprep.subr.mxu0 0.0
        %1240 = vmatpush1.msra.mxu0 0.0
        %1241 = vmatprep.subr.mxu0 0.0
        %1242 = vmatpush1.msra.mxu0 0.0
        %1243 = vmatprep.subr.mxu0 0.0
        %1244 = vmatpush1.msra.mxu0 0.0
        %1245 = vmatprep.subr.mxu0 0.0
        %1246 = vmatpush1.msra.mxu0 0.0
        %1247 = vmatprep.subr.mxu0 0.0
        %1248 = vmatpush1.msra.mxu0 0.0
        %1249 = vmatprep.subr.mxu0 0.0
        %1250 = vmatpush1.msra.mxu0 0.0
        %1251 = vmatprep.subr.mxu0 0.0
        %1252 = vmatpush1.msra.mxu0 0.0
        %1253 = vmatprep.subr.mxu0 0.0
        %1254 = vmatpush1.msra.mxu0 0.0
        %1255 = vmatprep.subr.mxu0 0.0
        %1256 = vmatpush1.msra.mxu0 0.0
        %1257 = vmatprep.subr.mxu0 0.0
        %1258 = vmatpush1.msra.mxu0 0.0
        %1259 = vmatprep.subr.mxu0 0.0
        %1260 = vmatpush1.msra.mxu0 0.0
        %1261 = vmatprep.subr.mxu0 0.0
        %1262 = vmatpush1.msra.mxu0 0.0
        %1263 = vmatprep.subr.mxu0 0.0
        %1264 = vmatpush1.msra.mxu0 0.0
        %1265 = vmatprep.subr.mxu0 0.0
        %1266 = vmatpush1.msra.mxu0 0.0
        %1267 = vmatprep.subr.mxu0 0.0
        %1268 = vmatpush1.msra.mxu0 0.0
        %1269 = vmatprep.subr.mxu0 0.0
        %1270 = vmatpush1.msra.mxu0 0.0
        %1271 = vmatprep.subr.mxu0 0.0
        %1272 = vmatpush1.msra.mxu0 0.0
        %1273 = vmatprep.subr.mxu0 0.0
        %1274 = vmatpush1.msra.mxu0 0.0
        %1275 = vmatprep.subr.mxu0 0.0
        %1276 = vmatpush1.msra.mxu0 0.0
        %1277 = vmatprep.subr.mxu0 0.0
        %1278 = vmatpush1.msra.mxu0 0.0
        %1279 = vmatprep.subr.mxu0 0.0
        %1280 = vmatpush1.msra.mxu0 0.0
        %1281 = vmatprep.subr.mxu0 0.0
        %1282 = vmatpush1.msra.mxu0 0.0
        %1283 = vmatprep.subr.mxu0 0.0
        %1284 = vmatpush1.msra.mxu0 0.0
        %1285 = vmatprep.subr.mxu0 0.0
        %1286 = vmatpush1.msra.mxu0 0.0
        %1287 = vmatprep.mubr.f32.mxu0 0.0
        %1288 = vmatmul.mubr.f32.gmra.mrb[0].mxu0 %v1221
        %v1289 = vpop.f32.mrb[0].mxu0
        %v1290 = vadd.f32 0.0, %v1289
        %v1291 = vpop.f32.mrb[0].mxu0
        %v1292 = vadd.f32 0.0, %v1291
        %1293 = vdwg.mxu0
        %1294 = vmatprep.subr.mxu0 %v1213
        %1295 = vmatpush1.msra.mxu0 %v1212
        %1296 = vmatprep.subr.mxu0 0.0
        %1297 = vmatpush1.msra.mxu0 0.0
        %1298 = vmatprep.subr.mxu0 0.0
        %1299 = vmatpush1.msra.mxu0 0.0
        %1300 = vmatprep.subr.mxu0 0.0
        %1301 = vmatpush1.msra.mxu0 0.0
        %1302 = vmatprep.subr.mxu0 0.0
        %1303 = vmatpush1.msra.mxu0 0.0
        %1304 = vmatprep.subr.mxu0 0.0
        %1305 = vmatpush1.msra.mxu0 0.0
        %1306 = vmatprep.subr.mxu0 0.0
        %1307 = vmatpush1.msra.mxu0 0.0
        %1308 = vmatprep.subr.mxu0 0.0
        %1309 = vmatpush1.msra.mxu0 0.0
        %1310 = vmatprep.subr.mxu0 0.0
        %1311 = vmatpush1.msra.mxu0 0.0
        %1312 = vmatprep.subr.mxu0 0.0
        %1313 = vmatpush1.msra.mxu0 0.0
        %1314 = vmatprep.subr.mxu0 0.0
        %1315 = vmatpush1.msra.mxu0 0.0
        %1316 = vmatprep.subr.mxu0 0.0
        %1317 = vmatpush1.msra.mxu0 0.0
        %1318 = vmatprep.subr.mxu0 0.0
        %1319 = vmatpush1.msra.mxu0 0.0
        %1320 = vmatprep.subr.mxu0 0.0
        %1321 = vmatpush1.msra.mxu0 0.0
        %1322 = vmatprep.subr.mxu0 0.0
        %1323 = vmatpush1.msra.mxu0 0.0
        %1324 = vmatprep.subr.mxu0 0.0
        %1325 = vmatpush1.msra.mxu0 0.0
        %1326 = vmatprep.subr.mxu0 0.0
        %1327 = vmatpush1.msra.mxu0 0.0
        %1328 = vmatprep.subr.mxu0 0.0
        %1329 = vmatpush1.msra.mxu0 0.0
        %1330 = vmatprep.subr.mxu0 0.0
        %1331 = vmatpush1.msra.mxu0 0.0
        %1332 = vmatprep.subr.mxu0 0.0
        %1333 = vmatpush1.msra.mxu0 0.0
        %1334 = vmatprep.subr.mxu0 0.0
        %1335 = vmatpush1.msra.mxu0 0.0
        %1336 = vmatprep.subr.mxu0 0.0
        %1337 = vmatpush1.msra.mxu0 0.0
        %1338 = vmatprep.subr.mxu0 0.0
        %1339 = vmatpush1.msra.mxu0 0.0
        %1340 = vmatprep.subr.mxu0 0.0
        %1341 = vmatpush1.msra.mxu0 0.0
        %1342 = vmatprep.subr.mxu0 0.0
        %1343 = vmatpush1.msra.mxu0 0.0
        %1344 = vmatprep.subr.mxu0 0.0
        %1345 = vmatpush1.msra.mxu0 0.0
        %1346 = vmatprep.subr.mxu0 0.0
        %1347 = vmatpush1.msra.mxu0 0.0
        %1348 = vmatprep.subr.mxu0 0.0
        %1349 = vmatpush1.msra.mxu0 0.0
        %1350 = vmatprep.subr.mxu0 0.0
        %1351 = vmatpush1.msra.mxu0 0.0
        %1352 = vmatprep.subr.mxu0 0.0
        %1353 = vmatpush1.msra.mxu0 0.0
        %1354 = vmatprep.subr.mxu0 0.0
        %1355 = vmatpush1.msra.mxu0 0.0
        %1356 = vmatprep.subr.mxu0 0.0
        %1357 = vmatpush1.msra.mxu0 0.0
        %1358 = vmatprep.mubr.f32.mxu0 0.0
        %1359 = vmatmul.mubr.f32.gmra.mrb[0].mxu0 %v1221
        %v1360 = vpop.f32.mrb[0].mxu0
        %v1361 = vadd.f32 0.0, %v1360
        %v1362 = vpop.f32.mrb[0].mxu0
        %v1363 = vadd.f32 0.0, %v1362
        %1364 = vdwg.mxu0
        %1365 = vmatprep.subr.mxu0 %v1215
        %1366 = vmatpush1.msra.mxu0 %v1214
        %1367 = vmatprep.subr.mxu0 0.0
        %1368 = vmatpush1.msra.mxu0 0.0
        %1369 = vmatprep.subr.mxu0 0.0
        %1370 = vmatpush1.msra.mxu0 0.0
        %1371 = vmatprep.subr.mxu0 0.0
        %1372 = vmatpush1.msra.mxu0 0.0
        %1373 = vmatprep.subr.mxu0 0.0
        %1374 = vmatpush1.msra.mxu0 0.0
        %1375 = vmatprep.subr.mxu0 0.0
        %1376 = vmatpush1.msra.mxu0 0.0
        %1377 = vmatprep.subr.mxu0 0.0
        %1378 = vmatpush1.msra.mxu0 0.0
        %1379 = vmatprep.subr.mxu0 0.0
        %1380 = vmatpush1.msra.mxu0 0.0
        %1381 = vmatprep.subr.mxu0 0.0
        %1382 = vmatpush1.msra.mxu0 0.0
        %1383 = vmatprep.subr.mxu0 0.0
        %1384 = vmatpush1.msra.mxu0 0.0
        %1385 = vmatprep.subr.mxu0 0.0
        %1386 = vmatpush1.msra.mxu0 0.0
        %1387 = vmatprep.subr.mxu0 0.0
        %1388 = vmatpush1.msra.mxu0 0.0
        %1389 = vmatprep.subr.mxu0 0.0
        %1390 = vmatpush1.msra.mxu0 0.0
        %1391 = vmatprep.subr.mxu0 0.0
        %1392 = vmatpush1.msra.mxu0 0.0
        %1393 = vmatprep.subr.mxu0 0.0
        %1394 = vmatpush1.msra.mxu0 0.0
        %1395 = vmatprep.subr.mxu0 0.0
        %1396 = vmatpush1.msra.mxu0 0.0
        %1397 = vmatprep.subr.mxu0 0.0
        %1398 = vmatpush1.msra.mxu0 0.0
        %1399 = vmatprep.subr.mxu0 0.0
        %1400 = vmatpush1.msra.mxu0 0.0
        %1401 = vmatprep.subr.mxu0 0.0
        %1402 = vmatpush1.msra.mxu0 0.0
        %1403 = vmatprep.subr.mxu0 0.0
        %1404 = vmatpush1.msra.mxu0 0.0
        %1405 = vmatprep.subr.mxu0 0.0
        %1406 = vmatpush1.msra.mxu0 0.0
        %1407 = vmatprep.subr.mxu0 0.0
        %1408 = vmatpush1.msra.mxu0 0.0
        %1409 = vmatprep.subr.mxu0 0.0
        %1410 = vmatpush1.msra.mxu0 0.0
        %1411 = vmatprep.subr.mxu0 0.0
        %1412 = vmatpush1.msra.mxu0 0.0
        %1413 = vmatprep.subr.mxu0 0.0
        %1414 = vmatpush1.msra.mxu0 0.0
        %1415 = vmatprep.subr.mxu0 0.0
        %1416 = vmatpush1.msra.mxu0 0.0
        %1417 = vmatprep.subr.mxu0 0.0
        %1418 = vmatpush1.msra.mxu0 0.0
        %1419 = vmatprep.subr.mxu0 0.0
        %1420 = vmatpush1.msra.mxu0 0.0
        %1421 = vmatprep.subr.mxu0 0.0
        %1422 = vmatpush1.msra.mxu0 0.0
        %1423 = vmatprep.subr.mxu0 0.0
        %1424 = vmatpush1.msra.mxu0 0.0
        %1425 = vmatprep.subr.mxu0 0.0
        %1426 = vmatpush1.msra.mxu0 0.0
        %1427 = vmatprep.subr.mxu0 0.0
        %1428 = vmatpush1.msra.mxu0 0.0
        %1429 = vmatprep.mubr.f32.mxu0 0.0
        %1430 = vmatmul.mubr.f32.gmra.mrb[0].mxu0 %v1221
        %v1431 = vpop.f32.mrb[0].mxu0
        %v1432 = vadd.f32 0.0, %v1431
        %v1433 = vpop.f32.mrb[0].mxu0
        %v1434 = vadd.f32 0.0, %v1433
        %1435 = vdwg.mxu0
        %1436 = vmatprep.subr.mxu0 %v1217
        %1437 = vmatpush1.msra.mxu0 %v1216
        %1438 = vmatprep.subr.mxu0 0.0
        %1439 = vmatpush1.msra.mxu0 0.0
        %1440 = vmatprep.subr.mxu0 0.0
        %1441 = vmatpush1.msra.mxu0 0.0
        %1442 = vmatprep.subr.mxu0 0.0
        %1443 = vmatpush1.msra.mxu0 0.0
        %1444 = vmatprep.subr.mxu0 0.0
        %1445 = vmatpush1.msra.mxu0 0.0
        %1446 = vmatprep.subr.mxu0 0.0
        %1447 = vmatpush1.msra.mxu0 0.0
        %1448 = vmatprep.subr.mxu0 0.0
        %1449 = vmatpush1.msra.mxu0 0.0
        %1450 = vmatprep.subr.mxu0 0.0
        %1451 = vmatpush1.msra.mxu0 0.0
        %1452 = vmatprep.subr.mxu0 0.0
        %1453 = vmatpush1.msra.mxu0 0.0
        %1454 = vmatprep.subr.mxu0 0.0
        %1455 = vmatpush1.msra.mxu0 0.0
        %1456 = vmatprep.subr.mxu0 0.0
        %1457 = vmatpush1.msra.mxu0 0.0
        %1458 = vmatprep.subr.mxu0 0.0
        %1459 = vmatpush1.msra.mxu0 0.0
        %1460 = vmatprep.subr.mxu0 0.0
        %1461 = vmatpush1.msra.mxu0 0.0
        %1462 = vmatprep.subr.mxu0 0.0
        %1463 = vmatpush1.msra.mxu0 0.0
        %1464 = vmatprep.subr.mxu0 0.0
        %1465 = vmatpush1.msra.mxu0 0.0
        %1466 = vmatprep.subr.mxu0 0.0
        %1467 = vmatpush1.msra.mxu0 0.0
        %1468 = vmatprep.subr.mxu0 0.0
        %1469 = vmatpush1.msra.mxu0 0.0
        %1470 = vmatprep.subr.mxu0 0.0
        %1471 = vmatpush1.msra.mxu0 0.0
        %1472 = vmatprep.subr.mxu0 0.0
        %1473 = vmatpush1.msra.mxu0 0.0
        %1474 = vmatprep.subr.mxu0 0.0
        %1475 = vmatpush1.msra.mxu0 0.0
        %1476 = vmatprep.subr.mxu0 0.0
        %1477 = vmatpush1.msra.mxu0 0.0
        %1478 = vmatprep.subr.mxu0 0.0
        %1479 = vmatpush1.msra.mxu0 0.0
        %1480 = vmatprep.subr.mxu0 0.0
        %1481 = vmatpush1.msra.mxu0 0.0
        %1482 = vmatprep.subr.mxu0 0.0
        %1483 = vmatpush1.msra.mxu0 0.0
        %1484 = vmatprep.subr.mxu0 0.0
        %1485 = vmatpush1.msra.mxu0 0.0
        %1486 = vmatprep.subr.mxu0 0.0
        %1487 = vmatpush1.msra.mxu0 0.0
        %1488 = vmatprep.subr.mxu0 0.0
        %1489 = vmatpush1.msra.mxu0 0.0
        %1490 = vmatprep.subr.mxu0 0.0
        %1491 = vmatpush1.msra.mxu0 0.0
        %1492 = vmatprep.subr.mxu0 0.0
        %1493 = vmatpush1.msra.mxu0 0.0
        %1494 = vmatprep.subr.mxu0 0.0
        %1495 = vmatpush1.msra.mxu0 0.0
        %1496 = vmatprep.subr.mxu0 0.0
        %1497 = vmatpush1.msra.mxu0 0.0
        %1498 = vmatprep.subr.mxu0 0.0
        %1499 = vmatpush1.msra.mxu0 0.0
        %1500 = vmatprep.mubr.f32.mxu0 0.0
        %1501 = vmatmul.mubr.f32.gmra.mrb[0].mxu0 %v1221
        %v1502 = vpop.f32.mrb[0].mxu0
        %v1503 = vadd.f32 0.0, %v1502
        %v1504 = vpop.f32.mrb[0].mxu0
        %v1505 = vadd.f32 0.0, %v1504
        %1506 = vdwg.mxu0
        %v1507 = vadd.f32 %v936, %v1290
        %v1508 = vadd.f32 %v938, %v1292
        %v1509 = vadd.f32 %v1007, %v1361
        %v1510 = vadd.f32 %v1009, %v1363
        %v1511 = vadd.f32 %v1078, %v1432
        %v1512 = vadd.f32 %v1080, %v1434
        %v1513 = vadd.f32 %v1149, %v1503
        %v1514 = vadd.f32 %v1151, %v1505
        %1515 = vrot.lane.b32.xlu0 %v428, 1
        %v1516 = vpop.permute.xlu0 %1515
        %1517 = vrot.lane.b32.xlu0 %v429, 1
        %v1518 = vpop.permute.xlu0 %1517
        %1519 = vrot.lane.b32.xlu0 %v430, 1
        %v1520 = vpop.permute.xlu0 %1519
        %1521 = vrot.lane.b32.xlu0 %v431, 1
        %v1522 = vpop.permute.xlu0 %1521
        %1523 = vrot.lane.b32.xlu0 %v432, 1
        %v1524 = vpop.permute.xlu0 %1523
        %1525 = vrot.lane.b32.xlu0 %v433, 1
        %v1526 = vpop.permute.xlu0 %1525
        %1527 = vrot.lane.b32.xlu0 %v434, 1
        %v1528 = vpop.permute.xlu0 %1527
        %1529 = vrot.lane.b32.xlu0 %v435, 1
        %v1530 = vpop.permute.xlu0 %1529
        %vm1531 = vcmp.lt.s32.totalorder %v437, 1
        %v1532 = vsel %vm1531, %v1528, %v1530
        %v1533 = vsel %vm1531, %v1526, %v1528
        %v1534 = vsel %vm1531, %v1524, %v1526
        %v1535 = vsel %vm1531, %v1522, %v1524
        %v1536 = vsel %vm1531, %v1520, %v1522
        %v1537 = vsel %vm1531, %v1518, %v1520
        %v1538 = vsel %vm1531, %v1516, %v1518
        %v1539 = vsel %vm1531, %v1530, %v1516
        %v1540 = vsel %vm486, 1, 0
        %v1541 = vsel %vm487, 1, 0
        %v1542 = vsel %vm488, 1, 0
        %v1543 = vsel %vm489, 1, 0
        %v1544 = vsel %vm490, 1, 0
        %v1545 = vsel %vm491, 1, 0
        %v1546 = vsel %vm492, 1, 0
        %v1547 = vsel %vm493, 1, 0
        %vm1548 = vcmp.eq.s32.totalorder %v1540, 1
        %vm1549 = vcmp.eq.s32.totalorder %v1541, 1
        %vm1550 = vcmp.eq.s32.totalorder %v1542, 1
        %vm1551 = vcmp.eq.s32.totalorder %v1543, 1
        %vm1552 = vcmp.eq.s32.totalorder %v1544, 1
        %vm1553 = vcmp.eq.s32.totalorder %v1545, 1
        %vm1554 = vcmp.eq.s32.totalorder %v1546, 1
        %vm1555 = vcmp.eq.s32.totalorder %v1547, 1
        %v1556 = vsel %vm1548, %v1539, 0.0
        %v1557 = vsel %vm1549, %v1538, 0.0
        %v1558 = vsel %vm1550, %v1537, 0.0
        %v1559 = vsel %vm1551, %v1536, 0.0
        %v1560 = vsel %vm1552, %v1535, 0.0
        %v1561 = vsel %vm1553, %v1534, 0.0
        %v1562 = vsel %vm1554, %v1533, 0.0
        %v1563 = vsel %vm1555, %v1532, 0.0
        %s1564 = scalar_lea.vmem [#allocation2], 24
        %v1565 = vld [vmem:[%s1564] sm:$0xff]
        %v1567 = vsel %vm578, %v1565, 0
        %1569 = vmatprep.subr.mxu0 %v1557
        %1570 = vmatpush1.msra.mxu0 %v1556
        %1571 = vmatprep.subr.mxu0 0.0
        %1572 = vmatpush1.msra.mxu0 0.0
        %1573 = vmatprep.subr.mxu0 0.0
        %1574 = vmatpush1.msra.mxu0 0.0
        %1575 = vmatprep.subr.mxu0 0.0
        %1576 = vmatpush1.msra.mxu0 0.0
        %1577 = vmatprep.subr.mxu0 0.0
        %1578 = vmatpush1.msra.mxu0 0.0
        %1579 = vmatprep.subr.mxu0 0.0
        %1580 = vmatpush1.msra.mxu0 0.0
        %1581 = vmatprep.subr.mxu0 0.0
        %1582 = vmatpush1.msra.mxu0 0.0
        %1583 = vmatprep.subr.mxu0 0.0
        %1584 = vmatpush1.msra.mxu0 0.0
        %1585 = vmatprep.subr.mxu0 0.0
        %1586 = vmatpush1.msra.mxu0 0.0
        %1587 = vmatprep.subr.mxu0 0.0
        %1588 = vmatpush1.msra.mxu0 0.0
        %1589 = vmatprep.subr.mxu0 0.0
        %1590 = vmatpush1.msra.mxu0 0.0
        %1591 = vmatprep.subr.mxu0 0.0
        %1592 = vmatpush1.msra.mxu0 0.0
        %1593 = vmatprep.subr.mxu0 0.0
        %1594 = vmatpush1.msra.mxu0 0.0
        %1595 = vmatprep.subr.mxu0 0.0
        %1596 = vmatpush1.msra.mxu0 0.0
        %1597 = vmatprep.subr.mxu0 0.0
        %1598 = vmatpush1.msra.mxu0 0.0
        %1599 = vmatprep.subr.mxu0 0.0
        %1600 = vmatpush1.msra.mxu0 0.0
        %1601 = vmatprep.subr.mxu0 0.0
        %1602 = vmatpush1.msra.mxu0 0.0
        %1603 = vmatprep.subr.mxu0 0.0
        %1604 = vmatpush1.msra.mxu0 0.0
        %1605 = vmatprep.subr.mxu0 0.0
        %1606 = vmatpush1.msra.mxu0 0.0
        %1607 = vmatprep.subr.mxu0 0.0
        %1608 = vmatpush1.msra.mxu0 0.0
        %1609 = vmatprep.subr.mxu0 0.0
        %1610 = vmatpush1.msra.mxu0 0.0
        %1611 = vmatprep.subr.mxu0 0.0
        %1612 = vmatpush1.msra.mxu0 0.0
        %1613 = vmatprep.subr.mxu0 0.0
        %1614 = vmatpush1.msra.mxu0 0.0
        %1615 = vmatprep.subr.mxu0 0.0
        %1616 = vmatpush1.msra.mxu0 0.0
        %1617 = vmatprep.subr.mxu0 0.0
        %1618 = vmatpush1.msra.mxu0 0.0
        %1619 = vmatprep.subr.mxu0 0.0
        %1620 = vmatpush1.msra.mxu0 0.0
        %1621 = vmatprep.subr.mxu0 0.0
        %1622 = vmatpush1.msra.mxu0 0.0
        %1623 = vmatprep.subr.mxu0 0.0
        %1624 = vmatpush1.msra.mxu0 0.0
        %1625 = vmatprep.subr.mxu0 0.0
        %1626 = vmatpush1.msra.mxu0 0.0
        %1627 = vmatprep.subr.mxu0 0.0
        %1628 = vmatpush1.msra.mxu0 0.0
        %1629 = vmatprep.subr.mxu0 0.0
        %1630 = vmatpush1.msra.mxu0 0.0
        %1631 = vmatprep.subr.mxu0 0.0
        %1632 = vmatpush1.msra.mxu0 0.0
        %1633 = vmatprep.mubr.f32.mxu0 0.0
        %1634 = vmatmul.mubr.f32.gmra.mrb[0].mxu0 %v1567
        %v1635 = vpop.f32.mrb[0].mxu0
        %v1636 = vadd.f32 0.0, %v1635
        %v1637 = vpop.f32.mrb[0].mxu0
        %v1638 = vadd.f32 0.0, %v1637
        %1639 = vdwg.mxu0
        %1640 = vmatprep.subr.mxu0 %v1559
        %1641 = vmatpush1.msra.mxu0 %v1558
        %1642 = vmatprep.subr.mxu0 0.0
        %1643 = vmatpush1.msra.mxu0 0.0
        %1644 = vmatprep.subr.mxu0 0.0
        %1645 = vmatpush1.msra.mxu0 0.0
        %1646 = vmatprep.subr.mxu0 0.0
        %1647 = vmatpush1.msra.mxu0 0.0
        %1648 = vmatprep.subr.mxu0 0.0
        %1649 = vmatpush1.msra.mxu0 0.0
        %1650 = vmatprep.subr.mxu0 0.0
        %1651 = vmatpush1.msra.mxu0 0.0
        %1652 = vmatprep.subr.mxu0 0.0
        %1653 = vmatpush1.msra.mxu0 0.0
        %1654 = vmatprep.subr.mxu0 0.0
        %1655 = vmatpush1.msra.mxu0 0.0
        %1656 = vmatprep.subr.mxu0 0.0
        %1657 = vmatpush1.msra.mxu0 0.0
        %1658 = vmatprep.subr.mxu0 0.0
        %1659 = vmatpush1.msra.mxu0 0.0
        %1660 = vmatprep.subr.mxu0 0.0
        %1661 = vmatpush1.msra.mxu0 0.0
        %1662 = vmatprep.subr.mxu0 0.0
        %1663 = vmatpush1.msra.mxu0 0.0
        %1664 = vmatprep.subr.mxu0 0.0
        %1665 = vmatpush1.msra.mxu0 0.0
        %1666 = vmatprep.subr.mxu0 0.0
        %1667 = vmatpush1.msra.mxu0 0.0
        %1668 = vmatprep.subr.mxu0 0.0
        %1669 = vmatpush1.msra.mxu0 0.0
        %1670 = vmatprep.subr.mxu0 0.0
        %1671 = vmatpush1.msra.mxu0 0.0
        %1672 = vmatprep.subr.mxu0 0.0
        %1673 = vmatpush1.msra.mxu0 0.0
        %1674 = vmatprep.subr.mxu0 0.0
        %1675 = vmatpush1.msra.mxu0 0.0
        %1676 = vmatprep.subr.mxu0 0.0
        %1677 = vmatpush1.msra.mxu0 0.0
        %1678 = vmatprep.subr.mxu0 0.0
        %1679 = vmatpush1.msra.mxu0 0.0
        %1680 = vmatprep.subr.mxu0 0.0
        %1681 = vmatpush1.msra.mxu0 0.0
        %1682 = vmatprep.subr.mxu0 0.0
        %1683 = vmatpush1.msra.mxu0 0.0
        %1684 = vmatprep.subr.mxu0 0.0
        %1685 = vmatpush1.msra.mxu0 0.0
        %1686 = vmatprep.subr.mxu0 0.0
        %1687 = vmatpush1.msra.mxu0 0.0
        %1688 = vmatprep.subr.mxu0 0.0
        %1689 = vmatpush1.msra.mxu0 0.0
        %1690 = vmatprep.subr.mxu0 0.0
        %1691 = vmatpush1.msra.mxu0 0.0
        %1692 = vmatprep.subr.mxu0 0.0
        %1693 = vmatpush1.msra.mxu0 0.0
        %1694 = vmatprep.subr.mxu0 0.0
        %1695 = vmatpush1.msra.mxu0 0.0
        %1696 = vmatprep.subr.mxu0 0.0
        %1697 = vmatpush1.msra.mxu0 0.0
        %1698 = vmatprep.subr.mxu0 0.0
        %1699 = vmatpush1.msra.mxu0 0.0
        %1700 = vmatprep.subr.mxu0 0.0
        %1701 = vmatpush1.msra.mxu0 0.0
        %1702 = vmatprep.subr.mxu0 0.0
        %1703 = vmatpush1.msra.mxu0 0.0
        %1704 = vmatprep.mubr.f32.mxu0 0.0
        %1705 = vmatmul.mubr.f32.gmra.mrb[0].mxu0 %v1567
        %v1706 = vpop.f32.mrb[0].mxu0
        %v1707 = vadd.f32 0.0, %v1706
        %v1708 = vpop.f32.mrb[0].mxu0
        %v1709 = vadd.f32 0.0, %v1708
        %1710 = vdwg.mxu0
        %1711 = vmatprep.subr.mxu0 %v1561
        %1712 = vmatpush1.msra.mxu0 %v1560
        %1713 = vmatprep.subr.mxu0 0.0
        %1714 = vmatpush1.msra.mxu0 0.0
        %1715 = vmatprep.subr.mxu0 0.0
        %1716 = vmatpush1.msra.mxu0 0.0
        %1717 = vmatprep.subr.mxu0 0.0
        %1718 = vmatpush1.msra.mxu0 0.0
        %1719 = vmatprep.subr.mxu0 0.0
        %1720 = vmatpush1.msra.mxu0 0.0
        %1721 = vmatprep.subr.mxu0 0.0
        %1722 = vmatpush1.msra.mxu0 0.0
        %1723 = vmatprep.subr.mxu0 0.0
        %1724 = vmatpush1.msra.mxu0 0.0
        %1725 = vmatprep.subr.mxu0 0.0
        %1726 = vmatpush1.msra.mxu0 0.0
        %1727 = vmatprep.subr.mxu0 0.0
        %1728 = vmatpush1.msra.mxu0 0.0
        %1729 = vmatprep.subr.mxu0 0.0
        %1730 = vmatpush1.msra.mxu0 0.0
        %1731 = vmatprep.subr.mxu0 0.0
        %1732 = vmatpush1.msra.mxu0 0.0
        %1733 = vmatprep.subr.mxu0 0.0
        %1734 = vmatpush1.msra.mxu0 0.0
        %1735 = vmatprep.subr.mxu0 0.0
        %1736 = vmatpush1.msra.mxu0 0.0
        %1737 = vmatprep.subr.mxu0 0.0
        %1738 = vmatpush1.msra.mxu0 0.0
        %1739 = vmatprep.subr.mxu0 0.0
        %1740 = vmatpush1.msra.mxu0 0.0
        %1741 = vmatprep.subr.mxu0 0.0
        %1742 = vmatpush1.msra.mxu0 0.0
        %1743 = vmatprep.subr.mxu0 0.0
        %1744 = vmatpush1.msra.mxu0 0.0
        %1745 = vmatprep.subr.mxu0 0.0
        %1746 = vmatpush1.msra.mxu0 0.0
        %1747 = vmatprep.subr.mxu0 0.0
        %1748 = vmatpush1.msra.mxu0 0.0
        %1749 = vmatprep.subr.mxu0 0.0
        %1750 = vmatpush1.msra.mxu0 0.0
        %1751 = vmatprep.subr.mxu0 0.0
        %1752 = vmatpush1.msra.mxu0 0.0
        %1753 = vmatprep.subr.mxu0 0.0
        %1754 = vmatpush1.msra.mxu0 0.0
        %1755 = vmatprep.subr.mxu0 0.0
        %1756 = vmatpush1.msra.mxu0 0.0
        %1757 = vmatprep.subr.mxu0 0.0
        %1758 = vmatpush1.msra.mxu0 0.0
        %1759 = vmatprep.subr.mxu0 0.0
        %1760 = vmatpush1.msra.mxu0 0.0
        %1761 = vmatprep.subr.mxu0 0.0
        %1762 = vmatpush1.msra.mxu0 0.0
        %1763 = vmatprep.subr.mxu0 0.0
        %1764 = vmatpush1.msra.mxu0 0.0
        %1765 = vmatprep.subr.mxu0 0.0
        %1766 = vmatpush1.msra.mxu0 0.0
        %1767 = vmatprep.subr.mxu0 0.0
        %1768 = vmatpush1.msra.mxu0 0.0
        %1769 = vmatprep.subr.mxu0 0.0
        %1770 = vmatpush1.msra.mxu0 0.0
        %1771 = vmatprep.subr.mxu0 0.0
        %1772 = vmatpush1.msra.mxu0 0.0
        %1773 = vmatprep.subr.mxu0 0.0
        %1774 = vmatpush1.msra.mxu0 0.0
        %1775 = vmatprep.mubr.f32.mxu0 0.0
        %1776 = vmatmul.mubr.f32.gmra.mrb[0].mxu0 %v1567
        %v1777 = vpop.f32.mrb[0].mxu0
        %v1778 = vadd.f32 0.0, %v1777
        %v1779 = vpop.f32.mrb[0].mxu0
        %v1780 = vadd.f32 0.0, %v1779
        %1781 = vdwg.mxu0
        %1782 = vmatprep.subr.mxu0 %v1563
        %1783 = vmatpush1.msra.mxu0 %v1562
        %1784 = vmatprep.subr.mxu0 0.0
        %1785 = vmatpush1.msra.mxu0 0.0
        %1786 = vmatprep.subr.mxu0 0.0
        %1787 = vmatpush1.msra.mxu0 0.0
        %1788 = vmatprep.subr.mxu0 0.0
        %1789 = vmatpush1.msra.mxu0 0.0
        %1790 = vmatprep.subr.mxu0 0.0
        %1791 = vmatpush1.msra.mxu0 0.0
        %1792 = vmatprep.subr.mxu0 0.0
        %1793 = vmatpush1.msra.mxu0 0.0
        %1794 = vmatprep.subr.mxu0 0.0
        %1795 = vmatpush1.msra.mxu0 0.0
        %1796 = vmatprep.subr.mxu0 0.0
        %1797 = vmatpush1.msra.mxu0 0.0
        %1798 = vmatprep.subr.mxu0 0.0
        %1799 = vmatpush1.msra.mxu0 0.0
        %1800 = vmatprep.subr.mxu0 0.0
        %1801 = vmatpush1.msra.mxu0 0.0
        %1802 = vmatprep.subr.mxu0 0.0
        %1803 = vmatpush1.msra.mxu0 0.0
        %1804 = vmatprep.subr.mxu0 0.0
        %1805 = vmatpush1.msra.mxu0 0.0
        %1806 = vmatprep.subr.mxu0 0.0
        %1807 = vmatpush1.msra.mxu0 0.0
        %1808 = vmatprep.subr.mxu0 0.0
        %1809 = vmatpush1.msra.mxu0 0.0
        %1810 = vmatprep.subr.mxu0 0.0
        %1811 = vmatpush1.msra.mxu0 0.0
        %1812 = vmatprep.subr.mxu0 0.0
        %1813 = vmatpush1.msra.mxu0 0.0
        %1814 = vmatprep.subr.mxu0 0.0
        %1815 = vmatpush1.msra.mxu0 0.0
        %1816 = vmatprep.subr.mxu0 0.0
        %1817 = vmatpush1.msra.mxu0 0.0
        %1818 = vmatprep.subr.mxu0 0.0
        %1819 = vmatpush1.msra.mxu0 0.0
        %1820 = vmatprep.subr.mxu0 0.0
        %1821 = vmatpush1.msra.mxu0 0.0
        %1822 = vmatprep.subr.mxu0 0.0
        %1823 = vmatpush1.msra.mxu0 0.0
        %1824 = vmatprep.subr.mxu0 0.0
        %1825 = vmatpush1.msra.mxu0 0.0
        %1826 = vmatprep.subr.mxu0 0.0
        %1827 = vmatpush1.msra.mxu0 0.0
        %1828 = vmatprep.subr.mxu0 0.0
        %1829 = vmatpush1.msra.mxu0 0.0
        %1830 = vmatprep.subr.mxu0 0.0
        %1831 = vmatpush1.msra.mxu0 0.0
        %1832 = vmatprep.subr.mxu0 0.0
        %1833 = vmatpush1.msra.mxu0 0.0
        %1834 = vmatprep.subr.mxu0 0.0
        %1835 = vmatpush1.msra.mxu0 0.0
        %1836 = vmatprep.subr.mxu0 0.0
        %1837 = vmatpush1.msra.mxu0 0.0
        %1838 = vmatprep.subr.mxu0 0.0
        %1839 = vmatpush1.msra.mxu0 0.0
        %1840 = vmatprep.subr.mxu0 0.0
        %1841 = vmatpush1.msra.mxu0 0.0
        %1842 = vmatprep.subr.mxu0 0.0
        %1843 = vmatpush1.msra.mxu0 0.0
        %1844 = vmatprep.subr.mxu0 0.0
        %1845 = vmatpush1.msra.mxu0 0.0
        %1846 = vmatprep.mubr.f32.mxu0 0.0
        %1847 = vmatmul.mubr.f32.gmra.mrb[0].mxu0 %v1567
        %v1848 = vpop.f32.mrb[0].mxu0
        %v1849 = vadd.f32 0.0, %v1848
        %v1850 = vpop.f32.mrb[0].mxu0
        %v1851 = vadd.f32 0.0, %v1850
        %1852 = vdwg.mxu0
        %v1853 = vadd.f32 %v1507, %v1636
        %v1854 = vadd.f32 %v1508, %v1638
        %v1855 = vadd.f32 %v1509, %v1707
        %v1856 = vadd.f32 %v1510, %v1709
        %v1857 = vadd.f32 %v1511, %v1778
        %v1858 = vadd.f32 %v1512, %v1780
        %v1859 = vadd.f32 %v1513, %v1849
        %v1860 = vadd.f32 %v1514, %v1851
        %s1861 = scalar_lea.vmem [#allocation2], 32
        %v1862 = vld [vmem:[%s1861] sm:$0xff]
        %v1864 = vsel %vm578, %v1862, 0
        %1866 = vmatprep.subr.mxu0 %v429
        %1867 = vmatpush1.msra.mxu0 %v428
        %1868 = vmatprep.subr.mxu0 0.0
        %1869 = vmatpush1.msra.mxu0 0.0
        %1870 = vmatprep.subr.mxu0 0.0
        %1871 = vmatpush1.msra.mxu0 0.0
        %1872 = vmatprep.subr.mxu0 0.0
        %1873 = vmatpush1.msra.mxu0 0.0
        %1874 = vmatprep.subr.mxu0 0.0
        %1875 = vmatpush1.msra.mxu0 0.0
        %1876 = vmatprep.subr.mxu0 0.0
        %1877 = vmatpush1.msra.mxu0 0.0
        %1878 = vmatprep.subr.mxu0 0.0
        %1879 = vmatpush1.msra.mxu0 0.0
        %1880 = vmatprep.subr.mxu0 0.0
        %1881 = vmatpush1.msra.mxu0 0.0
        %1882 = vmatprep.subr.mxu0 0.0
        %1883 = vmatpush1.msra.mxu0 0.0
        %1884 = vmatprep.subr.mxu0 0.0
        %1885 = vmatpush1.msra.mxu0 0.0
        %1886 = vmatprep.subr.mxu0 0.0
        %1887 = vmatpush1.msra.mxu0 0.0
        %1888 = vmatprep.subr.mxu0 0.0
        %1889 = vmatpush1.msra.mxu0 0.0
        %1890 = vmatprep.subr.mxu0 0.0
        %1891 = vmatpush1.msra.mxu0 0.0
        %1892 = vmatprep.subr.mxu0 0.0
        %1893 = vmatpush1.msra.mxu0 0.0
        %1894 = vmatprep.subr.mxu0 0.0
        %1895 = vmatpush1.msra.mxu0 0.0
        %1896 = vmatprep.subr.mxu0 0.0
        %1897 = vmatpush1.msra.mxu0 0.0
        %1898 = vmatprep.subr.mxu0 0.0
        %1899 = vmatpush1.msra.mxu0 0.0
        %1900 = vmatprep.subr.mxu0 0.0
        %1901 = vmatpush1.msra.mxu0 0.0
        %1902 = vmatprep.subr.mxu0 0.0
        %1903 = vmatpush1.msra.mxu0 0.0
        %1904 = vmatprep.subr.mxu0 0.0
        %1905 = vmatpush1.msra.mxu0 0.0
        %1906 = vmatprep.subr.mxu0 0.0
        %1907 = vmatpush1.msra.mxu0 0.0
        %1908 = vmatprep.subr.mxu0 0.0
        %1909 = vmatpush1.msra.mxu0 0.0
        %1910 = vmatprep.subr.mxu0 0.0
        %1911 = vmatpush1.msra.mxu0 0.0
        %1912 = vmatprep.subr.mxu0 0.0
        %1913 = vmatpush1.msra.mxu0 0.0
        %1914 = vmatprep.subr.mxu0 0.0
        %1915 = vmatpush1.msra.mxu0 0.0
        %1916 = vmatprep.subr.mxu0 0.0
        %1917 = vmatpush1.msra.mxu0 0.0
        %1918 = vmatprep.subr.mxu0 0.0
        %1919 = vmatpush1.msra.mxu0 0.0
        %1920 = vmatprep.subr.mxu0 0.0
        %1921 = vmatpush1.msra.mxu0 0.0
        %1922 = vmatprep.subr.mxu0 0.0
        %1923 = vmatpush1.msra.mxu0 0.0
        %1924 = vmatprep.subr.mxu0 0.0
        %1925 = vmatpush1.msra.mxu0 0.0
        %1926 = vmatprep.subr.mxu0 0.0
        %1927 = vmatpush1.msra.mxu0 0.0
        %1928 = vmatprep.subr.mxu0 0.0
        %1929 = vmatpush1.msra.mxu0 0.0
        %1930 = vmatprep.mubr.f32.mxu0 0.0
        %1931 = vmatmul.mubr.f32.gmra.mrb[0].mxu0 %v1864
        %v1932 = vpop.f32.mrb[0].mxu0
        %v1933 = vadd.f32 0.0, %v1932
        %v1934 = vpop.f32.mrb[0].mxu0
        %v1935 = vadd.f32 0.0, %v1934
        %1936 = vdwg.mxu0
        %1937 = vmatprep.subr.mxu0 %v431
        %1938 = vmatpush1.msra.mxu0 %v430
        %1939 = vmatprep.subr.mxu0 0.0
        %1940 = vmatpush1.msra.mxu0 0.0
        %1941 = vmatprep.subr.mxu0 0.0
        %1942 = vmatpush1.msra.mxu0 0.0
        %1943 = vmatprep.subr.mxu0 0.0
        %1944 = vmatpush1.msra.mxu0 0.0
        %1945 = vmatprep.subr.mxu0 0.0
        %1946 = vmatpush1.msra.mxu0 0.0
        %1947 = vmatprep.subr.mxu0 0.0
        %1948 = vmatpush1.msra.mxu0 0.0
        %1949 = vmatprep.subr.mxu0 0.0
        %1950 = vmatpush1.msra.mxu0 0.0
        %1951 = vmatprep.subr.mxu0 0.0
        %1952 = vmatpush1.msra.mxu0 0.0
        %1953 = vmatprep.subr.mxu0 0.0
        %1954 = vmatpush1.msra.mxu0 0.0
        %1955 = vmatprep.subr.mxu0 0.0
        %1956 = vmatpush1.msra.mxu0 0.0
        %1957 = vmatprep.subr.mxu0 0.0
        %1958 = vmatpush1.msra.mxu0 0.0
        %1959 = vmatprep.subr.mxu0 0.0
        %1960 = vmatpush1.msra.mxu0 0.0
        %1961 = vmatprep.subr.mxu0 0.0
        %1962 = vmatpush1.msra.mxu0 0.0
        %1963 = vmatprep.subr.mxu0 0.0
        %1964 = vmatpush1.msra.mxu0 0.0
        %1965 = vmatprep.subr.mxu0 0.0
        %1966 = vmatpush1.msra.mxu0 0.0
        %1967 = vmatprep.subr.mxu0 0.0
        %1968 = vmatpush1.msra.mxu0 0.0
        %1969 = vmatprep.subr.mxu0 0.0
        %1970 = vmatpush1.msra.mxu0 0.0
        %1971 = vmatprep.subr.mxu0 0.0
        %1972 = vmatpush1.msra.mxu0 0.0
        %1973 = vmatprep.subr.mxu0 0.0
        %1974 = vmatpush1.msra.mxu0 0.0
        %1975 = vmatprep.subr.mxu0 0.0
        %1976 = vmatpush1.msra.mxu0 0.0
        %1977 = vmatprep.subr.mxu0 0.0
        %1978 = vmatpush1.msra.mxu0 0.0
        %1979 = vmatprep.subr.mxu0 0.0
        %1980 = vmatpush1.msra.mxu0 0.0
        %1981 = vmatprep.subr.mxu0 0.0
        %1982 = vmatpush1.msra.mxu0 0.0
        %1983 = vmatprep.subr.mxu0 0.0
        %1984 = vmatpush1.msra.mxu0 0.0
        %1985 = vmatprep.subr.mxu0 0.0
        %1986 = vmatpush1.msra.mxu0 0.0
        %1987 = vmatprep.subr.mxu0 0.0
        %1988 = vmatpush1.msra.mxu0 0.0
        %1989 = vmatprep.subr.mxu0 0.0
        %1990 = vmatpush1.msra.mxu0 0.0
        %1991 = vmatprep.subr.mxu0 0.0
        %1992 = vmatpush1.msra.mxu0 0.0
        %1993 = vmatprep.subr.mxu0 0.0
        %1994 = vmatpush1.msra.mxu0 0.0
        %1995 = vmatprep.subr.mxu0 0.0
        %1996 = vmatpush1.msra.mxu0 0.0
        %1997 = vmatprep.subr.mxu0 0.0
        %1998 = vmatpush1.msra.mxu0 0.0
        %1999 = vmatprep.subr.mxu0 0.0
        %2000 = vmatpush1.msra.mxu0 0.0
        %2001 = vmatprep.mubr.f32.mxu0 0.0
        %2002 = vmatmul.mubr.f32.gmra.mrb[0].mxu0 %v1864
        %v2003 = vpop.f32.mrb[0].mxu0
        %v2004 = vadd.f32 0.0, %v2003
        %v2005 = vpop.f32.mrb[0].mxu0
        %v2006 = vadd.f32 0.0, %v2005
        %2007 = vdwg.mxu0
        %2008 = vmatprep.subr.mxu0 %v433
        %2009 = vmatpush1.msra.mxu0 %v432
        %2010 = vmatprep.subr.mxu0 0.0
        %2011 = vmatpush1.msra.mxu0 0.0
        %2012 = vmatprep.subr.mxu0 0.0
        %2013 = vmatpush1.msra.mxu0 0.0
        %2014 = vmatprep.subr.mxu0 0.0
        %2015 = vmatpush1.msra.mxu0 0.0
        %2016 = vmatprep.subr.mxu0 0.0
        %2017 = vmatpush1.msra.mxu0 0.0
        %2018 = vmatprep.subr.mxu0 0.0
        %2019 = vmatpush1.msra.mxu0 0.0
        %2020 = vmatprep.subr.mxu0 0.0
        %2021 = vmatpush1.msra.mxu0 0.0
        %2022 = vmatprep.subr.mxu0 0.0
        %2023 = vmatpush1.msra.mxu0 0.0
        %2024 = vmatprep.subr.mxu0 0.0
        %2025 = vmatpush1.msra.mxu0 0.0
        %2026 = vmatprep.subr.mxu0 0.0
        %2027 = vmatpush1.msra.mxu0 0.0
        %2028 = vmatprep.subr.mxu0 0.0
        %2029 = vmatpush1.msra.mxu0 0.0
        %2030 = vmatprep.subr.mxu0 0.0
        %2031 = vmatpush1.msra.mxu0 0.0
        %2032 = vmatprep.subr.mxu0 0.0
        %2033 = vmatpush1.msra.mxu0 0.0
        %2034 = vmatprep.subr.mxu0 0.0
        %2035 = vmatpush1.msra.mxu0 0.0
        %2036 = vmatprep.subr.mxu0 0.0
        %2037 = vmatpush1.msra.mxu0 0.0
        %2038 = vmatprep.subr.mxu0 0.0
        %2039 = vmatpush1.msra.mxu0 0.0
        %2040 = vmatprep.subr.mxu0 0.0
        %2041 = vmatpush1.msra.mxu0 0.0
        %2042 = vmatprep.subr.mxu0 0.0
        %2043 = vmatpush1.msra.mxu0 0.0
        %2044 = vmatprep.subr.mxu0 0.0
        %2045 = vmatpush1.msra.mxu0 0.0
        %2046 = vmatprep.subr.mxu0 0.0
        %2047 = vmatpush1.msra.mxu0 0.0
        %2048 = vmatprep.subr.mxu0 0.0
        %2049 = vmatpush1.msra.mxu0 0.0
        %2050 = vmatprep.subr.mxu0 0.0
        %2051 = vmatpush1.msra.mxu0 0.0
        %2052 = vmatprep.subr.mxu0 0.0
        %2053 = vmatpush1.msra.mxu0 0.0
        %2054 = vmatprep.subr.mxu0 0.0
        %2055 = vmatpush1.msra.mxu0 0.0
        %2056 = vmatprep.subr.mxu0 0.0
        %2057 = vmatpush1.msra.mxu0 0.0
        %2058 = vmatprep.subr.mxu0 0.0
        %2059 = vmatpush1.msra.mxu0 0.0
        %2060 = vmatprep.subr.mxu0 0.0
        %2061 = vmatpush1.msra.mxu0 0.0
        %2062 = vmatprep.subr.mxu0 0.0
        %2063 = vmatpush1.msra.mxu0 0.0
        %2064 = vmatprep.subr.mxu0 0.0
        %2065 = vmatpush1.msra.mxu0 0.0
        %2066 = vmatprep.subr.mxu0 0.0
        %2067 = vmatpush1.msra.mxu0 0.0
        %2068 = vmatprep.subr.mxu0 0.0
        %2069 = vmatpush1.msra.mxu0 0.0
        %2070 = vmatprep.subr.mxu0 0.0
        %2071 = vmatpush1.msra.mxu0 0.0
        %2072 = vmatprep.mubr.f32.mxu0 0.0
        %2073 = vmatmul.mubr.f32.gmra.mrb[0].mxu0 %v1864
        %v2074 = vpop.f32.mrb[0].mxu0
        %v2075 = vadd.f32 0.0, %v2074
        %v2076 = vpop.f32.mrb[0].mxu0
        %v2077 = vadd.f32 0.0, %v2076
        %2078 = vdwg.mxu0
        %2079 = vmatprep.subr.mxu0 %v435
        %2080 = vmatpush1.msra.mxu0 %v434
        %2081 = vmatprep.subr.mxu0 0.0
        %2082 = vmatpush1.msra.mxu0 0.0
        %2083 = vmatprep.subr.mxu0 0.0
        %2084 = vmatpush1.msra.mxu0 0.0
        %2085 = vmatprep.subr.mxu0 0.0
        %2086 = vmatpush1.msra.mxu0 0.0
        %2087 = vmatprep.subr.mxu0 0.0
        %2088 = vmatpush1.msra.mxu0 0.0
        %2089 = vmatprep.subr.mxu0 0.0
        %2090 = vmatpush1.msra.mxu0 0.0
        %2091 = vmatprep.subr.mxu0 0.0
        %2092 = vmatpush1.msra.mxu0 0.0
        %2093 = vmatprep.subr.mxu0 0.0
        %2094 = vmatpush1.msra.mxu0 0.0
        %2095 = vmatprep.subr.mxu0 0.0
        %2096 = vmatpush1.msra.mxu0 0.0
        %2097 = vmatprep.subr.mxu0 0.0
        %2098 = vmatpush1.msra.mxu0 0.0
        %2099 = vmatprep.subr.mxu0 0.0
        %2100 = vmatpush1.msra.mxu0 0.0
        %2101 = vmatprep.subr.mxu0 0.0
        %2102 = vmatpush1.msra.mxu0 0.0
        %2103 = vmatprep.subr.mxu0 0.0
        %2104 = vmatpush1.msra.mxu0 0.0
        %2105 = vmatprep.subr.mxu0 0.0
        %2106 = vmatpush1.msra.mxu0 0.0
        %2107 = vmatprep.subr.mxu0 0.0
        %2108 = vmatpush1.msra.mxu0 0.0
        %2109 = vmatprep.subr.mxu0 0.0
        %2110 = vmatpush1.msra.mxu0 0.0
        %2111 = vmatprep.subr.mxu0 0.0
        %2112 = vmatpush1.msra.mxu0 0.0
        %2113 = vmatprep.subr.mxu0 0.0
        %2114 = vmatpush1.msra.mxu0 0.0
        %2115 = vmatprep.subr.mxu0 0.0
        %2116 = vmatpush1.msra.mxu0 0.0
        %2117 = vmatprep.subr.mxu0 0.0
        %2118 = vmatpush1.msra.mxu0 0.0
        %2119 = vmatprep.subr.mxu0 0.0
        %2120 = vmatpush1.msra.mxu0 0.0
        %2121 = vmatprep.subr.mxu0 0.0
        %2122 = vmatpush1.msra.mxu0 0.0
        %2123 = vmatprep.subr.mxu0 0.0
        %2124 = vmatpush1.msra.mxu0 0.0
        %2125 = vmatprep.subr.mxu0 0.0
        %2126 = vmatpush1.msra.mxu0 0.0
        %2127 = vmatprep.subr.mxu0 0.0
        %2128 = vmatpush1.msra.mxu0 0.0
        %2129 = vmatprep.subr.mxu0 0.0
        %2130 = vmatpush1.msra.mxu0 0.0
        %2131 = vmatprep.subr.mxu0 0.0
        %2132 = vmatpush1.msra.mxu0 0.0
        %2133 = vmatprep.subr.mxu0 0.0
        %2134 = vmatpush1.msra.mxu0 0.0
        %2135 = vmatprep.subr.mxu0 0.0
        %2136 = vmatpush1.msra.mxu0 0.0
        %2137 = vmatprep.subr.mxu0 0.0
        %2138 = vmatpush1.msra.mxu0 0.0
        %2139 = vmatprep.subr.mxu0 0.0
        %2140 = vmatpush1.msra.mxu0 0.0
        %2141 = vmatprep.subr.mxu0 0.0
        %2142 = vmatpush1.msra.mxu0 0.0
        %2143 = vmatprep.mubr.f32.mxu0 0.0
        %2144 = vmatmul.mubr.f32.gmra.mrb[0].mxu0 %v1864
        %v2145 = vpop.f32.mrb[0].mxu0
        %v2146 = vadd.f32 0.0, %v2145
        %v2147 = vpop.f32.mrb[0].mxu0
        %v2148 = vadd.f32 0.0, %v2147
        %2149 = vdwg.mxu0
        %v2150 = vadd.f32 %v1853, %v1933
        %v2151 = vadd.f32 %v1854, %v1935
        %v2152 = vadd.f32 %v1855, %v2004
        %v2153 = vadd.f32 %v1856, %v2006
        %v2154 = vadd.f32 %v1857, %v2075
        %v2155 = vadd.f32 %v1858, %v2077
        %v2156 = vadd.f32 %v1859, %v2146
        %v2157 = vadd.f32 %v1860, %v2148
        %2158 = vrot.lane.b32.xlu0 %v428, 127
        %v2159 = vpop.permute.xlu0 %2158
        %2160 = vrot.lane.b32.xlu0 %v429, 127
        %v2161 = vpop.permute.xlu0 %2160
        %2162 = vrot.lane.b32.xlu0 %v430, 127
        %v2163 = vpop.permute.xlu0 %2162
        %2164 = vrot.lane.b32.xlu0 %v431, 127
        %v2165 = vpop.permute.xlu0 %2164
        %2166 = vrot.lane.b32.xlu0 %v432, 127
        %v2167 = vpop.permute.xlu0 %2166
        %2168 = vrot.lane.b32.xlu0 %v433, 127
        %v2169 = vpop.permute.xlu0 %2168
        %2170 = vrot.lane.b32.xlu0 %v434, 127
        %v2171 = vpop.permute.xlu0 %2170
        %2172 = vrot.lane.b32.xlu0 %v435, 127
        %v2173 = vpop.permute.xlu0 %2172
        %vm2174 = vcmp.lt.s32.totalorder %v437, 127
        %v2175 = vsel %vm2174, %v2171, %v2173
        %v2176 = vsel %vm2174, %v2169, %v2171
        %v2177 = vsel %vm2174, %v2167, %v2169
        %v2178 = vsel %vm2174, %v2165, %v2167
        %v2179 = vsel %vm2174, %v2163, %v2165
        %v2180 = vsel %vm2174, %v2161, %v2163
        %v2181 = vsel %vm2174, %v2159, %v2161
        %v2182 = vsel %vm2174, %v2173, %v2159
        %v2183 = vsel %vm1178, 1, 0
        %v2184 = vsel %vm1179, 1, 0
        %v2185 = vsel %vm1180, 1, 0
        %v2186 = vsel %vm1181, 1, 0
        %v2187 = vsel %vm1182, 1, 0
        %v2188 = vsel %vm1183, 1, 0
        %v2189 = vsel %vm1184, 1, 0
        %v2190 = vsel %vm1185, 1, 0
        %vm2191 = vcmp.eq.s32.totalorder %v2183, 1
        %vm2192 = vcmp.eq.s32.totalorder %v2184, 1
        %vm2193 = vcmp.eq.s32.totalorder %v2185, 1
        %vm2194 = vcmp.eq.s32.totalorder %v2186, 1
        %vm2195 = vcmp.eq.s32.totalorder %v2187, 1
        %vm2196 = vcmp.eq.s32.totalorder %v2188, 1
        %vm2197 = vcmp.eq.s32.totalorder %v2189, 1
        %vm2198 = vcmp.eq.s32.totalorder %v2190, 1
        %v2199 = vsel %vm2191, %v2181, 0.0
        %v2200 = vsel %vm2192, %v2180, 0.0
        %v2201 = vsel %vm2193, %v2179, 0.0
        %v2202 = vsel %vm2194, %v2178, 0.0
        %v2203 = vsel %vm2195, %v2177, 0.0
        %v2204 = vsel %vm2196, %v2176, 0.0
        %v2205 = vsel %vm2197, %v2175, 0.0
        %v2206 = vsel %vm2198, %v2182, 0.0
        %s2207 = scalar_lea.vmem [#allocation2], 40
        %v2208 = vld [vmem:[%s2207] sm:$0xff]
        %v2210 = vsel %vm578, %v2208, 0
        %2212 = vmatprep.subr.mxu0 %v2200
        %2213 = vmatpush1.msra.mxu0 %v2199
        %2214 = vmatprep.subr.mxu0 0.0
        %2215 = vmatpush1.msra.mxu0 0.0
        %2216 = vmatprep.subr.mxu0 0.0
        %2217 = vmatpush1.msra.mxu0 0.0
        %2218 = vmatprep.subr.mxu0 0.0
        %2219 = vmatpush1.msra.mxu0 0.0
        %2220 = vmatprep.subr.mxu0 0.0
        %2221 = vmatpush1.msra.mxu0 0.0
        %2222 = vmatprep.subr.mxu0 0.0
        %2223 = vmatpush1.msra.mxu0 0.0
        %2224 = vmatprep.subr.mxu0 0.0
        %2225 = vmatpush1.msra.mxu0 0.0
        %2226 = vmatprep.subr.mxu0 0.0
        %2227 = vmatpush1.msra.mxu0 0.0
        %2228 = vmatprep.subr.mxu0 0.0
        %2229 = vmatpush1.msra.mxu0 0.0
        %2230 = vmatprep.subr.mxu0 0.0
        %2231 = vmatpush1.msra.mxu0 0.0
        %2232 = vmatprep.subr.mxu0 0.0
        %2233 = vmatpush1.msra.mxu0 0.0
        %2234 = vmatprep.subr.mxu0 0.0
        %2235 = vmatpush1.msra.mxu0 0.0
        %2236 = vmatprep.subr.mxu0 0.0
        %2237 = vmatpush1.msra.mxu0 0.0
        %2238 = vmatprep.subr.mxu0 0.0
        %2239 = vmatpush1.msra.mxu0 0.0
        %2240 = vmatprep.subr.mxu0 0.0
        %2241 = vmatpush1.msra.mxu0 0.0
        %2242 = vmatprep.subr.mxu0 0.0
        %2243 = vmatpush1.msra.mxu0 0.0
        %2244 = vmatprep.subr.mxu0 0.0
        %2245 = vmatpush1.msra.mxu0 0.0
        %2246 = vmatprep.subr.mxu0 0.0
        %2247 = vmatpush1.msra.mxu0 0.0
        %2248 = vmatprep.subr.mxu0 0.0
        %2249 = vmatpush1.msra.mxu0 0.0
        %2250 = vmatprep.subr.mxu0 0.0
        %2251 = vmatpush1.msra.mxu0 0.0
        %2252 = vmatprep.subr.mxu0 0.0
        %2253 = vmatpush1.msra.mxu0 0.0
        %2254 = vmatprep.subr.mxu0 0.0
        %2255 = vmatpush1.msra.mxu0 0.0
        %2256 = vmatprep.subr.mxu0 0.0
        %2257 = vmatpush1.msra.mxu0 0.0
        %2258 = vmatprep.subr.mxu0 0.0
        %2259 = vmatpush1.msra.mxu0 0.0
        %2260 = vmatprep.subr.mxu0 0.0
        %2261 = vmatpush1.msra.mxu0 0.0
        %2262 = vmatprep.subr.mxu0 0.0
        %2263 = vmatpush1.msra.mxu0 0.0
        %2264 = vmatprep.subr.mxu0 0.0
        %2265 = vmatpush1.msra.mxu0 0.0
        %2266 = vmatprep.subr.mxu0 0.0
        %2267 = vmatpush1.msra.mxu0 0.0
        %2268 = vmatprep.subr.mxu0 0.0
        %2269 = vmatpush1.msra.mxu0 0.0
        %2270 = vmatprep.subr.mxu0 0.0
        %2271 = vmatpush1.msra.mxu0 0.0
        %2272 = vmatprep.subr.mxu0 0.0
        %2273 = vmatpush1.msra.mxu0 0.0
        %2274 = vmatprep.subr.mxu0 0.0
        %2275 = vmatpush1.msra.mxu0 0.0
        %2276 = vmatprep.mubr.f32.mxu0 0.0
        %2277 = vmatmul.mubr.f32.gmra.mrb[0].mxu0 %v2210
        %v2278 = vpop.f32.mrb[0].mxu0
        %v2279 = vadd.f32 0.0, %v2278
        %v2280 = vpop.f32.mrb[0].mxu0
        %v2281 = vadd.f32 0.0, %v2280
        %2282 = vdwg.mxu0
        %2283 = vmatprep.subr.mxu0 %v2202
        %2284 = vmatpush1.msra.mxu0 %v2201
        %2285 = vmatprep.subr.mxu0 0.0
        %2286 = vmatpush1.msra.mxu0 0.0
        %2287 = vmatprep.subr.mxu0 0.0
        %2288 = vmatpush1.msra.mxu0 0.0
        %2289 = vmatprep.subr.mxu0 0.0
        %2290 = vmatpush1.msra.mxu0 0.0
        %2291 = vmatprep.subr.mxu0 0.0
        %2292 = vmatpush1.msra.mxu0 0.0
        %2293 = vmatprep.subr.mxu0 0.0
        %2294 = vmatpush1.msra.mxu0 0.0
        %2295 = vmatprep.subr.mxu0 0.0
        %2296 = vmatpush1.msra.mxu0 0.0
        %2297 = vmatprep.subr.mxu0 0.0
        %2298 = vmatpush1.msra.mxu0 0.0
        %2299 = vmatprep.subr.mxu0 0.0
        %2300 = vmatpush1.msra.mxu0 0.0
        %2301 = vmatprep.subr.mxu0 0.0
        %2302 = vmatpush1.msra.mxu0 0.0
        %2303 = vmatprep.subr.mxu0 0.0
        %2304 = vmatpush1.msra.mxu0 0.0
        %2305 = vmatprep.subr.mxu0 0.0
        %2306 = vmatpush1.msra.mxu0 0.0
        %2307 = vmatprep.subr.mxu0 0.0
        %2308 = vmatpush1.msra.mxu0 0.0
        %2309 = vmatprep.subr.mxu0 0.0
        %2310 = vmatpush1.msra.mxu0 0.0
        %2311 = vmatprep.subr.mxu0 0.0
        %2312 = vmatpush1.msra.mxu0 0.0
        %2313 = vmatprep.subr.mxu0 0.0
        %2314 = vmatpush1.msra.mxu0 0.0
        %2315 = vmatprep.subr.mxu0 0.0
        %2316 = vmatpush1.msra.mxu0 0.0
        %2317 = vmatprep.subr.mxu0 0.0
        %2318 = vmatpush1.msra.mxu0 0.0
        %2319 = vmatprep.subr.mxu0 0.0
        %2320 = vmatpush1.msra.mxu0 0.0
        %2321 = vmatprep.subr.mxu0 0.0
        %2322 = vmatpush1.msra.mxu0 0.0
        %2323 = vmatprep.subr.mxu0 0.0
        %2324 = vmatpush1.msra.mxu0 0.0
        %2325 = vmatprep.subr.mxu0 0.0
        %2326 = vmatpush1.msra.mxu0 0.0
        %2327 = vmatprep.subr.mxu0 0.0
        %2328 = vmatpush1.msra.mxu0 0.0
        %2329 = vmatprep.subr.mxu0 0.0
        %2330 = vmatpush1.msra.mxu0 0.0
        %2331 = vmatprep.subr.mxu0 0.0
        %2332 = vmatpush1.msra.mxu0 0.0
        %2333 = vmatprep.subr.mxu0 0.0
        %2334 = vmatpush1.msra.mxu0 0.0
        %2335 = vmatprep.subr.mxu0 0.0
        %2336 = vmatpush1.msra.mxu0 0.0
        %2337 = vmatprep.subr.mxu0 0.0
        %2338 = vmatpush1.msra.mxu0 0.0
        %2339 = vmatprep.subr.mxu0 0.0
        %2340 = vmatpush1.msra.mxu0 0.0
        %2341 = vmatprep.subr.mxu0 0.0
        %2342 = vmatpush1.msra.mxu0 0.0
        %2343 = vmatprep.subr.mxu0 0.0
        %2344 = vmatpush1.msra.mxu0 0.0
        %2345 = vmatprep.subr.mxu0 0.0
        %2346 = vmatpush1.msra.mxu0 0.0
        %2347 = vmatprep.mubr.f32.mxu0 0.0
        %2348 = vmatmul.mubr.f32.gmra.mrb[0].mxu0 %v2210
        %v2349 = vpop.f32.mrb[0].mxu0
        %v2350 = vadd.f32 0.0, %v2349
        %v2351 = vpop.f32.mrb[0].mxu0
        %v2352 = vadd.f32 0.0, %v2351
        %2353 = vdwg.mxu0
        %2354 = vmatprep.subr.mxu0 %v2204
        %2355 = vmatpush1.msra.mxu0 %v2203
        %2356 = vmatprep.subr.mxu0 0.0
        %2357 = vmatpush1.msra.mxu0 0.0
        %2358 = vmatprep.subr.mxu0 0.0
        %2359 = vmatpush1.msra.mxu0 0.0
        %2360 = vmatprep.subr.mxu0 0.0
        %2361 = vmatpush1.msra.mxu0 0.0
        %2362 = vmatprep.subr.mxu0 0.0
        %2363 = vmatpush1.msra.mxu0 0.0
        %2364 = vmatprep.subr.mxu0 0.0
        %2365 = vmatpush1.msra.mxu0 0.0
        %2366 = vmatprep.subr.mxu0 0.0
        %2367 = vmatpush1.msra.mxu0 0.0
        %2368 = vmatprep.subr.mxu0 0.0
        %2369 = vmatpush1.msra.mxu0 0.0
        %2370 = vmatprep.subr.mxu0 0.0
        %2371 = vmatpush1.msra.mxu0 0.0
        %2372 = vmatprep.subr.mxu0 0.0
        %2373 = vmatpush1.msra.mxu0 0.0
        %2374 = vmatprep.subr.mxu0 0.0
        %2375 = vmatpush1.msra.mxu0 0.0
        %2376 = vmatprep.subr.mxu0 0.0
        %2377 = vmatpush1.msra.mxu0 0.0
        %2378 = vmatprep.subr.mxu0 0.0
        %2379 = vmatpush1.msra.mxu0 0.0
        %2380 = vmatprep.subr.mxu0 0.0
        %2381 = vmatpush1.msra.mxu0 0.0
        %2382 = vmatprep.subr.mxu0 0.0
        %2383 = vmatpush1.msra.mxu0 0.0
        %2384 = vmatprep.subr.mxu0 0.0
        %2385 = vmatpush1.msra.mxu0 0.0
        %2386 = vmatprep.subr.mxu0 0.0
        %2387 = vmatpush1.msra.mxu0 0.0
        %2388 = vmatprep.subr.mxu0 0.0
        %2389 = vmatpush1.msra.mxu0 0.0
        %2390 = vmatprep.subr.mxu0 0.0
        %2391 = vmatpush1.msra.mxu0 0.0
        %2392 = vmatprep.subr.mxu0 0.0
        %2393 = vmatpush1.msra.mxu0 0.0
        %2394 = vmatprep.subr.mxu0 0.0
        %2395 = vmatpush1.msra.mxu0 0.0
        %2396 = vmatprep.subr.mxu0 0.0
        %2397 = vmatpush1.msra.mxu0 0.0
        %2398 = vmatprep.subr.mxu0 0.0
        %2399 = vmatpush1.msra.mxu0 0.0
        %2400 = vmatprep.subr.mxu0 0.0
        %2401 = vmatpush1.msra.mxu0 0.0
        %2402 = vmatprep.subr.mxu0 0.0
        %2403 = vmatpush1.msra.mxu0 0.0
        %2404 = vmatprep.subr.mxu0 0.0
        %2405 = vmatpush1.msra.mxu0 0.0
        %2406 = vmatprep.subr.mxu0 0.0
        %2407 = vmatpush1.msra.mxu0 0.0
        %2408 = vmatprep.subr.mxu0 0.0
        %2409 = vmatpush1.msra.mxu0 0.0
        %2410 = vmatprep.subr.mxu0 0.0
        %2411 = vmatpush1.msra.mxu0 0.0
        %2412 = vmatprep.subr.mxu0 0.0
        %2413 = vmatpush1.msra.mxu0 0.0
        %2414 = vmatprep.subr.mxu0 0.0
        %2415 = vmatpush1.msra.mxu0 0.0
        %2416 = vmatprep.subr.mxu0 0.0
        %2417 = vmatpush1.msra.mxu0 0.0
        %2418 = vmatprep.mubr.f32.mxu0 0.0
        %2419 = vmatmul.mubr.f32.gmra.mrb[0].mxu0 %v2210
        %v2420 = vpop.f32.mrb[0].mxu0
        %v2421 = vadd.f32 0.0, %v2420
        %v2422 = vpop.f32.mrb[0].mxu0
        %v2423 = vadd.f32 0.0, %v2422
        %2424 = vdwg.mxu0
        %2425 = vmatprep.subr.mxu0 %v2206
        %2426 = vmatpush1.msra.mxu0 %v2205
        %2427 = vmatprep.subr.mxu0 0.0
        %2428 = vmatpush1.msra.mxu0 0.0
        %2429 = vmatprep.subr.mxu0 0.0
        %2430 = vmatpush1.msra.mxu0 0.0
        %2431 = vmatprep.subr.mxu0 0.0
        %2432 = vmatpush1.msra.mxu0 0.0
        %2433 = vmatprep.subr.mxu0 0.0
        %2434 = vmatpush1.msra.mxu0 0.0
        %2435 = vmatprep.subr.mxu0 0.0
        %2436 = vmatpush1.msra.mxu0 0.0
        %2437 = vmatprep.subr.mxu0 0.0
        %2438 = vmatpush1.msra.mxu0 0.0
        %2439 = vmatprep.subr.mxu0 0.0
        %2440 = vmatpush1.msra.mxu0 0.0
        %2441 = vmatprep.subr.mxu0 0.0
        %2442 = vmatpush1.msra.mxu0 0.0
        %2443 = vmatprep.subr.mxu0 0.0
        %2444 = vmatpush1.msra.mxu0 0.0
        %2445 = vmatprep.subr.mxu0 0.0
        %2446 = vmatpush1.msra.mxu0 0.0
        %2447 = vmatprep.subr.mxu0 0.0
        %2448 = vmatpush1.msra.mxu0 0.0
        %2449 = vmatprep.subr.mxu0 0.0
        %2450 = vmatpush1.msra.mxu0 0.0
        %2451 = vmatprep.subr.mxu0 0.0
        %2452 = vmatpush1.msra.mxu0 0.0
        %2453 = vmatprep.subr.mxu0 0.0
        %2454 = vmatpush1.msra.mxu0 0.0
        %2455 = vmatprep.subr.mxu0 0.0
        %2456 = vmatpush1.msra.mxu0 0.0
        %2457 = vmatprep.subr.mxu0 0.0
        %2458 = vmatpush1.msra.mxu0 0.0
        %2459 = vmatprep.subr.mxu0 0.0
        %2460 = vmatpush1.msra.mxu0 0.0
        %2461 = vmatprep.subr.mxu0 0.0
        %2462 = vmatpush1.msra.mxu0 0.0
        %2463 = vmatprep.subr.mxu0 0.0
        %2464 = vmatpush1.msra.mxu0 0.0
        %2465 = vmatprep.subr.mxu0 0.0
        %2466 = vmatpush1.msra.mxu0 0.0
        %2467 = vmatprep.subr.mxu0 0.0
        %2468 = vmatpush1.msra.mxu0 0.0
        %2469 = vmatprep.subr.mxu0 0.0
        %2470 = vmatpush1.msra.mxu0 0.0
        %2471 = vmatprep.subr.mxu0 0.0
        %2472 = vmatpush1.msra.mxu0 0.0
        %2473 = vmatprep.subr.mxu0 0.0
        %2474 = vmatpush1.msra.mxu0 0.0
        %2475 = vmatprep.subr.mxu0 0.0
        %2476 = vmatpush1.msra.mxu0 0.0
        %2477 = vmatprep.subr.mxu0 0.0
        %2478 = vmatpush1.msra.mxu0 0.0
        %2479 = vmatprep.subr.mxu0 0.0
        %2480 = vmatpush1.msra.mxu0 0.0
        %2481 = vmatprep.subr.mxu0 0.0
        %2482 = vmatpush1.msra.mxu0 0.0
        %2483 = vmatprep.subr.mxu0 0.0
        %2484 = vmatpush1.msra.mxu0 0.0
        %2485 = vmatprep.subr.mxu0 0.0
        %2486 = vmatpush1.msra.mxu0 0.0
        %2487 = vmatprep.subr.mxu0 0.0
        %2488 = vmatpush1.msra.mxu0 0.0
        %2489 = vmatprep.mubr.f32.mxu0 0.0
        %2490 = vmatmul.mubr.f32.gmra.mrb[0].mxu0 %v2210
        %v2491 = vpop.f32.mrb[0].mxu0
        %v2492 = vadd.f32 0.0, %v2491
        %v2493 = vpop.f32.mrb[0].mxu0
        %v2494 = vadd.f32 0.0, %v2493
        %2495 = vdwg.mxu0
        %v2496 = vadd.f32 %v2150, %v2279
        %v2497 = vadd.f32 %v2151, %v2281
        %v2498 = vadd.f32 %v2152, %v2350
        %v2499 = vadd.f32 %v2153, %v2352
        %v2500 = vadd.f32 %v2154, %v2421
        %v2501 = vadd.f32 %v2155, %v2423
        %v2502 = vadd.f32 %v2156, %v2492
        %v2503 = vadd.f32 %v2157, %v2494
        %2504 = vrot.lane.b32.xlu0 %v428, 97
        %v2505 = vpop.permute.xlu0 %2504
        %2506 = vrot.lane.b32.xlu0 %v429, 97
        %v2507 = vpop.permute.xlu0 %2506
        %2508 = vrot.lane.b32.xlu0 %v430, 97
        %v2509 = vpop.permute.xlu0 %2508
        %2510 = vrot.lane.b32.xlu0 %v431, 97
        %v2511 = vpop.permute.xlu0 %2510
        %2512 = vrot.lane.b32.xlu0 %v432, 97
        %v2513 = vpop.permute.xlu0 %2512
        %2514 = vrot.lane.b32.xlu0 %v433, 97
        %v2515 = vpop.permute.xlu0 %2514
        %2516 = vrot.lane.b32.xlu0 %v434, 97
        %v2517 = vpop.permute.xlu0 %2516
        %2518 = vrot.lane.b32.xlu0 %v435, 97
        %v2519 = vpop.permute.xlu0 %2518
        %vm2520 = vcmp.lt.s32.totalorder %v437, 97
        %v2521 = vsel %vm2520, %v2517, %v2519
        %v2522 = vsel %vm2520, %v2515, %v2517
        %v2523 = vsel %vm2520, %v2513, %v2515
        %v2524 = vsel %vm2520, %v2511, %v2513
        %v2525 = vsel %vm2520, %v2509, %v2511
        %v2526 = vsel %vm2520, %v2507, %v2509
        %v2527 = vsel %vm2520, %v2505, %v2507
        %v2528 = vsel %vm2520, %v2519, %v2505
        %vm2529 = vcmp.lt.s32.totalorder %v437, 992
        %vm2530 = vcmp.lt.s32.totalorder %v438, 992
        %vm2531 = vcmp.lt.s32.totalorder %v439, 992
        %vm2532 = vcmp.lt.s32.totalorder %v440, 992
        %vm2533 = vcmp.lt.s32.totalorder %v441, 992
        %vm2534 = vcmp.lt.s32.totalorder %v442, 992
        %vm2535 = vcmp.lt.s32.totalorder %v443, 992
        %vm2536 = vcmp.lt.s32.totalorder %v444, 992
        %vm2537 = vmand %vm2529, %vm486
        %vm2538 = vmand %vm2530, %vm487
        %vm2539 = vmand %vm2531, %vm488
        %vm2540 = vmand %vm2532, %vm489
        %vm2541 = vmand %vm2533, %vm490
        %vm2542 = vmand %vm2534, %vm491
        %vm2543 = vmand %vm2535, %vm492
        %vm2544 = vmand %vm2536, %vm493
        %v2545 = vsel %vm2537, 1, 0
        %v2546 = vsel %vm2538, 1, 0
        %v2547 = vsel %vm2539, 1, 0
        %v2548 = vsel %vm2540, 1, 0
        %v2549 = vsel %vm2541, 1, 0
        %v2550 = vsel %vm2542, 1, 0
        %v2551 = vsel %vm2543, 1, 0
        %v2552 = vsel %vm2544, 1, 0
        %vm2553 = vcmp.eq.s32.totalorder %v2545, 1
        %vm2554 = vcmp.eq.s32.totalorder %v2546, 1
        %vm2555 = vcmp.eq.s32.totalorder %v2547, 1
        %vm2556 = vcmp.eq.s32.totalorder %v2548, 1
        %vm2557 = vcmp.eq.s32.totalorder %v2549, 1
        %vm2558 = vcmp.eq.s32.totalorder %v2550, 1
        %vm2559 = vcmp.eq.s32.totalorder %v2551, 1
        %vm2560 = vcmp.eq.s32.totalorder %v2552, 1
        %v2561 = vsel %vm2553, %v2527, 0.0
        %v2562 = vsel %vm2554, %v2526, 0.0
        %v2563 = vsel %vm2555, %v2525, 0.0
        %v2564 = vsel %vm2556, %v2524, 0.0
        %v2565 = vsel %vm2557, %v2523, 0.0
        %v2566 = vsel %vm2558, %v2522, 0.0
        %v2567 = vsel %vm2559, %v2521, 0.0
        %v2568 = vsel %vm2560, %v2528, 0.0
        %s2569 = scalar_lea.vmem [#allocation2], 48
        %v2570 = vld [vmem:[%s2569] sm:$0xff]
        %v2572 = vsel %vm578, %v2570, 0
        %2574 = vmatprep.subr.mxu0 %v2562
        %2575 = vmatpush1.msra.mxu0 %v2561
        %2576 = vmatprep.subr.mxu0 0.0
        %2577 = vmatpush1.msra.mxu0 0.0
        %2578 = vmatprep.subr.mxu0 0.0
        %2579 = vmatpush1.msra.mxu0 0.0
        %2580 = vmatprep.subr.mxu0 0.0
        %2581 = vmatpush1.msra.mxu0 0.0
        %2582 = vmatprep.subr.mxu0 0.0
        %2583 = vmatpush1.msra.mxu0 0.0
        %2584 = vmatprep.subr.mxu0 0.0
        %2585 = vmatpush1.msra.mxu0 0.0
        %2586 = vmatprep.subr.mxu0 0.0
        %2587 = vmatpush1.msra.mxu0 0.0
        %2588 = vmatprep.subr.mxu0 0.0
        %2589 = vmatpush1.msra.mxu0 0.0
        %2590 = vmatprep.subr.mxu0 0.0
        %2591 = vmatpush1.msra.mxu0 0.0
        %2592 = vmatprep.subr.mxu0 0.0
        %2593 = vmatpush1.msra.mxu0 0.0
        %2594 = vmatprep.subr.mxu0 0.0
        %2595 = vmatpush1.msra.mxu0 0.0
        %2596 = vmatprep.subr.mxu0 0.0
        %2597 = vmatpush1.msra.mxu0 0.0
        %2598 = vmatprep.subr.mxu0 0.0
        %2599 = vmatpush1.msra.mxu0 0.0
        %2600 = vmatprep.subr.mxu0 0.0
        %2601 = vmatpush1.msra.mxu0 0.0
        %2602 = vmatprep.subr.mxu0 0.0
        %2603 = vmatpush1.msra.mxu0 0.0
        %2604 = vmatprep.subr.mxu0 0.0
        %2605 = vmatpush1.msra.mxu0 0.0
        %2606 = vmatprep.subr.mxu0 0.0
        %2607 = vmatpush1.msra.mxu0 0.0
        %2608 = vmatprep.subr.mxu0 0.0
        %2609 = vmatpush1.msra.mxu0 0.0
        %2610 = vmatprep.subr.mxu0 0.0
        %2611 = vmatpush1.msra.mxu0 0.0
        %2612 = vmatprep.subr.mxu0 0.0
        %2613 = vmatpush1.msra.mxu0 0.0
        %2614 = vmatprep.subr.mxu0 0.0
        %2615 = vmatpush1.msra.mxu0 0.0
        %2616 = vmatprep.subr.mxu0 0.0
        %2617 = vmatpush1.msra.mxu0 0.0
        %2618 = vmatprep.subr.mxu0 0.0
        %2619 = vmatpush1.msra.mxu0 0.0
        %2620 = vmatprep.subr.mxu0 0.0
        %2621 = vmatpush1.msra.mxu0 0.0
        %2622 = vmatprep.subr.mxu0 0.0
        %2623 = vmatpush1.msra.mxu0 0.0
        %2624 = vmatprep.subr.mxu0 0.0
        %2625 = vmatpush1.msra.mxu0 0.0
        %2626 = vmatprep.subr.mxu0 0.0
        %2627 = vmatpush1.msra.mxu0 0.0
        %2628 = vmatprep.subr.mxu0 0.0
        %2629 = vmatpush1.msra.mxu0 0.0
        %2630 = vmatprep.subr.mxu0 0.0
        %2631 = vmatpush1.msra.mxu0 0.0
        %2632 = vmatprep.subr.mxu0 0.0
        %2633 = vmatpush1.msra.mxu0 0.0
        %2634 = vmatprep.subr.mxu0 0.0
        %2635 = vmatpush1.msra.mxu0 0.0
        %2636 = vmatprep.subr.mxu0 0.0
        %2637 = vmatpush1.msra.mxu0 0.0
        %2638 = vmatprep.mubr.f32.mxu0 0.0
        %2639 = vmatmul.mubr.f32.gmra.mrb[0].mxu0 %v2572
        %v2640 = vpop.f32.mrb[0].mxu0
        %v2641 = vadd.f32 0.0, %v2640
        %v2642 = vpop.f32.mrb[0].mxu0
        %v2643 = vadd.f32 0.0, %v2642
        %2644 = vdwg.mxu0
        %2645 = vmatprep.subr.mxu0 %v2564
        %2646 = vmatpush1.msra.mxu0 %v2563
        %2647 = vmatprep.subr.mxu0 0.0
        %2648 = vmatpush1.msra.mxu0 0.0
        %2649 = vmatprep.subr.mxu0 0.0
        %2650 = vmatpush1.msra.mxu0 0.0
        %2651 = vmatprep.subr.mxu0 0.0
        %2652 = vmatpush1.msra.mxu0 0.0
        %2653 = vmatprep.subr.mxu0 0.0
        %2654 = vmatpush1.msra.mxu0 0.0
        %2655 = vmatprep.subr.mxu0 0.0
        %2656 = vmatpush1.msra.mxu0 0.0
        %2657 = vmatprep.subr.mxu0 0.0
        %2658 = vmatpush1.msra.mxu0 0.0
        %2659 = vmatprep.subr.mxu0 0.0
        %2660 = vmatpush1.msra.mxu0 0.0
        %2661 = vmatprep.subr.mxu0 0.0
        %2662 = vmatpush1.msra.mxu0 0.0
        %2663 = vmatprep.subr.mxu0 0.0
        %2664 = vmatpush1.msra.mxu0 0.0
        %2665 = vmatprep.subr.mxu0 0.0
        %2666 = vmatpush1.msra.mxu0 0.0
        %2667 = vmatprep.subr.mxu0 0.0
        %2668 = vmatpush1.msra.mxu0 0.0
        %2669 = vmatprep.subr.mxu0 0.0
        %2670 = vmatpush1.msra.mxu0 0.0
        %2671 = vmatprep.subr.mxu0 0.0
        %2672 = vmatpush1.msra.mxu0 0.0
        %2673 = vmatprep.subr.mxu0 0.0
        %2674 = vmatpush1.msra.mxu0 0.0
        %2675 = vmatprep.subr.mxu0 0.0
        %2676 = vmatpush1.msra.mxu0 0.0
        %2677 = vmatprep.subr.mxu0 0.0
        %2678 = vmatpush1.msra.mxu0 0.0
        %2679 = vmatprep.subr.mxu0 0.0
        %2680 = vmatpush1.msra.mxu0 0.0
        %2681 = vmatprep.subr.mxu0 0.0
        %2682 = vmatpush1.msra.mxu0 0.0
        %2683 = vmatprep.subr.mxu0 0.0
        %2684 = vmatpush1.msra.mxu0 0.0
        %2685 = vmatprep.subr.mxu0 0.0
        %2686 = vmatpush1.msra.mxu0 0.0
        %2687 = vmatprep.subr.mxu0 0.0
        %2688 = vmatpush1.msra.mxu0 0.0
        %2689 = vmatprep.subr.mxu0 0.0
        %2690 = vmatpush1.msra.mxu0 0.0
        %2691 = vmatprep.subr.mxu0 0.0
        %2692 = vmatpush1.msra.mxu0 0.0
        %2693 = vmatprep.subr.mxu0 0.0
        %2694 = vmatpush1.msra.mxu0 0.0
        %2695 = vmatprep.subr.mxu0 0.0
        %2696 = vmatpush1.msra.mxu0 0.0
        %2697 = vmatprep.subr.mxu0 0.0
        %2698 = vmatpush1.msra.mxu0 0.0
        %2699 = vmatprep.subr.mxu0 0.0
        %2700 = vmatpush1.msra.mxu0 0.0
        %2701 = vmatprep.subr.mxu0 0.0
        %2702 = vmatpush1.msra.mxu0 0.0
        %2703 = vmatprep.subr.mxu0 0.0
        %2704 = vmatpush1.msra.mxu0 0.0
        %2705 = vmatprep.subr.mxu0 0.0
        %2706 = vmatpush1.msra.mxu0 0.0
        %2707 = vmatprep.subr.mxu0 0.0
        %2708 = vmatpush1.msra.mxu0 0.0
        %2709 = vmatprep.mubr.f32.mxu0 0.0
        %2710 = vmatmul.mubr.f32.gmra.mrb[0].mxu0 %v2572
        %v2711 = vpop.f32.mrb[0].mxu0
        %v2712 = vadd.f32 0.0, %v2711
        %v2713 = vpop.f32.mrb[0].mxu0
        %v2714 = vadd.f32 0.0, %v2713
        %2715 = vdwg.mxu0
        %2716 = vmatprep.subr.mxu0 %v2566
        %2717 = vmatpush1.msra.mxu0 %v2565
        %2718 = vmatprep.subr.mxu0 0.0
        %2719 = vmatpush1.msra.mxu0 0.0
        %2720 = vmatprep.subr.mxu0 0.0
        %2721 = vmatpush1.msra.mxu0 0.0
        %2722 = vmatprep.subr.mxu0 0.0
        %2723 = vmatpush1.msra.mxu0 0.0
        %2724 = vmatprep.subr.mxu0 0.0
        %2725 = vmatpush1.msra.mxu0 0.0
        %2726 = vmatprep.subr.mxu0 0.0
        %2727 = vmatpush1.msra.mxu0 0.0
        %2728 = vmatprep.subr.mxu0 0.0
        %2729 = vmatpush1.msra.mxu0 0.0
        %2730 = vmatprep.subr.mxu0 0.0
        %2731 = vmatpush1.msra.mxu0 0.0
        %2732 = vmatprep.subr.mxu0 0.0
        %2733 = vmatpush1.msra.mxu0 0.0
        %2734 = vmatprep.subr.mxu0 0.0
        %2735 = vmatpush1.msra.mxu0 0.0
        %2736 = vmatprep.subr.mxu0 0.0
        %2737 = vmatpush1.msra.mxu0 0.0
        %2738 = vmatprep.subr.mxu0 0.0
        %2739 = vmatpush1.msra.mxu0 0.0
        %2740 = vmatprep.subr.mxu0 0.0
        %2741 = vmatpush1.msra.mxu0 0.0
        %2742 = vmatprep.subr.mxu0 0.0
        %2743 = vmatpush1.msra.mxu0 0.0
        %2744 = vmatprep.subr.mxu0 0.0
        %2745 = vmatpush1.msra.mxu0 0.0
        %2746 = vmatprep.subr.mxu0 0.0
        %2747 = vmatpush1.msra.mxu0 0.0
        %2748 = vmatprep.subr.mxu0 0.0
        %2749 = vmatpush1.msra.mxu0 0.0
        %2750 = vmatprep.subr.mxu0 0.0
        %2751 = vmatpush1.msra.mxu0 0.0
        %2752 = vmatprep.subr.mxu0 0.0
        %2753 = vmatpush1.msra.mxu0 0.0
        %2754 = vmatprep.subr.mxu0 0.0
        %2755 = vmatpush1.msra.mxu0 0.0
        %2756 = vmatprep.subr.mxu0 0.0
        %2757 = vmatpush1.msra.mxu0 0.0
        %2758 = vmatprep.subr.mxu0 0.0
        %2759 = vmatpush1.msra.mxu0 0.0
        %2760 = vmatprep.subr.mxu0 0.0
        %2761 = vmatpush1.msra.mxu0 0.0
        %2762 = vmatprep.subr.mxu0 0.0
        %2763 = vmatpush1.msra.mxu0 0.0
        %2764 = vmatprep.subr.mxu0 0.0
        %2765 = vmatpush1.msra.mxu0 0.0
        %2766 = vmatprep.subr.mxu0 0.0
        %2767 = vmatpush1.msra.mxu0 0.0
        %2768 = vmatprep.subr.mxu0 0.0
        %2769 = vmatpush1.msra.mxu0 0.0
        %2770 = vmatprep.subr.mxu0 0.0
        %2771 = vmatpush1.msra.mxu0 0.0
        %2772 = vmatprep.subr.mxu0 0.0
        %2773 = vmatpush1.msra.mxu0 0.0
        %2774 = vmatprep.subr.mxu0 0.0
        %2775 = vmatpush1.msra.mxu0 0.0
        %2776 = vmatprep.subr.mxu0 0.0
        %2777 = vmatpush1.msra.mxu0 0.0
        %2778 = vmatprep.subr.mxu0 0.0
        %2779 = vmatpush1.msra.mxu0 0.0
        %2780 = vmatprep.mubr.f32.mxu0 0.0
        %2781 = vmatmul.mubr.f32.gmra.mrb[0].mxu0 %v2572
        %v2782 = vpop.f32.mrb[0].mxu0
        %v2783 = vadd.f32 0.0, %v2782
        %v2784 = vpop.f32.mrb[0].mxu0
        %v2785 = vadd.f32 0.0, %v2784
        %2786 = vdwg.mxu0
        %2787 = vmatprep.subr.mxu0 %v2568
        %2788 = vmatpush1.msra.mxu0 %v2567
        %2789 = vmatprep.subr.mxu0 0.0
        %2790 = vmatpush1.msra.mxu0 0.0
        %2791 = vmatprep.subr.mxu0 0.0
        %2792 = vmatpush1.msra.mxu0 0.0
        %2793 = vmatprep.subr.mxu0 0.0
        %2794 = vmatpush1.msra.mxu0 0.0
        %2795 = vmatprep.subr.mxu0 0.0
        %2796 = vmatpush1.msra.mxu0 0.0
        %2797 = vmatprep.subr.mxu0 0.0
        %2798 = vmatpush1.msra.mxu0 0.0
        %2799 = vmatprep.subr.mxu0 0.0
        %2800 = vmatpush1.msra.mxu0 0.0
        %2801 = vmatprep.subr.mxu0 0.0
        %2802 = vmatpush1.msra.mxu0 0.0
        %2803 = vmatprep.subr.mxu0 0.0
        %2804 = vmatpush1.msra.mxu0 0.0
        %2805 = vmatprep.subr.mxu0 0.0
        %2806 = vmatpush1.msra.mxu0 0.0
        %2807 = vmatprep.subr.mxu0 0.0
        %2808 = vmatpush1.msra.mxu0 0.0
        %2809 = vmatprep.subr.mxu0 0.0
        %2810 = vmatpush1.msra.mxu0 0.0
        %2811 = vmatprep.subr.mxu0 0.0
        %2812 = vmatpush1.msra.mxu0 0.0
        %2813 = vmatprep.subr.mxu0 0.0
        %2814 = vmatpush1.msra.mxu0 0.0
        %2815 = vmatprep.subr.mxu0 0.0
        %2816 = vmatpush1.msra.mxu0 0.0
        %2817 = vmatprep.subr.mxu0 0.0
        %2818 = vmatpush1.msra.mxu0 0.0
        %2819 = vmatprep.subr.mxu0 0.0
        %2820 = vmatpush1.msra.mxu0 0.0
        %2821 = vmatprep.subr.mxu0 0.0
        %2822 = vmatpush1.msra.mxu0 0.0
        %2823 = vmatprep.subr.mxu0 0.0
        %2824 = vmatpush1.msra.mxu0 0.0
        %2825 = vmatprep.subr.mxu0 0.0
        %2826 = vmatpush1.msra.mxu0 0.0
        %2827 = vmatprep.subr.mxu0 0.0
        %2828 = vmatpush1.msra.mxu0 0.0
        %2829 = vmatprep.subr.mxu0 0.0
        %2830 = vmatpush1.msra.mxu0 0.0
        %2831 = vmatprep.subr.mxu0 0.0
        %2832 = vmatpush1.msra.mxu0 0.0
        %2833 = vmatprep.subr.mxu0 0.0
        %2834 = vmatpush1.msra.mxu0 0.0
        %2835 = vmatprep.subr.mxu0 0.0
        %2836 = vmatpush1.msra.mxu0 0.0
        %2837 = vmatprep.subr.mxu0 0.0
        %2838 = vmatpush1.msra.mxu0 0.0
        %2839 = vmatprep.subr.mxu0 0.0
        %2840 = vmatpush1.msra.mxu0 0.0
        %2841 = vmatprep.subr.mxu0 0.0
        %2842 = vmatpush1.msra.mxu0 0.0
        %2843 = vmatprep.subr.mxu0 0.0
        %2844 = vmatpush1.msra.mxu0 0.0
        %2845 = vmatprep.subr.mxu0 0.0
        %2846 = vmatpush1.msra.mxu0 0.0
        %2847 = vmatprep.subr.mxu0 0.0
        %2848 = vmatpush1.msra.mxu0 0.0
        %2849 = vmatprep.subr.mxu0 0.0
        %2850 = vmatpush1.msra.mxu0 0.0
        %2851 = vmatprep.mubr.f32.mxu0 0.0
        %2852 = vmatmul.mubr.f32.gmra.mrb[0].mxu0 %v2572
        %v2853 = vpop.f32.mrb[0].mxu0
        %v2854 = vadd.f32 0.0, %v2853
        %v2855 = vpop.f32.mrb[0].mxu0
        %v2856 = vadd.f32 0.0, %v2855
        %2857 = vdwg.mxu0
        %v2858 = vadd.f32 %v2496, %v2641
        %v2859 = vadd.f32 %v2497, %v2643
        %v2860 = vadd.f32 %v2498, %v2712
        %v2861 = vadd.f32 %v2499, %v2714
        %v2862 = vadd.f32 %v2500, %v2783
        %v2863 = vadd.f32 %v2501, %v2785
        %v2864 = vadd.f32 %v2502, %v2854
        %v2865 = vadd.f32 %v2503, %v2856
        %2866 = vrot.lane.b32.xlu0 %v428, 96
        %v2867 = vpop.permute.xlu0 %2866
        %2868 = vrot.lane.b32.xlu0 %v429, 96
        %v2869 = vpop.permute.xlu0 %2868
        %2870 = vrot.lane.b32.xlu0 %v430, 96
        %v2871 = vpop.permute.xlu0 %2870
        %2872 = vrot.lane.b32.xlu0 %v431, 96
        %v2873 = vpop.permute.xlu0 %2872
        %2874 = vrot.lane.b32.xlu0 %v432, 96
        %v2875 = vpop.permute.xlu0 %2874
        %2876 = vrot.lane.b32.xlu0 %v433, 96
        %v2877 = vpop.permute.xlu0 %2876
        %2878 = vrot.lane.b32.xlu0 %v434, 96
        %v2879 = vpop.permute.xlu0 %2878
        %2880 = vrot.lane.b32.xlu0 %v435, 96
        %v2881 = vpop.permute.xlu0 %2880
        %vm2882 = vcmp.lt.s32.totalorder %v437, 96
        %v2883 = vsel %vm2882, %v2879, %v2881
        %v2884 = vsel %vm2882, %v2877, %v2879
        %v2885 = vsel %vm2882, %v2875, %v2877
        %v2886 = vsel %vm2882, %v2873, %v2875
        %v2887 = vsel %vm2882, %v2871, %v2873
        %v2888 = vsel %vm2882, %v2869, %v2871
        %v2889 = vsel %vm2882, %v2867, %v2869
        %v2890 = vsel %vm2882, %v2881, %v2867
        %v2891 = vsel %vm2529, 1, 0
        %v2892 = vsel %vm2530, 1, 0
        %v2893 = vsel %vm2531, 1, 0
        %v2894 = vsel %vm2532, 1, 0
        %v2895 = vsel %vm2533, 1, 0
        %v2896 = vsel %vm2534, 1, 0
        %v2897 = vsel %vm2535, 1, 0
        %v2898 = vsel %vm2536, 1, 0
        %vm2899 = vcmp.eq.s32.totalorder %v2891, 1
        %vm2900 = vcmp.eq.s32.totalorder %v2892, 1
        %vm2901 = vcmp.eq.s32.totalorder %v2893, 1
        %vm2902 = vcmp.eq.s32.totalorder %v2894, 1
        %vm2903 = vcmp.eq.s32.totalorder %v2895, 1
        %vm2904 = vcmp.eq.s32.totalorder %v2896, 1
        %vm2905 = vcmp.eq.s32.totalorder %v2897, 1
        %vm2906 = vcmp.eq.s32.totalorder %v2898, 1
        %v2907 = vsel %vm2899, %v2889, 0.0
        %v2908 = vsel %vm2900, %v2888, 0.0
        %v2909 = vsel %vm2901, %v2887, 0.0
        %v2910 = vsel %vm2902, %v2886, 0.0
        %v2911 = vsel %vm2903, %v2885, 0.0
        %v2912 = vsel %vm2904, %v2884, 0.0
        %v2913 = vsel %vm2905, %v2883, 0.0
        %v2914 = vsel %vm2906, %v2890, 0.0
        %s2915 = scalar_lea.vmem [#allocation2], 56
        %v2916 = vld [vmem:[%s2915] sm:$0xff]
        %v2918 = vsel %vm578, %v2916, 0
        %2920 = vmatprep.subr.mxu0 %v2908
        %2921 = vmatpush1.msra.mxu0 %v2907
        %2922 = vmatprep.subr.mxu0 0.0
        %2923 = vmatpush1.msra.mxu0 0.0
        %2924 = vmatprep.subr.mxu0 0.0
        %2925 = vmatpush1.msra.mxu0 0.0
        %2926 = vmatprep.subr.mxu0 0.0
        %2927 = vmatpush1.msra.mxu0 0.0
        %2928 = vmatprep.subr.mxu0 0.0
        %2929 = vmatpush1.msra.mxu0 0.0
        %2930 = vmatprep.subr.mxu0 0.0
        %2931 = vmatpush1.msra.mxu0 0.0
        %2932 = vmatprep.subr.mxu0 0.0
        %2933 = vmatpush1.msra.mxu0 0.0
        %2934 = vmatprep.subr.mxu0 0.0
        %2935 = vmatpush1.msra.mxu0 0.0
        %2936 = vmatprep.subr.mxu0 0.0
        %2937 = vmatpush1.msra.mxu0 0.0
        %2938 = vmatprep.subr.mxu0 0.0
        %2939 = vmatpush1.msra.mxu0 0.0
        %2940 = vmatprep.subr.mxu0 0.0
        %2941 = vmatpush1.msra.mxu0 0.0
        %2942 = vmatprep.subr.mxu0 0.0
        %2943 = vmatpush1.msra.mxu0 0.0
        %2944 = vmatprep.subr.mxu0 0.0
        %2945 = vmatpush1.msra.mxu0 0.0
        %2946 = vmatprep.subr.mxu0 0.0
        %2947 = vmatpush1.msra.mxu0 0.0
        %2948 = vmatprep.subr.mxu0 0.0
        %2949 = vmatpush1.msra.mxu0 0.0
        %2950 = vmatprep.subr.mxu0 0.0
        %2951 = vmatpush1.msra.mxu0 0.0
        %2952 = vmatprep.subr.mxu0 0.0
        %2953 = vmatpush1.msra.mxu0 0.0
        %2954 = vmatprep.subr.mxu0 0.0
        %2955 = vmatpush1.msra.mxu0 0.0
        %2956 = vmatprep.subr.mxu0 0.0
        %2957 = vmatpush1.msra.mxu0 0.0
        %2958 = vmatprep.subr.mxu0 0.0
        %2959 = vmatpush1.msra.mxu0 0.0
        %2960 = vmatprep.subr.mxu0 0.0
        %2961 = vmatpush1.msra.mxu0 0.0
        %2962 = vmatprep.subr.mxu0 0.0
        %2963 = vmatpush1.msra.mxu0 0.0
        %2964 = vmatprep.subr.mxu0 0.0
        %2965 = vmatpush1.msra.mxu0 0.0
        %2966 = vmatprep.subr.mxu0 0.0
        %2967 = vmatpush1.msra.mxu0 0.0
        %2968 = vmatprep.subr.mxu0 0.0
        %2969 = vmatpush1.msra.mxu0 0.0
        %2970 = vmatprep.subr.mxu0 0.0
        %2971 = vmatpush1.msra.mxu0 0.0
        %2972 = vmatprep.subr.mxu0 0.0
        %2973 = vmatpush1.msra.mxu0 0.0
        %2974 = vmatprep.subr.mxu0 0.0
        %2975 = vmatpush1.msra.mxu0 0.0
        %2976 = vmatprep.subr.mxu0 0.0
        %2977 = vmatpush1.msra.mxu0 0.0
        %2978 = vmatprep.subr.mxu0 0.0
        %2979 = vmatpush1.msra.mxu0 0.0
        %2980 = vmatprep.subr.mxu0 0.0
        %2981 = vmatpush1.msra.mxu0 0.0
        %2982 = vmatprep.subr.mxu0 0.0
        %2983 = vmatpush1.msra.mxu0 0.0
        %2984 = vmatprep.mubr.f32.mxu0 0.0
        %2985 = vmatmul.mubr.f32.gmra.mrb[0].mxu0 %v2918
        %v2986 = vpop.f32.mrb[0].mxu0
        %v2987 = vadd.f32 0.0, %v2986
        %v2988 = vpop.f32.mrb[0].mxu0
        %v2989 = vadd.f32 0.0, %v2988
        %2990 = vdwg.mxu0
        %2991 = vmatprep.subr.mxu0 %v2910
        %2992 = vmatpush1.msra.mxu0 %v2909
        %2993 = vmatprep.subr.mxu0 0.0
        %2994 = vmatpush1.msra.mxu0 0.0
        %2995 = vmatprep.subr.mxu0 0.0
        %2996 = vmatpush1.msra.mxu0 0.0
        %2997 = vmatprep.subr.mxu0 0.0
        %2998 = vmatpush1.msra.mxu0 0.0
        %2999 = vmatprep.subr.mxu0 0.0
        %3000 = vmatpush1.msra.mxu0 0.0
        %3001 = vmatprep.subr.mxu0 0.0
        %3002 = vmatpush1.msra.mxu0 0.0
        %3003 = vmatprep.subr.mxu0 0.0
        %3004 = vmatpush1.msra.mxu0 0.0
        %3005 = vmatprep.subr.mxu0 0.0
        %3006 = vmatpush1.msra.mxu0 0.0
        %3007 = vmatprep.subr.mxu0 0.0
        %3008 = vmatpush1.msra.mxu0 0.0
        %3009 = vmatprep.subr.mxu0 0.0
        %3010 = vmatpush1.msra.mxu0 0.0
        %3011 = vmatprep.subr.mxu0 0.0
        %3012 = vmatpush1.msra.mxu0 0.0
        %3013 = vmatprep.subr.mxu0 0.0
        %3014 = vmatpush1.msra.mxu0 0.0
        %3015 = vmatprep.subr.mxu0 0.0
        %3016 = vmatpush1.msra.mxu0 0.0
        %3017 = vmatprep.subr.mxu0 0.0
        %3018 = vmatpush1.msra.mxu0 0.0
        %3019 = vmatprep.subr.mxu0 0.0
        %3020 = vmatpush1.msra.mxu0 0.0
        %3021 = vmatprep.subr.mxu0 0.0
        %3022 = vmatpush1.msra.mxu0 0.0
        %3023 = vmatprep.subr.mxu0 0.0
        %3024 = vmatpush1.msra.mxu0 0.0
        %3025 = vmatprep.subr.mxu0 0.0
        %3026 = vmatpush1.msra.mxu0 0.0
        %3027 = vmatprep.subr.mxu0 0.0
        %3028 = vmatpush1.msra.mxu0 0.0
        %3029 = vmatprep.subr.mxu0 0.0
        %3030 = vmatpush1.msra.mxu0 0.0
        %3031 = vmatprep.subr.mxu0 0.0
        %3032 = vmatpush1.msra.mxu0 0.0
        %3033 = vmatprep.subr.mxu0 0.0
        %3034 = vmatpush1.msra.mxu0 0.0
        %3035 = vmatprep.subr.mxu0 0.0
        %3036 = vmatpush1.msra.mxu0 0.0
        %3037 = vmatprep.subr.mxu0 0.0
        %3038 = vmatpush1.msra.mxu0 0.0
        %3039 = vmatprep.subr.mxu0 0.0
        %3040 = vmatpush1.msra.mxu0 0.0
        %3041 = vmatprep.subr.mxu0 0.0
        %3042 = vmatpush1.msra.mxu0 0.0
        %3043 = vmatprep.subr.mxu0 0.0
        %3044 = vmatpush1.msra.mxu0 0.0
        %3045 = vmatprep.subr.mxu0 0.0
        %3046 = vmatpush1.msra.mxu0 0.0
        %3047 = vmatprep.subr.mxu0 0.0
        %3048 = vmatpush1.msra.mxu0 0.0
        %3049 = vmatprep.subr.mxu0 0.0
        %3050 = vmatpush1.msra.mxu0 0.0
        %3051 = vmatprep.subr.mxu0 0.0
        %3052 = vmatpush1.msra.mxu0 0.0
        %3053 = vmatprep.subr.mxu0 0.0
        %3054 = vmatpush1.msra.mxu0 0.0
        %3055 = vmatprep.mubr.f32.mxu0 0.0
        %3056 = vmatmul.mubr.f32.gmra.mrb[0].mxu0 %v2918
        %v3057 = vpop.f32.mrb[0].mxu0
        %v3058 = vadd.f32 0.0, %v3057
        %v3059 = vpop.f32.mrb[0].mxu0
        %v3060 = vadd.f32 0.0, %v3059
        %3061 = vdwg.mxu0
        %3062 = vmatprep.subr.mxu0 %v2912
        %3063 = vmatpush1.msra.mxu0 %v2911
        %3064 = vmatprep.subr.mxu0 0.0
        %3065 = vmatpush1.msra.mxu0 0.0
        %3066 = vmatprep.subr.mxu0 0.0
        %3067 = vmatpush1.msra.mxu0 0.0
        %3068 = vmatprep.subr.mxu0 0.0
        %3069 = vmatpush1.msra.mxu0 0.0
        %3070 = vmatprep.subr.mxu0 0.0
        %3071 = vmatpush1.msra.mxu0 0.0
        %3072 = vmatprep.subr.mxu0 0.0
        %3073 = vmatpush1.msra.mxu0 0.0
        %3074 = vmatprep.subr.mxu0 0.0
        %3075 = vmatpush1.msra.mxu0 0.0
        %3076 = vmatprep.subr.mxu0 0.0
        %3077 = vmatpush1.msra.mxu0 0.0
        %3078 = vmatprep.subr.mxu0 0.0
        %3079 = vmatpush1.msra.mxu0 0.0
        %3080 = vmatprep.subr.mxu0 0.0
        %3081 = vmatpush1.msra.mxu0 0.0
        %3082 = vmatprep.subr.mxu0 0.0
        %3083 = vmatpush1.msra.mxu0 0.0
        %3084 = vmatprep.subr.mxu0 0.0
        %3085 = vmatpush1.msra.mxu0 0.0
        %3086 = vmatprep.subr.mxu0 0.0
        %3087 = vmatpush1.msra.mxu0 0.0
        %3088 = vmatprep.subr.mxu0 0.0
        %3089 = vmatpush1.msra.mxu0 0.0
        %3090 = vmatprep.subr.mxu0 0.0
        %3091 = vmatpush1.msra.mxu0 0.0
        %3092 = vmatprep.subr.mxu0 0.0
        %3093 = vmatpush1.msra.mxu0 0.0
        %3094 = vmatprep.subr.mxu0 0.0
        %3095 = vmatpush1.msra.mxu0 0.0
        %3096 = vmatprep.subr.mxu0 0.0
        %3097 = vmatpush1.msra.mxu0 0.0
        %3098 = vmatprep.subr.mxu0 0.0
        %3099 = vmatpush1.msra.mxu0 0.0
        %3100 = vmatprep.subr.mxu0 0.0
        %3101 = vmatpush1.msra.mxu0 0.0
        %3102 = vmatprep.subr.mxu0 0.0
        %3103 = vmatpush1.msra.mxu0 0.0
        %3104 = vmatprep.subr.mxu0 0.0
        %3105 = vmatpush1.msra.mxu0 0.0
        %3106 = vmatprep.subr.mxu0 0.0
        %3107 = vmatpush1.msra.mxu0 0.0
        %3108 = vmatprep.subr.mxu0 0.0
        %3109 = vmatpush1.msra.mxu0 0.0
        %3110 = vmatprep.subr.mxu0 0.0
        %3111 = vmatpush1.msra.mxu0 0.0
        %3112 = vmatprep.subr.mxu0 0.0
        %3113 = vmatpush1.msra.mxu0 0.0
        %3114 = vmatprep.subr.mxu0 0.0
        %3115 = vmatpush1.msra.mxu0 0.0
        %3116 = vmatprep.subr.mxu0 0.0
        %3117 = vmatpush1.msra.mxu0 0.0
        %3118 = vmatprep.subr.mxu0 0.0
        %3119 = vmatpush1.msra.mxu0 0.0
        %3120 = vmatprep.subr.mxu0 0.0
        %3121 = vmatpush1.msra.mxu0 0.0
        %3122 = vmatprep.subr.mxu0 0.0
        %3123 = vmatpush1.msra.mxu0 0.0
        %3124 = vmatprep.subr.mxu0 0.0
        %3125 = vmatpush1.msra.mxu0 0.0
        %3126 = vmatprep.mubr.f32.mxu0 0.0
        %3127 = vmatmul.mubr.f32.gmra.mrb[0].mxu0 %v2918
        %v3128 = vpop.f32.mrb[0].mxu0
        %v3129 = vadd.f32 0.0, %v3128
        %v3130 = vpop.f32.mrb[0].mxu0
        %v3131 = vadd.f32 0.0, %v3130
        %3132 = vdwg.mxu0
        %3133 = vmatprep.subr.mxu0 %v2914
        %3134 = vmatpush1.msra.mxu0 %v2913
        %3135 = vmatprep.subr.mxu0 0.0
        %3136 = vmatpush1.msra.mxu0 0.0
        %3137 = vmatprep.subr.mxu0 0.0
        %3138 = vmatpush1.msra.mxu0 0.0
        %3139 = vmatprep.subr.mxu0 0.0
        %3140 = vmatpush1.msra.mxu0 0.0
        %3141 = vmatprep.subr.mxu0 0.0
        %3142 = vmatpush1.msra.mxu0 0.0
        %3143 = vmatprep.subr.mxu0 0.0
        %3144 = vmatpush1.msra.mxu0 0.0
        %3145 = vmatprep.subr.mxu0 0.0
        %3146 = vmatpush1.msra.mxu0 0.0
        %3147 = vmatprep.subr.mxu0 0.0
        %3148 = vmatpush1.msra.mxu0 0.0
        %3149 = vmatprep.subr.mxu0 0.0
        %3150 = vmatpush1.msra.mxu0 0.0
        %3151 = vmatprep.subr.mxu0 0.0
        %3152 = vmatpush1.msra.mxu0 0.0
        %3153 = vmatprep.subr.mxu0 0.0
        %3154 = vmatpush1.msra.mxu0 0.0
        %3155 = vmatprep.subr.mxu0 0.0
        %3156 = vmatpush1.msra.mxu0 0.0
        %3157 = vmatprep.subr.mxu0 0.0
        %3158 = vmatpush1.msra.mxu0 0.0
        %3159 = vmatprep.subr.mxu0 0.0
        %3160 = vmatpush1.msra.mxu0 0.0
        %3161 = vmatprep.subr.mxu0 0.0
        %3162 = vmatpush1.msra.mxu0 0.0
        %3163 = vmatprep.subr.mxu0 0.0
        %3164 = vmatpush1.msra.mxu0 0.0
        %3165 = vmatprep.subr.mxu0 0.0
        %3166 = vmatpush1.msra.mxu0 0.0
        %3167 = vmatprep.subr.mxu0 0.0
        %3168 = vmatpush1.msra.mxu0 0.0
        %3169 = vmatprep.subr.mxu0 0.0
        %3170 = vmatpush1.msra.mxu0 0.0
        %3171 = vmatprep.subr.mxu0 0.0
        %3172 = vmatpush1.msra.mxu0 0.0
        %3173 = vmatprep.subr.mxu0 0.0
        %3174 = vmatpush1.msra.mxu0 0.0
        %3175 = vmatprep.subr.mxu0 0.0
        %3176 = vmatpush1.msra.mxu0 0.0
        %3177 = vmatprep.subr.mxu0 0.0
        %3178 = vmatpush1.msra.mxu0 0.0
        %3179 = vmatprep.subr.mxu0 0.0
        %3180 = vmatpush1.msra.mxu0 0.0
        %3181 = vmatprep.subr.mxu0 0.0
        %3182 = vmatpush1.msra.mxu0 0.0
        %3183 = vmatprep.subr.mxu0 0.0
        %3184 = vmatpush1.msra.mxu0 0.0
        %3185 = vmatprep.subr.mxu0 0.0
        %3186 = vmatpush1.msra.mxu0 0.0
        %3187 = vmatprep.subr.mxu0 0.0
        %3188 = vmatpush1.msra.mxu0 0.0
        %3189 = vmatprep.subr.mxu0 0.0
        %3190 = vmatpush1.msra.mxu0 0.0
        %3191 = vmatprep.subr.mxu0 0.0
        %3192 = vmatpush1.msra.mxu0 0.0
        %3193 = vmatprep.subr.mxu0 0.0
        %3194 = vmatpush1.msra.mxu0 0.0
        %3195 = vmatprep.subr.mxu0 0.0
        %3196 = vmatpush1.msra.mxu0 0.0
        %3197 = vmatprep.mubr.f32.mxu0 0.0
        %3198 = vmatmul.mubr.f32.gmra.mrb[0].mxu0 %v2918
        %v3199 = vpop.f32.mrb[0].mxu0
        %v3200 = vadd.f32 0.0, %v3199
        %v3201 = vpop.f32.mrb[0].mxu0
        %v3202 = vadd.f32 0.0, %v3201
        %3203 = vdwg.mxu0
        %v3204 = vadd.f32 %v2858, %v2987
        %v3205 = vadd.f32 %v2859, %v2989
        %v3206 = vadd.f32 %v2860, %v3058
        %v3207 = vadd.f32 %v2861, %v3060
        %v3208 = vadd.f32 %v2862, %v3129
        %v3209 = vadd.f32 %v2863, %v3131
        %v3210 = vadd.f32 %v2864, %v3200
        %v3211 = vadd.f32 %v2865, %v3202
        %3212 = vrot.lane.b32.xlu0 %v428, 95
        %v3213 = vpop.permute.xlu0 %3212
        %3214 = vrot.lane.b32.xlu0 %v429, 95
        %v3215 = vpop.permute.xlu0 %3214
        %3216 = vrot.lane.b32.xlu0 %v430, 95
        %v3217 = vpop.permute.xlu0 %3216
        %3218 = vrot.lane.b32.xlu0 %v431, 95
        %v3219 = vpop.permute.xlu0 %3218
        %3220 = vrot.lane.b32.xlu0 %v432, 95
        %v3221 = vpop.permute.xlu0 %3220
        %3222 = vrot.lane.b32.xlu0 %v433, 95
        %v3223 = vpop.permute.xlu0 %3222
        %3224 = vrot.lane.b32.xlu0 %v434, 95
        %v3225 = vpop.permute.xlu0 %3224
        %3226 = vrot.lane.b32.xlu0 %v435, 95
        %v3227 = vpop.permute.xlu0 %3226
        %vm3228 = vcmp.lt.s32.totalorder %v437, 95
        %v3229 = vsel %vm3228, %v3225, %v3227
        %v3230 = vsel %vm3228, %v3223, %v3225
        %v3231 = vsel %vm3228, %v3221, %v3223
        %v3232 = vsel %vm3228, %v3219, %v3221
        %v3233 = vsel %vm3228, %v3217, %v3219
        %v3234 = vsel %vm3228, %v3215, %v3217
        %v3235 = vsel %vm3228, %v3213, %v3215
        %v3236 = vsel %vm3228, %v3227, %v3213
        %vm3237 = vmand %vm2529, %vm1178
        %vm3238 = vmand %vm2530, %vm1179
        %vm3239 = vmand %vm2531, %vm1180
        %vm3240 = vmand %vm2532, %vm1181
        %vm3241 = vmand %vm2533, %vm1182
        %vm3242 = vmand %vm2534, %vm1183
        %vm3243 = vmand %vm2535, %vm1184
        %vm3244 = vmand %vm2536, %vm1185
        %v3245 = vsel %vm3237, 1, 0
        %v3246 = vsel %vm3238, 1, 0
        %v3247 = vsel %vm3239, 1, 0
        %v3248 = vsel %vm3240, 1, 0
        %v3249 = vsel %vm3241, 1, 0
        %v3250 = vsel %vm3242, 1, 0
        %v3251 = vsel %vm3243, 1, 0
        %v3252 = vsel %vm3244, 1, 0
        %vm3253 = vcmp.eq.s32.totalorder %v3245, 1
        %vm3254 = vcmp.eq.s32.totalorder %v3246, 1
        %vm3255 = vcmp.eq.s32.totalorder %v3247, 1
        %vm3256 = vcmp.eq.s32.totalorder %v3248, 1
        %vm3257 = vcmp.eq.s32.totalorder %v3249, 1
        %vm3258 = vcmp.eq.s32.totalorder %v3250, 1
        %vm3259 = vcmp.eq.s32.totalorder %v3251, 1
        %vm3260 = vcmp.eq.s32.totalorder %v3252, 1
        %v3261 = vsel %vm3253, %v3235, 0.0
        %v3262 = vsel %vm3254, %v3234, 0.0
        %v3263 = vsel %vm3255, %v3233, 0.0
        %v3264 = vsel %vm3256, %v3232, 0.0
        %v3265 = vsel %vm3257, %v3231, 0.0
        %v3266 = vsel %vm3258, %v3230, 0.0
        %v3267 = vsel %vm3259, %v3229, 0.0
        %v3268 = vsel %vm3260, %v3236, 0.0
        %s3269 = scalar_lea.vmem [#allocation2], 64
        %v3270 = vld [vmem:[%s3269] sm:$0xff]
        %v3272 = vsel %vm578, %v3270, 0
        %3274 = vmatprep.subr.mxu0 %v3262
        %3275 = vmatpush1.msra.mxu0 %v3261
        %3276 = vmatprep.subr.mxu0 0.0
        %3277 = vmatpush1.msra.mxu0 0.0
        %3278 = vmatprep.subr.mxu0 0.0
        %3279 = vmatpush1.msra.mxu0 0.0
        %3280 = vmatprep.subr.mxu0 0.0
        %3281 = vmatpush1.msra.mxu0 0.0
        %3282 = vmatprep.subr.mxu0 0.0
        %3283 = vmatpush1.msra.mxu0 0.0
        %3284 = vmatprep.subr.mxu0 0.0
        %3285 = vmatpush1.msra.mxu0 0.0
        %3286 = vmatprep.subr.mxu0 0.0
        %3287 = vmatpush1.msra.mxu0 0.0
        %3288 = vmatprep.subr.mxu0 0.0
        %3289 = vmatpush1.msra.mxu0 0.0
        %3290 = vmatprep.subr.mxu0 0.0
        %3291 = vmatpush1.msra.mxu0 0.0
        %3292 = vmatprep.subr.mxu0 0.0
        %3293 = vmatpush1.msra.mxu0 0.0
        %3294 = vmatprep.subr.mxu0 0.0
        %3295 = vmatpush1.msra.mxu0 0.0
        %3296 = vmatprep.subr.mxu0 0.0
        %3297 = vmatpush1.msra.mxu0 0.0
        %3298 = vmatprep.subr.mxu0 0.0
        %3299 = vmatpush1.msra.mxu0 0.0
        %3300 = vmatprep.subr.mxu0 0.0
        %3301 = vmatpush1.msra.mxu0 0.0
        %3302 = vmatprep.subr.mxu0 0.0
        %3303 = vmatpush1.msra.mxu0 0.0
        %3304 = vmatprep.subr.mxu0 0.0
        %3305 = vmatpush1.msra.mxu0 0.0
        %3306 = vmatprep.subr.mxu0 0.0
        %3307 = vmatpush1.msra.mxu0 0.0
        %3308 = vmatprep.subr.mxu0 0.0
        %3309 = vmatpush1.msra.mxu0 0.0
        %3310 = vmatprep.subr.mxu0 0.0
        %3311 = vmatpush1.msra.mxu0 0.0
        %3312 = vmatprep.subr.mxu0 0.0
        %3313 = vmatpush1.msra.mxu0 0.0
        %3314 = vmatprep.subr.mxu0 0.0
        %3315 = vmatpush1.msra.mxu0 0.0
        %3316 = vmatprep.subr.mxu0 0.0
        %3317 = vmatpush1.msra.mxu0 0.0
        %3318 = vmatprep.subr.mxu0 0.0
        %3319 = vmatpush1.msra.mxu0 0.0
        %3320 = vmatprep.subr.mxu0 0.0
        %3321 = vmatpush1.msra.mxu0 0.0
        %3322 = vmatprep.subr.mxu0 0.0
        %3323 = vmatpush1.msra.mxu0 0.0
        %3324 = vmatprep.subr.mxu0 0.0
        %3325 = vmatpush1.msra.mxu0 0.0
        %3326 = vmatprep.subr.mxu0 0.0
        %3327 = vmatpush1.msra.mxu0 0.0
        %3328 = vmatprep.subr.mxu0 0.0
        %3329 = vmatpush1.msra.mxu0 0.0
        %3330 = vmatprep.subr.mxu0 0.0
        %3331 = vmatpush1.msra.mxu0 0.0
        %3332 = vmatprep.subr.mxu0 0.0
        %3333 = vmatpush1.msra.mxu0 0.0
        %3334 = vmatprep.subr.mxu0 0.0
        %3335 = vmatpush1.msra.mxu0 0.0
        %3336 = vmatprep.subr.mxu0 0.0
        %3337 = vmatpush1.msra.mxu0 0.0
        %3338 = vmatprep.mubr.f32.mxu0 0.0
        %3339 = vmatmul.mubr.f32.gmra.mrb[0].mxu0 %v3272
        %v3340 = vpop.f32.mrb[0].mxu0
        %v3341 = vadd.f32 0.0, %v3340
        %v3342 = vpop.f32.mrb[0].mxu0
        %v3343 = vadd.f32 0.0, %v3342
        %3344 = vdwg.mxu0
        %3345 = vmatprep.subr.mxu0 %v3264
        %3346 = vmatpush1.msra.mxu0 %v3263
        %3347 = vmatprep.subr.mxu0 0.0
        %3348 = vmatpush1.msra.mxu0 0.0
        %3349 = vmatprep.subr.mxu0 0.0
        %3350 = vmatpush1.msra.mxu0 0.0
        %3351 = vmatprep.subr.mxu0 0.0
        %3352 = vmatpush1.msra.mxu0 0.0
        %3353 = vmatprep.subr.mxu0 0.0
        %3354 = vmatpush1.msra.mxu0 0.0
        %3355 = vmatprep.subr.mxu0 0.0
        %3356 = vmatpush1.msra.mxu0 0.0
        %3357 = vmatprep.subr.mxu0 0.0
        %3358 = vmatpush1.msra.mxu0 0.0
        %3359 = vmatprep.subr.mxu0 0.0
        %3360 = vmatpush1.msra.mxu0 0.0
        %3361 = vmatprep.subr.mxu0 0.0
        %3362 = vmatpush1.msra.mxu0 0.0
        %3363 = vmatprep.subr.mxu0 0.0
        %3364 = vmatpush1.msra.mxu0 0.0
        %3365 = vmatprep.subr.mxu0 0.0
        %3366 = vmatpush1.msra.mxu0 0.0
        %3367 = vmatprep.subr.mxu0 0.0
        %3368 = vmatpush1.msra.mxu0 0.0
        %3369 = vmatprep.subr.mxu0 0.0
        %3370 = vmatpush1.msra.mxu0 0.0
        %3371 = vmatprep.subr.mxu0 0.0
        %3372 = vmatpush1.msra.mxu0 0.0
        %3373 = vmatprep.subr.mxu0 0.0
        %3374 = vmatpush1.msra.mxu0 0.0
        %3375 = vmatprep.subr.mxu0 0.0
        %3376 = vmatpush1.msra.mxu0 0.0
        %3377 = vmatprep.subr.mxu0 0.0
        %3378 = vmatpush1.msra.mxu0 0.0
        %3379 = vmatprep.subr.mxu0 0.0
        %3380 = vmatpush1.msra.mxu0 0.0
        %3381 = vmatprep.subr.mxu0 0.0
        %3382 = vmatpush1.msra.mxu0 0.0
        %3383 = vmatprep.subr.mxu0 0.0
        %3384 = vmatpush1.msra.mxu0 0.0
        %3385 = vmatprep.subr.mxu0 0.0
        %3386 = vmatpush1.msra.mxu0 0.0
        %3387 = vmatprep.subr.mxu0 0.0
        %3388 = vmatpush1.msra.mxu0 0.0
        %3389 = vmatprep.subr.mxu0 0.0
        %3390 = vmatpush1.msra.mxu0 0.0
        %3391 = vmatprep.subr.mxu0 0.0
        %3392 = vmatpush1.msra.mxu0 0.0
        %3393 = vmatprep.subr.mxu0 0.0
        %3394 = vmatpush1.msra.mxu0 0.0
        %3395 = vmatprep.subr.mxu0 0.0
        %3396 = vmatpush1.msra.mxu0 0.0
        %3397 = vmatprep.subr.mxu0 0.0
        %3398 = vmatpush1.msra.mxu0 0.0
        %3399 = vmatprep.subr.mxu0 0.0
        %3400 = vmatpush1.msra.mxu0 0.0
        %3401 = vmatprep.subr.mxu0 0.0
        %3402 = vmatpush1.msra.mxu0 0.0
        %3403 = vmatprep.subr.mxu0 0.0
        %3404 = vmatpush1.msra.mxu0 0.0
        %3405 = vmatprep.subr.mxu0 0.0
        %3406 = vmatpush1.msra.mxu0 0.0
        %3407 = vmatprep.subr.mxu0 0.0
        %3408 = vmatpush1.msra.mxu0 0.0
        %3409 = vmatprep.mubr.f32.mxu0 0.0
        %3410 = vmatmul.mubr.f32.gmra.mrb[0].mxu0 %v3272
        %v3411 = vpop.f32.mrb[0].mxu0
        %v3412 = vadd.f32 0.0, %v3411
        %v3413 = vpop.f32.mrb[0].mxu0
        %v3414 = vadd.f32 0.0, %v3413
        %3415 = vdwg.mxu0
        %3416 = vmatprep.subr.mxu0 %v3266
        %3417 = vmatpush1.msra.mxu0 %v3265
        %3418 = vmatprep.subr.mxu0 0.0
        %3419 = vmatpush1.msra.mxu0 0.0
        %3420 = vmatprep.subr.mxu0 0.0
        %3421 = vmatpush1.msra.mxu0 0.0
        %3422 = vmatprep.subr.mxu0 0.0
        %3423 = vmatpush1.msra.mxu0 0.0
        %3424 = vmatprep.subr.mxu0 0.0
        %3425 = vmatpush1.msra.mxu0 0.0
        %3426 = vmatprep.subr.mxu0 0.0
        %3427 = vmatpush1.msra.mxu0 0.0
        %3428 = vmatprep.subr.mxu0 0.0
        %3429 = vmatpush1.msra.mxu0 0.0
        %3430 = vmatprep.subr.mxu0 0.0
        %3431 = vmatpush1.msra.mxu0 0.0
        %3432 = vmatprep.subr.mxu0 0.0
        %3433 = vmatpush1.msra.mxu0 0.0
        %3434 = vmatprep.subr.mxu0 0.0
        %3435 = vmatpush1.msra.mxu0 0.0
        %3436 = vmatprep.subr.mxu0 0.0
        %3437 = vmatpush1.msra.mxu0 0.0
        %3438 = vmatprep.subr.mxu0 0.0
        %3439 = vmatpush1.msra.mxu0 0.0
        %3440 = vmatprep.subr.mxu0 0.0
        %3441 = vmatpush1.msra.mxu0 0.0
        %3442 = vmatprep.subr.mxu0 0.0
        %3443 = vmatpush1.msra.mxu0 0.0
        %3444 = vmatprep.subr.mxu0 0.0
        %3445 = vmatpush1.msra.mxu0 0.0
        %3446 = vmatprep.subr.mxu0 0.0
        %3447 = vmatpush1.msra.mxu0 0.0
        %3448 = vmatprep.subr.mxu0 0.0
        %3449 = vmatpush1.msra.mxu0 0.0
        %3450 = vmatprep.subr.mxu0 0.0
        %3451 = vmatpush1.msra.mxu0 0.0
        %3452 = vmatprep.subr.mxu0 0.0
        %3453 = vmatpush1.msra.mxu0 0.0
        %3454 = vmatprep.subr.mxu0 0.0
        %3455 = vmatpush1.msra.mxu0 0.0
        %3456 = vmatprep.subr.mxu0 0.0
        %3457 = vmatpush1.msra.mxu0 0.0
        %3458 = vmatprep.subr.mxu0 0.0
        %3459 = vmatpush1.msra.mxu0 0.0
        %3460 = vmatprep.subr.mxu0 0.0
        %3461 = vmatpush1.msra.mxu0 0.0
        %3462 = vmatprep.subr.mxu0 0.0
        %3463 = vmatpush1.msra.mxu0 0.0
        %3464 = vmatprep.subr.mxu0 0.0
        %3465 = vmatpush1.msra.mxu0 0.0
        %3466 = vmatprep.subr.mxu0 0.0
        %3467 = vmatpush1.msra.mxu0 0.0
        %3468 = vmatprep.subr.mxu0 0.0
        %3469 = vmatpush1.msra.mxu0 0.0
        %3470 = vmatprep.subr.mxu0 0.0
        %3471 = vmatpush1.msra.mxu0 0.0
        %3472 = vmatprep.subr.mxu0 0.0
        %3473 = vmatpush1.msra.mxu0 0.0
        %3474 = vmatprep.subr.mxu0 0.0
        %3475 = vmatpush1.msra.mxu0 0.0
        %3476 = vmatprep.subr.mxu0 0.0
        %3477 = vmatpush1.msra.mxu0 0.0
        %3478 = vmatprep.subr.mxu0 0.0
        %3479 = vmatpush1.msra.mxu0 0.0
        %3480 = vmatprep.mubr.f32.mxu0 0.0
        %3481 = vmatmul.mubr.f32.gmra.mrb[0].mxu0 %v3272
        %v3482 = vpop.f32.mrb[0].mxu0
        %v3483 = vadd.f32 0.0, %v3482
        %v3484 = vpop.f32.mrb[0].mxu0
        %v3485 = vadd.f32 0.0, %v3484
        %3486 = vdwg.mxu0
        %3487 = vmatprep.subr.mxu0 %v3268
        %3488 = vmatpush1.msra.mxu0 %v3267
        %3489 = vmatprep.subr.mxu0 0.0
        %3490 = vmatpush1.msra.mxu0 0.0
        %3491 = vmatprep.subr.mxu0 0.0
        %3492 = vmatpush1.msra.mxu0 0.0
        %3493 = vmatprep.subr.mxu0 0.0
        %3494 = vmatpush1.msra.mxu0 0.0
        %3495 = vmatprep.subr.mxu0 0.0
        %3496 = vmatpush1.msra.mxu0 0.0
        %3497 = vmatprep.subr.mxu0 0.0
        %3498 = vmatpush1.msra.mxu0 0.0
        %3499 = vmatprep.subr.mxu0 0.0
        %3500 = vmatpush1.msra.mxu0 0.0
        %3501 = vmatprep.subr.mxu0 0.0
        %3502 = vmatpush1.msra.mxu0 0.0
        %3503 = vmatprep.subr.mxu0 0.0
        %3504 = vmatpush1.msra.mxu0 0.0
        %3505 = vmatprep.subr.mxu0 0.0
        %3506 = vmatpush1.msra.mxu0 0.0
        %3507 = vmatprep.subr.mxu0 0.0
        %3508 = vmatpush1.msra.mxu0 0.0
        %3509 = vmatprep.subr.mxu0 0.0
        %3510 = vmatpush1.msra.mxu0 0.0
        %3511 = vmatprep.subr.mxu0 0.0
        %3512 = vmatpush1.msra.mxu0 0.0
        %3513 = vmatprep.subr.mxu0 0.0
        %3514 = vmatpush1.msra.mxu0 0.0
        %3515 = vmatprep.subr.mxu0 0.0
        %3516 = vmatpush1.msra.mxu0 0.0
        %3517 = vmatprep.subr.mxu0 0.0
        %3518 = vmatpush1.msra.mxu0 0.0
        %3519 = vmatprep.subr.mxu0 0.0
        %3520 = vmatpush1.msra.mxu0 0.0
        %3521 = vmatprep.subr.mxu0 0.0
        %3522 = vmatpush1.msra.mxu0 0.0
        %3523 = vmatprep.subr.mxu0 0.0
        %3524 = vmatpush1.msra.mxu0 0.0
        %3525 = vmatprep.subr.mxu0 0.0
        %3526 = vmatpush1.msra.mxu0 0.0
        %3527 = vmatprep.subr.mxu0 0.0
        %3528 = vmatpush1.msra.mxu0 0.0
        %3529 = vmatprep.subr.mxu0 0.0
        %3530 = vmatpush1.msra.mxu0 0.0
        %3531 = vmatprep.subr.mxu0 0.0
        %3532 = vmatpush1.msra.mxu0 0.0
        %3533 = vmatprep.subr.mxu0 0.0
        %3534 = vmatpush1.msra.mxu0 0.0
        %3535 = vmatprep.subr.mxu0 0.0
        %3536 = vmatpush1.msra.mxu0 0.0
        %3537 = vmatprep.subr.mxu0 0.0
        %3538 = vmatpush1.msra.mxu0 0.0
        %3539 = vmatprep.subr.mxu0 0.0
        %3540 = vmatpush1.msra.mxu0 0.0
        %3541 = vmatprep.subr.mxu0 0.0
        %3542 = vmatpush1.msra.mxu0 0.0
        %3543 = vmatprep.subr.mxu0 0.0
        %3544 = vmatpush1.msra.mxu0 0.0
        %3545 = vmatprep.subr.mxu0 0.0
        %3546 = vmatpush1.msra.mxu0 0.0
        %3547 = vmatprep.subr.mxu0 0.0
        %3548 = vmatpush1.msra.mxu0 0.0
        %3549 = vmatprep.subr.mxu0 0.0
        %3550 = vmatpush1.msra.mxu0 0.0
        %3551 = vmatprep.mubr.f32.mxu0 0.0
        %3552 = vmatmul.mubr.f32.gmra.mrb[0].mxu0 %v3272
        %v3553 = vpop.f32.mrb[0].mxu0
        %v3554 = vadd.f32 0.0, %v3553
        %v3555 = vpop.f32.mrb[0].mxu0
        %v3556 = vadd.f32 0.0, %v3555
        %3557 = vdwg.mxu0
        %v3558 = vadd.f32 %v3204, %v3341
        %v3559 = vadd.f32 %v3205, %v3343
        %v3560 = vadd.f32 %v3206, %v3412
        %v3561 = vadd.f32 %v3207, %v3414
        %v3562 = vadd.f32 %v3208, %v3483
        %v3563 = vadd.f32 %v3209, %v3485
        %v3564 = vadd.f32 %v3210, %v3554
        %v3565 = vadd.f32 %v3211, %v3556
        %v3566 = vld [vmem:[%s2] sm:$0xff]
        %3568 = vset.pattern.permute.xlu0 0
        %3569 = vperm.xlu0 %3568, %v3566
        %v3570 = vpop.permute.xlu0 %3569
        %v3572 = vadd.f32 %v3558, %v3570
        %v3573 = vadd.f32 %v3559, %v3570
        %v3574 = vadd.f32 %v3560, %v3570
        %v3575 = vadd.f32 %v3561, %v3570
        %v3576 = vadd.f32 %v3562, %v3570
        %v3577 = vadd.f32 %v3563, %v3570
        %v3578 = vadd.f32 %v3564, %v3570
        %v3579 = vadd.f32 %v3565, %v3570
        %v3580 = vmax.f32 %v3572, 0.0
        %v3581 = vmax.f32 %v3573, 0.0
        %v3582 = vmax.f32 %v3574, 0.0
        %v3583 = vmax.f32 %v3575, 0.0
        %v3584 = vmax.f32 %v3576, 0.0
        %v3585 = vmax.f32 %v3577, 0.0
        %v3586 = vmax.f32 %v3578, 0.0
        %v3587 = vmax.f32 %v3579, 0.0
        %3588 = vrot.lane.b32.xlu0 %v3580, 127
        %v3589 = vpop.permute.xlu0 %3588
        %3590 = vrot.lane.b32.xlu0 %v3581, 127
        %v3591 = vpop.permute.xlu0 %3590
        %3592 = vrot.lane.b32.xlu0 %v3582, 127
        %v3593 = vpop.permute.xlu0 %3592
        %3594 = vrot.lane.b32.xlu0 %v3583, 127
        %v3595 = vpop.permute.xlu0 %3594
        %3596 = vrot.lane.b32.xlu0 %v3584, 127
        %v3597 = vpop.permute.xlu0 %3596
        %3598 = vrot.lane.b32.xlu0 %v3585, 127
        %v3599 = vpop.permute.xlu0 %3598
        %3600 = vrot.lane.b32.xlu0 %v3586, 127
        %v3601 = vpop.permute.xlu0 %3600
        %3602 = vrot.lane.b32.xlu0 %v3587, 127
        %v3603 = vpop.permute.xlu0 %3602
        %v3604 = vsel %vm2174, %v3601, %v3603
        %v3605 = vsel %vm2174, %v3599, %v3601
        %v3606 = vsel %vm2174, %v3597, %v3599
        %v3607 = vsel %vm2174, %v3595, %v3597
        %v3608 = vsel %vm2174, %v3593, %v3595
        %v3609 = vsel %vm2174, %v3591, %v3593
        %v3610 = vsel %vm2174, %v3589, %v3591
        %v3611 = vsel %vm2174, %v3603, %v3589
        %v3612 = vmax.f32 %v3580, %v3610
        %v3613 = vmax.f32 %v3581, %v3609
        %v3614 = vmax.f32 %v3582, %v3608
        %v3615 = vmax.f32 %v3583, %v3607
        %v3616 = vmax.f32 %v3584, %v3606
        %v3617 = vmax.f32 %v3585, %v3605
        %v3618 = vmax.f32 %v3586, %v3604
        %v3619 = vmax.f32 %v3587, %v3611
        %3620 = vrot.lane.b32.xlu0 %v3612, 96
        %v3621 = vpop.permute.xlu0 %3620
        %3622 = vrot.lane.b32.xlu0 %v3613, 96
        %v3623 = vpop.permute.xlu0 %3622
        %3624 = vrot.lane.b32.xlu0 %v3614, 96
        %v3625 = vpop.permute.xlu0 %3624
        %3626 = vrot.lane.b32.xlu0 %v3615, 96
        %v3627 = vpop.permute.xlu0 %3626
        %3628 = vrot.lane.b32.xlu0 %v3616, 96
        %v3629 = vpop.permute.xlu0 %3628
        %3630 = vrot.lane.b32.xlu0 %v3617, 96
        %v3631 = vpop.permute.xlu0 %3630
        %3632 = vrot.lane.b32.xlu0 %v3618, 96
        %v3633 = vpop.permute.xlu0 %3632
        %3634 = vrot.lane.b32.xlu0 %v3619, 96
        %v3635 = vpop.permute.xlu0 %3634
        %v3636 = vsel %vm2882, %v3633, %v3635
        %v3637 = vsel %vm2882, %v3631, %v3633
        %v3638 = vsel %vm2882, %v3629, %v3631
        %v3639 = vsel %vm2882, %v3627, %v3629
        %v3640 = vsel %vm2882, %v3625, %v3627
        %v3641 = vsel %vm2882, %v3623, %v3625
        %v3642 = vsel %vm2882, %v3621, %v3623
        %v3643 = vsel %vm2882, %v3635, %v3621
        %v3644 = vmax.f32 %v3612, %v3642
        %v3645 = vmax.f32 %v3613, %v3641
        %v3646 = vmax.f32 %v3614, %v3640
        %v3647 = vmax.f32 %v3615, %v3639
        %v3648 = vmax.f32 %v3616, %v3638
        %v3649 = vmax.f32 %v3617, %v3637
        %v3650 = vmax.f32 %v3618, %v3636
        %v3651 = vmax.f32 %v3619, %v3643
        %v3652 = vld [vmem:[#allocation5] sm:$0xff]
        %v3653 = vld [vmem:[#allocation5 + $0x8] sm:$0xff]
        %v3654 = vld [vmem:[#allocation5 + $0x10] sm:$0xff]
        %v3655 = vld [vmem:[#allocation5 + $0x18] sm:$0xff]
        %v3656 = vld [vmem:[#allocation5 + $0x20] sm:$0xff]
        %v3657 = vld [vmem:[#allocation5 + $0x28] sm:$0xff]
        %v3658 = vld [vmem:[#allocation5 + $0x30] sm:$0xff]
        %v3659 = vld [vmem:[#allocation5 + $0x38] sm:$0xff]
        %v3660 = vld [vmem:[#allocation5 + $0x40] sm:$0xff]
        %v3661 = vld [vmem:[#allocation5 + $0x48] sm:$0xff]
        %v3662 = vld [vmem:[#allocation5 + $0x50] sm:$0xff]
        %v3663 = vld [vmem:[#allocation5 + $0x58] sm:$0xff]
        %v3664 = vld [vmem:[#allocation5 + $0x60] sm:$0xff]
        %v3665 = vld [vmem:[#allocation5 + $0x68] sm:$0xff]
        %v3666 = vld [vmem:[#allocation5 + $0x70] sm:$0xff]
        %v3667 = vld [vmem:[#allocation5 + $0x78] sm:$0xff]
        %v3668 = vld [vmem:[#allocation5 + $0x80] sm:$0xff]
        %v3669 = vld [vmem:[#allocation5 + $0x88] sm:$0xff]
        %v3670 = vld [vmem:[#allocation5 + $0x90] sm:$0xff]
        %v3671 = vld [vmem:[#allocation5 + $0x98] sm:$0xff]
        %v3672 = vld [vmem:[#allocation5 + $0xa0] sm:$0xff]
        %v3673 = vld [vmem:[#allocation5 + $0xa8] sm:$0xff]
        %v3674 = vld [vmem:[#allocation5 + $0xb0] sm:$0xff]
        %v3675 = vld [vmem:[#allocation5 + $0xb8] sm:$0xff]
        %v3676 = vld [vmem:[#allocation5 + $0xc0] sm:$0xff]
        %v3677 = vld [vmem:[#allocation5 + $0xc8] sm:$0xff]
        %v3678 = vld [vmem:[#allocation5 + $0xd0] sm:$0xff]
        %v3679 = vld [vmem:[#allocation5 + $0xd8] sm:$0xff]
        %v3680 = vld [vmem:[#allocation5 + $0xe0] sm:$0xff]
        %v3681 = vld [vmem:[#allocation5 + $0xe8] sm:$0xff]
        %v3682 = vld [vmem:[#allocation5 + $0xf0] sm:$0xff]
        %v3683 = vld [vmem:[#allocation5 + $0xf8] sm:$0xff]
        %v3684 = vld [vmem:[#allocation5 + $0x100] sm:$0xff]
        %v3685 = vld [vmem:[#allocation5 + $0x108] sm:$0xff]
        %v3686 = vld [vmem:[#allocation5 + $0x110] sm:$0xff]
        %v3687 = vld [vmem:[#allocation5 + $0x118] sm:$0xff]
        %v3688 = vld [vmem:[#allocation5 + $0x120] sm:$0xff]
        %v3689 = vld [vmem:[#allocation5 + $0x128] sm:$0xff]
        %v3690 = vld [vmem:[#allocation5 + $0x130] sm:$0xff]
        %v3691 = vld [vmem:[#allocation5 + $0x138] sm:$0xff]
        %v3692 = vld [vmem:[#allocation5 + $0x140] sm:$0xff]
        %v3693 = vld [vmem:[#allocation5 + $0x148] sm:$0xff]
        %v3694 = vld [vmem:[#allocation5 + $0x150] sm:$0xff]
        %v3695 = vld [vmem:[#allocation5 + $0x158] sm:$0xff]
        %v3696 = vld [vmem:[#allocation5 + $0x160] sm:$0xff]
        %v3697 = vld [vmem:[#allocation5 + $0x168] sm:$0xff]
        %v3698 = vld [vmem:[#allocation5 + $0x170] sm:$0xff]
        %v3699 = vld [vmem:[#allocation5 + $0x178] sm:$0xff]
        %v3700 = vld [vmem:[#allocation5 + $0x180] sm:$0xff]
        %v3701 = vld [vmem:[#allocation5 + $0x188] sm:$0xff]
        %v3702 = vld [vmem:[#allocation5 + $0x190] sm:$0xff]
        %v3703 = vld [vmem:[#allocation5 + $0x198] sm:$0xff]
        %v3704 = vld [vmem:[#allocation5 + $0x1a0] sm:$0xff]
        %v3705 = vld [vmem:[#allocation5 + $0x1a8] sm:$0xff]
        %v3706 = vld [vmem:[#allocation5 + $0x1b0] sm:$0xff]
        %v3707 = vld [vmem:[#allocation5 + $0x1b8] sm:$0xff]
        %v3708 = vld [vmem:[#allocation5 + $0x1c0] sm:$0xff]
        %v3709 = vld [vmem:[#allocation5 + $0x1c8] sm:$0xff]
        %v3710 = vld [vmem:[#allocation5 + $0x1d0] sm:$0xff]
        %v3711 = vld [vmem:[#allocation5 + $0x1d8] sm:$0xff]
        %v3712 = vld [vmem:[#allocation5 + $0x1e0] sm:$0xff]
        %v3713 = vld [vmem:[#allocation5 + $0x1e8] sm:$0xff]
        %v3714 = vld [vmem:[#allocation5 + $0x1f0] sm:$0xff]
        %v3715 = vld [vmem:[#allocation5 + $0x1f8] sm:$0xff]
        %v3716 = vld [vmem:[#allocation5 + $0x200] sm:$0xff]
        %v3717 = vld [vmem:[#allocation5 + $0x208] sm:$0xff]
        %v3718 = vld [vmem:[#allocation5 + $0x210] sm:$0xff]
        %v3719 = vld [vmem:[#allocation5 + $0x218] sm:$0xff]
        %v3720 = vld [vmem:[#allocation5 + $0x220] sm:$0xff]
        %v3721 = vld [vmem:[#allocation5 + $0x228] sm:$0xff]
        %v3722 = vld [vmem:[#allocation5 + $0x230] sm:$0xff]
        %v3723 = vld [vmem:[#allocation5 + $0x238] sm:$0xff]
        %v3724 = vld [vmem:[#allocation5 + $0x240] sm:$0xff]
        %v3725 = vld [vmem:[#allocation5 + $0x248] sm:$0xff]
        %v3726 = vld [vmem:[#allocation5 + $0x250] sm:$0xff]
        %v3727 = vld [vmem:[#allocation5 + $0x258] sm:$0xff]
        %v3728 = vld [vmem:[#allocation5 + $0x260] sm:$0xff]
        %v3729 = vld [vmem:[#allocation5 + $0x268] sm:$0xff]
        %v3730 = vld [vmem:[#allocation5 + $0x270] sm:$0xff]
        %v3731 = vld [vmem:[#allocation5 + $0x278] sm:$0xff]
        %v3732 = vld [vmem:[#allocation5 + $0x280] sm:$0xff]
        %v3733 = vld [vmem:[#allocation5 + $0x288] sm:$0xff]
        %v3734 = vld [vmem:[#allocation5 + $0x290] sm:$0xff]
        %v3735 = vld [vmem:[#allocation5 + $0x298] sm:$0xff]
        %v3736 = vld [vmem:[#allocation5 + $0x2a0] sm:$0xff]
        %v3737 = vld [vmem:[#allocation5 + $0x2a8] sm:$0xff]
        %v3738 = vld [vmem:[#allocation5 + $0x2b0] sm:$0xff]
        %v3739 = vld [vmem:[#allocation5 + $0x2b8] sm:$0xff]
        %v3740 = vld [vmem:[#allocation5 + $0x2c0] sm:$0xff]
        %v3741 = vld [vmem:[#allocation5 + $0x2c8] sm:$0xff]
        %v3742 = vld [vmem:[#allocation5 + $0x2d0] sm:$0xff]
        %v3743 = vld [vmem:[#allocation5 + $0x2d8] sm:$0xff]
        %v3744 = vld [vmem:[#allocation5 + $0x2e0] sm:$0xff]
        %v3745 = vld [vmem:[#allocation5 + $0x2e8] sm:$0xff]
        %v3746 = vld [vmem:[#allocation5 + $0x2f0] sm:$0xff]
        %v3747 = vld [vmem:[#allocation5 + $0x2f8] sm:$0xff]
        %v3748 = vld [vmem:[#allocation5 + $0x300] sm:$0xff]
        %v3749 = vld [vmem:[#allocation5 + $0x308] sm:$0xff]
        %v3750 = vld [vmem:[#allocation5 + $0x310] sm:$0xff]
        %v3751 = vld [vmem:[#allocation5 + $0x318] sm:$0xff]
        %v3752 = vld [vmem:[#allocation5 + $0x320] sm:$0xff]
        %v3753 = vld [vmem:[#allocation5 + $0x328] sm:$0xff]
        %v3754 = vld [vmem:[#allocation5 + $0x330] sm:$0xff]
        %v3755 = vld [vmem:[#allocation5 + $0x338] sm:$0xff]
        %v3756 = vld [vmem:[#allocation5 + $0x340] sm:$0xff]
        %v3757 = vld [vmem:[#allocation5 + $0x348] sm:$0xff]
        %v3758 = vld [vmem:[#allocation5 + $0x350] sm:$0xff]
        %v3759 = vld [vmem:[#allocation5 + $0x358] sm:$0xff]
        %v3760 = vld [vmem:[#allocation5 + $0x360] sm:$0xff]
        %v3761 = vld [vmem:[#allocation5 + $0x368] sm:$0xff]
        %v3762 = vld [vmem:[#allocation5 + $0x370] sm:$0xff]
        %v3763 = vld [vmem:[#allocation5 + $0x378] sm:$0xff]
        %v3764 = vld [vmem:[#allocation5 + $0x380] sm:$0xff]
        %v3765 = vld [vmem:[#allocation5 + $0x388] sm:$0xff]
        %v3766 = vld [vmem:[#allocation5 + $0x390] sm:$0xff]
        %v3767 = vld [vmem:[#allocation5 + $0x398] sm:$0xff]
        %v3768 = vld [vmem:[#allocation5 + $0x3a0] sm:$0xff]
        %v3769 = vld [vmem:[#allocation5 + $0x3a8] sm:$0xff]
        %v3770 = vld [vmem:[#allocation5 + $0x3b0] sm:$0xff]
        %v3771 = vld [vmem:[#allocation5 + $0x3b8] sm:$0xff]
        %v3772 = vld [vmem:[#allocation5 + $0x3c0] sm:$0xff]
        %v3773 = vld [vmem:[#allocation5 + $0x3c8] sm:$0xff]
        %v3774 = vld [vmem:[#allocation5 + $0x3d0] sm:$0xff]
        %v3775 = vld [vmem:[#allocation5 + $0x3d8] sm:$0xff]
        %v3776 = vld [vmem:[#allocation5 + $0x3e0] sm:$0xff]
        %v3777 = vld [vmem:[#allocation5 + $0x3e8] sm:$0xff]
        %v3778 = vld [vmem:[#allocation5 + $0x3f0] sm:$0xff]
        %v3779 = vld [vmem:[#allocation5 + $0x3f8] sm:$0xff]
        %v3780 = vld [vmem:[#allocation5 + $0x400] sm:$0xff]
        %v3781 = vld [vmem:[#allocation5 + $0x408] sm:$0xff]
        %v3782 = vld [vmem:[#allocation5 + $0x410] sm:$0xff]
        %v3783 = vld [vmem:[#allocation5 + $0x418] sm:$0xff]
        %v3784 = vld [vmem:[#allocation5 + $0x420] sm:$0xff]
        %v3785 = vld [vmem:[#allocation5 + $0x428] sm:$0xff]
        %v3786 = vld [vmem:[#allocation5 + $0x430] sm:$0xff]
        %v3787 = vld [vmem:[#allocation5 + $0x438] sm:$0xff]
        %v3788 = vld [vmem:[#allocation5 + $0x440] sm:$0xff]
        %v3789 = vld [vmem:[#allocation5 + $0x448] sm:$0xff]
        %v3790 = vld [vmem:[#allocation5 + $0x450] sm:$0xff]
        %v3791 = vld [vmem:[#allocation5 + $0x458] sm:$0xff]
        %v3792 = vld [vmem:[#allocation5 + $0x460] sm:$0xff]
        %v3793 = vld [vmem:[#allocation5 + $0x468] sm:$0xff]
        %v3794 = vld [vmem:[#allocation5 + $0x470] sm:$0xff]
        %v3795 = vld [vmem:[#allocation5 + $0x478] sm:$0xff]
        %v3796 = vld [vmem:[#allocation5 + $0x480] sm:$0xff]
        %v3797 = vld [vmem:[#allocation5 + $0x488] sm:$0xff]
        %v3798 = vld [vmem:[#allocation5 + $0x490] sm:$0xff]
        %v3799 = vld [vmem:[#allocation5 + $0x498] sm:$0xff]
        %v3800 = vld [vmem:[#allocation5 + $0x4a0] sm:$0xff]
        %v3801 = vld [vmem:[#allocation5 + $0x4a8] sm:$0xff]
        %v3802 = vld [vmem:[#allocation5 + $0x4b0] sm:$0xff]
        %v3803 = vld [vmem:[#allocation5 + $0x4b8] sm:$0xff]
        %v3804 = vld [vmem:[#allocation5 + $0x4c0] sm:$0xff]
        %v3805 = vld [vmem:[#allocation5 + $0x4c8] sm:$0xff]
        %v3806 = vld [vmem:[#allocation5 + $0x4d0] sm:$0xff]
        %v3807 = vld [vmem:[#allocation5 + $0x4d8] sm:$0xff]
        %v3808 = vld [vmem:[#allocation5 + $0x4e0] sm:$0xff]
        %v3809 = vld [vmem:[#allocation5 + $0x4e8] sm:$0xff]
        %v3810 = vld [vmem:[#allocation5 + $0x4f0] sm:$0xff]
        %v3811 = vld [vmem:[#allocation5 + $0x4f8] sm:$0xff]
        %v3812 = vld [vmem:[#allocation5 + $0x500] sm:$0xff]
        %v3813 = vld [vmem:[#allocation5 + $0x508] sm:$0xff]
        %v3814 = vld [vmem:[#allocation5 + $0x510] sm:$0xff]
        %v3815 = vld [vmem:[#allocation5 + $0x518] sm:$0xff]
        %v3816 = vld [vmem:[#allocation5 + $0x520] sm:$0xff]
        %v3817 = vld [vmem:[#allocation5 + $0x528] sm:$0xff]
        %v3818 = vld [vmem:[#allocation5 + $0x530] sm:$0xff]
        %v3819 = vld [vmem:[#allocation5 + $0x538] sm:$0xff]
        %v3820 = vld [vmem:[#allocation5 + $0x540] sm:$0xff]
        %v3821 = vld [vmem:[#allocation5 + $0x548] sm:$0xff]
        %v3822 = vld [vmem:[#allocation5 + $0x550] sm:$0xff]
        %v3823 = vld [vmem:[#allocation5 + $0x558] sm:$0xff]
        %v3824 = vld [vmem:[#allocation5 + $0x560] sm:$0xff]
        %v3825 = vld [vmem:[#allocation5 + $0x568] sm:$0xff]
        %v3826 = vld [vmem:[#allocation5 + $0x570] sm:$0xff]
        %v3827 = vld [vmem:[#allocation5 + $0x578] sm:$0xff]
        %v3828 = vld [vmem:[#allocation5 + $0x580] sm:$0xff]
        %v3829 = vld [vmem:[#allocation5 + $0x588] sm:$0xff]
        %v3830 = vld [vmem:[#allocation5 + $0x590] sm:$0xff]
        %v3831 = vld [vmem:[#allocation5 + $0x598] sm:$0xff]
        %v3832 = vld [vmem:[#allocation5 + $0x5a0] sm:$0xff]
        %v3833 = vld [vmem:[#allocation5 + $0x5a8] sm:$0xff]
        %v3834 = vld [vmem:[#allocation5 + $0x5b0] sm:$0xff]
        %v3835 = vld [vmem:[#allocation5 + $0x5b8] sm:$0xff]
        %v3836 = vld [vmem:[#allocation5 + $0x5c0] sm:$0xff]
        %v3837 = vld [vmem:[#allocation5 + $0x5c8] sm:$0xff]
        %v3838 = vld [vmem:[#allocation5 + $0x5d0] sm:$0xff]
        %v3839 = vld [vmem:[#allocation5 + $0x5d8] sm:$0xff]
        %v3840 = vld [vmem:[#allocation5 + $0x5e0] sm:$0xff]
        %v3841 = vld [vmem:[#allocation5 + $0x5e8] sm:$0xff]
        %v3842 = vld [vmem:[#allocation5 + $0x5f0] sm:$0xff]
        %v3843 = vld [vmem:[#allocation5 + $0x5f8] sm:$0xff]
        %v3844 = vld [vmem:[#allocation5 + $0x600] sm:$0xff]
        %v3845 = vld [vmem:[#allocation5 + $0x608] sm:$0xff]
        %v3846 = vld [vmem:[#allocation5 + $0x610] sm:$0xff]
        %v3847 = vld [vmem:[#allocation5 + $0x618] sm:$0xff]
        %v3848 = vld [vmem:[#allocation5 + $0x620] sm:$0xff]
        %v3849 = vld [vmem:[#allocation5 + $0x628] sm:$0xff]
        %v3850 = vld [vmem:[#allocation5 + $0x630] sm:$0xff]
        %v3851 = vld [vmem:[#allocation5 + $0x638] sm:$0xff]
        %v3852 = vld [vmem:[#allocation5 + $0x640] sm:$0xff]
        %v3853 = vld [vmem:[#allocation5 + $0x648] sm:$0xff]
        %v3854 = vld [vmem:[#allocation5 + $0x650] sm:$0xff]
        %v3855 = vld [vmem:[#allocation5 + $0x658] sm:$0xff]
        %v3856 = vld [vmem:[#allocation5 + $0x660] sm:$0xff]
        %v3857 = vld [vmem:[#allocation5 + $0x668] sm:$0xff]
        %v3858 = vld [vmem:[#allocation5 + $0x670] sm:$0xff]
        %v3859 = vld [vmem:[#allocation5 + $0x678] sm:$0xff]
        %v3860 = vld [vmem:[#allocation5 + $0x680] sm:$0xff]
        %v3861 = vld [vmem:[#allocation5 + $0x688] sm:$0xff]
        %v3862 = vld [vmem:[#allocation5 + $0x690] sm:$0xff]
        %v3863 = vld [vmem:[#allocation5 + $0x698] sm:$0xff]
        %v3864 = vld [vmem:[#allocation5 + $0x6a0] sm:$0xff]
        %v3865 = vld [vmem:[#allocation5 + $0x6a8] sm:$0xff]
        %v3866 = vld [vmem:[#allocation5 + $0x6b0] sm:$0xff]
        %v3867 = vld [vmem:[#allocation5 + $0x6b8] sm:$0xff]
        %v3868 = vld [vmem:[#allocation5 + $0x6c0] sm:$0xff]
        %v3869 = vld [vmem:[#allocation5 + $0x6c8] sm:$0xff]
        %v3870 = vld [vmem:[#allocation5 + $0x6d0] sm:$0xff]
        %v3871 = vld [vmem:[#allocation5 + $0x6d8] sm:$0xff]
        %v3872 = vld [vmem:[#allocation5 + $0x6e0] sm:$0xff]
        %v3873 = vld [vmem:[#allocation5 + $0x6e8] sm:$0xff]
        %v3874 = vld [vmem:[#allocation5 + $0x6f0] sm:$0xff]
        %v3875 = vld [vmem:[#allocation5 + $0x6f8] sm:$0xff]
        %v3876 = vld [vmem:[#allocation5 + $0x700] sm:$0xff]
        %v3877 = vld [vmem:[#allocation5 + $0x708] sm:$0xff]
        %v3878 = vld [vmem:[#allocation5 + $0x710] sm:$0xff]
        %v3879 = vld [vmem:[#allocation5 + $0x718] sm:$0xff]
        %v3880 = vld [vmem:[#allocation5 + $0x720] sm:$0xff]
        %v3881 = vld [vmem:[#allocation5 + $0x728] sm:$0xff]
        %v3882 = vld [vmem:[#allocation5 + $0x730] sm:$0xff]
        %v3883 = vld [vmem:[#allocation5 + $0x738] sm:$0xff]
        %v3884 = vld [vmem:[#allocation5 + $0x740] sm:$0xff]
        %v3885 = vld [vmem:[#allocation5 + $0x748] sm:$0xff]
        %v3886 = vld [vmem:[#allocation5 + $0x750] sm:$0xff]
        %v3887 = vld [vmem:[#allocation5 + $0x758] sm:$0xff]
        %v3888 = vld [vmem:[#allocation5 + $0x760] sm:$0xff]
        %v3889 = vld [vmem:[#allocation5 + $0x768] sm:$0xff]
        %v3890 = vld [vmem:[#allocation5 + $0x770] sm:$0xff]
        %v3891 = vld [vmem:[#allocation5 + $0x778] sm:$0xff]
        %v3892 = vld [vmem:[#allocation5 + $0x780] sm:$0xff]
        %v3893 = vld [vmem:[#allocation5 + $0x788] sm:$0xff]
        %v3894 = vld [vmem:[#allocation5 + $0x790] sm:$0xff]
        %v3895 = vld [vmem:[#allocation5 + $0x798] sm:$0xff]
        %v3896 = vld [vmem:[#allocation5 + $0x7a0] sm:$0xff]
        %v3897 = vld [vmem:[#allocation5 + $0x7a8] sm:$0xff]
        %v3898 = vld [vmem:[#allocation5 + $0x7b0] sm:$0xff]
        %v3899 = vld [vmem:[#allocation5 + $0x7b8] sm:$0xff]
        %v3900 = vld [vmem:[#allocation5 + $0x7c0] sm:$0xff]
        %v3901 = vld [vmem:[#allocation5 + $0x7c8] sm:$0xff]
        %v3902 = vld [vmem:[#allocation5 + $0x7d0] sm:$0xff]
        %v3903 = vld [vmem:[#allocation5 + $0x7d8] sm:$0xff]
        %v3904 = vld [vmem:[#allocation5 + $0x7e0] sm:$0xff]
        %v3905 = vld [vmem:[#allocation5 + $0x7e8] sm:$0xff]
        %v3906 = vld [vmem:[#allocation5 + $0x7f0] sm:$0xff]
        %v3907 = vld [vmem:[#allocation5 + $0x7f8] sm:$0xff]
        %3908 = vmatprep.subr.mxu0 %v3653
        %3909 = vmatpush1.msra.mxu0 %v3652
        %3910 = vmatprep.subr.mxu0 %v3655
        %3911 = vmatpush1.msra.mxu0 %v3654
        %3912 = vmatprep.subr.mxu0 %v3657
        %3913 = vmatpush1.msra.mxu0 %v3656
        %3914 = vmatprep.subr.mxu0 %v3659
        %3915 = vmatpush1.msra.mxu0 %v3658
        %3916 = vmatprep.subr.mxu0 %v3661
        %3917 = vmatpush1.msra.mxu0 %v3660
        %3918 = vmatprep.subr.mxu0 %v3663
        %3919 = vmatpush1.msra.mxu0 %v3662
        %3920 = vmatprep.subr.mxu0 %v3665
        %3921 = vmatpush1.msra.mxu0 %v3664
        %3922 = vmatprep.subr.mxu0 %v3667
        %3923 = vmatpush1.msra.mxu0 %v3666
        %3924 = vmatprep.subr.mxu0 %v3669
        %3925 = vmatpush1.msra.mxu0 %v3668
        %3926 = vmatprep.subr.mxu0 %v3671
        %3927 = vmatpush1.msra.mxu0 %v3670
        %3928 = vmatprep.subr.mxu0 %v3673
        %3929 = vmatpush1.msra.mxu0 %v3672
        %3930 = vmatprep.subr.mxu0 %v3675
        %3931 = vmatpush1.msra.mxu0 %v3674
        %3932 = vmatprep.subr.mxu0 %v3677
        %3933 = vmatpush1.msra.mxu0 %v3676
        %3934 = vmatprep.subr.mxu0 %v3679
        %3935 = vmatpush1.msra.mxu0 %v3678
        %3936 = vmatprep.subr.mxu0 %v3681
        %3937 = vmatpush1.msra.mxu0 %v3680
        %3938 = vmatprep.subr.mxu0 %v3683
        %3939 = vmatpush1.msra.mxu0 %v3682
        %3940 = vmatprep.subr.mxu0 %v3685
        %3941 = vmatpush1.msra.mxu0 %v3684
        %3942 = vmatprep.subr.mxu0 %v3687
        %3943 = vmatpush1.msra.mxu0 %v3686
        %3944 = vmatprep.subr.mxu0 %v3689
        %3945 = vmatpush1.msra.mxu0 %v3688
        %3946 = vmatprep.subr.mxu0 %v3691
        %3947 = vmatpush1.msra.mxu0 %v3690
        %3948 = vmatprep.subr.mxu0 %v3693
        %3949 = vmatpush1.msra.mxu0 %v3692
        %3950 = vmatprep.subr.mxu0 %v3695
        %3951 = vmatpush1.msra.mxu0 %v3694
        %3952 = vmatprep.subr.mxu0 %v3697
        %3953 = vmatpush1.msra.mxu0 %v3696
        %3954 = vmatprep.subr.mxu0 %v3699
        %3955 = vmatpush1.msra.mxu0 %v3698
        %3956 = vmatprep.subr.mxu0 %v3701
        %3957 = vmatpush1.msra.mxu0 %v3700
        %3958 = vmatprep.subr.mxu0 %v3703
        %3959 = vmatpush1.msra.mxu0 %v3702
        %3960 = vmatprep.subr.mxu0 %v3705
        %3961 = vmatpush1.msra.mxu0 %v3704
        %3962 = vmatprep.subr.mxu0 %v3707
        %3963 = vmatpush1.msra.mxu0 %v3706
        %3964 = vmatprep.subr.mxu0 %v3709
        %3965 = vmatpush1.msra.mxu0 %v3708
        %3966 = vmatprep.subr.mxu0 %v3711
        %3967 = vmatpush1.msra.mxu0 %v3710
        %3968 = vmatprep.subr.mxu0 %v3713
        %3969 = vmatpush1.msra.mxu0 %v3712
        %3970 = vmatprep.subr.mxu0 %v3715
        %3971 = vmatpush1.msra.mxu0 %v3714
        %3972 = vmatprep.mubr.f32.mxu0 %v3645
        %3973 = vmatmul.mubr.f32.gmra.mrb[0].mxu0 %v3644
        %v3974 = vpop.f32.mrb[0].mxu0
        %v3975 = vadd.f32 0.0, %v3974
        %v3976 = vpop.f32.mrb[0].mxu0
        %v3977 = vadd.f32 0.0, %v3976
        %3978 = vdwg.mxu0
        %3979 = vmatprep.subr.mxu0 %v3717
        %3980 = vmatpush1.msra.mxu0 %v3716
        %3981 = vmatprep.subr.mxu0 %v3719
        %3982 = vmatpush1.msra.mxu0 %v3718
        %3983 = vmatprep.subr.mxu0 %v3721
        %3984 = vmatpush1.msra.mxu0 %v3720
        %3985 = vmatprep.subr.mxu0 %v3723
        %3986 = vmatpush1.msra.mxu0 %v3722
        %3987 = vmatprep.subr.mxu0 %v3725
        %3988 = vmatpush1.msra.mxu0 %v3724
        %3989 = vmatprep.subr.mxu0 %v3727
        %3990 = vmatpush1.msra.mxu0 %v3726
        %3991 = vmatprep.subr.mxu0 %v3729
        %3992 = vmatpush1.msra.mxu0 %v3728
        %3993 = vmatprep.subr.mxu0 %v3731
        %3994 = vmatpush1.msra.mxu0 %v3730
        %3995 = vmatprep.subr.mxu0 %v3733
        %3996 = vmatpush1.msra.mxu0 %v3732
        %3997 = vmatprep.subr.mxu0 %v3735
        %3998 = vmatpush1.msra.mxu0 %v3734
        %3999 = vmatprep.subr.mxu0 %v3737
        %4000 = vmatpush1.msra.mxu0 %v3736
        %4001 = vmatprep.subr.mxu0 %v3739
        %4002 = vmatpush1.msra.mxu0 %v3738
        %4003 = vmatprep.subr.mxu0 %v3741
        %4004 = vmatpush1.msra.mxu0 %v3740
        %4005 = vmatprep.subr.mxu0 %v3743
        %4006 = vmatpush1.msra.mxu0 %v3742
        %4007 = vmatprep.subr.mxu0 %v3745
        %4008 = vmatpush1.msra.mxu0 %v3744
        %4009 = vmatprep.subr.mxu0 %v3747
        %4010 = vmatpush1.msra.mxu0 %v3746
        %4011 = vmatprep.subr.mxu0 %v3749
        %4012 = vmatpush1.msra.mxu0 %v3748
        %4013 = vmatprep.subr.mxu0 %v3751
        %4014 = vmatpush1.msra.mxu0 %v3750
        %4015 = vmatprep.subr.mxu0 %v3753
        %4016 = vmatpush1.msra.mxu0 %v3752
        %4017 = vmatprep.subr.mxu0 %v3755
        %4018 = vmatpush1.msra.mxu0 %v3754
        %4019 = vmatprep.subr.mxu0 %v3757
        %4020 = vmatpush1.msra.mxu0 %v3756
        %4021 = vmatprep.subr.mxu0 %v3759
        %4022 = vmatpush1.msra.mxu0 %v3758
        %4023 = vmatprep.subr.mxu0 %v3761
        %4024 = vmatpush1.msra.mxu0 %v3760
        %4025 = vmatprep.subr.mxu0 %v3763
        %4026 = vmatpush1.msra.mxu0 %v3762
        %4027 = vmatprep.subr.mxu0 %v3765
        %4028 = vmatpush1.msra.mxu0 %v3764
        %4029 = vmatprep.subr.mxu0 %v3767
        %4030 = vmatpush1.msra.mxu0 %v3766
        %4031 = vmatprep.subr.mxu0 %v3769
        %4032 = vmatpush1.msra.mxu0 %v3768
        %4033 = vmatprep.subr.mxu0 %v3771
        %4034 = vmatpush1.msra.mxu0 %v3770
        %4035 = vmatprep.subr.mxu0 %v3773
        %4036 = vmatpush1.msra.mxu0 %v3772
        %4037 = vmatprep.subr.mxu0 %v3775
        %4038 = vmatpush1.msra.mxu0 %v3774
        %4039 = vmatprep.subr.mxu0 %v3777
        %4040 = vmatpush1.msra.mxu0 %v3776
        %4041 = vmatprep.subr.mxu0 %v3779
        %4042 = vmatpush1.msra.mxu0 %v3778
        %4043 = vmatprep.mubr.f32.mxu0 %v3647
        %4044 = vmatmul.mubr.f32.gmra.mrb[0].mxu0 %v3646
        %v4045 = vpop.f32.mrb[0].mxu0
        %v4046 = vadd.f32 %v3975, %v4045
        %v4047 = vpop.f32.mrb[0].mxu0
        %v4048 = vadd.f32 %v3977, %v4047
        %4049 = vdwg.mxu0
        %4050 = vmatprep.subr.mxu0 %v3781
        %4051 = vmatpush1.msra.mxu0 %v3780
        %4052 = vmatprep.subr.mxu0 %v3783
        %4053 = vmatpush1.msra.mxu0 %v3782
        %4054 = vmatprep.subr.mxu0 %v3785
        %4055 = vmatpush1.msra.mxu0 %v3784
        %4056 = vmatprep.subr.mxu0 %v3787
        %4057 = vmatpush1.msra.mxu0 %v3786
        %4058 = vmatprep.subr.mxu0 %v3789
        %4059 = vmatpush1.msra.mxu0 %v3788
        %4060 = vmatprep.subr.mxu0 %v3791
        %4061 = vmatpush1.msra.mxu0 %v3790
        %4062 = vmatprep.subr.mxu0 %v3793
        %4063 = vmatpush1.msra.mxu0 %v3792
        %4064 = vmatprep.subr.mxu0 %v3795
        %4065 = vmatpush1.msra.mxu0 %v3794
        %4066 = vmatprep.subr.mxu0 %v3797
        %4067 = vmatpush1.msra.mxu0 %v3796
        %4068 = vmatprep.subr.mxu0 %v3799
        %4069 = vmatpush1.msra.mxu0 %v3798
        %4070 = vmatprep.subr.mxu0 %v3801
        %4071 = vmatpush1.msra.mxu0 %v3800
        %4072 = vmatprep.subr.mxu0 %v3803
        %4073 = vmatpush1.msra.mxu0 %v3802
        %4074 = vmatprep.subr.mxu0 %v3805
        %4075 = vmatpush1.msra.mxu0 %v3804
        %4076 = vmatprep.subr.mxu0 %v3807
        %4077 = vmatpush1.msra.mxu0 %v3806
        %4078 = vmatprep.subr.mxu0 %v3809
        %4079 = vmatpush1.msra.mxu0 %v3808
        %4080 = vmatprep.subr.mxu0 %v3811
        %4081 = vmatpush1.msra.mxu0 %v3810
        %4082 = vmatprep.subr.mxu0 %v3813
        %4083 = vmatpush1.msra.mxu0 %v3812
        %4084 = vmatprep.subr.mxu0 %v3815
        %4085 = vmatpush1.msra.mxu0 %v3814
        %4086 = vmatprep.subr.mxu0 %v3817
        %4087 = vmatpush1.msra.mxu0 %v3816
        %4088 = vmatprep.subr.mxu0 %v3819
        %4089 = vmatpush1.msra.mxu0 %v3818
        %4090 = vmatprep.subr.mxu0 %v3821
        %4091 = vmatpush1.msra.mxu0 %v3820
        %4092 = vmatprep.subr.mxu0 %v3823
        %4093 = vmatpush1.msra.mxu0 %v3822
        %4094 = vmatprep.subr.mxu0 %v3825
        %4095 = vmatpush1.msra.mxu0 %v3824
        %4096 = vmatprep.subr.mxu0 %v3827
        %4097 = vmatpush1.msra.mxu0 %v3826
        %4098 = vmatprep.subr.mxu0 %v3829
        %4099 = vmatpush1.msra.mxu0 %v3828
        %4100 = vmatprep.subr.mxu0 %v3831
        %4101 = vmatpush1.msra.mxu0 %v3830
        %4102 = vmatprep.subr.mxu0 %v3833
        %4103 = vmatpush1.msra.mxu0 %v3832
        %4104 = vmatprep.subr.mxu0 %v3835
        %4105 = vmatpush1.msra.mxu0 %v3834
        %4106 = vmatprep.subr.mxu0 %v3837
        %4107 = vmatpush1.msra.mxu0 %v3836
        %4108 = vmatprep.subr.mxu0 %v3839
        %4109 = vmatpush1.msra.mxu0 %v3838
        %4110 = vmatprep.subr.mxu0 %v3841
        %4111 = vmatpush1.msra.mxu0 %v3840
        %4112 = vmatprep.subr.mxu0 %v3843
        %4113 = vmatpush1.msra.mxu0 %v3842
        %4114 = vmatprep.mubr.f32.mxu0 %v3649
        %4115 = vmatmul.mubr.f32.gmra.mrb[0].mxu0 %v3648
        %v4116 = vpop.f32.mrb[0].mxu0
        %v4117 = vadd.f32 %v4046, %v4116
        %v4118 = vpop.f32.mrb[0].mxu0
        %v4119 = vadd.f32 %v4048, %v4118
        %4120 = vdwg.mxu0
        %4121 = vmatprep.subr.mxu0 %v3845
        %4122 = vmatpush1.msra.mxu0 %v3844
        %4123 = vmatprep.subr.mxu0 %v3847
        %4124 = vmatpush1.msra.mxu0 %v3846
        %4125 = vmatprep.subr.mxu0 %v3849
        %4126 = vmatpush1.msra.mxu0 %v3848
        %4127 = vmatprep.subr.mxu0 %v3851
        %4128 = vmatpush1.msra.mxu0 %v3850
        %4129 = vmatprep.subr.mxu0 %v3853
        %4130 = vmatpush1.msra.mxu0 %v3852
        %4131 = vmatprep.subr.mxu0 %v3855
        %4132 = vmatpush1.msra.mxu0 %v3854
        %4133 = vmatprep.subr.mxu0 %v3857
        %4134 = vmatpush1.msra.mxu0 %v3856
        %4135 = vmatprep.subr.mxu0 %v3859
        %4136 = vmatpush1.msra.mxu0 %v3858
        %4137 = vmatprep.subr.mxu0 %v3861
        %4138 = vmatpush1.msra.mxu0 %v3860
        %4139 = vmatprep.subr.mxu0 %v3863
        %4140 = vmatpush1.msra.mxu0 %v3862
        %4141 = vmatprep.subr.mxu0 %v3865
        %4142 = vmatpush1.msra.mxu0 %v3864
        %4143 = vmatprep.subr.mxu0 %v3867
        %4144 = vmatpush1.msra.mxu0 %v3866
        %4145 = vmatprep.subr.mxu0 %v3869
        %4146 = vmatpush1.msra.mxu0 %v3868
        %4147 = vmatprep.subr.mxu0 %v3871
        %4148 = vmatpush1.msra.mxu0 %v3870
        %4149 = vmatprep.subr.mxu0 %v3873
        %4150 = vmatpush1.msra.mxu0 %v3872
        %4151 = vmatprep.subr.mxu0 %v3875
        %4152 = vmatpush1.msra.mxu0 %v3874
        %4153 = vmatprep.subr.mxu0 %v3877
        %4154 = vmatpush1.msra.mxu0 %v3876
        %4155 = vmatprep.subr.mxu0 %v3879
        %4156 = vmatpush1.msra.mxu0 %v3878
        %4157 = vmatprep.subr.mxu0 %v3881
        %4158 = vmatpush1.msra.mxu0 %v3880
        %4159 = vmatprep.subr.mxu0 %v3883
        %4160 = vmatpush1.msra.mxu0 %v3882
        %4161 = vmatprep.subr.mxu0 %v3885
        %4162 = vmatpush1.msra.mxu0 %v3884
        %4163 = vmatprep.subr.mxu0 %v3887
        %4164 = vmatpush1.msra.mxu0 %v3886
        %4165 = vmatprep.subr.mxu0 %v3889
        %4166 = vmatpush1.msra.mxu0 %v3888
        %4167 = vmatprep.subr.mxu0 %v3891
        %4168 = vmatpush1.msra.mxu0 %v3890
        %4169 = vmatprep.subr.mxu0 %v3893
        %4170 = vmatpush1.msra.mxu0 %v3892
        %4171 = vmatprep.subr.mxu0 %v3895
        %4172 = vmatpush1.msra.mxu0 %v3894
        %4173 = vmatprep.subr.mxu0 %v3897
        %4174 = vmatpush1.msra.mxu0 %v3896
        %4175 = vmatprep.subr.mxu0 %v3899
        %4176 = vmatpush1.msra.mxu0 %v3898
        %4177 = vmatprep.subr.mxu0 %v3901
        %4178 = vmatpush1.msra.mxu0 %v3900
        %4179 = vmatprep.subr.mxu0 %v3903
        %4180 = vmatpush1.msra.mxu0 %v3902
        %4181 = vmatprep.subr.mxu0 %v3905
        %4182 = vmatpush1.msra.mxu0 %v3904
        %4183 = vmatprep.subr.mxu0 %v3907
        %4184 = vmatpush1.msra.mxu0 %v3906
        %4185 = vmatprep.mubr.f32.mxu0 %v3651
        %4186 = vmatmul.mubr.f32.gmra.mrb[0].mxu0 %v3650
        %v4187 = vpop.f32.mrb[0].mxu0
        %v4188 = vadd.f32 %v4117, %v4187
        %v4189 = vpop.f32.mrb[0].mxu0
        %v4190 = vadd.f32 %v4119, %v4189
        %4191 = vdwg.mxu0
        %v4192 = vand.u32 %v437, 15
        %v4193 = vand.u32 %v438, 15
        %4194 = vrot.lane.b32.xlu0 %v4188, 17
        %v4195 = vpop.permute.xlu0 %4194
        %4196 = vrot.lane.b32.xlu0 %v4190, 17
        %v4197 = vpop.permute.xlu0 %4196
        %vm4198 = vcmp.lt.s32.totalorder %v437, 17
        %v4199 = vsel %vm4198, %v4195, %v4197
        %v4200 = vsel %vm4198, %v4197, %v4195
        %vm4201 = vcmp.ge.s32.totalorder %v437, 16
        %vm4202 = vcmp.ge.s32.totalorder %v438, 16
        %vm4203 = vcmp.ge.s32.totalorder %v4192, 1
        %vm4204 = vcmp.ge.s32.totalorder %v4193, 1
        %vm4205 = vmand %vm4201, %vm4203
        %vm4206 = vmand %vm4202, %vm4204
        %v4207 = vsel %vm4205, 1, 0
        %v4208 = vsel %vm4206, 1, 0
        %vm4209 = vcmp.eq.s32.totalorder %v4207, 1
        %vm4210 = vcmp.eq.s32.totalorder %v4208, 1
        %v4211 = vsel %vm4209, %v4200, 0.0
        %v4212 = vsel %vm4210, %v4199, 0.0
        %v4213 = vld [vmem:[%s4] sm:$0xff]
        %v4214 = vld [vmem:[%s4 + $0x8] sm:$0xff]
        %4215 = vrot.lane.b32.xlu0 %v4188, 16
        %v4216 = vpop.permute.xlu0 %4215
        %4217 = vrot.lane.b32.xlu0 %v4190, 16
        %v4218 = vpop.permute.xlu0 %4217
        %vm4219 = vcmp.lt.s32.totalorder %v437, 16
        %v4220 = vsel %vm4219, %v4216, %v4218
        %v4221 = vsel %vm4219, %v4218, %v4216
        %v4222 = vsel %vm4201, 1, 0
        %v4223 = vsel %vm4202, 1, 0
        %vm4224 = vcmp.eq.s32.totalorder %v4222, 1
        %vm4225 = vcmp.eq.s32.totalorder %v4223, 1
        %v4226 = vsel %vm4224, %v4221, 0.0
        %v4227 = vsel %vm4225, %v4220, 0.0
        %s4228 = scalar_lea.vmem %s4, 16
        %v4229 = vld [vmem:[%s4228] sm:$0xff]
        %v4230 = vld [vmem:[%s4228 + $0x8] sm:$0xff]
        %v4232 = vsel %vm578, %v4229, 0
        %v4235 = vsel %vm578, %v4230, 0
        %4237 = vmatprep.subr.mxu0 %v4227
        %4238 = vmatpush1.msra.mxu0 %v4226
        %4239 = vmatprep.subr.mxu0 0.0
        %4240 = vmatpush1.msra.mxu0 0.0
        %4241 = vmatprep.subr.mxu0 0.0
        %4242 = vmatpush1.msra.mxu0 0.0
        %4243 = vmatprep.subr.mxu0 0.0
        %4244 = vmatpush1.msra.mxu0 0.0
        %4245 = vmatprep.subr.mxu0 0.0
        %4246 = vmatpush1.msra.mxu0 0.0
        %4247 = vmatprep.subr.mxu0 0.0
        %4248 = vmatpush1.msra.mxu0 0.0
        %4249 = vmatprep.subr.mxu0 0.0
        %4250 = vmatpush1.msra.mxu0 0.0
        %4251 = vmatprep.subr.mxu0 0.0
        %4252 = vmatpush1.msra.mxu0 0.0
        %4253 = vmatprep.subr.mxu0 0.0
        %4254 = vmatpush1.msra.mxu0 0.0
        %4255 = vmatprep.subr.mxu0 0.0
        %4256 = vmatpush1.msra.mxu0 0.0
        %4257 = vmatprep.subr.mxu0 0.0
        %4258 = vmatpush1.msra.mxu0 0.0
        %4259 = vmatprep.subr.mxu0 0.0
        %4260 = vmatpush1.msra.mxu0 0.0
        %4261 = vmatprep.subr.mxu0 0.0
        %4262 = vmatpush1.msra.mxu0 0.0
        %4263 = vmatprep.subr.mxu0 0.0
        %4264 = vmatpush1.msra.mxu0 0.0
        %4265 = vmatprep.subr.mxu0 0.0
        %4266 = vmatpush1.msra.mxu0 0.0
        %4267 = vmatprep.subr.mxu0 0.0
        %4268 = vmatpush1.msra.mxu0 0.0
        %4269 = vmatprep.subr.mxu0 0.0
        %4270 = vmatpush1.msra.mxu0 0.0
        %4271 = vmatprep.subr.mxu0 0.0
        %4272 = vmatpush1.msra.mxu0 0.0
        %4273 = vmatprep.subr.mxu0 0.0
        %4274 = vmatpush1.msra.mxu0 0.0
        %4275 = vmatprep.subr.mxu0 0.0
        %4276 = vmatpush1.msra.mxu0 0.0
        %4277 = vmatprep.subr.mxu0 0.0
        %4278 = vmatpush1.msra.mxu0 0.0
        %4279 = vmatprep.subr.mxu0 0.0
        %4280 = vmatpush1.msra.mxu0 0.0
        %4281 = vmatprep.subr.mxu0 0.0
        %4282 = vmatpush1.msra.mxu0 0.0
        %4283 = vmatprep.subr.mxu0 0.0
        %4284 = vmatpush1.msra.mxu0 0.0
        %4285 = vmatprep.subr.mxu0 0.0
        %4286 = vmatpush1.msra.mxu0 0.0
        %4287 = vmatprep.subr.mxu0 0.0
        %4288 = vmatpush1.msra.mxu0 0.0
        %4289 = vmatprep.subr.mxu0 0.0
        %4290 = vmatpush1.msra.mxu0 0.0
        %4291 = vmatprep.subr.mxu0 0.0
        %4292 = vmatpush1.msra.mxu0 0.0
        %4293 = vmatprep.subr.mxu0 0.0
        %4294 = vmatpush1.msra.mxu0 0.0
        %4295 = vmatprep.subr.mxu0 0.0
        %4296 = vmatpush1.msra.mxu0 0.0
        %4297 = vmatprep.subr.mxu0 0.0
        %4298 = vmatpush1.msra.mxu0 0.0
        %4299 = vmatprep.subr.mxu0 0.0
        %4300 = vmatpush1.msra.mxu0 0.0
        %4301 = vmatprep.mubr.f32.mxu0 0.0
        %4302 = vmatmul.mubr.f32.gmra.mrb[0].mxu0 %v4232
        %v4303 = vpop.f32.mrb[0].mxu0
        %v4304 = vadd.f32 0.0, %v4303
        %v4305 = vpop.f32.mrb[0].mxu0
        %v4306 = vadd.f32 0.0, %v4305
        %4307 = vmatprep.mubr.f32.mxu0 0.0
        %4308 = vmatmul.mubr.f32.gmra.mrb[0].mxu0 %v4235
        %v4309 = vpop.f32.mrb[0].mxu0
        %v4310 = vadd.f32 0.0, %v4309
        %v4311 = vpop.f32.mrb[0].mxu0
        %v4312 = vadd.f32 0.0, %v4311
        %4313 = vdwg.mxu0
        %v4315 = vsel %vm578, %v4213, 0
        %v4318 = vsel %vm578, %v4214, 0
        %4320 = vmatprep.subr.mxu0 %v4212
        %4321 = vmatpush1.msra.mxu0 %v4211
        %4322 = vmatprep.subr.mxu0 0.0
        %4323 = vmatpush1.msra.mxu0 0.0
        %4324 = vmatprep.subr.mxu0 0.0
        %4325 = vmatpush1.msra.mxu0 0.0
        %4326 = vmatprep.subr.mxu0 0.0
        %4327 = vmatpush1.msra.mxu0 0.0
        %4328 = vmatprep.subr.mxu0 0.0
        %4329 = vmatpush1.msra.mxu0 0.0
        %4330 = vmatprep.subr.mxu0 0.0
        %4331 = vmatpush1.msra.mxu0 0.0
        %4332 = vmatprep.subr.mxu0 0.0
        %4333 = vmatpush1.msra.mxu0 0.0
        %4334 = vmatprep.subr.mxu0 0.0
        %4335 = vmatpush1.msra.mxu0 0.0
        %4336 = vmatprep.subr.mxu0 0.0
        %4337 = vmatpush1.msra.mxu0 0.0
        %4338 = vmatprep.subr.mxu0 0.0
        %4339 = vmatpush1.msra.mxu0 0.0
        %4340 = vmatprep.subr.mxu0 0.0
        %4341 = vmatpush1.msra.mxu0 0.0
        %4342 = vmatprep.subr.mxu0 0.0
        %4343 = vmatpush1.msra.mxu0 0.0
        %4344 = vmatprep.subr.mxu0 0.0
        %4345 = vmatpush1.msra.mxu0 0.0
        %4346 = vmatprep.subr.mxu0 0.0
        %4347 = vmatpush1.msra.mxu0 0.0
        %4348 = vmatprep.subr.mxu0 0.0
        %4349 = vmatpush1.msra.mxu0 0.0
        %4350 = vmatprep.subr.mxu0 0.0
        %4351 = vmatpush1.msra.mxu0 0.0
        %4352 = vmatprep.subr.mxu0 0.0
        %4353 = vmatpush1.msra.mxu0 0.0
        %4354 = vmatprep.subr.mxu0 0.0
        %4355 = vmatpush1.msra.mxu0 0.0
        %4356 = vmatprep.subr.mxu0 0.0
        %4357 = vmatpush1.msra.mxu0 0.0
        %4358 = vmatprep.subr.mxu0 0.0
        %4359 = vmatpush1.msra.mxu0 0.0
        %4360 = vmatprep.subr.mxu0 0.0
        %4361 = vmatpush1.msra.mxu0 0.0
        %4362 = vmatprep.subr.mxu0 0.0
        %4363 = vmatpush1.msra.mxu0 0.0
        %4364 = vmatprep.subr.mxu0 0.0
        %4365 = vmatpush1.msra.mxu0 0.0
        %4366 = vmatprep.subr.mxu0 0.0
        %4367 = vmatpush1.msra.mxu0 0.0
        %4368 = vmatprep.subr.mxu0 0.0
        %4369 = vmatpush1.msra.mxu0 0.0
        %4370 = vmatprep.subr.mxu0 0.0
        %4371 = vmatpush1.msra.mxu0 0.0
        %4372 = vmatprep.subr.mxu0 0.0
        %4373 = vmatpush1.msra.mxu0 0.0
        %4374 = vmatprep.subr.mxu0 0.0
        %4375 = vmatpush1.msra.mxu0 0.0
        %4376 = vmatprep.subr.mxu0 0.0
        %4377 = vmatpush1.msra.mxu0 0.0
        %4378 = vmatprep.subr.mxu0 0.0
        %4379 = vmatpush1.msra.mxu0 0.0
        %4380 = vmatprep.subr.mxu0 0.0
        %4381 = vmatpush1.msra.mxu0 0.0
        %4382 = vmatprep.subr.mxu0 0.0
        %4383 = vmatpush1.msra.mxu0 0.0
        %4384 = vmatprep.mubr.f32.mxu0 0.0
        %4385 = vmatmul.mubr.f32.gmra.mrb[0].mxu0 %v4315
        %v4386 = vpop.f32.mrb[0].mxu0
        %v4387 = vadd.f32 %v4304, %v4386
        %v4388 = vpop.f32.mrb[0].mxu0
        %v4389 = vadd.f32 %v4306, %v4388
        %4390 = vmatprep.mubr.f32.mxu0 0.0
        %4391 = vmatmul.mubr.f32.gmra.mrb[0].mxu0 %v4318
        %v4392 = vpop.f32.mrb[0].mxu0
        %v4393 = vadd.f32 %v4310, %v4392
        %v4394 = vpop.f32.mrb[0].mxu0
        %v4395 = vadd.f32 %v4312, %v4394
        %4396 = vdwg.mxu0
        %4397 = vrot.lane.b32.xlu0 %v4188, 15
        %v4398 = vpop.permute.xlu0 %4397
        %4399 = vrot.lane.b32.xlu0 %v4190, 15
        %v4400 = vpop.permute.xlu0 %4399
        %vm4401 = vcmp.lt.s32.totalorder %v437, 15
        %v4402 = vsel %vm4401, %v4398, %v4400
        %v4403 = vsel %vm4401, %v4400, %v4398
        %vm4404 = vcmp.le.s32.totalorder %v4192, 14
        %vm4405 = vcmp.le.s32.totalorder %v4193, 14
        %vm4406 = vmand %vm4201, %vm4404
        %vm4407 = vmand %vm4202, %vm4405
        %v4408 = vsel %vm4406, 1, 0
        %v4409 = vsel %vm4407, 1, 0
        %vm4410 = vcmp.eq.s32.totalorder %v4408, 1
        %vm4411 = vcmp.eq.s32.totalorder %v4409, 1
        %v4412 = vsel %vm4410, %v4403, 0.0
        %v4413 = vsel %vm4411, %v4402, 0.0
        %s4414 = scalar_lea.vmem %s4, 32
        %v4415 = vld [vmem:[%s4414] sm:$0xff]
        %v4416 = vld [vmem:[%s4414 + $0x8] sm:$0xff]
        %v4418 = vsel %vm578, %v4415, 0
        %v4421 = vsel %vm578, %v4416, 0
        %4423 = vmatprep.subr.mxu0 %v4413
        %4424 = vmatpush1.msra.mxu0 %v4412
        %4425 = vmatprep.subr.mxu0 0.0
        %4426 = vmatpush1.msra.mxu0 0.0
        %4427 = vmatprep.subr.mxu0 0.0
        %4428 = vmatpush1.msra.mxu0 0.0
        %4429 = vmatprep.subr.mxu0 0.0
        %4430 = vmatpush1.msra.mxu0 0.0
        %4431 = vmatprep.subr.mxu0 0.0
        %4432 = vmatpush1.msra.mxu0 0.0
        %4433 = vmatprep.subr.mxu0 0.0
        %4434 = vmatpush1.msra.mxu0 0.0
        %4435 = vmatprep.subr.mxu0 0.0
        %4436 = vmatpush1.msra.mxu0 0.0
        %4437 = vmatprep.subr.mxu0 0.0
        %4438 = vmatpush1.msra.mxu0 0.0
        %4439 = vmatprep.subr.mxu0 0.0
        %4440 = vmatpush1.msra.mxu0 0.0
        %4441 = vmatprep.subr.mxu0 0.0
        %4442 = vmatpush1.msra.mxu0 0.0
        %4443 = vmatprep.subr.mxu0 0.0
        %4444 = vmatpush1.msra.mxu0 0.0
        %4445 = vmatprep.subr.mxu0 0.0
        %4446 = vmatpush1.msra.mxu0 0.0
        %4447 = vmatprep.subr.mxu0 0.0
        %4448 = vmatpush1.msra.mxu0 0.0
        %4449 = vmatprep.subr.mxu0 0.0
        %4450 = vmatpush1.msra.mxu0 0.0
        %4451 = vmatprep.subr.mxu0 0.0
        %4452 = vmatpush1.msra.mxu0 0.0
        %4453 = vmatprep.subr.mxu0 0.0
        %4454 = vmatpush1.msra.mxu0 0.0
        %4455 = vmatprep.subr.mxu0 0.0
        %4456 = vmatpush1.msra.mxu0 0.0
        %4457 = vmatprep.subr.mxu0 0.0
        %4458 = vmatpush1.msra.mxu0 0.0
        %4459 = vmatprep.subr.mxu0 0.0
        %4460 = vmatpush1.msra.mxu0 0.0
        %4461 = vmatprep.subr.mxu0 0.0
        %4462 = vmatpush1.msra.mxu0 0.0
        %4463 = vmatprep.subr.mxu0 0.0
        %4464 = vmatpush1.msra.mxu0 0.0
        %4465 = vmatprep.subr.mxu0 0.0
        %4466 = vmatpush1.msra.mxu0 0.0
        %4467 = vmatprep.subr.mxu0 0.0
        %4468 = vmatpush1.msra.mxu0 0.0
        %4469 = vmatprep.subr.mxu0 0.0
        %4470 = vmatpush1.msra.mxu0 0.0
        %4471 = vmatprep.subr.mxu0 0.0
        %4472 = vmatpush1.msra.mxu0 0.0
        %4473 = vmatprep.subr.mxu0 0.0
        %4474 = vmatpush1.msra.mxu0 0.0
        %4475 = vmatprep.subr.mxu0 0.0
        %4476 = vmatpush1.msra.mxu0 0.0
        %4477 = vmatprep.subr.mxu0 0.0
        %4478 = vmatpush1.msra.mxu0 0.0
        %4479 = vmatprep.subr.mxu0 0.0
        %4480 = vmatpush1.msra.mxu0 0.0
        %4481 = vmatprep.subr.mxu0 0.0
        %4482 = vmatpush1.msra.mxu0 0.0
        %4483 = vmatprep.subr.mxu0 0.0
        %4484 = vmatpush1.msra.mxu0 0.0
        %4485 = vmatprep.subr.mxu0 0.0
        %4486 = vmatpush1.msra.mxu0 0.0
        %4487 = vmatprep.mubr.f32.mxu0 0.0
        %4488 = vmatmul.mubr.f32.gmra.mrb[0].mxu0 %v4418
        %v4489 = vpop.f32.mrb[0].mxu0
        %v4490 = vadd.f32 0.0, %v4489
        %v4491 = vpop.f32.mrb[0].mxu0
        %v4492 = vadd.f32 0.0, %v4491
        %4493 = vmatprep.mubr.f32.mxu0 0.0
        %4494 = vmatmul.mubr.f32.gmra.mrb[0].mxu0 %v4421
        %v4495 = vpop.f32.mrb[0].mxu0
        %v4496 = vadd.f32 0.0, %v4495
        %v4497 = vpop.f32.mrb[0].mxu0
        %v4498 = vadd.f32 0.0, %v4497
        %4499 = vdwg.mxu0
        %v4500 = vadd.f32 %v4387, %v4490
        %v4501 = vadd.f32 %v4389, %v4492
        %v4502 = vadd.f32 %v4393, %v4496
        %v4503 = vadd.f32 %v4395, %v4498
        %4504 = vrot.lane.b32.xlu0 %v4188, 1
        %v4505 = vpop.permute.xlu0 %4504
        %4506 = vrot.lane.b32.xlu0 %v4190, 1
        %v4507 = vpop.permute.xlu0 %4506
        %v4508 = vsel %vm1531, %v4505, %v4507
        %v4509 = vsel %vm1531, %v4507, %v4505
        %v4510 = vsel %vm4203, 1, 0
        %v4511 = vsel %vm4204, 1, 0
        %vm4512 = vcmp.eq.s32.totalorder %v4510, 1
        %vm4513 = vcmp.eq.s32.totalorder %v4511, 1
        %v4514 = vsel %vm4512, %v4509, 0.0
        %v4515 = vsel %vm4513, %v4508, 0.0
        %s4516 = scalar_lea.vmem %s4, 48
        %v4517 = vld [vmem:[%s4516] sm:$0xff]
        %v4518 = vld [vmem:[%s4516 + $0x8] sm:$0xff]
        %v4520 = vsel %vm578, %v4517, 0
        %v4523 = vsel %vm578, %v4518, 0
        %4525 = vmatprep.subr.mxu0 %v4515
        %4526 = vmatpush1.msra.mxu0 %v4514
        %4527 = vmatprep.subr.mxu0 0.0
        %4528 = vmatpush1.msra.mxu0 0.0
        %4529 = vmatprep.subr.mxu0 0.0
        %4530 = vmatpush1.msra.mxu0 0.0
        %4531 = vmatprep.subr.mxu0 0.0
        %4532 = vmatpush1.msra.mxu0 0.0
        %4533 = vmatprep.subr.mxu0 0.0
        %4534 = vmatpush1.msra.mxu0 0.0
        %4535 = vmatprep.subr.mxu0 0.0
        %4536 = vmatpush1.msra.mxu0 0.0
        %4537 = vmatprep.subr.mxu0 0.0
        %4538 = vmatpush1.msra.mxu0 0.0
        %4539 = vmatprep.subr.mxu0 0.0
        %4540 = vmatpush1.msra.mxu0 0.0
        %4541 = vmatprep.subr.mxu0 0.0
        %4542 = vmatpush1.msra.mxu0 0.0
        %4543 = vmatprep.subr.mxu0 0.0
        %4544 = vmatpush1.msra.mxu0 0.0
        %4545 = vmatprep.subr.mxu0 0.0
        %4546 = vmatpush1.msra.mxu0 0.0
        %4547 = vmatprep.subr.mxu0 0.0
        %4548 = vmatpush1.msra.mxu0 0.0
        %4549 = vmatprep.subr.mxu0 0.0
        %4550 = vmatpush1.msra.mxu0 0.0
        %4551 = vmatprep.subr.mxu0 0.0
        %4552 = vmatpush1.msra.mxu0 0.0
        %4553 = vmatprep.subr.mxu0 0.0
        %4554 = vmatpush1.msra.mxu0 0.0
        %4555 = vmatprep.subr.mxu0 0.0
        %4556 = vmatpush1.msra.mxu0 0.0
        %4557 = vmatprep.subr.mxu0 0.0
        %4558 = vmatpush1.msra.mxu0 0.0
        %4559 = vmatprep.subr.mxu0 0.0
        %4560 = vmatpush1.msra.mxu0 0.0
        %4561 = vmatprep.subr.mxu0 0.0
        %4562 = vmatpush1.msra.mxu0 0.0
        %4563 = vmatprep.subr.mxu0 0.0
        %4564 = vmatpush1.msra.mxu0 0.0
        %4565 = vmatprep.subr.mxu0 0.0
        %4566 = vmatpush1.msra.mxu0 0.0
        %4567 = vmatprep.subr.mxu0 0.0
        %4568 = vmatpush1.msra.mxu0 0.0
        %4569 = vmatprep.subr.mxu0 0.0
        %4570 = vmatpush1.msra.mxu0 0.0
        %4571 = vmatprep.subr.mxu0 0.0
        %4572 = vmatpush1.msra.mxu0 0.0
        %4573 = vmatprep.subr.mxu0 0.0
        %4574 = vmatpush1.msra.mxu0 0.0
        %4575 = vmatprep.subr.mxu0 0.0
        %4576 = vmatpush1.msra.mxu0 0.0
        %4577 = vmatprep.subr.mxu0 0.0
        %4578 = vmatpush1.msra.mxu0 0.0
        %4579 = vmatprep.subr.mxu0 0.0
        %4580 = vmatpush1.msra.mxu0 0.0
        %4581 = vmatprep.subr.mxu0 0.0
        %4582 = vmatpush1.msra.mxu0 0.0
        %4583 = vmatprep.subr.mxu0 0.0
        %4584 = vmatpush1.msra.mxu0 0.0
        %4585 = vmatprep.subr.mxu0 0.0
        %4586 = vmatpush1.msra.mxu0 0.0
        %4587 = vmatprep.subr.mxu0 0.0
        %4588 = vmatpush1.msra.mxu0 0.0
        %4589 = vmatprep.mubr.f32.mxu0 0.0
        %4590 = vmatmul.mubr.f32.gmra.mrb[0].mxu0 %v4520
        %v4591 = vpop.f32.mrb[0].mxu0
        %v4592 = vadd.f32 0.0, %v4591
        %v4593 = vpop.f32.mrb[0].mxu0
        %v4594 = vadd.f32 0.0, %v4593
        %4595 = vmatprep.mubr.f32.mxu0 0.0
        %4596 = vmatmul.mubr.f32.gmra.mrb[0].mxu0 %v4523
        %v4597 = vpop.f32.mrb[0].mxu0
        %v4598 = vadd.f32 0.0, %v4597
        %v4599 = vpop.f32.mrb[0].mxu0
        %v4600 = vadd.f32 0.0, %v4599
        %4601 = vdwg.mxu0
        %v4602 = vadd.f32 %v4500, %v4592
        %v4603 = vadd.f32 %v4501, %v4594
        %v4604 = vadd.f32 %v4502, %v4598
        %v4605 = vadd.f32 %v4503, %v4600
        %s4606 = scalar_lea.vmem %s4, 64
        %v4607 = vld [vmem:[%s4606] sm:$0xff]
        %v4608 = vld [vmem:[%s4606 + $0x8] sm:$0xff]
        %v4610 = vsel %vm578, %v4607, 0
        %v4613 = vsel %vm578, %v4608, 0
        %4615 = vmatprep.subr.mxu0 %v4190
        %4616 = vmatpush1.msra.mxu0 %v4188
        %4617 = vmatprep.subr.mxu0 0.0
        %4618 = vmatpush1.msra.mxu0 0.0
        %4619 = vmatprep.subr.mxu0 0.0
        %4620 = vmatpush1.msra.mxu0 0.0
        %4621 = vmatprep.subr.mxu0 0.0
        %4622 = vmatpush1.msra.mxu0 0.0
        %4623 = vmatprep.subr.mxu0 0.0
        %4624 = vmatpush1.msra.mxu0 0.0
        %4625 = vmatprep.subr.mxu0 0.0
        %4626 = vmatpush1.msra.mxu0 0.0
        %4627 = vmatprep.subr.mxu0 0.0
        %4628 = vmatpush1.msra.mxu0 0.0
        %4629 = vmatprep.subr.mxu0 0.0
        %4630 = vmatpush1.msra.mxu0 0.0
        %4631 = vmatprep.subr.mxu0 0.0
        %4632 = vmatpush1.msra.mxu0 0.0
        %4633 = vmatprep.subr.mxu0 0.0
        %4634 = vmatpush1.msra.mxu0 0.0
        %4635 = vmatprep.subr.mxu0 0.0
        %4636 = vmatpush1.msra.mxu0 0.0
        %4637 = vmatprep.subr.mxu0 0.0
        %4638 = vmatpush1.msra.mxu0 0.0
        %4639 = vmatprep.subr.mxu0 0.0
        %4640 = vmatpush1.msra.mxu0 0.0
        %4641 = vmatprep.subr.mxu0 0.0
        %4642 = vmatpush1.msra.mxu0 0.0
        %4643 = vmatprep.subr.mxu0 0.0
        %4644 = vmatpush1.msra.mxu0 0.0
        %4645 = vmatprep.subr.mxu0 0.0
        %4646 = vmatpush1.msra.mxu0 0.0
        %4647 = vmatprep.subr.mxu0 0.0
        %4648 = vmatpush1.msra.mxu0 0.0
        %4649 = vmatprep.subr.mxu0 0.0
        %4650 = vmatpush1.msra.mxu0 0.0
        %4651 = vmatprep.subr.mxu0 0.0
        %4652 = vmatpush1.msra.mxu0 0.0
        %4653 = vmatprep.subr.mxu0 0.0
        %4654 = vmatpush1.msra.mxu0 0.0
        %4655 = vmatprep.subr.mxu0 0.0
        %4656 = vmatpush1.msra.mxu0 0.0
        %4657 = vmatprep.subr.mxu0 0.0
        %4658 = vmatpush1.msra.mxu0 0.0
        %4659 = vmatprep.subr.mxu0 0.0
        %4660 = vmatpush1.msra.mxu0 0.0
        %4661 = vmatprep.subr.mxu0 0.0
        %4662 = vmatpush1.msra.mxu0 0.0
        %4663 = vmatprep.subr.mxu0 0.0
        %4664 = vmatpush1.msra.mxu0 0.0
        %4665 = vmatprep.subr.mxu0 0.0
        %4666 = vmatpush1.msra.mxu0 0.0
        %4667 = vmatprep.subr.mxu0 0.0
        %4668 = vmatpush1.msra.mxu0 0.0
        %4669 = vmatprep.subr.mxu0 0.0
        %4670 = vmatpush1.msra.mxu0 0.0
        %4671 = vmatprep.subr.mxu0 0.0
        %4672 = vmatpush1.msra.mxu0 0.0
        %4673 = vmatprep.subr.mxu0 0.0
        %4674 = vmatpush1.msra.mxu0 0.0
        %4675 = vmatprep.subr.mxu0 0.0
        %4676 = vmatpush1.msra.mxu0 0.0
        %4677 = vmatprep.subr.mxu0 0.0
        %4678 = vmatpush1.msra.mxu0 0.0
        %4679 = vmatprep.mubr.f32.mxu0 0.0
        %4680 = vmatmul.mubr.f32.gmra.mrb[0].mxu0 %v4610
        %v4681 = vpop.f32.mrb[0].mxu0
        %v4682 = vadd.f32 0.0, %v4681
        %v4683 = vpop.f32.mrb[0].mxu0
        %v4684 = vadd.f32 0.0, %v4683
        %4685 = vmatprep.mubr.f32.mxu0 0.0
        %4686 = vmatmul.mubr.f32.gmra.mrb[0].mxu0 %v4613
        %v4687 = vpop.f32.mrb[0].mxu0
        %v4688 = vadd.f32 0.0, %v4687
        %v4689 = vpop.f32.mrb[0].mxu0
        %v4690 = vadd.f32 0.0, %v4689
        %4691 = vdwg.mxu0
        %v4692 = vadd.f32 %v4602, %v4682
        %v4693 = vadd.f32 %v4603, %v4684
        %v4694 = vadd.f32 %v4604, %v4688
        %v4695 = vadd.f32 %v4605, %v4690
        %4696 = vrot.lane.b32.xlu0 %v4188, 127
        %v4697 = vpop.permute.xlu0 %4696
        %4698 = vrot.lane.b32.xlu0 %v4190, 127
        %v4699 = vpop.permute.xlu0 %4698
        %v4700 = vsel %vm2174, %v4697, %v4699
        %v4701 = vsel %vm2174, %v4699, %v4697
        %v4702 = vsel %vm4404, 1, 0
        %v4703 = vsel %vm4405, 1, 0
        %vm4704 = vcmp.eq.s32.totalorder %v4702, 1
        %vm4705 = vcmp.eq.s32.totalorder %v4703, 1
        %v4706 = vsel %vm4704, %v4700, 0.0
        %v4707 = vsel %vm4705, %v4701, 0.0
        %s4708 = scalar_lea.vmem %s4, 80
        %v4709 = vld [vmem:[%s4708] sm:$0xff]
        %v4710 = vld [vmem:[%s4708 + $0x8] sm:$0xff]
        %v4712 = vsel %vm578, %v4709, 0
        %v4715 = vsel %vm578, %v4710, 0
        %4717 = vmatprep.subr.mxu0 %v4707
        %4718 = vmatpush1.msra.mxu0 %v4706
        %4719 = vmatprep.subr.mxu0 0.0
        %4720 = vmatpush1.msra.mxu0 0.0
        %4721 = vmatprep.subr.mxu0 0.0
        %4722 = vmatpush1.msra.mxu0 0.0
        %4723 = vmatprep.subr.mxu0 0.0
        %4724 = vmatpush1.msra.mxu0 0.0
        %4725 = vmatprep.subr.mxu0 0.0
        %4726 = vmatpush1.msra.mxu0 0.0
        %4727 = vmatprep.subr.mxu0 0.0
        %4728 = vmatpush1.msra.mxu0 0.0
        %4729 = vmatprep.subr.mxu0 0.0
        %4730 = vmatpush1.msra.mxu0 0.0
        %4731 = vmatprep.subr.mxu0 0.0
        %4732 = vmatpush1.msra.mxu0 0.0
        %4733 = vmatprep.subr.mxu0 0.0
        %4734 = vmatpush1.msra.mxu0 0.0
        %4735 = vmatprep.subr.mxu0 0.0
        %4736 = vmatpush1.msra.mxu0 0.0
        %4737 = vmatprep.subr.mxu0 0.0
        %4738 = vmatpush1.msra.mxu0 0.0
        %4739 = vmatprep.subr.mxu0 0.0
        %4740 = vmatpush1.msra.mxu0 0.0
        %4741 = vmatprep.subr.mxu0 0.0
        %4742 = vmatpush1.msra.mxu0 0.0
        %4743 = vmatprep.subr.mxu0 0.0
        %4744 = vmatpush1.msra.mxu0 0.0
        %4745 = vmatprep.subr.mxu0 0.0
        %4746 = vmatpush1.msra.mxu0 0.0
        %4747 = vmatprep.subr.mxu0 0.0
        %4748 = vmatpush1.msra.mxu0 0.0
        %4749 = vmatprep.subr.mxu0 0.0
        %4750 = vmatpush1.msra.mxu0 0.0
        %4751 = vmatprep.subr.mxu0 0.0
        %4752 = vmatpush1.msra.mxu0 0.0
        %4753 = vmatprep.subr.mxu0 0.0
        %4754 = vmatpush1.msra.mxu0 0.0
        %4755 = vmatprep.subr.mxu0 0.0
        %4756 = vmatpush1.msra.mxu0 0.0
        %4757 = vmatprep.subr.mxu0 0.0
        %4758 = vmatpush1.msra.mxu0 0.0
        %4759 = vmatprep.subr.mxu0 0.0
        %4760 = vmatpush1.msra.mxu0 0.0
        %4761 = vmatprep.subr.mxu0 0.0
        %4762 = vmatpush1.msra.mxu0 0.0
        %4763 = vmatprep.subr.mxu0 0.0
        %4764 = vmatpush1.msra.mxu0 0.0
        %4765 = vmatprep.subr.mxu0 0.0
        %4766 = vmatpush1.msra.mxu0 0.0
        %4767 = vmatprep.subr.mxu0 0.0
        %4768 = vmatpush1.msra.mxu0 0.0
        %4769 = vmatprep.subr.mxu0 0.0
        %4770 = vmatpush1.msra.mxu0 0.0
        %4771 = vmatprep.subr.mxu0 0.0
        %4772 = vmatpush1.msra.mxu0 0.0
        %4773 = vmatprep.subr.mxu0 0.0
        %4774 = vmatpush1.msra.mxu0 0.0
        %4775 = vmatprep.subr.mxu0 0.0
        %4776 = vmatpush1.msra.mxu0 0.0
        %4777 = vmatprep.subr.mxu0 0.0
        %4778 = vmatpush1.msra.mxu0 0.0
        %4779 = vmatprep.subr.mxu0 0.0
        %4780 = vmatpush1.msra.mxu0 0.0
        %4781 = vmatprep.mubr.f32.mxu0 0.0
        %4782 = vmatmul.mubr.f32.gmra.mrb[0].mxu0 %v4712
        %v4783 = vpop.f32.mrb[0].mxu0
        %v4784 = vadd.f32 0.0, %v4783
        %v4785 = vpop.f32.mrb[0].mxu0
        %v4786 = vadd.f32 0.0, %v4785
        %4787 = vmatprep.mubr.f32.mxu0 0.0
        %4788 = vmatmul.mubr.f32.gmra.mrb[0].mxu0 %v4715
        %v4789 = vpop.f32.mrb[0].mxu0
        %v4790 = vadd.f32 0.0, %v4789
        %v4791 = vpop.f32.mrb[0].mxu0
        %v4792 = vadd.f32 0.0, %v4791
        %4793 = vdwg.mxu0
        %v4794 = vadd.f32 %v4692, %v4784
        %v4795 = vadd.f32 %v4693, %v4786
        %v4796 = vadd.f32 %v4694, %v4790
        %v4797 = vadd.f32 %v4695, %v4792
        %4798 = vrot.lane.b32.xlu0 %v4188, 113
        %v4799 = vpop.permute.xlu0 %4798
        %4800 = vrot.lane.b32.xlu0 %v4190, 113
        %v4801 = vpop.permute.xlu0 %4800
        %vm4802 = vcmp.lt.s32.totalorder %v437, 113
        %v4803 = vsel %vm4802, %v4799, %v4801
        %v4804 = vsel %vm4802, %v4801, %v4799
        %vm4805 = vcmp.lt.s32.totalorder %v437, 240
        %vm4806 = vcmp.lt.s32.totalorder %v438, 240
        %vm4807 = vmand %vm4805, %vm4203
        %vm4808 = vmand %vm4806, %vm4204
        %v4809 = vsel %vm4807, 1, 0
        %v4810 = vsel %vm4808, 1, 0
        %vm4811 = vcmp.eq.s32.totalorder %v4809, 1
        %vm4812 = vcmp.eq.s32.totalorder %v4810, 1
        %v4813 = vsel %vm4811, %v4803, 0.0
        %v4814 = vsel %vm4812, %v4804, 0.0
        %s4815 = scalar_lea.vmem %s4, 96
        %v4816 = vld [vmem:[%s4815] sm:$0xff]
        %v4817 = vld [vmem:[%s4815 + $0x8] sm:$0xff]
        %v4819 = vsel %vm578, %v4816, 0
        %v4822 = vsel %vm578, %v4817, 0
        %4824 = vmatprep.subr.mxu0 %v4814
        %4825 = vmatpush1.msra.mxu0 %v4813
        %4826 = vmatprep.subr.mxu0 0.0
        %4827 = vmatpush1.msra.mxu0 0.0
        %4828 = vmatprep.subr.mxu0 0.0
        %4829 = vmatpush1.msra.mxu0 0.0
        %4830 = vmatprep.subr.mxu0 0.0
        %4831 = vmatpush1.msra.mxu0 0.0
        %4832 = vmatprep.subr.mxu0 0.0
        %4833 = vmatpush1.msra.mxu0 0.0
        %4834 = vmatprep.subr.mxu0 0.0
        %4835 = vmatpush1.msra.mxu0 0.0
        %4836 = vmatprep.subr.mxu0 0.0
        %4837 = vmatpush1.msra.mxu0 0.0
        %4838 = vmatprep.subr.mxu0 0.0
        %4839 = vmatpush1.msra.mxu0 0.0
        %4840 = vmatprep.subr.mxu0 0.0
        %4841 = vmatpush1.msra.mxu0 0.0
        %4842 = vmatprep.subr.mxu0 0.0
        %4843 = vmatpush1.msra.mxu0 0.0
        %4844 = vmatprep.subr.mxu0 0.0
        %4845 = vmatpush1.msra.mxu0 0.0
        %4846 = vmatprep.subr.mxu0 0.0
        %4847 = vmatpush1.msra.mxu0 0.0
        %4848 = vmatprep.subr.mxu0 0.0
        %4849 = vmatpush1.msra.mxu0 0.0
        %4850 = vmatprep.subr.mxu0 0.0
        %4851 = vmatpush1.msra.mxu0 0.0
        %4852 = vmatprep.subr.mxu0 0.0
        %4853 = vmatpush1.msra.mxu0 0.0
        %4854 = vmatprep.subr.mxu0 0.0
        %4855 = vmatpush1.msra.mxu0 0.0
        %4856 = vmatprep.subr.mxu0 0.0
        %4857 = vmatpush1.msra.mxu0 0.0
        %4858 = vmatprep.subr.mxu0 0.0
        %4859 = vmatpush1.msra.mxu0 0.0
        %4860 = vmatprep.subr.mxu0 0.0
        %4861 = vmatpush1.msra.mxu0 0.0
        %4862 = vmatprep.subr.mxu0 0.0
        %4863 = vmatpush1.msra.mxu0 0.0
        %4864 = vmatprep.subr.mxu0 0.0
        %4865 = vmatpush1.msra.mxu0 0.0
        %4866 = vmatprep.subr.mxu0 0.0
        %4867 = vmatpush1.msra.mxu0 0.0
        %4868 = vmatprep.subr.mxu0 0.0
        %4869 = vmatpush1.msra.mxu0 0.0
        %4870 = vmatprep.subr.mxu0 0.0
        %4871 = vmatpush1.msra.mxu0 0.0
        %4872 = vmatprep.subr.mxu0 0.0
        %4873 = vmatpush1.msra.mxu0 0.0
        %4874 = vmatprep.subr.mxu0 0.0
        %4875 = vmatpush1.msra.mxu0 0.0
        %4876 = vmatprep.subr.mxu0 0.0
        %4877 = vmatpush1.msra.mxu0 0.0
        %4878 = vmatprep.subr.mxu0 0.0
        %4879 = vmatpush1.msra.mxu0 0.0
        %4880 = vmatprep.subr.mxu0 0.0
        %4881 = vmatpush1.msra.mxu0 0.0
        %4882 = vmatprep.subr.mxu0 0.0
        %4883 = vmatpush1.msra.mxu0 0.0
        %4884 = vmatprep.subr.mxu0 0.0
        %4885 = vmatpush1.msra.mxu0 0.0
        %4886 = vmatprep.subr.mxu0 0.0
        %4887 = vmatpush1.msra.mxu0 0.0
        %4888 = vmatprep.mubr.f32.mxu0 0.0
        %4889 = vmatmul.mubr.f32.gmra.mrb[0].mxu0 %v4819
        %v4890 = vpop.f32.mrb[0].mxu0
        %v4891 = vadd.f32 0.0, %v4890
        %v4892 = vpop.f32.mrb[0].mxu0
        %v4893 = vadd.f32 0.0, %v4892
        %4894 = vmatprep.mubr.f32.mxu0 0.0
        %4895 = vmatmul.mubr.f32.gmra.mrb[0].mxu0 %v4822
        %v4896 = vpop.f32.mrb[0].mxu0
        %v4897 = vadd.f32 0.0, %v4896
        %v4898 = vpop.f32.mrb[0].mxu0
        %v4899 = vadd.f32 0.0, %v4898
        %4900 = vdwg.mxu0
        %v4901 = vadd.f32 %v4794, %v4891
        %v4902 = vadd.f32 %v4795, %v4893
        %v4903 = vadd.f32 %v4796, %v4897
        %v4904 = vadd.f32 %v4797, %v4899
        %4905 = vrot.lane.b32.xlu0 %v4188, 112
        %v4906 = vpop.permute.xlu0 %4905
        %4907 = vrot.lane.b32.xlu0 %v4190, 112
        %v4908 = vpop.permute.xlu0 %4907
        %vm4909 = vcmp.lt.s32.totalorder %v437, 112
        %v4910 = vsel %vm4909, %v4906, %v4908
        %v4911 = vsel %vm4909, %v4908, %v4906
        %v4912 = vsel %vm4805, 1, 0
        %v4913 = vsel %vm4806, 1, 0
        %vm4914 = vcmp.eq.s32.totalorder %v4912, 1
        %vm4915 = vcmp.eq.s32.totalorder %v4913, 1
        %v4916 = vsel %vm4914, %v4910, 0.0
        %v4917 = vsel %vm4915, %v4911, 0.0
        %s4918 = scalar_lea.vmem %s4, 112
        %v4919 = vld [vmem:[%s4918] sm:$0xff]
        %v4920 = vld [vmem:[%s4918 + $0x8] sm:$0xff]
        %v4922 = vsel %vm578, %v4919, 0
        %v4925 = vsel %vm578, %v4920, 0
        %4927 = vmatprep.subr.mxu0 %v4917
        %4928 = vmatpush1.msra.mxu0 %v4916
        %4929 = vmatprep.subr.mxu0 0.0
        %4930 = vmatpush1.msra.mxu0 0.0
        %4931 = vmatprep.subr.mxu0 0.0
        %4932 = vmatpush1.msra.mxu0 0.0
        %4933 = vmatprep.subr.mxu0 0.0
        %4934 = vmatpush1.msra.mxu0 0.0
        %4935 = vmatprep.subr.mxu0 0.0
        %4936 = vmatpush1.msra.mxu0 0.0
        %4937 = vmatprep.subr.mxu0 0.0
        %4938 = vmatpush1.msra.mxu0 0.0
        %4939 = vmatprep.subr.mxu0 0.0
        %4940 = vmatpush1.msra.mxu0 0.0
        %4941 = vmatprep.subr.mxu0 0.0
        %4942 = vmatpush1.msra.mxu0 0.0
        %4943 = vmatprep.subr.mxu0 0.0
        %4944 = vmatpush1.msra.mxu0 0.0
        %4945 = vmatprep.subr.mxu0 0.0
        %4946 = vmatpush1.msra.mxu0 0.0
        %4947 = vmatprep.subr.mxu0 0.0
        %4948 = vmatpush1.msra.mxu0 0.0
        %4949 = vmatprep.subr.mxu0 0.0
        %4950 = vmatpush1.msra.mxu0 0.0
        %4951 = vmatprep.subr.mxu0 0.0
        %4952 = vmatpush1.msra.mxu0 0.0
        %4953 = vmatprep.subr.mxu0 0.0
        %4954 = vmatpush1.msra.mxu0 0.0
        %4955 = vmatprep.subr.mxu0 0.0
        %4956 = vmatpush1.msra.mxu0 0.0
        %4957 = vmatprep.subr.mxu0 0.0
        %4958 = vmatpush1.msra.mxu0 0.0
        %4959 = vmatprep.subr.mxu0 0.0
        %4960 = vmatpush1.msra.mxu0 0.0
        %4961 = vmatprep.subr.mxu0 0.0
        %4962 = vmatpush1.msra.mxu0 0.0
        %4963 = vmatprep.subr.mxu0 0.0
        %4964 = vmatpush1.msra.mxu0 0.0
        %4965 = vmatprep.subr.mxu0 0.0
        %4966 = vmatpush1.msra.mxu0 0.0
        %4967 = vmatprep.subr.mxu0 0.0
        %4968 = vmatpush1.msra.mxu0 0.0
        %4969 = vmatprep.subr.mxu0 0.0
        %4970 = vmatpush1.msra.mxu0 0.0
        %4971 = vmatprep.subr.mxu0 0.0
        %4972 = vmatpush1.msra.mxu0 0.0
        %4973 = vmatprep.subr.mxu0 0.0
        %4974 = vmatpush1.msra.mxu0 0.0
        %4975 = vmatprep.subr.mxu0 0.0
        %4976 = vmatpush1.msra.mxu0 0.0
        %4977 = vmatprep.subr.mxu0 0.0
        %4978 = vmatpush1.msra.mxu0 0.0
        %4979 = vmatprep.subr.mxu0 0.0
        %4980 = vmatpush1.msra.mxu0 0.0
        %4981 = vmatprep.subr.mxu0 0.0
        %4982 = vmatpush1.msra.mxu0 0.0
        %4983 = vmatprep.subr.mxu0 0.0
        %4984 = vmatpush1.msra.mxu0 0.0
        %4985 = vmatprep.subr.mxu0 0.0
        %4986 = vmatpush1.msra.mxu0 0.0
        %4987 = vmatprep.subr.mxu0 0.0
        %4988 = vmatpush1.msra.mxu0 0.0
        %4989 = vmatprep.subr.mxu0 0.0
        %4990 = vmatpush1.msra.mxu0 0.0
        %4991 = vmatprep.mubr.f32.mxu0 0.0
        %4992 = vmatmul.mubr.f32.gmra.mrb[0].mxu0 %v4922
        %v4993 = vpop.f32.mrb[0].mxu0
        %v4994 = vadd.f32 0.0, %v4993
        %v4995 = vpop.f32.mrb[0].mxu0
        %v4996 = vadd.f32 0.0, %v4995
        %4997 = vmatprep.mubr.f32.mxu0 0.0
        %4998 = vmatmul.mubr.f32.gmra.mrb[0].mxu0 %v4925
        %v4999 = vpop.f32.mrb[0].mxu0
        %v5000 = vadd.f32 0.0, %v4999
        %v5001 = vpop.f32.mrb[0].mxu0
        %v5002 = vadd.f32 0.0, %v5001
        %5003 = vdwg.mxu0
        %v5004 = vadd.f32 %v4901, %v4994
        %v5005 = vadd.f32 %v4902, %v4996
        %v5006 = vadd.f32 %v4903, %v5000
        %v5007 = vadd.f32 %v4904, %v5002
        %5008 = vrot.lane.b32.xlu0 %v4188, 111
        %v5009 = vpop.permute.xlu0 %5008
        %5010 = vrot.lane.b32.xlu0 %v4190, 111
        %v5011 = vpop.permute.xlu0 %5010
        %vm5012 = vcmp.lt.s32.totalorder %v437, 111
        %v5013 = vsel %vm5012, %v5009, %v5011
        %v5014 = vsel %vm5012, %v5011, %v5009
        %vm5015 = vmand %vm4805, %vm4404
        %vm5016 = vmand %vm4806, %vm4405
        %v5017 = vsel %vm5015, 1, 0
        %v5018 = vsel %vm5016, 1, 0
        %vm5019 = vcmp.eq.s32.totalorder %v5017, 1
        %vm5020 = vcmp.eq.s32.totalorder %v5018, 1
        %v5021 = vsel %vm5019, %v5013, 0.0
        %v5022 = vsel %vm5020, %v5014, 0.0
        %s5023 = scalar_lea.vmem %s4, 128
        %v5024 = vld [vmem:[%s5023] sm:$0xff]
        %v5025 = vld [vmem:[%s5023 + $0x8] sm:$0xff]
        %v5027 = vsel %vm578, %v5024, 0
        %v5030 = vsel %vm578, %v5025, 0
        %5032 = vmatprep.subr.mxu0 %v5022
        %5033 = vmatpush1.msra.mxu0 %v5021
        %5034 = vmatprep.subr.mxu0 0.0
        %5035 = vmatpush1.msra.mxu0 0.0
        %5036 = vmatprep.subr.mxu0 0.0
        %5037 = vmatpush1.msra.mxu0 0.0
        %5038 = vmatprep.subr.mxu0 0.0
        %5039 = vmatpush1.msra.mxu0 0.0
        %5040 = vmatprep.subr.mxu0 0.0
        %5041 = vmatpush1.msra.mxu0 0.0
        %5042 = vmatprep.subr.mxu0 0.0
        %5043 = vmatpush1.msra.mxu0 0.0
        %5044 = vmatprep.subr.mxu0 0.0
        %5045 = vmatpush1.msra.mxu0 0.0
        %5046 = vmatprep.subr.mxu0 0.0
        %5047 = vmatpush1.msra.mxu0 0.0
        %5048 = vmatprep.subr.mxu0 0.0
        %5049 = vmatpush1.msra.mxu0 0.0
        %5050 = vmatprep.subr.mxu0 0.0
        %5051 = vmatpush1.msra.mxu0 0.0
        %5052 = vmatprep.subr.mxu0 0.0
        %5053 = vmatpush1.msra.mxu0 0.0
        %5054 = vmatprep.subr.mxu0 0.0
        %5055 = vmatpush1.msra.mxu0 0.0
        %5056 = vmatprep.subr.mxu0 0.0
        %5057 = vmatpush1.msra.mxu0 0.0
        %5058 = vmatprep.subr.mxu0 0.0
        %5059 = vmatpush1.msra.mxu0 0.0
        %5060 = vmatprep.subr.mxu0 0.0
        %5061 = vmatpush1.msra.mxu0 0.0
        %5062 = vmatprep.subr.mxu0 0.0
        %5063 = vmatpush1.msra.mxu0 0.0
        %5064 = vmatprep.subr.mxu0 0.0
        %5065 = vmatpush1.msra.mxu0 0.0
        %5066 = vmatprep.subr.mxu0 0.0
        %5067 = vmatpush1.msra.mxu0 0.0
        %5068 = vmatprep.subr.mxu0 0.0
        %5069 = vmatpush1.msra.mxu0 0.0
        %5070 = vmatprep.subr.mxu0 0.0
        %5071 = vmatpush1.msra.mxu0 0.0
        %5072 = vmatprep.subr.mxu0 0.0
        %5073 = vmatpush1.msra.mxu0 0.0
        %5074 = vmatprep.subr.mxu0 0.0
        %5075 = vmatpush1.msra.mxu0 0.0
        %5076 = vmatprep.subr.mxu0 0.0
        %5077 = vmatpush1.msra.mxu0 0.0
        %5078 = vmatprep.subr.mxu0 0.0
        %5079 = vmatpush1.msra.mxu0 0.0
        %5080 = vmatprep.subr.mxu0 0.0
        %5081 = vmatpush1.msra.mxu0 0.0
        %5082 = vmatprep.subr.mxu0 0.0
        %5083 = vmatpush1.msra.mxu0 0.0
        %5084 = vmatprep.subr.mxu0 0.0
        %5085 = vmatpush1.msra.mxu0 0.0
        %5086 = vmatprep.subr.mxu0 0.0
        %5087 = vmatpush1.msra.mxu0 0.0
        %5088 = vmatprep.subr.mxu0 0.0
        %5089 = vmatpush1.msra.mxu0 0.0
        %5090 = vmatprep.subr.mxu0 0.0
        %5091 = vmatpush1.msra.mxu0 0.0
        %5092 = vmatprep.subr.mxu0 0.0
        %5093 = vmatpush1.msra.mxu0 0.0
        %5094 = vmatprep.subr.mxu0 0.0
        %5095 = vmatpush1.msra.mxu0 0.0
        %5096 = vmatprep.mubr.f32.mxu0 0.0
        %5097 = vmatmul.mubr.f32.gmra.mrb[0].mxu0 %v5027
        %v5098 = vpop.f32.mrb[0].mxu0
        %v5099 = vadd.f32 0.0, %v5098
        %v5100 = vpop.f32.mrb[0].mxu0
        %v5101 = vadd.f32 0.0, %v5100
        %5102 = vmatprep.mubr.f32.mxu0 0.0
        %5103 = vmatmul.mubr.f32.gmra.mrb[0].mxu0 %v5030
        %v5104 = vpop.f32.mrb[0].mxu0
        %v5105 = vadd.f32 0.0, %v5104
        %v5106 = vpop.f32.mrb[0].mxu0
        %v5107 = vadd.f32 0.0, %v5106
        %5108 = vdwg.mxu0
        %v5109 = vadd.f32 %v5004, %v5099
        %v5110 = vadd.f32 %v5005, %v5101
        %v5111 = vadd.f32 %v5006, %v5105
        %v5112 = vadd.f32 %v5007, %v5107
        %v5113 = vld [vmem:[%s5] sm:$0xff]
        %v5114 = vld [vmem:[%s5 + $0x8] sm:$0xff]
        %5116 = vset.pattern.permute.xlu0 0
        %5117 = vperm.xlu0 %5116, %v5113
        %v5118 = vpop.permute.xlu0 %5117
        %5121 = vset.pattern.permute.xlu0 0
        %5122 = vperm.xlu0 %5121, %v5114
        %v5123 = vpop.permute.xlu0 %5122
        %v5125 = vadd.f32 %v5109, %v5118
        %v5126 = vadd.f32 %v5110, %v5118
        %v5127 = vadd.f32 %v5111, %v5123
        %v5128 = vadd.f32 %v5112, %v5123
        %v5129 = vmax.f32 %v5125, 0.0
        %v5130 = vmax.f32 %v5126, 0.0
        %v5131 = vmax.f32 %v5127, 0.0
        %v5132 = vmax.f32 %v5128, 0.0
        %5133 = vrot.lane.b32.xlu0 %v5129, 127
        %v5134 = vpop.permute.xlu0 %5133
        %5135 = vrot.lane.b32.xlu0 %v5131, 127
        %v5136 = vpop.permute.xlu0 %5135
        %5137 = vrot.lane.b32.xlu0 %v5130, 127
        %v5138 = vpop.permute.xlu0 %5137
        %5139 = vrot.lane.b32.xlu0 %v5132, 127
        %v5140 = vpop.permute.xlu0 %5139
        %v5141 = vsel %vm2174, %v5134, %v5138
        %v5142 = vsel %vm2174, %v5136, %v5140
        %v5143 = vsel %vm2174, %v5138, %v5134
        %v5144 = vsel %vm2174, %v5140, %v5136
        %v5145 = vmax.f32 %v5129, %v5141
        %v5146 = vmax.f32 %v5130, %v5143
        %v5147 = vmax.f32 %v5131, %v5142
        %v5148 = vmax.f32 %v5132, %v5144
        %5149 = vrot.lane.b32.xlu0 %v5145, 112
        %v5150 = vpop.permute.xlu0 %5149
        %5151 = vrot.lane.b32.xlu0 %v5147, 112
        %v5152 = vpop.permute.xlu0 %5151
        %5153 = vrot.lane.b32.xlu0 %v5146, 112
        %v5154 = vpop.permute.xlu0 %5153
        %5155 = vrot.lane.b32.xlu0 %v5148, 112
        %v5156 = vpop.permute.xlu0 %5155
        %v5157 = vsel %vm4909, %v5150, %v5154
        %v5158 = vsel %vm4909, %v5152, %v5156
        %v5159 = vsel %vm4909, %v5154, %v5150
        %v5160 = vsel %vm4909, %v5156, %v5152
        %v5161 = vmax.f32 %v5145, %v5157
        %v5162 = vmax.f32 %v5146, %v5159
        %v5163 = vmax.f32 %v5147, %v5158
        %v5164 = vmax.f32 %v5148, %v5160
        %v5165 = vld [vmem:[%s6] sm:$0xff]
        %v5166 = vld [vmem:[%s6 + $0x8] sm:$0xff]
        %v5167 = vld [vmem:[%s6 + $0x10] sm:$0xff]
        %v5168 = vld [vmem:[%s6 + $0x18] sm:$0xff]
        %v5169 = vld [vmem:[%s6 + $0x20] sm:$0xff]
        %v5170 = vld [vmem:[%s6 + $0x28] sm:$0xff]
        %v5171 = vld [vmem:[%s6 + $0x30] sm:$0xff]
        %v5172 = vld [vmem:[%s6 + $0x38] sm:$0xff]
        %v5173 = vld [vmem:[%s6 + $0x40] sm:$0xff]
        %v5174 = vld [vmem:[%s6 + $0x48] sm:$0xff]
        %v5175 = vld [vmem:[%s6 + $0x50] sm:$0xff]
        %v5176 = vld [vmem:[%s6 + $0x58] sm:$0xff]
        %v5177 = vld [vmem:[%s6 + $0x60] sm:$0xff]
        %v5178 = vld [vmem:[%s6 + $0x68] sm:$0xff]
        %v5179 = vld [vmem:[%s6 + $0x70] sm:$0xff]
        %v5180 = vld [vmem:[%s6 + $0x78] sm:$0xff]
        %v5181 = vld [vmem:[%s6 + $0x80] sm:$0xff]
        %v5182 = vld [vmem:[%s6 + $0x88] sm:$0xff]
        %v5183 = vld [vmem:[%s6 + $0x90] sm:$0xff]
        %v5184 = vld [vmem:[%s6 + $0x98] sm:$0xff]
        %v5185 = vld [vmem:[%s6 + $0xa0] sm:$0xff]
        %v5186 = vld [vmem:[%s6 + $0xa8] sm:$0xff]
        %v5187 = vld [vmem:[%s6 + $0xb0] sm:$0xff]
        %v5188 = vld [vmem:[%s6 + $0xb8] sm:$0xff]
        %v5189 = vld [vmem:[%s6 + $0xc0] sm:$0xff]
        %v5190 = vld [vmem:[%s6 + $0xc8] sm:$0xff]
        %v5191 = vld [vmem:[%s6 + $0xd0] sm:$0xff]
        %v5192 = vld [vmem:[%s6 + $0xd8] sm:$0xff]
        %v5193 = vld [vmem:[%s6 + $0xe0] sm:$0xff]
        %v5194 = vld [vmem:[%s6 + $0xe8] sm:$0xff]
        %v5195 = vld [vmem:[%s6 + $0xf0] sm:$0xff]
        %v5196 = vld [vmem:[%s6 + $0xf8] sm:$0xff]
        %5197 = vmatprep.subr.mxu0 0.0
        %5198 = vmatpush1.msra.mxu0 %v5165
        %5199 = vmatprep.subr.mxu0 0.0
        %5200 = vmatpush1.msra.mxu0 %v5166
        %5201 = vmatprep.subr.mxu0 0.0
        %5202 = vmatpush1.msra.mxu0 %v5167
        %5203 = vmatprep.subr.mxu0 0.0
        %5204 = vmatpush1.msra.mxu0 %v5168
        %5205 = vmatprep.subr.mxu0 0.0
        %5206 = vmatpush1.msra.mxu0 %v5169
        %5207 = vmatprep.subr.mxu0 0.0
        %5208 = vmatpush1.msra.mxu0 %v5170
        %5209 = vmatprep.subr.mxu0 0.0
        %5210 = vmatpush1.msra.mxu0 %v5171
        %5211 = vmatprep.subr.mxu0 0.0
        %5212 = vmatpush1.msra.mxu0 %v5172
        %5213 = vmatprep.subr.mxu0 0.0
        %5214 = vmatpush1.msra.mxu0 %v5173
        %5215 = vmatprep.subr.mxu0 0.0
        %5216 = vmatpush1.msra.mxu0 %v5174
        %5217 = vmatprep.subr.mxu0 0.0
        %5218 = vmatpush1.msra.mxu0 %v5175
        %5219 = vmatprep.subr.mxu0 0.0
        %5220 = vmatpush1.msra.mxu0 %v5176
        %5221 = vmatprep.subr.mxu0 0.0
        %5222 = vmatpush1.msra.mxu0 %v5177
        %5223 = vmatprep.subr.mxu0 0.0
        %5224 = vmatpush1.msra.mxu0 %v5178
        %5225 = vmatprep.subr.mxu0 0.0
        %5226 = vmatpush1.msra.mxu0 %v5179
        %5227 = vmatprep.subr.mxu0 0.0
        %5228 = vmatpush1.msra.mxu0 %v5180
        %5229 = vmatprep.subr.mxu0 0.0
        %5230 = vmatpush1.msra.mxu0 %v5181
        %5231 = vmatprep.subr.mxu0 0.0
        %5232 = vmatpush1.msra.mxu0 %v5182
        %5233 = vmatprep.subr.mxu0 0.0
        %5234 = vmatpush1.msra.mxu0 %v5183
        %5235 = vmatprep.subr.mxu0 0.0
        %5236 = vmatpush1.msra.mxu0 %v5184
        %5237 = vmatprep.subr.mxu0 0.0
        %5238 = vmatpush1.msra.mxu0 %v5185
        %5239 = vmatprep.subr.mxu0 0.0
        %5240 = vmatpush1.msra.mxu0 %v5186
        %5241 = vmatprep.subr.mxu0 0.0
        %5242 = vmatpush1.msra.mxu0 %v5187
        %5243 = vmatprep.subr.mxu0 0.0
        %5244 = vmatpush1.msra.mxu0 %v5188
        %5245 = vmatprep.subr.mxu0 0.0
        %5246 = vmatpush1.msra.mxu0 %v5189
        %5247 = vmatprep.subr.mxu0 0.0
        %5248 = vmatpush1.msra.mxu0 %v5190
        %5249 = vmatprep.subr.mxu0 0.0
        %5250 = vmatpush1.msra.mxu0 %v5191
        %5251 = vmatprep.subr.mxu0 0.0
        %5252 = vmatpush1.msra.mxu0 %v5192
        %5253 = vmatprep.subr.mxu0 0.0
        %5254 = vmatpush1.msra.mxu0 %v5193
        %5255 = vmatprep.subr.mxu0 0.0
        %5256 = vmatpush1.msra.mxu0 %v5194
        %5257 = vmatprep.subr.mxu0 0.0
        %5258 = vmatpush1.msra.mxu0 %v5195
        %5259 = vmatprep.subr.mxu0 0.0
        %5260 = vmatpush1.msra.mxu0 %v5196
        %5261 = vmatprep.mubr.f32.mxu0 %v5162
        %5262 = vmatmul.mubr.f32.gmra.mrb[0].mxu0 %v5161
        %v5263 = vpop.f32.mrb[0].mxu0
        %v5264 = vadd.f32 0.0, %v5263
        %v5265 = vpop.f32.mrb[0].mxu0
        %5266 = vmatprep.mubr.f32.mxu0 %v5164
        %5267 = vmatmul.mubr.f32.gmra.mrb[0].mxu0 %v5163
        %v5268 = vpop.f32.mrb[0].mxu0
        %v5269 = vadd.f32 0.0, %v5268
        %v5270 = vpop.f32.mrb[0].mxu0
        %5271 = vdwg.mxu0
        %v5272 = vld [vmem:[%s8] sm:$0x1]
        %v5273 = vld [vmem:[#allocation7] sm:$0xff]
        %v5274 = vld [vmem:[#allocation7 + $0x8] sm:$0xff]
        %v5275 = vld [vmem:[#allocation7 + $0x10] sm:$0xff]
        %v5276 = vld [vmem:[#allocation7 + $0x18] sm:$0xff]
        %v5277 = vld [vmem:[#allocation7 + $0x20] sm:$0xff]
        %v5278 = vld [vmem:[#allocation7 + $0x28] sm:$0xff]
        %v5279 = vld [vmem:[#allocation7 + $0x30] sm:$0xff]
        %v5280 = vld [vmem:[#allocation7 + $0x38] sm:$0xff]
        %vm5281 = vcmask 523264
        %v5283 = vsel %vm5281, %v5264, 0
        %5285 = vmatprep.subr.mxu0 0.0
        %5286 = vmatpush1.msra.mxu0 %v5273
        %5287 = vmatprep.subr.mxu0 0.0
        %5288 = vmatpush1.msra.mxu0 %v5274
        %5289 = vmatprep.subr.mxu0 0.0
        %5290 = vmatpush1.msra.mxu0 %v5275
        %5291 = vmatprep.subr.mxu0 0.0
        %5292 = vmatpush1.msra.mxu0 %v5276
        %5293 = vmatprep.subr.mxu0 0.0
        %5294 = vmatpush1.msra.mxu0 %v5277
        %5295 = vmatprep.subr.mxu0 0.0
        %5296 = vmatpush1.msra.mxu0 %v5278
        %5297 = vmatprep.subr.mxu0 0.0
        %5298 = vmatpush1.msra.mxu0 %v5279
        %5299 = vmatprep.subr.mxu0 0.0
        %5300 = vmatpush1.msra.mxu0 %v5280
        %5301 = vmatprep.subr.mxu0 0.0
        %5302 = vmatpush1.msra.mxu0 0.0
        %5303 = vmatprep.subr.mxu0 0.0
        %5304 = vmatpush1.msra.mxu0 0.0
        %5305 = vmatprep.subr.mxu0 0.0
        %5306 = vmatpush1.msra.mxu0 0.0
        %5307 = vmatprep.subr.mxu0 0.0
        %5308 = vmatpush1.msra.mxu0 0.0
        %5309 = vmatprep.subr.mxu0 0.0
        %5310 = vmatpush1.msra.mxu0 0.0
        %5311 = vmatprep.subr.mxu0 0.0
        %5312 = vmatpush1.msra.mxu0 0.0
        %5313 = vmatprep.subr.mxu0 0.0
        %5314 = vmatpush1.msra.mxu0 0.0
        %5315 = vmatprep.subr.mxu0 0.0
        %5316 = vmatpush1.msra.mxu0 0.0
        %5317 = vmatprep.subr.mxu0 0.0
        %5318 = vmatpush1.msra.mxu0 0.0
        %5319 = vmatprep.subr.mxu0 0.0
        %5320 = vmatpush1.msra.mxu0 0.0
        %5321 = vmatprep.subr.mxu0 0.0
        %5322 = vmatpush1.msra.mxu0 0.0
        %5323 = vmatprep.subr.mxu0 0.0
        %5324 = vmatpush1.msra.mxu0 0.0
        %5325 = vmatprep.subr.mxu0 0.0
        %5326 = vmatpush1.msra.mxu0 0.0
        %5327 = vmatprep.subr.mxu0 0.0
        %5328 = vmatpush1.msra.mxu0 0.0
        %5329 = vmatprep.subr.mxu0 0.0
        %5330 = vmatpush1.msra.mxu0 0.0
        %5331 = vmatprep.subr.mxu0 0.0
        %5332 = vmatpush1.msra.mxu0 0.0
        %5333 = vmatprep.subr.mxu0 0.0
        %5334 = vmatpush1.msra.mxu0 0.0
        %5335 = vmatprep.subr.mxu0 0.0
        %5336 = vmatpush1.msra.mxu0 0.0
        %5337 = vmatprep.subr.mxu0 0.0
        %5338 = vmatpush1.msra.mxu0 0.0
        %5339 = vmatprep.subr.mxu0 0.0
        %5340 = vmatpush1.msra.mxu0 0.0
        %5341 = vmatprep.subr.mxu0 0.0
        %5342 = vmatpush1.msra.mxu0 0.0
        %5343 = vmatprep.subr.mxu0 0.0
        %5344 = vmatpush1.msra.mxu0 0.0
        %5345 = vmatprep.subr.mxu0 0.0
        %5346 = vmatpush1.msra.mxu0 0.0
        %5347 = vmatprep.subr.mxu0 0.0
        %5348 = vmatpush1.msra.mxu0 0.0
        %5349 = vmatprep.mubr.f32.mxu0 0.0
        %5350 = vmatmul.mubr.f32.gmra.mrb[0].mxu0 %v5283
        %v5351 = vpop.f32.mrb[0].mxu0
        %v5352 = vadd.f32 0.0, %v5351
        %v5353 = vpop.f32.mrb[0].mxu0
        %5354 = vdwg.mxu0
        %v5355 = vadd.f32 %v5272, %v5352
        %s5356 = scalar_lea.vmem [#allocation7], 64
        %v5357 = vld [vmem:[%s5356] sm:$0xff]
        %v5358 = vld [vmem:[%s5356 + $0x8] sm:$0xff]
        %v5359 = vld [vmem:[%s5356 + $0x10] sm:$0xff]
        %v5360 = vld [vmem:[%s5356 + $0x18] sm:$0xff]
        %v5361 = vld [vmem:[%s5356 + $0x20] sm:$0xff]
        %v5362 = vld [vmem:[%s5356 + $0x28] sm:$0xff]
        %v5363 = vld [vmem:[%s5356 + $0x30] sm:$0xff]
        %v5364 = vld [vmem:[%s5356 + $0x38] sm:$0xff]
        %v5365 = vrot.slane %v5264, 1
        %v5366 = vsel %vm5281, %v5365, 0
        %5368 = vmatprep.subr.mxu0 0.0
        %5369 = vmatpush1.msra.mxu0 %v5357
        %5370 = vmatprep.subr.mxu0 0.0
        %5371 = vmatpush1.msra.mxu0 %v5358
        %5372 = vmatprep.subr.mxu0 0.0
        %5373 = vmatpush1.msra.mxu0 %v5359
        %5374 = vmatprep.subr.mxu0 0.0
        %5375 = vmatpush1.msra.mxu0 %v5360
        %5376 = vmatprep.subr.mxu0 0.0
        %5377 = vmatpush1.msra.mxu0 %v5361
        %5378 = vmatprep.subr.mxu0 0.0
        %5379 = vmatpush1.msra.mxu0 %v5362
        %5380 = vmatprep.subr.mxu0 0.0
        %5381 = vmatpush1.msra.mxu0 %v5363
        %5382 = vmatprep.subr.mxu0 0.0
        %5383 = vmatpush1.msra.mxu0 %v5364
        %5384 = vmatprep.subr.mxu0 0.0
        %5385 = vmatpush1.msra.mxu0 0.0
        %5386 = vmatprep.subr.mxu0 0.0
        %5387 = vmatpush1.msra.mxu0 0.0
        %5388 = vmatprep.subr.mxu0 0.0
        %5389 = vmatpush1.msra.mxu0 0.0
        %5390 = vmatprep.subr.mxu0 0.0
        %5391 = vmatpush1.msra.mxu0 0.0
        %5392 = vmatprep.subr.mxu0 0.0
        %5393 = vmatpush1.msra.mxu0 0.0
        %5394 = vmatprep.subr.mxu0 0.0
        %5395 = vmatpush1.msra.mxu0 0.0
        %5396 = vmatprep.subr.mxu0 0.0
        %5397 = vmatpush1.msra.mxu0 0.0
        %5398 = vmatprep.subr.mxu0 0.0
        %5399 = vmatpush1.msra.mxu0 0.0
        %5400 = vmatprep.subr.mxu0 0.0
        %5401 = vmatpush1.msra.mxu0 0.0
        %5402 = vmatprep.subr.mxu0 0.0
        %5403 = vmatpush1.msra.mxu0 0.0
        %5404 = vmatprep.subr.mxu0 0.0
        %5405 = vmatpush1.msra.mxu0 0.0
        %5406 = vmatprep.subr.mxu0 0.0
        %5407 = vmatpush1.msra.mxu0 0.0
        %5408 = vmatprep.subr.mxu0 0.0
        %5409 = vmatpush1.msra.mxu0 0.0
        %5410 = vmatprep.subr.mxu0 0.0
        %5411 = vmatpush1.msra.mxu0 0.0
        %5412 = vmatprep.subr.mxu0 0.0
        %5413 = vmatpush1.msra.mxu0 0.0
        %5414 = vmatprep.subr.mxu0 0.0
        %5415 = vmatpush1.msra.mxu0 0.0
        %5416 = vmatprep.subr.mxu0 0.0
        %5417 = vmatpush1.msra.mxu0 0.0
        %5418 = vmatprep.subr.mxu0 0.0
        %5419 = vmatpush1.msra.mxu0 0.0
        %5420 = vmatprep.subr.mxu0 0.0
        %5421 = vmatpush1.msra.mxu0 0.0
        %5422 = vmatprep.subr.mxu0 0.0
        %5423 = vmatpush1.msra.mxu0 0.0
        %5424 = vmatprep.subr.mxu0 0.0
        %5425 = vmatpush1.msra.mxu0 0.0
        %5426 = vmatprep.subr.mxu0 0.0
        %5427 = vmatpush1.msra.mxu0 0.0
        %5428 = vmatprep.subr.mxu0 0.0
        %5429 = vmatpush1.msra.mxu0 0.0
        %5430 = vmatprep.subr.mxu0 0.0
        %5431 = vmatpush1.msra.mxu0 0.0
        %5432 = vmatprep.mubr.f32.mxu0 0.0
        %5433 = vmatmul.mubr.f32.gmra.mrb[0].mxu0 %v5366
        %v5434 = vpop.f32.mrb[0].mxu0
        %v5435 = vadd.f32 0.0, %v5434
        %v5436 = vpop.f32.mrb[0].mxu0
        %5437 = vdwg.mxu0
        %v5438 = vadd.f32 %v5355, %v5435
        %s5439 = scalar_lea.vmem [#allocation7], 128
        %v5440 = vld [vmem:[%s5439] sm:$0xff]
        %v5441 = vld [vmem:[%s5439 + $0x8] sm:$0xff]
        %v5442 = vld [vmem:[%s5439 + $0x10] sm:$0xff]
        %v5443 = vld [vmem:[%s5439 + $0x18] sm:$0xff]
        %v5444 = vld [vmem:[%s5439 + $0x20] sm:$0xff]
        %v5445 = vld [vmem:[%s5439 + $0x28] sm:$0xff]
        %v5446 = vld [vmem:[%s5439 + $0x30] sm:$0xff]
        %v5447 = vld [vmem:[%s5439 + $0x38] sm:$0xff]
        %v5448 = vrot.slane %v5264, 2
        %v5449 = vsel %vm5281, %v5448, 0
        %5451 = vmatprep.subr.mxu0 0.0
        %5452 = vmatpush1.msra.mxu0 %v5440
        %5453 = vmatprep.subr.mxu0 0.0
        %5454 = vmatpush1.msra.mxu0 %v5441
        %5455 = vmatprep.subr.mxu0 0.0
        %5456 = vmatpush1.msra.mxu0 %v5442
        %5457 = vmatprep.subr.mxu0 0.0
        %5458 = vmatpush1.msra.mxu0 %v5443
        %5459 = vmatprep.subr.mxu0 0.0
        %5460 = vmatpush1.msra.mxu0 %v5444
        %5461 = vmatprep.subr.mxu0 0.0
        %5462 = vmatpush1.msra.mxu0 %v5445
        %5463 = vmatprep.subr.mxu0 0.0
        %5464 = vmatpush1.msra.mxu0 %v5446
        %5465 = vmatprep.subr.mxu0 0.0
        %5466 = vmatpush1.msra.mxu0 %v5447
        %5467 = vmatprep.subr.mxu0 0.0
        %5468 = vmatpush1.msra.mxu0 0.0
        %5469 = vmatprep.subr.mxu0 0.0
        %5470 = vmatpush1.msra.mxu0 0.0
        %5471 = vmatprep.subr.mxu0 0.0
        %5472 = vmatpush1.msra.mxu0 0.0
        %5473 = vmatprep.subr.mxu0 0.0
        %5474 = vmatpush1.msra.mxu0 0.0
        %5475 = vmatprep.subr.mxu0 0.0
        %5476 = vmatpush1.msra.mxu0 0.0
        %5477 = vmatprep.subr.mxu0 0.0
        %5478 = vmatpush1.msra.mxu0 0.0
        %5479 = vmatprep.subr.mxu0 0.0
        %5480 = vmatpush1.msra.mxu0 0.0
        %5481 = vmatprep.subr.mxu0 0.0
        %5482 = vmatpush1.msra.mxu0 0.0
        %5483 = vmatprep.subr.mxu0 0.0
        %5484 = vmatpush1.msra.mxu0 0.0
        %5485 = vmatprep.subr.mxu0 0.0
        %5486 = vmatpush1.msra.mxu0 0.0
        %5487 = vmatprep.subr.mxu0 0.0
        %5488 = vmatpush1.msra.mxu0 0.0
        %5489 = vmatprep.subr.mxu0 0.0
        %5490 = vmatpush1.msra.mxu0 0.0
        %5491 = vmatprep.subr.mxu0 0.0
        %5492 = vmatpush1.msra.mxu0 0.0
        %5493 = vmatprep.subr.mxu0 0.0
        %5494 = vmatpush1.msra.mxu0 0.0
        %5495 = vmatprep.subr.mxu0 0.0
        %5496 = vmatpush1.msra.mxu0 0.0
        %5497 = vmatprep.subr.mxu0 0.0
        %5498 = vmatpush1.msra.mxu0 0.0
        %5499 = vmatprep.subr.mxu0 0.0
        %5500 = vmatpush1.msra.mxu0 0.0
        %5501 = vmatprep.subr.mxu0 0.0
        %5502 = vmatpush1.msra.mxu0 0.0
        %5503 = vmatprep.subr.mxu0 0.0
        %5504 = vmatpush1.msra.mxu0 0.0
        %5505 = vmatprep.subr.mxu0 0.0
        %5506 = vmatpush1.msra.mxu0 0.0
        %5507 = vmatprep.subr.mxu0 0.0
        %5508 = vmatpush1.msra.mxu0 0.0
        %5509 = vmatprep.subr.mxu0 0.0
        %5510 = vmatpush1.msra.mxu0 0.0
        %5511 = vmatprep.subr.mxu0 0.0
        %5512 = vmatpush1.msra.mxu0 0.0
        %5513 = vmatprep.subr.mxu0 0.0
        %5514 = vmatpush1.msra.mxu0 0.0
        %5515 = vmatprep.mubr.f32.mxu0 0.0
        %5516 = vmatmul.mubr.f32.gmra.mrb[0].mxu0 %v5449
        %v5517 = vpop.f32.mrb[0].mxu0
        %v5518 = vadd.f32 0.0, %v5517
        %v5519 = vpop.f32.mrb[0].mxu0
        %5520 = vdwg.mxu0
        %v5521 = vadd.f32 %v5438, %v5518
        %s5522 = scalar_lea.vmem [#allocation7], 192
        %v5523 = vld [vmem:[%s5522] sm:$0xff]
        %v5524 = vld [vmem:[%s5522 + $0x8] sm:$0xff]
        %v5525 = vld [vmem:[%s5522 + $0x10] sm:$0xff]
        %v5526 = vld [vmem:[%s5522 + $0x18] sm:$0xff]
        %v5527 = vld [vmem:[%s5522 + $0x20] sm:$0xff]
        %v5528 = vld [vmem:[%s5522 + $0x28] sm:$0xff]
        %v5529 = vld [vmem:[%s5522 + $0x30] sm:$0xff]
        %v5530 = vld [vmem:[%s5522 + $0x38] sm:$0xff]
        %v5531 = vrot.slane %v5264, 3
        %v5532 = vsel %vm5281, %v5531, 0
        %5534 = vmatprep.subr.mxu0 0.0
        %5535 = vmatpush1.msra.mxu0 %v5523
        %5536 = vmatprep.subr.mxu0 0.0
        %5537 = vmatpush1.msra.mxu0 %v5524
        %5538 = vmatprep.subr.mxu0 0.0
        %5539 = vmatpush1.msra.mxu0 %v5525
        %5540 = vmatprep.subr.mxu0 0.0
        %5541 = vmatpush1.msra.mxu0 %v5526
        %5542 = vmatprep.subr.mxu0 0.0
        %5543 = vmatpush1.msra.mxu0 %v5527
        %5544 = vmatprep.subr.mxu0 0.0
        %5545 = vmatpush1.msra.mxu0 %v5528
        %5546 = vmatprep.subr.mxu0 0.0
        %5547 = vmatpush1.msra.mxu0 %v5529
        %5548 = vmatprep.subr.mxu0 0.0
        %5549 = vmatpush1.msra.mxu0 %v5530
        %5550 = vmatprep.subr.mxu0 0.0
        %5551 = vmatpush1.msra.mxu0 0.0
        %5552 = vmatprep.subr.mxu0 0.0
        %5553 = vmatpush1.msra.mxu0 0.0
        %5554 = vmatprep.subr.mxu0 0.0
        %5555 = vmatpush1.msra.mxu0 0.0
        %5556 = vmatprep.subr.mxu0 0.0
        %5557 = vmatpush1.msra.mxu0 0.0
        %5558 = vmatprep.subr.mxu0 0.0
        %5559 = vmatpush1.msra.mxu0 0.0
        %5560 = vmatprep.subr.mxu0 0.0
        %5561 = vmatpush1.msra.mxu0 0.0
        %5562 = vmatprep.subr.mxu0 0.0
        %5563 = vmatpush1.msra.mxu0 0.0
        %5564 = vmatprep.subr.mxu0 0.0
        %5565 = vmatpush1.msra.mxu0 0.0
        %5566 = vmatprep.subr.mxu0 0.0
        %5567 = vmatpush1.msra.mxu0 0.0
        %5568 = vmatprep.subr.mxu0 0.0
        %5569 = vmatpush1.msra.mxu0 0.0
        %5570 = vmatprep.subr.mxu0 0.0
        %5571 = vmatpush1.msra.mxu0 0.0
        %5572 = vmatprep.subr.mxu0 0.0
        %5573 = vmatpush1.msra.mxu0 0.0
        %5574 = vmatprep.subr.mxu0 0.0
        %5575 = vmatpush1.msra.mxu0 0.0
        %5576 = vmatprep.subr.mxu0 0.0
        %5577 = vmatpush1.msra.mxu0 0.0
        %5578 = vmatprep.subr.mxu0 0.0
        %5579 = vmatpush1.msra.mxu0 0.0
        %5580 = vmatprep.subr.mxu0 0.0
        %5581 = vmatpush1.msra.mxu0 0.0
        %5582 = vmatprep.subr.mxu0 0.0
        %5583 = vmatpush1.msra.mxu0 0.0
        %5584 = vmatprep.subr.mxu0 0.0
        %5585 = vmatpush1.msra.mxu0 0.0
        %5586 = vmatprep.subr.mxu0 0.0
        %5587 = vmatpush1.msra.mxu0 0.0
        %5588 = vmatprep.subr.mxu0 0.0
        %5589 = vmatpush1.msra.mxu0 0.0
        %5590 = vmatprep.subr.mxu0 0.0
        %5591 = vmatpush1.msra.mxu0 0.0
        %5592 = vmatprep.subr.mxu0 0.0
        %5593 = vmatpush1.msra.mxu0 0.0
        %5594 = vmatprep.subr.mxu0 0.0
        %5595 = vmatpush1.msra.mxu0 0.0
        %5596 = vmatprep.subr.mxu0 0.0
        %5597 = vmatpush1.msra.mxu0 0.0
        %5598 = vmatprep.mubr.f32.mxu0 0.0
        %5599 = vmatmul.mubr.f32.gmra.mrb[0].mxu0 %v5532
        %v5600 = vpop.f32.mrb[0].mxu0
        %v5601 = vadd.f32 0.0, %v5600
        %v5602 = vpop.f32.mrb[0].mxu0
        %5603 = vdwg.mxu0
        %v5604 = vadd.f32 %v5521, %v5601
        %s5605 = scalar_lea.vmem [#allocation7], 256
        %v5606 = vld [vmem:[%s5605] sm:$0xff]
        %v5607 = vld [vmem:[%s5605 + $0x8] sm:$0xff]
        %v5608 = vld [vmem:[%s5605 + $0x10] sm:$0xff]
        %v5609 = vld [vmem:[%s5605 + $0x18] sm:$0xff]
        %v5610 = vld [vmem:[%s5605 + $0x20] sm:$0xff]
        %v5611 = vld [vmem:[%s5605 + $0x28] sm:$0xff]
        %v5612 = vld [vmem:[%s5605 + $0x30] sm:$0xff]
        %v5613 = vld [vmem:[%s5605 + $0x38] sm:$0xff]
        %v5614 = vrot.slane %v5264, 4
        %v5615 = vsel %vm5281, %v5614, 0
        %5617 = vmatprep.subr.mxu0 0.0
        %5618 = vmatpush1.msra.mxu0 %v5606
        %5619 = vmatprep.subr.mxu0 0.0
        %5620 = vmatpush1.msra.mxu0 %v5607
        %5621 = vmatprep.subr.mxu0 0.0
        %5622 = vmatpush1.msra.mxu0 %v5608
        %5623 = vmatprep.subr.mxu0 0.0
        %5624 = vmatpush1.msra.mxu0 %v5609
        %5625 = vmatprep.subr.mxu0 0.0
        %5626 = vmatpush1.msra.mxu0 %v5610
        %5627 = vmatprep.subr.mxu0 0.0
        %5628 = vmatpush1.msra.mxu0 %v5611
        %5629 = vmatprep.subr.mxu0 0.0
        %5630 = vmatpush1.msra.mxu0 %v5612
        %5631 = vmatprep.subr.mxu0 0.0
        %5632 = vmatpush1.msra.mxu0 %v5613
        %5633 = vmatprep.subr.mxu0 0.0
        %5634 = vmatpush1.msra.mxu0 0.0
        %5635 = vmatprep.subr.mxu0 0.0
        %5636 = vmatpush1.msra.mxu0 0.0
        %5637 = vmatprep.subr.mxu0 0.0
        %5638 = vmatpush1.msra.mxu0 0.0
        %5639 = vmatprep.subr.mxu0 0.0
        %5640 = vmatpush1.msra.mxu0 0.0
        %5641 = vmatprep.subr.mxu0 0.0
        %5642 = vmatpush1.msra.mxu0 0.0
        %5643 = vmatprep.subr.mxu0 0.0
        %5644 = vmatpush1.msra.mxu0 0.0
        %5645 = vmatprep.subr.mxu0 0.0
        %5646 = vmatpush1.msra.mxu0 0.0
        %5647 = vmatprep.subr.mxu0 0.0
        %5648 = vmatpush1.msra.mxu0 0.0
        %5649 = vmatprep.subr.mxu0 0.0
        %5650 = vmatpush1.msra.mxu0 0.0
        %5651 = vmatprep.subr.mxu0 0.0
        %5652 = vmatpush1.msra.mxu0 0.0
        %5653 = vmatprep.subr.mxu0 0.0
        %5654 = vmatpush1.msra.mxu0 0.0
        %5655 = vmatprep.subr.mxu0 0.0
        %5656 = vmatpush1.msra.mxu0 0.0
        %5657 = vmatprep.subr.mxu0 0.0
        %5658 = vmatpush1.msra.mxu0 0.0
        %5659 = vmatprep.subr.mxu0 0.0
        %5660 = vmatpush1.msra.mxu0 0.0
        %5661 = vmatprep.subr.mxu0 0.0
        %5662 = vmatpush1.msra.mxu0 0.0
        %5663 = vmatprep.subr.mxu0 0.0
        %5664 = vmatpush1.msra.mxu0 0.0
        %5665 = vmatprep.subr.mxu0 0.0
        %5666 = vmatpush1.msra.mxu0 0.0
        %5667 = vmatprep.subr.mxu0 0.0
        %5668 = vmatpush1.msra.mxu0 0.0
        %5669 = vmatprep.subr.mxu0 0.0
        %5670 = vmatpush1.msra.mxu0 0.0
        %5671 = vmatprep.subr.mxu0 0.0
        %5672 = vmatpush1.msra.mxu0 0.0
        %5673 = vmatprep.subr.mxu0 0.0
        %5674 = vmatpush1.msra.mxu0 0.0
        %5675 = vmatprep.subr.mxu0 0.0
        %5676 = vmatpush1.msra.mxu0 0.0
        %5677 = vmatprep.subr.mxu0 0.0
        %5678 = vmatpush1.msra.mxu0 0.0
        %5679 = vmatprep.subr.mxu0 0.0
        %5680 = vmatpush1.msra.mxu0 0.0
        %5681 = vmatprep.mubr.f32.mxu0 0.0
        %5682 = vmatmul.mubr.f32.gmra.mrb[0].mxu0 %v5615
        %v5683 = vpop.f32.mrb[0].mxu0
        %v5684 = vadd.f32 0.0, %v5683
        %v5685 = vpop.f32.mrb[0].mxu0
        %5686 = vdwg.mxu0
        %v5687 = vadd.f32 %v5604, %v5684
        %s5688 = scalar_lea.vmem [#allocation7], 320
        %v5689 = vld [vmem:[%s5688] sm:$0xff]
        %v5690 = vld [vmem:[%s5688 + $0x8] sm:$0xff]
        %v5691 = vld [vmem:[%s5688 + $0x10] sm:$0xff]
        %v5692 = vld [vmem:[%s5688 + $0x18] sm:$0xff]
        %v5693 = vld [vmem:[%s5688 + $0x20] sm:$0xff]
        %v5694 = vld [vmem:[%s5688 + $0x28] sm:$0xff]
        %v5695 = vld [vmem:[%s5688 + $0x30] sm:$0xff]
        %v5696 = vld [vmem:[%s5688 + $0x38] sm:$0xff]
        %v5697 = vrot.slane %v5264, 5
        %v5698 = vsel %vm5281, %v5697, 0
        %5700 = vmatprep.subr.mxu0 0.0
        %5701 = vmatpush1.msra.mxu0 %v5689
        %5702 = vmatprep.subr.mxu0 0.0
        %5703 = vmatpush1.msra.mxu0 %v5690
        %5704 = vmatprep.subr.mxu0 0.0
        %5705 = vmatpush1.msra.mxu0 %v5691
        %5706 = vmatprep.subr.mxu0 0.0
        %5707 = vmatpush1.msra.mxu0 %v5692
        %5708 = vmatprep.subr.mxu0 0.0
        %5709 = vmatpush1.msra.mxu0 %v5693
        %5710 = vmatprep.subr.mxu0 0.0
        %5711 = vmatpush1.msra.mxu0 %v5694
        %5712 = vmatprep.subr.mxu0 0.0
        %5713 = vmatpush1.msra.mxu0 %v5695
        %5714 = vmatprep.subr.mxu0 0.0
        %5715 = vmatpush1.msra.mxu0 %v5696
        %5716 = vmatprep.subr.mxu0 0.0
        %5717 = vmatpush1.msra.mxu0 0.0
        %5718 = vmatprep.subr.mxu0 0.0
        %5719 = vmatpush1.msra.mxu0 0.0
        %5720 = vmatprep.subr.mxu0 0.0
        %5721 = vmatpush1.msra.mxu0 0.0
        %5722 = vmatprep.subr.mxu0 0.0
        %5723 = vmatpush1.msra.mxu0 0.0
        %5724 = vmatprep.subr.mxu0 0.0
        %5725 = vmatpush1.msra.mxu0 0.0
        %5726 = vmatprep.subr.mxu0 0.0
        %5727 = vmatpush1.msra.mxu0 0.0
        %5728 = vmatprep.subr.mxu0 0.0
        %5729 = vmatpush1.msra.mxu0 0.0
        %5730 = vmatprep.subr.mxu0 0.0
        %5731 = vmatpush1.msra.mxu0 0.0
        %5732 = vmatprep.subr.mxu0 0.0
        %5733 = vmatpush1.msra.mxu0 0.0
        %5734 = vmatprep.subr.mxu0 0.0
        %5735 = vmatpush1.msra.mxu0 0.0
        %5736 = vmatprep.subr.mxu0 0.0
        %5737 = vmatpush1.msra.mxu0 0.0
        %5738 = vmatprep.subr.mxu0 0.0
        %5739 = vmatpush1.msra.mxu0 0.0
        %5740 = vmatprep.subr.mxu0 0.0
        %5741 = vmatpush1.msra.mxu0 0.0
        %5742 = vmatprep.subr.mxu0 0.0
        %5743 = vmatpush1.msra.mxu0 0.0
        %5744 = vmatprep.subr.mxu0 0.0
        %5745 = vmatpush1.msra.mxu0 0.0
        %5746 = vmatprep.subr.mxu0 0.0
        %5747 = vmatpush1.msra.mxu0 0.0
        %5748 = vmatprep.subr.mxu0 0.0
        %5749 = vmatpush1.msra.mxu0 0.0
        %5750 = vmatprep.subr.mxu0 0.0
        %5751 = vmatpush1.msra.mxu0 0.0
        %5752 = vmatprep.subr.mxu0 0.0
        %5753 = vmatpush1.msra.mxu0 0.0
        %5754 = vmatprep.subr.mxu0 0.0
        %5755 = vmatpush1.msra.mxu0 0.0
        %5756 = vmatprep.subr.mxu0 0.0
        %5757 = vmatpush1.msra.mxu0 0.0
        %5758 = vmatprep.subr.mxu0 0.0
        %5759 = vmatpush1.msra.mxu0 0.0
        %5760 = vmatprep.subr.mxu0 0.0
        %5761 = vmatpush1.msra.mxu0 0.0
        %5762 = vmatprep.subr.mxu0 0.0
        %5763 = vmatpush1.msra.mxu0 0.0
        %5764 = vmatprep.mubr.f32.mxu0 0.0
        %5765 = vmatmul.mubr.f32.gmra.mrb[0].mxu0 %v5698
        %v5766 = vpop.f32.mrb[0].mxu0
        %v5767 = vadd.f32 0.0, %v5766
        %v5768 = vpop.f32.mrb[0].mxu0
        %5769 = vdwg.mxu0
        %v5770 = vadd.f32 %v5687, %v5767
        %s5771 = scalar_lea.vmem [#allocation7], 384
        %v5772 = vld [vmem:[%s5771] sm:$0xff]
        %v5773 = vld [vmem:[%s5771 + $0x8] sm:$0xff]
        %v5774 = vld [vmem:[%s5771 + $0x10] sm:$0xff]
        %v5775 = vld [vmem:[%s5771 + $0x18] sm:$0xff]
        %v5776 = vld [vmem:[%s5771 + $0x20] sm:$0xff]
        %v5777 = vld [vmem:[%s5771 + $0x28] sm:$0xff]
        %v5778 = vld [vmem:[%s5771 + $0x30] sm:$0xff]
        %v5779 = vld [vmem:[%s5771 + $0x38] sm:$0xff]
        %v5780 = vrot.slane %v5264, 6
        %v5781 = vsel %vm5281, %v5780, 0
        %5783 = vmatprep.subr.mxu0 0.0
        %5784 = vmatpush1.msra.mxu0 %v5772
        %5785 = vmatprep.subr.mxu0 0.0
        %5786 = vmatpush1.msra.mxu0 %v5773
        %5787 = vmatprep.subr.mxu0 0.0
        %5788 = vmatpush1.msra.mxu0 %v5774
        %5789 = vmatprep.subr.mxu0 0.0
        %5790 = vmatpush1.msra.mxu0 %v5775
        %5791 = vmatprep.subr.mxu0 0.0
        %5792 = vmatpush1.msra.mxu0 %v5776
        %5793 = vmatprep.subr.mxu0 0.0
        %5794 = vmatpush1.msra.mxu0 %v5777
        %5795 = vmatprep.subr.mxu0 0.0
        %5796 = vmatpush1.msra.mxu0 %v5778
        %5797 = vmatprep.subr.mxu0 0.0
        %5798 = vmatpush1.msra.mxu0 %v5779
        %5799 = vmatprep.subr.mxu0 0.0
        %5800 = vmatpush1.msra.mxu0 0.0
        %5801 = vmatprep.subr.mxu0 0.0
        %5802 = vmatpush1.msra.mxu0 0.0
        %5803 = vmatprep.subr.mxu0 0.0
        %5804 = vmatpush1.msra.mxu0 0.0
        %5805 = vmatprep.subr.mxu0 0.0
        %5806 = vmatpush1.msra.mxu0 0.0
        %5807 = vmatprep.subr.mxu0 0.0
        %5808 = vmatpush1.msra.mxu0 0.0
        %5809 = vmatprep.subr.mxu0 0.0
        %5810 = vmatpush1.msra.mxu0 0.0
        %5811 = vmatprep.subr.mxu0 0.0
        %5812 = vmatpush1.msra.mxu0 0.0
        %5813 = vmatprep.subr.mxu0 0.0
        %5814 = vmatpush1.msra.mxu0 0.0
        %5815 = vmatprep.subr.mxu0 0.0
        %5816 = vmatpush1.msra.mxu0 0.0
        %5817 = vmatprep.subr.mxu0 0.0
        %5818 = vmatpush1.msra.mxu0 0.0
        %5819 = vmatprep.subr.mxu0 0.0
        %5820 = vmatpush1.msra.mxu0 0.0
        %5821 = vmatprep.subr.mxu0 0.0
        %5822 = vmatpush1.msra.mxu0 0.0
        %5823 = vmatprep.subr.mxu0 0.0
        %5824 = vmatpush1.msra.mxu0 0.0
        %5825 = vmatprep.subr.mxu0 0.0
        %5826 = vmatpush1.msra.mxu0 0.0
        %5827 = vmatprep.subr.mxu0 0.0
        %5828 = vmatpush1.msra.mxu0 0.0
        %5829 = vmatprep.subr.mxu0 0.0
        %5830 = vmatpush1.msra.mxu0 0.0
        %5831 = vmatprep.subr.mxu0 0.0
        %5832 = vmatpush1.msra.mxu0 0.0
        %5833 = vmatprep.subr.mxu0 0.0
        %5834 = vmatpush1.msra.mxu0 0.0
        %5835 = vmatprep.subr.mxu0 0.0
        %5836 = vmatpush1.msra.mxu0 0.0
        %5837 = vmatprep.subr.mxu0 0.0
        %5838 = vmatpush1.msra.mxu0 0.0
        %5839 = vmatprep.subr.mxu0 0.0
        %5840 = vmatpush1.msra.mxu0 0.0
        %5841 = vmatprep.subr.mxu0 0.0
        %5842 = vmatpush1.msra.mxu0 0.0
        %5843 = vmatprep.subr.mxu0 0.0
        %5844 = vmatpush1.msra.mxu0 0.0
        %5845 = vmatprep.subr.mxu0 0.0
        %5846 = vmatpush1.msra.mxu0 0.0
        %5847 = vmatprep.mubr.f32.mxu0 0.0
        %5848 = vmatmul.mubr.f32.gmra.mrb[0].mxu0 %v5781
        %v5849 = vpop.f32.mrb[0].mxu0
        %v5850 = vadd.f32 0.0, %v5849
        %v5851 = vpop.f32.mrb[0].mxu0
        %5852 = vdwg.mxu0
        %v5853 = vadd.f32 %v5770, %v5850
        %s5854 = scalar_lea.vmem [#allocation7], 448
        %v5855 = vld [vmem:[%s5854] sm:$0xff]
        %v5856 = vld [vmem:[%s5854 + $0x8] sm:$0xff]
        %v5857 = vld [vmem:[%s5854 + $0x10] sm:$0xff]
        %v5858 = vld [vmem:[%s5854 + $0x18] sm:$0xff]
        %v5859 = vld [vmem:[%s5854 + $0x20] sm:$0xff]
        %v5860 = vld [vmem:[%s5854 + $0x28] sm:$0xff]
        %v5861 = vld [vmem:[%s5854 + $0x30] sm:$0xff]
        %v5862 = vld [vmem:[%s5854 + $0x38] sm:$0xff]
        %v5863 = vrot.slane %v5264, 7
        %v5864 = vsel %vm5281, %v5863, 0
        %5866 = vmatprep.subr.mxu0 0.0
        %5867 = vmatpush1.msra.mxu0 %v5855
        %5868 = vmatprep.subr.mxu0 0.0
        %5869 = vmatpush1.msra.mxu0 %v5856
        %5870 = vmatprep.subr.mxu0 0.0
        %5871 = vmatpush1.msra.mxu0 %v5857
        %5872 = vmatprep.subr.mxu0 0.0
        %5873 = vmatpush1.msra.mxu0 %v5858
        %5874 = vmatprep.subr.mxu0 0.0
        %5875 = vmatpush1.msra.mxu0 %v5859
        %5876 = vmatprep.subr.mxu0 0.0
        %5877 = vmatpush1.msra.mxu0 %v5860
        %5878 = vmatprep.subr.mxu0 0.0
        %5879 = vmatpush1.msra.mxu0 %v5861
        %5880 = vmatprep.subr.mxu0 0.0
        %5881 = vmatpush1.msra.mxu0 %v5862
        %5882 = vmatprep.subr.mxu0 0.0
        %5883 = vmatpush1.msra.mxu0 0.0
        %5884 = vmatprep.subr.mxu0 0.0
        %5885 = vmatpush1.msra.mxu0 0.0
        %5886 = vmatprep.subr.mxu0 0.0
        %5887 = vmatpush1.msra.mxu0 0.0
        %5888 = vmatprep.subr.mxu0 0.0
        %5889 = vmatpush1.msra.mxu0 0.0
        %5890 = vmatprep.subr.mxu0 0.0
        %5891 = vmatpush1.msra.mxu0 0.0
        %5892 = vmatprep.subr.mxu0 0.0
        %5893 = vmatpush1.msra.mxu0 0.0
        %5894 = vmatprep.subr.mxu0 0.0
        %5895 = vmatpush1.msra.mxu0 0.0
        %5896 = vmatprep.subr.mxu0 0.0
        %5897 = vmatpush1.msra.mxu0 0.0
        %5898 = vmatprep.subr.mxu0 0.0
        %5899 = vmatpush1.msra.mxu0 0.0
        %5900 = vmatprep.subr.mxu0 0.0
        %5901 = vmatpush1.msra.mxu0 0.0
        %5902 = vmatprep.subr.mxu0 0.0
        %5903 = vmatpush1.msra.mxu0 0.0
        %5904 = vmatprep.subr.mxu0 0.0
        %5905 = vmatpush1.msra.mxu0 0.0
        %5906 = vmatprep.subr.mxu0 0.0
        %5907 = vmatpush1.msra.mxu0 0.0
        %5908 = vmatprep.subr.mxu0 0.0
        %5909 = vmatpush1.msra.mxu0 0.0
        %5910 = vmatprep.subr.mxu0 0.0
        %5911 = vmatpush1.msra.mxu0 0.0
        %5912 = vmatprep.subr.mxu0 0.0
        %5913 = vmatpush1.msra.mxu0 0.0
        %5914 = vmatprep.subr.mxu0 0.0
        %5915 = vmatpush1.msra.mxu0 0.0
        %5916 = vmatprep.subr.mxu0 0.0
        %5917 = vmatpush1.msra.mxu0 0.0
        %5918 = vmatprep.subr.mxu0 0.0
        %5919 = vmatpush1.msra.mxu0 0.0
        %5920 = vmatprep.subr.mxu0 0.0
        %5921 = vmatpush1.msra.mxu0 0.0
        %5922 = vmatprep.subr.mxu0 0.0
        %5923 = vmatpush1.msra.mxu0 0.0
        %5924 = vmatprep.subr.mxu0 0.0
        %5925 = vmatpush1.msra.mxu0 0.0
        %5926 = vmatprep.subr.mxu0 0.0
        %5927 = vmatpush1.msra.mxu0 0.0
        %5928 = vmatprep.subr.mxu0 0.0
        %5929 = vmatpush1.msra.mxu0 0.0
        %5930 = vmatprep.mubr.f32.mxu0 0.0
        %5931 = vmatmul.mubr.f32.gmra.mrb[0].mxu0 %v5864
        %v5932 = vpop.f32.mrb[0].mxu0
        %v5933 = vadd.f32 0.0, %v5932
        %v5934 = vpop.f32.mrb[0].mxu0
        %5935 = vdwg.mxu0
        %v5936 = vadd.f32 %v5853, %v5933
        %s5937 = scalar_lea.vmem [#allocation7], 512
        %v5938 = vld [vmem:[%s5937] sm:$0xff]
        %v5939 = vld [vmem:[%s5937 + $0x8] sm:$0xff]
        %v5940 = vld [vmem:[%s5937 + $0x10] sm:$0xff]
        %v5941 = vld [vmem:[%s5937 + $0x18] sm:$0xff]
        %v5942 = vld [vmem:[%s5937 + $0x20] sm:$0xff]
        %v5943 = vld [vmem:[%s5937 + $0x28] sm:$0xff]
        %v5944 = vld [vmem:[%s5937 + $0x30] sm:$0xff]
        %v5945 = vld [vmem:[%s5937 + $0x38] sm:$0xff]
        %v5947 = vsel %vm5281, %v5269, 0
        %5949 = vmatprep.subr.mxu0 0.0
        %5950 = vmatpush1.msra.mxu0 %v5938
        %5951 = vmatprep.subr.mxu0 0.0
        %5952 = vmatpush1.msra.mxu0 %v5939
        %5953 = vmatprep.subr.mxu0 0.0
        %5954 = vmatpush1.msra.mxu0 %v5940
        %5955 = vmatprep.subr.mxu0 0.0
        %5956 = vmatpush1.msra.mxu0 %v5941
        %5957 = vmatprep.subr.mxu0 0.0
        %5958 = vmatpush1.msra.mxu0 %v5942
        %5959 = vmatprep.subr.mxu0 0.0
        %5960 = vmatpush1.msra.mxu0 %v5943
        %5961 = vmatprep.subr.mxu0 0.0
        %5962 = vmatpush1.msra.mxu0 %v5944
        %5963 = vmatprep.subr.mxu0 0.0
        %5964 = vmatpush1.msra.mxu0 %v5945
        %5965 = vmatprep.subr.mxu0 0.0
        %5966 = vmatpush1.msra.mxu0 0.0
        %5967 = vmatprep.subr.mxu0 0.0
        %5968 = vmatpush1.msra.mxu0 0.0
        %5969 = vmatprep.subr.mxu0 0.0
        %5970 = vmatpush1.msra.mxu0 0.0
        %5971 = vmatprep.subr.mxu0 0.0
        %5972 = vmatpush1.msra.mxu0 0.0
        %5973 = vmatprep.subr.mxu0 0.0
        %5974 = vmatpush1.msra.mxu0 0.0
        %5975 = vmatprep.subr.mxu0 0.0
        %5976 = vmatpush1.msra.mxu0 0.0
        %5977 = vmatprep.subr.mxu0 0.0
        %5978 = vmatpush1.msra.mxu0 0.0
        %5979 = vmatprep.subr.mxu0 0.0
        %5980 = vmatpush1.msra.mxu0 0.0
        %5981 = vmatprep.subr.mxu0 0.0
        %5982 = vmatpush1.msra.mxu0 0.0
        %5983 = vmatprep.subr.mxu0 0.0
        %5984 = vmatpush1.msra.mxu0 0.0
        %5985 = vmatprep.subr.mxu0 0.0
        %5986 = vmatpush1.msra.mxu0 0.0
        %5987 = vmatprep.subr.mxu0 0.0
        %5988 = vmatpush1.msra.mxu0 0.0
        %5989 = vmatprep.subr.mxu0 0.0
        %5990 = vmatpush1.msra.mxu0 0.0
        %5991 = vmatprep.subr.mxu0 0.0
        %5992 = vmatpush1.msra.mxu0 0.0
        %5993 = vmatprep.subr.mxu0 0.0
        %5994 = vmatpush1.msra.mxu0 0.0
        %5995 = vmatprep.subr.mxu0 0.0
        %5996 = vmatpush1.msra.mxu0 0.0
        %5997 = vmatprep.subr.mxu0 0.0
        %5998 = vmatpush1.msra.mxu0 0.0
        %5999 = vmatprep.subr.mxu0 0.0
        %6000 = vmatpush1.msra.mxu0 0.0
        %6001 = vmatprep.subr.mxu0 0.0
        %6002 = vmatpush1.msra.mxu0 0.0
        %6003 = vmatprep.subr.mxu0 0.0
        %6004 = vmatpush1.msra.mxu0 0.0
        %6005 = vmatprep.subr.mxu0 0.0
        %6006 = vmatpush1.msra.mxu0 0.0
        %6007 = vmatprep.subr.mxu0 0.0
        %6008 = vmatpush1.msra.mxu0 0.0
        %6009 = vmatprep.subr.mxu0 0.0
        %6010 = vmatpush1.msra.mxu0 0.0
        %6011 = vmatprep.subr.mxu0 0.0
        %6012 = vmatpush1.msra.mxu0 0.0
        %6013 = vmatprep.mubr.f32.mxu0 0.0
        %6014 = vmatmul.mubr.f32.gmra.mrb[0].mxu0 %v5947
        %v6015 = vpop.f32.mrb[0].mxu0
        %v6016 = vadd.f32 0.0, %v6015
        %v6017 = vpop.f32.mrb[0].mxu0
        %6018 = vdwg.mxu0
        %v6019 = vadd.f32 %v5936, %v6016
        %s6020 = scalar_lea.vmem [#allocation7], 576
        %v6021 = vld [vmem:[%s6020] sm:$0xff]
        %v6022 = vld [vmem:[%s6020 + $0x8] sm:$0xff]
        %v6023 = vld [vmem:[%s6020 + $0x10] sm:$0xff]
        %v6024 = vld [vmem:[%s6020 + $0x18] sm:$0xff]
        %v6025 = vld [vmem:[%s6020 + $0x20] sm:$0xff]
        %v6026 = vld [vmem:[%s6020 + $0x28] sm:$0xff]
        %v6027 = vld [vmem:[%s6020 + $0x30] sm:$0xff]
        %v6028 = vld [vmem:[%s6020 + $0x38] sm:$0xff]
        %v6029 = vrot.slane %v5269, 1
        %v6030 = vsel %vm5281, %v6029, 0
        %6032 = vmatprep.subr.mxu0 0.0
        %6033 = vmatpush1.msra.mxu0 %v6021
        %6034 = vmatprep.subr.mxu0 0.0
        %6035 = vmatpush1.msra.mxu0 %v6022
        %6036 = vmatprep.subr.mxu0 0.0
        %6037 = vmatpush1.msra.mxu0 %v6023
        %6038 = vmatprep.subr.mxu0 0.0
        %6039 = vmatpush1.msra.mxu0 %v6024
        %6040 = vmatprep.subr.mxu0 0.0
        %6041 = vmatpush1.msra.mxu0 %v6025
        %6042 = vmatprep.subr.mxu0 0.0
        %6043 = vmatpush1.msra.mxu0 %v6026
        %6044 = vmatprep.subr.mxu0 0.0
        %6045 = vmatpush1.msra.mxu0 %v6027
        %6046 = vmatprep.subr.mxu0 0.0
        %6047 = vmatpush1.msra.mxu0 %v6028
        %6048 = vmatprep.subr.mxu0 0.0
        %6049 = vmatpush1.msra.mxu0 0.0
        %6050 = vmatprep.subr.mxu0 0.0
        %6051 = vmatpush1.msra.mxu0 0.0
        %6052 = vmatprep.subr.mxu0 0.0
        %6053 = vmatpush1.msra.mxu0 0.0
        %6054 = vmatprep.subr.mxu0 0.0
        %6055 = vmatpush1.msra.mxu0 0.0
        %6056 = vmatprep.subr.mxu0 0.0
        %6057 = vmatpush1.msra.mxu0 0.0
        %6058 = vmatprep.subr.mxu0 0.0
        %6059 = vmatpush1.msra.mxu0 0.0
        %6060 = vmatprep.subr.mxu0 0.0
        %6061 = vmatpush1.msra.mxu0 0.0
        %6062 = vmatprep.subr.mxu0 0.0
        %6063 = vmatpush1.msra.mxu0 0.0
        %6064 = vmatprep.subr.mxu0 0.0
        %6065 = vmatpush1.msra.mxu0 0.0
        %6066 = vmatprep.subr.mxu0 0.0
        %6067 = vmatpush1.msra.mxu0 0.0
        %6068 = vmatprep.subr.mxu0 0.0
        %6069 = vmatpush1.msra.mxu0 0.0
        %6070 = vmatprep.subr.mxu0 0.0
        %6071 = vmatpush1.msra.mxu0 0.0
        %6072 = vmatprep.subr.mxu0 0.0
        %6073 = vmatpush1.msra.mxu0 0.0
        %6074 = vmatprep.subr.mxu0 0.0
        %6075 = vmatpush1.msra.mxu0 0.0
        %6076 = vmatprep.subr.mxu0 0.0
        %6077 = vmatpush1.msra.mxu0 0.0
        %6078 = vmatprep.subr.mxu0 0.0
        %6079 = vmatpush1.msra.mxu0 0.0
        %6080 = vmatprep.subr.mxu0 0.0
        %6081 = vmatpush1.msra.mxu0 0.0
        %6082 = vmatprep.subr.mxu0 0.0
        %6083 = vmatpush1.msra.mxu0 0.0
        %6084 = vmatprep.subr.mxu0 0.0
        %6085 = vmatpush1.msra.mxu0 0.0
        %6086 = vmatprep.subr.mxu0 0.0
        %6087 = vmatpush1.msra.mxu0 0.0
        %6088 = vmatprep.subr.mxu0 0.0
        %6089 = vmatpush1.msra.mxu0 0.0
        %6090 = vmatprep.subr.mxu0 0.0
        %6091 = vmatpush1.msra.mxu0 0.0
        %6092 = vmatprep.subr.mxu0 0.0
        %6093 = vmatpush1.msra.mxu0 0.0
        %6094 = vmatprep.subr.mxu0 0.0
        %6095 = vmatpush1.msra.mxu0 0.0
        %6096 = vmatprep.mubr.f32.mxu0 0.0
        %6097 = vmatmul.mubr.f32.gmra.mrb[0].mxu0 %v6030
        %v6098 = vpop.f32.mrb[0].mxu0
        %v6099 = vadd.f32 0.0, %v6098
        %v6100 = vpop.f32.mrb[0].mxu0
        %6101 = vdwg.mxu0
        %v6102 = vadd.f32 %v6019, %v6099
        %s6103 = scalar_lea.vmem [#allocation7], 640
        %v6104 = vld [vmem:[%s6103] sm:$0xff]
        %v6105 = vld [vmem:[%s6103 + $0x8] sm:$0xff]
        %v6106 = vld [vmem:[%s6103 + $0x10] sm:$0xff]
        %v6107 = vld [vmem:[%s6103 + $0x18] sm:$0xff]
        %v6108 = vld [vmem:[%s6103 + $0x20] sm:$0xff]
        %v6109 = vld [vmem:[%s6103 + $0x28] sm:$0xff]
        %v6110 = vld [vmem:[%s6103 + $0x30] sm:$0xff]
        %v6111 = vld [vmem:[%s6103 + $0x38] sm:$0xff]
        %v6112 = vrot.slane %v5269, 2
        %v6113 = vsel %vm5281, %v6112, 0
        %6115 = vmatprep.subr.mxu0 0.0
        %6116 = vmatpush1.msra.mxu0 %v6104
        %6117 = vmatprep.subr.mxu0 0.0
        %6118 = vmatpush1.msra.mxu0 %v6105
        %6119 = vmatprep.subr.mxu0 0.0
        %6120 = vmatpush1.msra.mxu0 %v6106
        %6121 = vmatprep.subr.mxu0 0.0
        %6122 = vmatpush1.msra.mxu0 %v6107
        %6123 = vmatprep.subr.mxu0 0.0
        %6124 = vmatpush1.msra.mxu0 %v6108
        %6125 = vmatprep.subr.mxu0 0.0
        %6126 = vmatpush1.msra.mxu0 %v6109
        %6127 = vmatprep.subr.mxu0 0.0
        %6128 = vmatpush1.msra.mxu0 %v6110
        %6129 = vmatprep.subr.mxu0 0.0
        %6130 = vmatpush1.msra.mxu0 %v6111
        %6131 = vmatprep.subr.mxu0 0.0
        %6132 = vmatpush1.msra.mxu0 0.0
        %6133 = vmatprep.subr.mxu0 0.0
        %6134 = vmatpush1.msra.mxu0 0.0
        %6135 = vmatprep.subr.mxu0 0.0
        %6136 = vmatpush1.msra.mxu0 0.0
        %6137 = vmatprep.subr.mxu0 0.0
        %6138 = vmatpush1.msra.mxu0 0.0
        %6139 = vmatprep.subr.mxu0 0.0
        %6140 = vmatpush1.msra.mxu0 0.0
        %6141 = vmatprep.subr.mxu0 0.0
        %6142 = vmatpush1.msra.mxu0 0.0
        %6143 = vmatprep.subr.mxu0 0.0
        %6144 = vmatpush1.msra.mxu0 0.0
        %6145 = vmatprep.subr.mxu0 0.0
        %6146 = vmatpush1.msra.mxu0 0.0
        %6147 = vmatprep.subr.mxu0 0.0
        %6148 = vmatpush1.msra.mxu0 0.0
        %6149 = vmatprep.subr.mxu0 0.0
        %6150 = vmatpush1.msra.mxu0 0.0
        %6151 = vmatprep.subr.mxu0 0.0
        %6152 = vmatpush1.msra.mxu0 0.0
        %6153 = vmatprep.subr.mxu0 0.0
        %6154 = vmatpush1.msra.mxu0 0.0
        %6155 = vmatprep.subr.mxu0 0.0
        %6156 = vmatpush1.msra.mxu0 0.0
        %6157 = vmatprep.subr.mxu0 0.0
        %6158 = vmatpush1.msra.mxu0 0.0
        %6159 = vmatprep.subr.mxu0 0.0
        %6160 = vmatpush1.msra.mxu0 0.0
        %6161 = vmatprep.subr.mxu0 0.0
        %6162 = vmatpush1.msra.mxu0 0.0
        %6163 = vmatprep.subr.mxu0 0.0
        %6164 = vmatpush1.msra.mxu0 0.0
        %6165 = vmatprep.subr.mxu0 0.0
        %6166 = vmatpush1.msra.mxu0 0.0
        %6167 = vmatprep.subr.mxu0 0.0
        %6168 = vmatpush1.msra.mxu0 0.0
        %6169 = vmatprep.subr.mxu0 0.0
        %6170 = vmatpush1.msra.mxu0 0.0
        %6171 = vmatprep.subr.mxu0 0.0
        %6172 = vmatpush1.msra.mxu0 0.0
        %6173 = vmatprep.subr.mxu0 0.0
        %6174 = vmatpush1.msra.mxu0 0.0
        %6175 = vmatprep.subr.mxu0 0.0
        %6176 = vmatpush1.msra.mxu0 0.0
        %6177 = vmatprep.subr.mxu0 0.0
        %6178 = vmatpush1.msra.mxu0 0.0
        %6179 = vmatprep.mubr.f32.mxu0 0.0
        %6180 = vmatmul.mubr.f32.gmra.mrb[0].mxu0 %v6113
        %v6181 = vpop.f32.mrb[0].mxu0
        %v6182 = vadd.f32 0.0, %v6181
        %v6183 = vpop.f32.mrb[0].mxu0
        %6184 = vdwg.mxu0
        %v6185 = vadd.f32 %v6102, %v6182
        %s6186 = scalar_lea.vmem [#allocation7], 704
        %v6187 = vld [vmem:[%s6186] sm:$0xff]
        %v6188 = vld [vmem:[%s6186 + $0x8] sm:$0xff]
        %v6189 = vld [vmem:[%s6186 + $0x10] sm:$0xff]
        %v6190 = vld [vmem:[%s6186 + $0x18] sm:$0xff]
        %v6191 = vld [vmem:[%s6186 + $0x20] sm:$0xff]
        %v6192 = vld [vmem:[%s6186 + $0x28] sm:$0xff]
        %v6193 = vld [vmem:[%s6186 + $0x30] sm:$0xff]
        %v6194 = vld [vmem:[%s6186 + $0x38] sm:$0xff]
        %v6195 = vrot.slane %v5269, 3
        %v6196 = vsel %vm5281, %v6195, 0
        %6198 = vmatprep.subr.mxu0 0.0
        %6199 = vmatpush1.msra.mxu0 %v6187
        %6200 = vmatprep.subr.mxu0 0.0
        %6201 = vmatpush1.msra.mxu0 %v6188
        %6202 = vmatprep.subr.mxu0 0.0
        %6203 = vmatpush1.msra.mxu0 %v6189
        %6204 = vmatprep.subr.mxu0 0.0
        %6205 = vmatpush1.msra.mxu0 %v6190
        %6206 = vmatprep.subr.mxu0 0.0
        %6207 = vmatpush1.msra.mxu0 %v6191
        %6208 = vmatprep.subr.mxu0 0.0
        %6209 = vmatpush1.msra.mxu0 %v6192
        %6210 = vmatprep.subr.mxu0 0.0
        %6211 = vmatpush1.msra.mxu0 %v6193
        %6212 = vmatprep.subr.mxu0 0.0
        %6213 = vmatpush1.msra.mxu0 %v6194
        %6214 = vmatprep.subr.mxu0 0.0
        %6215 = vmatpush1.msra.mxu0 0.0
        %6216 = vmatprep.subr.mxu0 0.0
        %6217 = vmatpush1.msra.mxu0 0.0
        %6218 = vmatprep.subr.mxu0 0.0
        %6219 = vmatpush1.msra.mxu0 0.0
        %6220 = vmatprep.subr.mxu0 0.0
        %6221 = vmatpush1.msra.mxu0 0.0
        %6222 = vmatprep.subr.mxu0 0.0
        %6223 = vmatpush1.msra.mxu0 0.0
        %6224 = vmatprep.subr.mxu0 0.0
        %6225 = vmatpush1.msra.mxu0 0.0
        %6226 = vmatprep.subr.mxu0 0.0
        %6227 = vmatpush1.msra.mxu0 0.0
        %6228 = vmatprep.subr.mxu0 0.0
        %6229 = vmatpush1.msra.mxu0 0.0
        %6230 = vmatprep.subr.mxu0 0.0
        %6231 = vmatpush1.msra.mxu0 0.0
        %6232 = vmatprep.subr.mxu0 0.0
        %6233 = vmatpush1.msra.mxu0 0.0
        %6234 = vmatprep.subr.mxu0 0.0
        %6235 = vmatpush1.msra.mxu0 0.0
        %6236 = vmatprep.subr.mxu0 0.0
        %6237 = vmatpush1.msra.mxu0 0.0
        %6238 = vmatprep.subr.mxu0 0.0
        %6239 = vmatpush1.msra.mxu0 0.0
        %6240 = vmatprep.subr.mxu0 0.0
        %6241 = vmatpush1.msra.mxu0 0.0
        %6242 = vmatprep.subr.mxu0 0.0
        %6243 = vmatpush1.msra.mxu0 0.0
        %6244 = vmatprep.subr.mxu0 0.0
        %6245 = vmatpush1.msra.mxu0 0.0
        %6246 = vmatprep.subr.mxu0 0.0
        %6247 = vmatpush1.msra.mxu0 0.0
        %6248 = vmatprep.subr.mxu0 0.0
        %6249 = vmatpush1.msra.mxu0 0.0
        %6250 = vmatprep.subr.mxu0 0.0
        %6251 = vmatpush1.msra.mxu0 0.0
        %6252 = vmatprep.subr.mxu0 0.0
        %6253 = vmatpush1.msra.mxu0 0.0
        %6254 = vmatprep.subr.mxu0 0.0
        %6255 = vmatpush1.msra.mxu0 0.0
        %6256 = vmatprep.subr.mxu0 0.0
        %6257 = vmatpush1.msra.mxu0 0.0
        %6258 = vmatprep.subr.mxu0 0.0
        %6259 = vmatpush1.msra.mxu0 0.0
        %6260 = vmatprep.subr.mxu0 0.0
        %6261 = vmatpush1.msra.mxu0 0.0
        %6262 = vmatprep.mubr.f32.mxu0 0.0
        %6263 = vmatmul.mubr.f32.gmra.mrb[0].mxu0 %v6196
        %v6264 = vpop.f32.mrb[0].mxu0
        %v6265 = vadd.f32 0.0, %v6264
        %v6266 = vpop.f32.mrb[0].mxu0
        %6267 = vdwg.mxu0
        %v6268 = vadd.f32 %v6185, %v6265
        %s6269 = scalar_lea.vmem [#allocation7], 768
        %v6270 = vld [vmem:[%s6269] sm:$0xff]
        %v6271 = vld [vmem:[%s6269 + $0x8] sm:$0xff]
        %v6272 = vld [vmem:[%s6269 + $0x10] sm:$0xff]
        %v6273 = vld [vmem:[%s6269 + $0x18] sm:$0xff]
        %v6274 = vld [vmem:[%s6269 + $0x20] sm:$0xff]
        %v6275 = vld [vmem:[%s6269 + $0x28] sm:$0xff]
        %v6276 = vld [vmem:[%s6269 + $0x30] sm:$0xff]
        %v6277 = vld [vmem:[%s6269 + $0x38] sm:$0xff]
        %v6278 = vrot.slane %v5269, 4
        %v6279 = vsel %vm5281, %v6278, 0
        %6281 = vmatprep.subr.mxu0 0.0
        %6282 = vmatpush1.msra.mxu0 %v6270
        %6283 = vmatprep.subr.mxu0 0.0
        %6284 = vmatpush1.msra.mxu0 %v6271
        %6285 = vmatprep.subr.mxu0 0.0
        %6286 = vmatpush1.msra.mxu0 %v6272
        %6287 = vmatprep.subr.mxu0 0.0
        %6288 = vmatpush1.msra.mxu0 %v6273
        %6289 = vmatprep.subr.mxu0 0.0
        %6290 = vmatpush1.msra.mxu0 %v6274
        %6291 = vmatprep.subr.mxu0 0.0
        %6292 = vmatpush1.msra.mxu0 %v6275
        %6293 = vmatprep.subr.mxu0 0.0
        %6294 = vmatpush1.msra.mxu0 %v6276
        %6295 = vmatprep.subr.mxu0 0.0
        %6296 = vmatpush1.msra.mxu0 %v6277
        %6297 = vmatprep.subr.mxu0 0.0
        %6298 = vmatpush1.msra.mxu0 0.0
        %6299 = vmatprep.subr.mxu0 0.0
        %6300 = vmatpush1.msra.mxu0 0.0
        %6301 = vmatprep.subr.mxu0 0.0
        %6302 = vmatpush1.msra.mxu0 0.0
        %6303 = vmatprep.subr.mxu0 0.0
        %6304 = vmatpush1.msra.mxu0 0.0
        %6305 = vmatprep.subr.mxu0 0.0
        %6306 = vmatpush1.msra.mxu0 0.0
        %6307 = vmatprep.subr.mxu0 0.0
        %6308 = vmatpush1.msra.mxu0 0.0
        %6309 = vmatprep.subr.mxu0 0.0
        %6310 = vmatpush1.msra.mxu0 0.0
        %6311 = vmatprep.subr.mxu0 0.0
        %6312 = vmatpush1.msra.mxu0 0.0
        %6313 = vmatprep.subr.mxu0 0.0
        %6314 = vmatpush1.msra.mxu0 0.0
        %6315 = vmatprep.subr.mxu0 0.0
        %6316 = vmatpush1.msra.mxu0 0.0
        %6317 = vmatprep.subr.mxu0 0.0
        %6318 = vmatpush1.msra.mxu0 0.0
        %6319 = vmatprep.subr.mxu0 0.0
        %6320 = vmatpush1.msra.mxu0 0.0
        %6321 = vmatprep.subr.mxu0 0.0
        %6322 = vmatpush1.msra.mxu0 0.0
        %6323 = vmatprep.subr.mxu0 0.0
        %6324 = vmatpush1.msra.mxu0 0.0
        %6325 = vmatprep.subr.mxu0 0.0
        %6326 = vmatpush1.msra.mxu0 0.0
        %6327 = vmatprep.subr.mxu0 0.0
        %6328 = vmatpush1.msra.mxu0 0.0
        %6329 = vmatprep.subr.mxu0 0.0
        %6330 = vmatpush1.msra.mxu0 0.0
        %6331 = vmatprep.subr.mxu0 0.0
        %6332 = vmatpush1.msra.mxu0 0.0
        %6333 = vmatprep.subr.mxu0 0.0
        %6334 = vmatpush1.msra.mxu0 0.0
        %6335 = vmatprep.subr.mxu0 0.0
        %6336 = vmatpush1.msra.mxu0 0.0
        %6337 = vmatprep.subr.mxu0 0.0
        %6338 = vmatpush1.msra.mxu0 0.0
        %6339 = vmatprep.subr.mxu0 0.0
        %6340 = vmatpush1.msra.mxu0 0.0
        %6341 = vmatprep.subr.mxu0 0.0
        %6342 = vmatpush1.msra.mxu0 0.0
        %6343 = vmatprep.subr.mxu0 0.0
        %6344 = vmatpush1.msra.mxu0 0.0
        %6345 = vmatprep.mubr.f32.mxu0 0.0
        %6346 = vmatmul.mubr.f32.gmra.mrb[0].mxu0 %v6279
        %v6347 = vpop.f32.mrb[0].mxu0
        %v6348 = vadd.f32 0.0, %v6347
        %v6349 = vpop.f32.mrb[0].mxu0
        %6350 = vdwg.mxu0
        %v6351 = vadd.f32 %v6268, %v6348
        %s6352 = scalar_lea.vmem [#allocation7], 832
        %v6353 = vld [vmem:[%s6352] sm:$0xff]
        %v6354 = vld [vmem:[%s6352 + $0x8] sm:$0xff]
        %v6355 = vld [vmem:[%s6352 + $0x10] sm:$0xff]
        %v6356 = vld [vmem:[%s6352 + $0x18] sm:$0xff]
        %v6357 = vld [vmem:[%s6352 + $0x20] sm:$0xff]
        %v6358 = vld [vmem:[%s6352 + $0x28] sm:$0xff]
        %v6359 = vld [vmem:[%s6352 + $0x30] sm:$0xff]
        %v6360 = vld [vmem:[%s6352 + $0x38] sm:$0xff]
        %v6361 = vrot.slane %v5269, 5
        %v6362 = vsel %vm5281, %v6361, 0
        %6364 = vmatprep.subr.mxu0 0.0
        %6365 = vmatpush1.msra.mxu0 %v6353
        %6366 = vmatprep.subr.mxu0 0.0
        %6367 = vmatpush1.msra.mxu0 %v6354
        %6368 = vmatprep.subr.mxu0 0.0
        %6369 = vmatpush1.msra.mxu0 %v6355
        %6370 = vmatprep.subr.mxu0 0.0
        %6371 = vmatpush1.msra.mxu0 %v6356
        %6372 = vmatprep.subr.mxu0 0.0
        %6373 = vmatpush1.msra.mxu0 %v6357
        %6374 = vmatprep.subr.mxu0 0.0
        %6375 = vmatpush1.msra.mxu0 %v6358
        %6376 = vmatprep.subr.mxu0 0.0
        %6377 = vmatpush1.msra.mxu0 %v6359
        %6378 = vmatprep.subr.mxu0 0.0
        %6379 = vmatpush1.msra.mxu0 %v6360
        %6380 = vmatprep.subr.mxu0 0.0
        %6381 = vmatpush1.msra.mxu0 0.0
        %6382 = vmatprep.subr.mxu0 0.0
        %6383 = vmatpush1.msra.mxu0 0.0
        %6384 = vmatprep.subr.mxu0 0.0
        %6385 = vmatpush1.msra.mxu0 0.0
        %6386 = vmatprep.subr.mxu0 0.0
        %6387 = vmatpush1.msra.mxu0 0.0
        %6388 = vmatprep.subr.mxu0 0.0
        %6389 = vmatpush1.msra.mxu0 0.0
        %6390 = vmatprep.subr.mxu0 0.0
        %6391 = vmatpush1.msra.mxu0 0.0
        %6392 = vmatprep.subr.mxu0 0.0
        %6393 = vmatpush1.msra.mxu0 0.0
        %6394 = vmatprep.subr.mxu0 0.0
        %6395 = vmatpush1.msra.mxu0 0.0
        %6396 = vmatprep.subr.mxu0 0.0
        %6397 = vmatpush1.msra.mxu0 0.0
        %6398 = vmatprep.subr.mxu0 0.0
        %6399 = vmatpush1.msra.mxu0 0.0
        %6400 = vmatprep.subr.mxu0 0.0
        %6401 = vmatpush1.msra.mxu0 0.0
        %6402 = vmatprep.subr.mxu0 0.0
        %6403 = vmatpush1.msra.mxu0 0.0
        %6404 = vmatprep.subr.mxu0 0.0
        %6405 = vmatpush1.msra.mxu0 0.0
        %6406 = vmatprep.subr.mxu0 0.0
        %6407 = vmatpush1.msra.mxu0 0.0
        %6408 = vmatprep.subr.mxu0 0.0
        %6409 = vmatpush1.msra.mxu0 0.0
        %6410 = vmatprep.subr.mxu0 0.0
        %6411 = vmatpush1.msra.mxu0 0.0
        %6412 = vmatprep.subr.mxu0 0.0
        %6413 = vmatpush1.msra.mxu0 0.0
        %6414 = vmatprep.subr.mxu0 0.0
        %6415 = vmatpush1.msra.mxu0 0.0
        %6416 = vmatprep.subr.mxu0 0.0
        %6417 = vmatpush1.msra.mxu0 0.0
        %6418 = vmatprep.subr.mxu0 0.0
        %6419 = vmatpush1.msra.mxu0 0.0
        %6420 = vmatprep.subr.mxu0 0.0
        %6421 = vmatpush1.msra.mxu0 0.0
        %6422 = vmatprep.subr.mxu0 0.0
        %6423 = vmatpush1.msra.mxu0 0.0
        %6424 = vmatprep.subr.mxu0 0.0
        %6425 = vmatpush1.msra.mxu0 0.0
        %6426 = vmatprep.subr.mxu0 0.0
        %6427 = vmatpush1.msra.mxu0 0.0
        %6428 = vmatprep.mubr.f32.mxu0 0.0
        %6429 = vmatmul.mubr.f32.gmra.mrb[0].mxu0 %v6362
        %v6430 = vpop.f32.mrb[0].mxu0
        %v6431 = vadd.f32 0.0, %v6430
        %v6432 = vpop.f32.mrb[0].mxu0
        %6433 = vdwg.mxu0
        %v6434 = vadd.f32 %v6351, %v6431
        %s6435 = scalar_lea.vmem [#allocation7], 896
        %v6436 = vld [vmem:[%s6435] sm:$0xff]
        %v6437 = vld [vmem:[%s6435 + $0x8] sm:$0xff]
        %v6438 = vld [vmem:[%s6435 + $0x10] sm:$0xff]
        %v6439 = vld [vmem:[%s6435 + $0x18] sm:$0xff]
        %v6440 = vld [vmem:[%s6435 + $0x20] sm:$0xff]
        %v6441 = vld [vmem:[%s6435 + $0x28] sm:$0xff]
        %v6442 = vld [vmem:[%s6435 + $0x30] sm:$0xff]
        %v6443 = vld [vmem:[%s6435 + $0x38] sm:$0xff]
        %v6444 = vrot.slane %v5269, 6
        %v6445 = vsel %vm5281, %v6444, 0
        %6447 = vmatprep.subr.mxu0 0.0
        %6448 = vmatpush1.msra.mxu0 %v6436
        %6449 = vmatprep.subr.mxu0 0.0
        %6450 = vmatpush1.msra.mxu0 %v6437
        %6451 = vmatprep.subr.mxu0 0.0
        %6452 = vmatpush1.msra.mxu0 %v6438
        %6453 = vmatprep.subr.mxu0 0.0
        %6454 = vmatpush1.msra.mxu0 %v6439
        %6455 = vmatprep.subr.mxu0 0.0
        %6456 = vmatpush1.msra.mxu0 %v6440
        %6457 = vmatprep.subr.mxu0 0.0
        %6458 = vmatpush1.msra.mxu0 %v6441
        %6459 = vmatprep.subr.mxu0 0.0
        %6460 = vmatpush1.msra.mxu0 %v6442
        %6461 = vmatprep.subr.mxu0 0.0
        %6462 = vmatpush1.msra.mxu0 %v6443
        %6463 = vmatprep.subr.mxu0 0.0
        %6464 = vmatpush1.msra.mxu0 0.0
        %6465 = vmatprep.subr.mxu0 0.0
        %6466 = vmatpush1.msra.mxu0 0.0
        %6467 = vmatprep.subr.mxu0 0.0
        %6468 = vmatpush1.msra.mxu0 0.0
        %6469 = vmatprep.subr.mxu0 0.0
        %6470 = vmatpush1.msra.mxu0 0.0
        %6471 = vmatprep.subr.mxu0 0.0
        %6472 = vmatpush1.msra.mxu0 0.0
        %6473 = vmatprep.subr.mxu0 0.0
        %6474 = vmatpush1.msra.mxu0 0.0
        %6475 = vmatprep.subr.mxu0 0.0
        %6476 = vmatpush1.msra.mxu0 0.0
        %6477 = vmatprep.subr.mxu0 0.0
        %6478 = vmatpush1.msra.mxu0 0.0
        %6479 = vmatprep.subr.mxu0 0.0
        %6480 = vmatpush1.msra.mxu0 0.0
        %6481 = vmatprep.subr.mxu0 0.0
        %6482 = vmatpush1.msra.mxu0 0.0
        %6483 = vmatprep.subr.mxu0 0.0
        %6484 = vmatpush1.msra.mxu0 0.0
        %6485 = vmatprep.subr.mxu0 0.0
        %6486 = vmatpush1.msra.mxu0 0.0
        %6487 = vmatprep.subr.mxu0 0.0
        %6488 = vmatpush1.msra.mxu0 0.0
        %6489 = vmatprep.subr.mxu0 0.0
        %6490 = vmatpush1.msra.mxu0 0.0
        %6491 = vmatprep.subr.mxu0 0.0
        %6492 = vmatpush1.msra.mxu0 0.0
        %6493 = vmatprep.subr.mxu0 0.0
        %6494 = vmatpush1.msra.mxu0 0.0
        %6495 = vmatprep.subr.mxu0 0.0
        %6496 = vmatpush1.msra.mxu0 0.0
        %6497 = vmatprep.subr.mxu0 0.0
        %6498 = vmatpush1.msra.mxu0 0.0
        %6499 = vmatprep.subr.mxu0 0.0
        %6500 = vmatpush1.msra.mxu0 0.0
        %6501 = vmatprep.subr.mxu0 0.0
        %6502 = vmatpush1.msra.mxu0 0.0
        %6503 = vmatprep.subr.mxu0 0.0
        %6504 = vmatpush1.msra.mxu0 0.0
        %6505 = vmatprep.subr.mxu0 0.0
        %6506 = vmatpush1.msra.mxu0 0.0
        %6507 = vmatprep.subr.mxu0 0.0
        %6508 = vmatpush1.msra.mxu0 0.0
        %6509 = vmatprep.subr.mxu0 0.0
        %6510 = vmatpush1.msra.mxu0 0.0
        %6511 = vmatprep.mubr.f32.mxu0 0.0
        %6512 = vmatmul.mubr.f32.gmra.mrb[0].mxu0 %v6445
        %v6513 = vpop.f32.mrb[0].mxu0
        %v6514 = vadd.f32 0.0, %v6513
        %v6515 = vpop.f32.mrb[0].mxu0
        %6516 = vdwg.mxu0
        %v6517 = vadd.f32 %v6434, %v6514
        %s6518 = scalar_lea.vmem [#allocation7], 960
        %v6519 = vld [vmem:[%s6518] sm:$0xff]
        %v6520 = vld [vmem:[%s6518 + $0x8] sm:$0xff]
        %v6521 = vld [vmem:[%s6518 + $0x10] sm:$0xff]
        %v6522 = vld [vmem:[%s6518 + $0x18] sm:$0xff]
        %v6523 = vld [vmem:[%s6518 + $0x20] sm:$0xff]
        %v6524 = vld [vmem:[%s6518 + $0x28] sm:$0xff]
        %v6525 = vld [vmem:[%s6518 + $0x30] sm:$0xff]
        %v6526 = vld [vmem:[%s6518 + $0x38] sm:$0xff]
        %v6527 = vrot.slane %v5269, 7
        %v6528 = vsel %vm5281, %v6527, 0
        %6530 = vmatprep.subr.mxu0 0.0
        %6531 = vmatpush1.msra.mxu0 %v6519
        %6532 = vmatprep.subr.mxu0 0.0
        %6533 = vmatpush1.msra.mxu0 %v6520
        %6534 = vmatprep.subr.mxu0 0.0
        %6535 = vmatpush1.msra.mxu0 %v6521
        %6536 = vmatprep.subr.mxu0 0.0
        %6537 = vmatpush1.msra.mxu0 %v6522
        %6538 = vmatprep.subr.mxu0 0.0
        %6539 = vmatpush1.msra.mxu0 %v6523
        %6540 = vmatprep.subr.mxu0 0.0
        %6541 = vmatpush1.msra.mxu0 %v6524
        %6542 = vmatprep.subr.mxu0 0.0
        %6543 = vmatpush1.msra.mxu0 %v6525
        %6544 = vmatprep.subr.mxu0 0.0
        %6545 = vmatpush1.msra.mxu0 %v6526
        %6546 = vmatprep.subr.mxu0 0.0
        %6547 = vmatpush1.msra.mxu0 0.0
        %6548 = vmatprep.subr.mxu0 0.0
        %6549 = vmatpush1.msra.mxu0 0.0
        %6550 = vmatprep.subr.mxu0 0.0
        %6551 = vmatpush1.msra.mxu0 0.0
        %6552 = vmatprep.subr.mxu0 0.0
        %6553 = vmatpush1.msra.mxu0 0.0
        %6554 = vmatprep.subr.mxu0 0.0
        %6555 = vmatpush1.msra.mxu0 0.0
        %6556 = vmatprep.subr.mxu0 0.0
        %6557 = vmatpush1.msra.mxu0 0.0
        %6558 = vmatprep.subr.mxu0 0.0
        %6559 = vmatpush1.msra.mxu0 0.0
        %6560 = vmatprep.subr.mxu0 0.0
        %6561 = vmatpush1.msra.mxu0 0.0
        %6562 = vmatprep.subr.mxu0 0.0
        %6563 = vmatpush1.msra.mxu0 0.0
        %6564 = vmatprep.subr.mxu0 0.0
        %6565 = vmatpush1.msra.mxu0 0.0
        %6566 = vmatprep.subr.mxu0 0.0
        %6567 = vmatpush1.msra.mxu0 0.0
        %6568 = vmatprep.subr.mxu0 0.0
        %6569 = vmatpush1.msra.mxu0 0.0
        %6570 = vmatprep.subr.mxu0 0.0
        %6571 = vmatpush1.msra.mxu0 0.0
        %6572 = vmatprep.subr.mxu0 0.0
        %6573 = vmatpush1.msra.mxu0 0.0
        %6574 = vmatprep.subr.mxu0 0.0
        %6575 = vmatpush1.msra.mxu0 0.0
        %6576 = vmatprep.subr.mxu0 0.0
        %6577 = vmatpush1.msra.mxu0 0.0
        %6578 = vmatprep.subr.mxu0 0.0
        %6579 = vmatpush1.msra.mxu0 0.0
        %6580 = vmatprep.subr.mxu0 0.0
        %6581 = vmatpush1.msra.mxu0 0.0
        %6582 = vmatprep.subr.mxu0 0.0
        %6583 = vmatpush1.msra.mxu0 0.0
        %6584 = vmatprep.subr.mxu0 0.0
        %6585 = vmatpush1.msra.mxu0 0.0
        %6586 = vmatprep.subr.mxu0 0.0
        %6587 = vmatpush1.msra.mxu0 0.0
        %6588 = vmatprep.subr.mxu0 0.0
        %6589 = vmatpush1.msra.mxu0 0.0
        %6590 = vmatprep.subr.mxu0 0.0
        %6591 = vmatpush1.msra.mxu0 0.0
        %6592 = vmatprep.subr.mxu0 0.0
        %6593 = vmatpush1.msra.mxu0 0.0
        %6594 = vmatprep.mubr.f32.mxu0 0.0
        %6595 = vmatmul.mubr.f32.gmra.mrb[0].mxu0 %v6528
        %v6596 = vpop.f32.mrb[0].mxu0
        %v6597 = vadd.f32 0.0, %v6596
        %v6598 = vpop.f32.mrb[0].mxu0
        %6599 = vdwg.mxu0
        %v6600 = vadd.f32 %v6517, %v6597
        %v6601 = vmax.f32 %v6600, 0.0
        %v6602 = vld [vmem:[%s9] sm:$0xff]
        %v6603 = vld [vmem:[%s9 + $0x8] sm:$0xff]
        %v6604 = vld [vmem:[%s9 + $0x10] sm:$0xff]
        %v6605 = vld [vmem:[%s9 + $0x18] sm:$0xff]
        %v6606 = vld [vmem:[%s10] sm:$0x1]
        %vm6607 = vcmask 261120
        %v6609 = vsel %vm6607, %v6601, 0
        %6611 = vmatprep.subr.mxu0 0.0
        %6612 = vmatpush1.msra.mxu0 %v6602
        %6613 = vmatprep.subr.mxu0 0.0
        %6614 = vmatpush1.msra.mxu0 %v6603
        %6615 = vmatprep.subr.mxu0 0.0
        %6616 = vmatpush1.msra.mxu0 %v6604
        %6617 = vmatprep.subr.mxu0 0.0
        %6618 = vmatpush1.msra.mxu0 %v6605
        %6619 = vmatprep.subr.mxu0 0.0
        %6620 = vmatpush1.msra.mxu0 0.0
        %6621 = vmatprep.subr.mxu0 0.0
        %6622 = vmatpush1.msra.mxu0 0.0
        %6623 = vmatprep.subr.mxu0 0.0
        %6624 = vmatpush1.msra.mxu0 0.0
        %6625 = vmatprep.subr.mxu0 0.0
        %6626 = vmatpush1.msra.mxu0 0.0
        %6627 = vmatprep.subr.mxu0 0.0
        %6628 = vmatpush1.msra.mxu0 0.0
        %6629 = vmatprep.subr.mxu0 0.0
        %6630 = vmatpush1.msra.mxu0 0.0
        %6631 = vmatprep.subr.mxu0 0.0
        %6632 = vmatpush1.msra.mxu0 0.0
        %6633 = vmatprep.subr.mxu0 0.0
        %6634 = vmatpush1.msra.mxu0 0.0
        %6635 = vmatprep.subr.mxu0 0.0
        %6636 = vmatpush1.msra.mxu0 0.0
        %6637 = vmatprep.subr.mxu0 0.0
        %6638 = vmatpush1.msra.mxu0 0.0
        %6639 = vmatprep.subr.mxu0 0.0
        %6640 = vmatpush1.msra.mxu0 0.0
        %6641 = vmatprep.subr.mxu0 0.0
        %6642 = vmatpush1.msra.mxu0 0.0
        %6643 = vmatprep.subr.mxu0 0.0
        %6644 = vmatpush1.msra.mxu0 0.0
        %6645 = vmatprep.subr.mxu0 0.0
        %6646 = vmatpush1.msra.mxu0 0.0
        %6647 = vmatprep.subr.mxu0 0.0
        %6648 = vmatpush1.msra.mxu0 0.0
        %6649 = vmatprep.subr.mxu0 0.0
        %6650 = vmatpush1.msra.mxu0 0.0
        %6651 = vmatprep.subr.mxu0 0.0
        %6652 = vmatpush1.msra.mxu0 0.0
        %6653 = vmatprep.subr.mxu0 0.0
        %6654 = vmatpush1.msra.mxu0 0.0
        %6655 = vmatprep.subr.mxu0 0.0
        %6656 = vmatpush1.msra.mxu0 0.0
        %6657 = vmatprep.subr.mxu0 0.0
        %6658 = vmatpush1.msra.mxu0 0.0
        %6659 = vmatprep.subr.mxu0 0.0
        %6660 = vmatpush1.msra.mxu0 0.0
        %6661 = vmatprep.subr.mxu0 0.0
        %6662 = vmatpush1.msra.mxu0 0.0
        %6663 = vmatprep.subr.mxu0 0.0
        %6664 = vmatpush1.msra.mxu0 0.0
        %6665 = vmatprep.subr.mxu0 0.0
        %6666 = vmatpush1.msra.mxu0 0.0
        %6667 = vmatprep.subr.mxu0 0.0
        %6668 = vmatpush1.msra.mxu0 0.0
        %6669 = vmatprep.subr.mxu0 0.0
        %6670 = vmatpush1.msra.mxu0 0.0
        %6671 = vmatprep.subr.mxu0 0.0
        %6672 = vmatpush1.msra.mxu0 0.0
        %6673 = vmatprep.subr.mxu0 0.0
        %6674 = vmatpush1.msra.mxu0 0.0
        %6675 = vmatprep.mubr.f32.mxu0 0.0
        %6676 = vmatmul.mubr.f32.gmra.mrb[0].mxu0 %v6609
        %v6677 = vpop.f32.mrb[0].mxu0
        %v6678 = vadd.f32 %v6606, %v6677
        %v6679 = vpop.f32.mrb[0].mxu0
        %6680 = vdwg.mxu0
        %vm6681 = vcmask 73728
        %6682 = vst.msk [vmem:[%s422] sm:$0x1] %vm6681, %v6678
        %s6683 = sand.u32 %s271, 1
        %s6684 = scalar_lea.sflag [#allocation4], %s6683
        %s6685 = sand.u32 %s271, 1
        %s6686 = scalar_lea.vmem [#allocation8], %s6685
        // Predicated region
        $region77: #{_lambda_.1} parent=63 // pred_check
          %p6687 = pneg %p281
        $region78: #{_lambda_.1} parent=63 // pred_check_branch
          %6689 = sbr.rel (%p6687) target = $region80
        $region79: #{_lambda_.1} parent=63 // pred_region
          %s6691 = ssub.s32 16, 16
          %6692 = vsyncadd %s6684, %s6691
          %s6693 = smul.addr %s27, 16
          %s6694 = scalar_lea.hbm %s11, %s6693
          %s6696 = sshll.u32 %s6686, 4
          %s6697 = int_to_ptr.vmem [resolvable:$true] %s6696
          %6699 = dma.vmem_to_hbm [thread:$0]  %s6697, 16, %s6694, %s6684
        $region80: #{_lambda_.1} parent=63 // pred_fallthru
          _
      $region64: #{_lambda_.1} parent=5 // pred_fallthru
        _
      %p6700 = scmp.le.s32.totalorder 2, %s22
      // Predicated region
      $region81: #{_lambda_.1} parent=5 // pred_check
        %p6701 = pneg %p6700
      $region82: #{_lambda_.1} parent=5 // pred_check_branch
        %6703 = sbr.rel (%p6701) target = $region84
      $region83: #{_lambda_.1} parent=5 // pred_region
        %s6704 = ssub.s32 %s22, 2
        // Predicated region
        $region85: #{_lambda_.1} parent=83 // pred_check
          %p6705 = pneg %p287
        $region86: #{_lambda_.1} parent=83 // pred_check_branch
          %6707 = sbr.rel (%p6705) target = $region88
        $region87: #{_lambda_.1} parent=83 // pred_region
          %s6708 = sand.u32 %s272, 1
          %s6709 = scalar_lea.sflag [#allocation4], %s6708
          %s6710 = sand.u32 %s272, 1
          %s6711 = scalar_lea.vmem [#allocation8], %s6710
          %6712 = dma.done %s6709, 16
        $region88: #{_lambda_.1} parent=83 // pred_fallthru
          _
      $region84: #{_lambda_.1} parent=5 // pred_fallthru
        _
    $region6: #{_lambda_.1} parent=1 // loop_footer
      %s26 = sadd.s32 1, %s22
    $region7: #{_lambda_.1} parent=1 // loop_footer_branch
      %21 = sbr.rel target = $region3
    $region8: #{_lambda_.1} parent=1 // loop_exit
      _
    %6713 = vsyncpa [#allocation3], 1
    %s6714 = scalar_lea.sflag [#allocation3], 1
    %6715 = vsyncpa %s6714, 1
    %6716 = vsyncpa [#allocation6], 1
    %6717 = vsyncpa [#allocation4], 1
    %s6718 = scalar_lea.sflag [#allocation4], 1
    %6719 = vsyncpa %s6718, 1

</llo_original>
